<compile_context>
chip_gen: v7x
topology: tpu7x:2x2x1
jax: 0.10.0
libtpu: 0.0.40
codegen_flags: <defaults>
</compile_context>

<pallas_src>
import jax
import jax.numpy as jnp
from jax import lax
from jax.experimental import pallas as pl
from jax.experimental.pallas import tpu as pltpu

S = 8          # sequence length
E = 32         # embed_size
H = 300        # hidden_size (forced to 300 by the hardcoded context)
H2 = H // 2    # per-direction LSTM hidden size (150)
L = 31         # label_size
VOCAB = 50     # synthetic vocab size

HP = 256       # per-gate / per-direction lane padding (H2=150 -> 2 vregs)
HP2 = 2 * HP   # merged fwd+bwd state width (512)
G8 = 8 * HP    # merged gate width, both directions interleaved (2048)
HC = 304       # context / wa1_c row padding (300 -> multiple of 8)

# wih+x slab layout (rows, G8 lanes)
R_X = 2 * E                 # x_cat rows start after the (2E) W_ih rows
WIHX_ROWS = R_X + 16        # 80 rows (x in rows 64:72, rest zero)

# Row offsets inside the packed "small weights" slab (R_TOT, E); multiples of 16.
R_A1H = 0                   # wa1 rows multiplying [h_fwd | h_bwd]      (HP2, E)
R_A1C = R_A1H + HP2         # wa1 rows multiplying the context          (HC, E)
R_A2 = R_A1C + HC           # wa2                                       (E, E)
R_A3 = R_A2 + E             # wa3 (lane 0 valid)                        (E, E)
R_LH = R_A3 + E             # classifier rows for [h_fwd | h_bwd]       (HP2, E)
R_TOT = R_LH + HP2          # 1392


def lstmnet_kernel(wihx_ref, whh_hbm, ws_ref, vec_ref, y_ref,
                   whh_vmem, whh_sem, xpre_scr, h_scr):
    f32, bf16 = jnp.float32, jnp.bfloat16

    # Kick off the ~1 MiB W_hh HBM->VMEM DMA; it is hidden behind the input projection.
    whh_cp = pltpu.make_async_copy(whh_hbm, whh_vmem, whh_sem)
    whh_cp.start()

    # Hoisted input projection for BOTH directions and all gates in one matmul.
    # Row t of x_cat is [x_t | x_{S-1-t}]; columns of wih are interleaved
    # [i_f|i_b|f_f|f_b|o_f|o_b|g_f|g_b], so row t of xpre is the full merged preactivation.
    wih = wihx_ref[0:R_X, :]                        # (2E, G8) bf16
    x_cat = wihx_ref[R_X:R_X + S, 0:R_X]            # (S, 2E)  bf16
    b_all = vec_ref[0:1, :]                         # (1, G8)  f32 merged biases
    xpre_scr[...] = jnp.dot(x_cat, wih, preferred_element_type=f32) + b_all

    whh_cp.wait()
    whh = whh_vmem[...]                             # (HP2, G8) bf16, block-diag fwd/bwd

    # Fully-unrolled 8-step recurrence; fwd & bwd run fused: one (1,512)@(512,2048)
    # dot, one contiguous sigmoid (i,f,o) and one tanh (g) per step, all offsets static.
    h = jnp.zeros((1, HP2), f32)
    c = jnp.zeros((1, HP2), f32)
    for t in range(S):
        tb = S - 1 - t
        pre = xpre_scr[pl.ds(t, 1), :] + jnp.dot(h.astype(bf16), whh,
                                                 preferred_element_type=f32)  # (1, G8)
        sg = jax.nn.sigmoid(pre[:, 0:6 * HP])       # i_f,i_b,f_f,f_b,o_f,o_b
        gg = jnp.tanh(pre[:, 6 * HP:G8])            # g_f,g_b
        i_g = sg[:, 0:HP2]
        f_g = sg[:, HP2:2 * HP2]
        o_g = sg[:, 2 * HP2:3 * HP2]
        c = f_g * c + i_g * gg
        h = o_g * jnp.tanh(c)                       # padding lanes stay exactly 0
        h_scr[pl.ds(t, 1), 0:HP] = h[:, 0:HP]       # forward half  -> row t
        h_scr[pl.ds(tb, 1), HP:HP2] = h[:, HP:HP2]  # backward half -> row S-1-t

    h_all = h_scr[...]                              # (S, HP2) f32, [fwd | bwd] lanes

    # ---- attention MLP: Linear(2H->E) -> tanh -> Linear(E->E) -> tanh -> Linear(E->1)
    wa1_h = ws_ref[R_A1H:R_A1H + HP2, :]
    wa1_c = ws_ref[R_A1C:R_A1C + HC, :]
    wa2 = ws_ref[R_A2:R_A2 + E, :]
    wa3 = ws_ref[R_A3:R_A3 + E, :]                  # lane 0 valid
    wl_h = ws_ref[R_LH:R_LH + HP2, :]               # lanes < L valid

    ctx = vec_ref[1:2, 0:HC].astype(bf16)
    ba1 = vec_ref[2:3, 0:E]
    ba2 = vec_ref[3:4, 0:E]
    ba3 = vec_ref[4:5, 0:1]
    bl = vec_ref[5:6, 0:L]

    h_all_bf = h_all.astype(bf16)
    ctx_proj = jnp.dot(ctx, wa1_c, preferred_element_type=f32)             # (1, E)
    a1 = jnp.tanh(jnp.dot(h_all_bf, wa1_h, preferred_element_type=f32)
                  + ctx_proj + ba1)                                        # (S, E)
    a2 = jnp.tanh(jnp.dot(a1.astype(bf16), wa2, preferred_element_type=f32) + ba2)
    score = jnp.dot(a2.astype(bf16), wa3, preferred_element_type=f32)[:, 0:1] + ba3

    # attn = LogSoftmax over the sequence dim (exactly as the PyTorch module)
    m = jnp.max(score, axis=0, keepdims=True)
    lse = m + jnp.log(jnp.sum(jnp.exp(score - m), axis=0, keepdims=True))
    attn = score - lse                                                     # (S, 1) log-probs

    # h_t_ = sum_S(h_t * attn); both directions weighted/reduced in one pass
    h_w = jnp.sum(h_all * attn, axis=0, keepdims=True)                     # (1, HP2)

    # classifier + LogSoftmax(dim=1)
    logits = jnp.dot(h_w.astype(bf16), wl_h,
                     preferred_element_type=f32)[:, 0:L] + bl              # (1, L)
    m2 = jnp.max(logits, axis=1, keepdims=True)
    lse2 = m2 + jnp.log(jnp.sum(jnp.exp(logits - m2), axis=1, keepdims=True))
    y_ref[...] = logits - lse2


# ---------------- one-time static weight packing (hoisted out of per-call path) ----------------
def pack_params(p):
    f32, bf16 = jnp.float32, jnp.bfloat16
    torch_gate = (0, 1, 3, 2)   # torch gate order [i,f,g,o] -> kernel order [i,f,o,g]

    wih = jnp.zeros((2 * E, G8), f32)
    whh = jnp.zeros((HP2, G8), f32)
    b_all = jnp.zeros((G8,), f32)
    for d, sfx in enumerate(("f", "b")):                 # d=0 fwd, d=1 bwd
        w_ih, w_hh = p[f"w_ih_{sfx}"], p[f"w_hh_{sfx}"]
        bias = p[f"b_ih_{sfx}"] + p[f"b_hh_{sfx}"]
        for gk, gs in enumerate(torch_gate):
            col = (2 * gk + d) * HP                      # interleaved gate lane block
            wih = wih.at[d * E:(d + 1) * E, col:col + H2].set(
                w_ih[gs * H2:(gs + 1) * H2].T)
            whh = whh.at[d * HP:d * HP + H2, col:col + H2].set(
                w_hh[gs * H2:(gs + 1) * H2].T)           # block-diagonal placement
            b_all = b_all.at[col:col + H2].set(bias[gs * H2:(gs + 1) * H2])

    wihx_base = jnp.zeros((WIHX_ROWS, G8), f32).at[0:2 * E, :].set(wih)

    # attention MLP / classifier small-weights slab (R_TOT, E)
    wa1_t = p["wa1"].T                                   # (2H, E): rows 0:H -> h_t, H:2H -> ctx
    wl_t = p["wl"].T                                     # (H, L)
    ws = jnp.zeros((R_TOT, E), f32)
    ws = ws.at[R_A1H:R_A1H + H2, :].set(wa1_t[0:H2])
    ws = ws.at[R_A1H + HP:R_A1H + HP + H2, :].set(wa1_t[H2:H])
    ws = ws.at[R_A1C:R_A1C + H, :].set(wa1_t[H:2 * H])
    ws = ws.at[R_A2:R_A2 + E, :].set(p["wa2"].T)
    ws = ws.at[R_A3:R_A3 + E, 0:1].set(p["wa3"].T)
    ws = ws.at[R_LH:R_LH + H2, 0:L].set(wl_t[0:H2])
    ws = ws.at[R_LH + HP:R_LH + HP + H2, 0:L].set(wl_t[H2:H])

    # row-vector slab (f32): merged LSTM bias, context slot (row 1, per-call), MLP/cls biases
    vec = jnp.zeros((8, G8), f32)
    vec = vec.at[0, :].set(b_all)
    vec = vec.at[2, 0:E].set(p["ba1"])
    vec = vec.at[3, 0:E].set(p["ba2"])
    vec = vec.at[4, 0:1].set(p["ba3"])
    vec = vec.at[5, 0:L].set(p["bl"])

    return {"embedding": p["embedding"],
            "wihx_base": wihx_base.astype(bf16),
            "whh": whh.astype(bf16),
            "w_small": ws.astype(bf16),
            "vec_base": vec}


def init_params(key):
    ks = jax.random.split(key, 20)
    rnd = lambda k, shape, s=0.1: jax.random.normal(k, shape, jnp.float32) * s
    p = {}
    p["embedding"] = rnd(ks[0], (VOCAB, E), 1.0)
    # PyTorch nn.LSTM param shapes (per direction): W_ih (4*H2, E), W_hh (4*H2, H2), b (4*H2,)
    p["w_ih_f"] = rnd(ks[1], (4 * H2, E));  p["w_hh_f"] = rnd(ks[2], (4 * H2, H2))
    p["b_ih_f"] = rnd(ks[3], (4 * H2,));    p["b_hh_f"] = rnd(ks[4], (4 * H2,))
    p["w_ih_b"] = rnd(ks[5], (4 * H2, E));  p["w_hh_b"] = rnd(ks[6], (4 * H2, H2))
    p["b_ih_b"] = rnd(ks[7], (4 * H2,));    p["b_hh_b"] = rnd(ks[8], (4 * H2,))
    # attn Sequential: Linear(2H, E), Linear(E, E), Linear(E, 1)
    p["wa1"] = rnd(ks[9], (E, 2 * H));      p["ba1"] = rnd(ks[10], (E,))
    p["wa2"] = rnd(ks[11], (E, E));         p["ba2"] = rnd(ks[12], (E,))
    p["wa3"] = rnd(ks[13], (1, E));         p["ba3"] = rnd(ks[14], (1,))
    # classifier: Linear(H, L)
    p["wl"] = rnd(ks[15], (L, H));          p["bl"] = rnd(ks[16], (L,))
    return p


@jax.jit
def lstmnet_forward(packed, token_ids, context):
    bf16 = jnp.bfloat16
    x = packed["embedding"][token_ids]                                 # (S, E) gather in glue
    x_cat = jnp.concatenate([x, x[::-1]], axis=1).astype(bf16)         # (S, 2E): [x_t | x_{S-1-t}]
    wihx = lax.dynamic_update_slice(packed["wihx_base"], x_cat, (R_X, 0))
    vec = lax.dynamic_update_slice(packed["vec_base"],
                                   context.astype(jnp.float32), (1, 0))

    vmem = pl.BlockSpec(memory_space=pltpu.MemorySpace.VMEM)
    y = pl.pallas_call(
        lstmnet_kernel,
        out_shape=jax.ShapeDtypeStruct((1, L), jnp.float32),
        in_specs=[vmem,
                  pl.BlockSpec(memory_space=pl.ANY),   # W_hh: manual DMA, overlapped
                  vmem, vmem],
        out_specs=vmem,
        scratch_shapes=[
            pltpu.VMEM((HP2, G8), jnp.bfloat16),       # W_hh landing buffer
            pltpu.SemaphoreType.DMA,                   # its DMA semaphore
            pltpu.VMEM((S, G8), jnp.float32),          # hoisted input projection
            pltpu.VMEM((S, HP2), jnp.float32),         # packed bi-directional hidden states
        ],
    )(wihx, packed["whh"], packed["w_small"], vec)

    predict_label = jnp.argmax(y, axis=1)              # eval branch of the module
    return y, predict_label
    # TODO(synk): v7x second-TensorCore (batch grid) and MXU weight-resident
    # (matmul_push_rhs) variants not implemented; single-example latency path only.


def reference_forward(params, token_ids, context, matmul_dtype=jnp.float32):
    """Pure-JAX reference. matmul_dtype=bfloat16 mirrors the kernel's bf16 MXU-operand
    cast (f32 accumulation); float32 gives the original module's full-f32 numerics."""
    f32 = jnp.float32

    def mm(a, b):
        return jnp.dot(a.astype(matmul_dtype), b.astype(matmul_dtype),
                       preferred_element_type=f32)

    x = params["embedding"][token_ids]

    def run_dir(wih, whh, bih, bhh, xs):
        def step(carry, x_t):
            h, c = carry
            pre = (mm(x_t[None, :], wih.T) + mm(h[None, :], whh.T))[0] + bih + bhh
            i = jax.nn.sigmoid(pre[0:H2]); f = jax.nn.sigmoid(pre[H2:2 * H2])
            g = jnp.tanh(pre[2 * H2:3 * H2]); o = jax.nn.sigmoid(pre[3 * H2:4 * H2])
            c = f * c + i * g
            h = o * jnp.tanh(c)
            return (h, c), h
        (_, _), hs = lax.scan(step, (jnp.zeros(H2, f32), jnp.zeros(H2, f32)), xs)
        return hs

    hf = run_dir(params["w_ih_f"], params["w_hh_f"], params["b_ih_f"], params["b_hh_f"], x)
    hb = run_dir(params["w_ih_b"], params["w_hh_b"], params["b_ih_b"], params["b_hh_b"], x[::-1])[::-1]
    h_t = jnp.concatenate([hf, hb], axis=1)                            # (S, H)
    cat = jnp.concatenate([h_t, jnp.broadcast_to(context, (S, H))], axis=1)
    a1 = jnp.tanh(mm(cat, params["wa1"].T) + params["ba1"])
    a2 = jnp.tanh(mm(a1, params["wa2"].T) + params["ba2"])
    score = mm(a2, params["wa3"].T) + params["ba3"]                    # (S, 1)
    attn = jax.nn.log_softmax(score[:, 0])[:, None]
    h_ = jnp.sum(h_t * attn, axis=0, keepdims=True)
    y = jax.nn.log_softmax(mm(h_, params["wl"].T) + params["bl"], axis=1)
    return y


if __name__ == "__main__":
    key = jax.random.PRNGKey(0)
    k_param, k_ids, k_ctx = jax.random.split(key, 3)
    params = init_params(k_param)
    token_ids = jax.random.randint(k_ids, (S,), 0, VOCAB)
    # deterministic stand-in for torch.rand([1, 1, 300])
    context = jax.random.uniform(k_ctx, (1, H), jnp.float32)

    packed = pack_params(params)   # one-time static packing (hoisted out of the jitted path)
    y, predict = lstmnet_forward(packed, token_ids, context)
    jax.block_until_ready((y, predict))

    assert y.shape == (1, L) and predict.shape == (1,)
    # Tight check vs a reference that mirrors the kernel's bf16-operand / f32-accum matmuls.
    y_ref_bf = reference_forward(params, token_ids, context, matmul_dtype=jnp.bfloat16)
    assert jnp.allclose(y, y_ref_bf, atol=2e-3, rtol=2e-3), "mismatch vs bf16-matmul reference"
    # Loose sanity bound vs the pure-f32 reference (bf16 MXU-operand rounding only).
    y_ref_f32 = reference_forward(params, token_ids, context, matmul_dtype=jnp.float32)
    assert jnp.allclose(y, y_ref_f32, atol=5e-2, rtol=5e-2), "drifted too far from f32 reference"
    # TODO(synk): training branch (NLLLoss) not implemented; eval path only.
    print("KERNEL_OK")
</pallas_src>

<mosaic_0001>
module attributes {stable_mosaic.version = 11 : i64} {
  func.func @lstmnet_kernel(%arg0: memref<80x2048xbf16, #tpu.memory_space<vmem>>, %arg1: memref<512x2048xbf16, #tpu.memory_space<any>>, %arg2: memref<1392x32xbf16, #tpu.memory_space<vmem>>, %arg3: memref<8x2048xf32, #tpu.memory_space<vmem>>, %arg4: memref<1x31xf32, #tpu.memory_space<vmem>>, %arg5: memref<512x2048xbf16, #tpu.memory_space<vmem>>, %arg6: memref<!tpu.dma_semaphore, #tpu.memory_space<semaphore_mem>>, %arg7: memref<8x2048xf32, #tpu.memory_space<vmem>>, %arg8: memref<8x512xf32, #tpu.memory_space<vmem>>) attributes {dimension_semantics = [], scalar_prefetch = 0 : i64, scratch_operands = 4 : i64, tpu.core_type = #tpu.core_type<tc>} {
    tpu.enqueue_dma source(%arg1 : memref<512x2048xbf16, #tpu.memory_space<any>>) target(%arg5 : memref<512x2048xbf16, #tpu.memory_space<vmem>>) target_semaphore(%arg6 : memref<!tpu.dma_semaphore, #tpu.memory_space<semaphore_mem>>)
    %c0 = arith.constant 0 : index
    %c0_0 = arith.constant 0 : index
    %0 = vector.load %arg0[%c0, %c0_0] : memref<80x2048xbf16, #tpu.memory_space<vmem>>, vector<64x2048xbf16>
    %c64 = arith.constant 64 : index
    %c0_1 = arith.constant 0 : index
    %1 = vector.load %arg0[%c64, %c0_1] : memref<80x2048xbf16, #tpu.memory_space<vmem>>, vector<8x64xbf16>
    %c0_2 = arith.constant 0 : index
    %c0_3 = arith.constant 0 : index
    %2 = vector.load %arg3[%c0_2, %c0_3] : memref<8x2048xf32, #tpu.memory_space<vmem>>, vector<1x2048xf32>
    %cst = arith.constant dense<0.000000e+00> : vector<8x2048xf32>
    %3 = tpu.matmul %1, %0, %cst {dimension_numbers = #tpu.dot_dimension_numbers<[1], [0], [0], [1], [0, 0, 1, 1], [], []>} : vector<8x64xbf16>, vector<64x2048xbf16>, vector<8x2048xf32> -> vector<8x2048xf32>
    %4 = vector.broadcast %2 : vector<1x2048xf32> to vector<8x2048xf32>
    %5 = arith.addf %3, %4 : vector<8x2048xf32>
    %c0_4 = arith.constant 0 : index
    %c0_5 = arith.constant 0 : index
    %6 = vector.load %arg7[%c0_4, %c0_5] : memref<8x2048xf32, #tpu.memory_space<vmem>>, vector<8x2048xf32>
    tpu.vector_store %arg7[%c0_4, %c0_5], %5 {strides = array<i32>} : memref<8x2048xf32, #tpu.memory_space<vmem>>, vector<8x2048xf32>,
    tpu.wait_dma2 semaphore(%arg6 : memref<!tpu.dma_semaphore, #tpu.memory_space<semaphore_mem>>) src(%arg1 : memref<512x2048xbf16, #tpu.memory_space<any>>) dst(%arg5 : memref<512x2048xbf16, #tpu.memory_space<vmem>>)
    %c0_6 = arith.constant 0 : index
    %c0_7 = arith.constant 0 : index
    %7 = vector.load %arg5[%c0_6, %c0_7] : memref<512x2048xbf16, #tpu.memory_space<vmem>>, vector<512x2048xbf16>
    %cst_8 = arith.constant 0.000000e+00 : f32
    %8 = vector.broadcast %cst_8 : f32 to vector<1x512xf32>
    %cst_9 = arith.constant 0.000000e+00 : f32
    %9 = vector.broadcast %cst_9 : f32 to vector<1x512xf32>
    %c0_10 = arith.constant 0 : index
    %c0_11 = arith.constant 0 : index
    %10 = vector.load %arg7[%c0_10, %c0_11] : memref<8x2048xf32, #tpu.memory_space<vmem>>, vector<1x2048xf32>
    %11 = arith.truncf %8 : vector<1x512xf32> to vector<1x512xbf16>
    %cst_12 = arith.constant dense<0.000000e+00> : vector<1x2048xf32>
    %12 = tpu.matmul %11, %7, %cst_12 {dimension_numbers = #tpu.dot_dimension_numbers<[1], [0], [0], [1], [0, 0, 1, 1], [], []>} : vector<1x512xbf16>, vector<512x2048xbf16>, vector<1x2048xf32> -> vector<1x2048xf32>
    %13 = arith.addf %10, %12 : vector<1x2048xf32>
    %14 = vector.extract_strided_slice %13 {offsets = [0, 0], sizes = [1, 1536], strides = [1, 1]} : vector<1x2048xf32> to vector<1x1536xf32>
    %15 = arith.negf %14 : vector<1x1536xf32>
    %16 = math.exp %15 : vector<1x1536xf32>
    %cst_13 = arith.constant 1.000000e+00 : f32
    %17 = vector.broadcast %cst_13 : f32 to vector<1x1536xf32>
    %18 = arith.addf %17, %16 : vector<1x1536xf32>
    %19 = arith.divf %17, %18 : vector<1x1536xf32>
    %20 = vector.extract_strided_slice %13 {offsets = [0, 1536], sizes = [1, 512], strides = [1, 1]} : vector<1x2048xf32> to vector<1x512xf32>
    %21 = math.tanh %20 : vector<1x512xf32>
    %22 = vector.extract_strided_slice %19 {offsets = [0, 0], sizes = [1, 512], strides = [1, 1]} : vector<1x1536xf32> to vector<1x512xf32>
    %23 = vector.extract_strided_slice %19 {offsets = [0, 512], sizes = [1, 512], strides = [1, 1]} : vector<1x1536xf32> to vector<1x512xf32>
    %24 = vector.extract_strided_slice %19 {offsets = [0, 1024], sizes = [1, 512], strides = [1, 1]} : vector<1x1536xf32> to vector<1x512xf32>
    %25 = arith.mulf %23, %9 : vector<1x512xf32>
    %26 = arith.mulf %22, %21 : vector<1x512xf32>
    %27 = arith.addf %25, %26 : vector<1x512xf32>
    %28 = math.tanh %27 : vector<1x512xf32>
    %29 = arith.mulf %24, %28 : vector<1x512xf32>
    %30 = vector.extract_strided_slice %29 {offsets = [0, 0], sizes = [1, 256], strides = [1, 1]} : vector<1x512xf32> to vector<1x256xf32>
    %c0_14 = arith.constant 0 : index
    %c0_15 = arith.constant 0 : index
    %31 = vector.load %arg8[%c0_14, %c0_15] : memref<8x512xf32, #tpu.memory_space<vmem>>, vector<1x256xf32>
    tpu.vector_store %arg8[%c0_14, %c0_15], %30 {strides = array<i32>} : memref<8x512xf32, #tpu.memory_space<vmem>>, vector<1x256xf32>,
    %32 = vector.extract_strided_slice %29 {offsets = [0, 256], sizes = [1, 256], strides = [1, 1]} : vector<1x512xf32> to vector<1x256xf32>
    %c7 = arith.constant 7 : index
    %c256 = arith.constant 256 : index
    %33 = vector.load %arg8[%c7, %c256] : memref<8x512xf32, #tpu.memory_space<vmem>>, vector<1x256xf32>
    tpu.vector_store %arg8[%c7, %c256], %32 {strides = array<i32>} : memref<8x512xf32, #tpu.memory_space<vmem>>, vector<1x256xf32>,
    %c1 = arith.constant 1 : index
    %c0_16 = arith.constant 0 : index
    %34 = vector.load %arg7[%c1, %c0_16] : memref<8x2048xf32, #tpu.memory_space<vmem>>, vector<1x2048xf32>
    %35 = arith.truncf %29 : vector<1x512xf32> to vector<1x512xbf16>
    %cst_17 = arith.constant dense<0.000000e+00> : vector<1x2048xf32>
    %36 = tpu.matmul %35, %7, %cst_17 {dimension_numbers = #tpu.dot_dimension_numbers<[1], [0], [0], [1], [0, 0, 1, 1], [], []>} : vector<1x512xbf16>, vector<512x2048xbf16>, vector<1x2048xf32> -> vector<1x2048xf32>
    %37 = arith.addf %34, %36 : vector<1x2048xf32>
    %38 = vector.extract_strided_slice %37 {offsets = [0, 0], sizes = [1, 1536], strides = [1, 1]} : vector<1x2048xf32> to vector<1x1536xf32>
    %39 = arith.negf %38 : vector<1x1536xf32>
    %40 = math.exp %39 : vector<1x1536xf32>
    %cst_18 = arith.constant 1.000000e+00 : f32
    %41 = vector.broadcast %cst_18 : f32 to vector<1x1536xf32>
    %42 = arith.addf %41, %40 : vector<1x1536xf32>
    %43 = arith.divf %41, %42 : vector<1x1536xf32>
    %44 = vector.extract_strided_slice %37 {offsets = [0, 1536], sizes = [1, 512], strides = [1, 1]} : vector<1x2048xf32> to vector<1x512xf32>
    %45 = math.tanh %44 : vector<1x512xf32>
    %46 = vector.extract_strided_slice %43 {offsets = [0, 0], sizes = [1, 512], strides = [1, 1]} : vector<1x1536xf32> to vector<1x512xf32>
    %47 = vector.extract_strided_slice %43 {offsets = [0, 512], sizes = [1, 512], strides = [1, 1]} : vector<1x1536xf32> to vector<1x512xf32>
    %48 = vector.extract_strided_slice %43 {offsets = [0, 1024], sizes = [1, 512], strides = [1, 1]} : vector<1x1536xf32> to vector<1x512xf32>
    %49 = arith.mulf %47, %27 : vector<1x512xf32>
    %50 = arith.mulf %46, %45 : vector<1x512xf32>
    %51 = arith.addf %49, %50 : vector<1x512xf32>
    %52 = math.tanh %51 : vector<1x512xf32>
    %53 = arith.mulf %48, %52 : vector<1x512xf32>
    %54 = vector.extract_strided_slice %53 {offsets = [0, 0], sizes = [1, 256], strides = [1, 1]} : vector<1x512xf32> to vector<1x256xf32>
    %c1_19 = arith.constant 1 : index
    %c0_20 = arith.constant 0 : index
    %55 = vector.load %arg8[%c1_19, %c0_20] : memref<8x512xf32, #tpu.memory_space<vmem>>, vector<1x256xf32>
    tpu.vector_store %arg8[%c1_19, %c0_20], %54 {strides = array<i32>} : memref<8x512xf32, #tpu.memory_space<vmem>>, vector<1x256xf32>,
    %56 = vector.extract_strided_slice %53 {offsets = [0, 256], sizes = [1, 256], strides = [1, 1]} : vector<1x512xf32> to vector<1x256xf32>
    %c6 = arith.constant 6 : index
    %c256_21 = arith.constant 256 : index
    %57 = vector.load %arg8[%c6, %c256_21] : memref<8x512xf32, #tpu.memory_space<vmem>>, vector<1x256xf32>
    tpu.vector_store %arg8[%c6, %c256_21], %56 {strides = array<i32>} : memref<8x512xf32, #tpu.memory_space<vmem>>, vector<1x256xf32>,
    %c2 = arith.constant 2 : index
    %c0_22 = arith.constant 0 : index
    %58 = vector.load %arg7[%c2, %c0_22] : memref<8x2048xf32, #tpu.memory_space<vmem>>, vector<1x2048xf32>
    %59 = arith.truncf %53 : vector<1x512xf32> to vector<1x512xbf16>
    %cst_23 = arith.constant dense<0.000000e+00> : vector<1x2048xf32>
    %60 = tpu.matmul %59, %7, %cst_23 {dimension_numbers = #tpu.dot_dimension_numbers<[1], [0], [0], [1], [0, 0, 1, 1], [], []>} : vector<1x512xbf16>, vector<512x2048xbf16>, vector<1x2048xf32> -> vector<1x2048xf32>
    %61 = arith.addf %58, %60 : vector<1x2048xf32>
    %62 = vector.extract_strided_slice %61 {offsets = [0, 0], sizes = [1, 1536], strides = [1, 1]} : vector<1x2048xf32> to vector<1x1536xf32>
    %63 = arith.negf %62 : vector<1x1536xf32>
    %64 = math.exp %63 : vector<1x1536xf32>
    %cst_24 = arith.constant 1.000000e+00 : f32
    %65 = vector.broadcast %cst_24 : f32 to vector<1x1536xf32>
    %66 = arith.addf %65, %64 : vector<1x1536xf32>
    %67 = arith.divf %65, %66 : vector<1x1536xf32>
    %68 = vector.extract_strided_slice %61 {offsets = [0, 1536], sizes = [1, 512], strides = [1, 1]} : vector<1x2048xf32> to vector<1x512xf32>
    %69 = math.tanh %68 : vector<1x512xf32>
    %70 = vector.extract_strided_slice %67 {offsets = [0, 0], sizes = [1, 512], strides = [1, 1]} : vector<1x1536xf32> to vector<1x512xf32>
    %71 = vector.extract_strided_slice %67 {offsets = [0, 512], sizes = [1, 512], strides = [1, 1]} : vector<1x1536xf32> to vector<1x512xf32>
    %72 = vector.extract_strided_slice %67 {offsets = [0, 1024], sizes = [1, 512], strides = [1, 1]} : vector<1x1536xf32> to vector<1x512xf32>
    %73 = arith.mulf %71, %51 : vector<1x512xf32>
    %74 = arith.mulf %70, %69 : vector<1x512xf32>
    %75 = arith.addf %73, %74 : vector<1x512xf32>
    %76 = math.tanh %75 : vector<1x512xf32>
    %77 = arith.mulf %72, %76 : vector<1x512xf32>
    %78 = vector.extract_strided_slice %77 {offsets = [0, 0], sizes = [1, 256], strides = [1, 1]} : vector<1x512xf32> to vector<1x256xf32>
    %c2_25 = arith.constant 2 : index
    %c0_26 = arith.constant 0 : index
    %79 = vector.load %arg8[%c2_25, %c0_26] : memref<8x512xf32, #tpu.memory_space<vmem>>, vector<1x256xf32>
    tpu.vector_store %arg8[%c2_25, %c0_26], %78 {strides = array<i32>} : memref<8x512xf32, #tpu.memory_space<vmem>>, vector<1x256xf32>,
    %80 = vector.extract_strided_slice %77 {offsets = [0, 256], sizes = [1, 256], strides = [1, 1]} : vector<1x512xf32> to vector<1x256xf32>
    %c5 = arith.constant 5 : index
    %c256_27 = arith.constant 256 : index
    %81 = vector.load %arg8[%c5, %c256_27] : memref<8x512xf32, #tpu.memory_space<vmem>>, vector<1x256xf32>
    tpu.vector_store %arg8[%c5, %c256_27], %80 {strides = array<i32>} : memref<8x512xf32, #tpu.memory_space<vmem>>, vector<1x256xf32>,
    %c3 = arith.constant 3 : index
    %c0_28 = arith.constant 0 : index
    %82 = vector.load %arg7[%c3, %c0_28] : memref<8x2048xf32, #tpu.memory_space<vmem>>, vector<1x2048xf32>
    %83 = arith.truncf %77 : vector<1x512xf32> to vector<1x512xbf16>
    %cst_29 = arith.constant dense<0.000000e+00> : vector<1x2048xf32>
    %84 = tpu.matmul %83, %7, %cst_29 {dimension_numbers = #tpu.dot_dimension_numbers<[1], [0], [0], [1], [0, 0, 1, 1], [], []>} : vector<1x512xbf16>, vector<512x2048xbf16>, vector<1x2048xf32> -> vector<1x2048xf32>
    %85 = arith.addf %82, %84 : vector<1x2048xf32>
    %86 = vector.extract_strided_slice %85 {offsets = [0, 0], sizes = [1, 1536], strides = [1, 1]} : vector<1x2048xf32> to vector<1x1536xf32>
    %87 = arith.negf %86 : vector<1x1536xf32>
    %88 = math.exp %87 : vector<1x1536xf32>
    %cst_30 = arith.constant 1.000000e+00 : f32
    %89 = vector.broadcast %cst_30 : f32 to vector<1x1536xf32>
    %90 = arith.addf %89, %88 : vector<1x1536xf32>
    %91 = arith.divf %89, %90 : vector<1x1536xf32>
    %92 = vector.extract_strided_slice %85 {offsets = [0, 1536], sizes = [1, 512], strides = [1, 1]} : vector<1x2048xf32> to vector<1x512xf32>
    %93 = math.tanh %92 : vector<1x512xf32>
    %94 = vector.extract_strided_slice %91 {offsets = [0, 0], sizes = [1, 512], strides = [1, 1]} : vector<1x1536xf32> to vector<1x512xf32>
    %95 = vector.extract_strided_slice %91 {offsets = [0, 512], sizes = [1, 512], strides = [1, 1]} : vector<1x1536xf32> to vector<1x512xf32>
    %96 = vector.extract_strided_slice %91 {offsets = [0, 1024], sizes = [1, 512], strides = [1, 1]} : vector<1x1536xf32> to vector<1x512xf32>
    %97 = arith.mulf %95, %75 : vector<1x512xf32>
    %98 = arith.mulf %94, %93 : vector<1x512xf32>
    %99 = arith.addf %97, %98 : vector<1x512xf32>
    %100 = math.tanh %99 : vector<1x512xf32>
    %101 = arith.mulf %96, %100 : vector<1x512xf32>
    %102 = vector.extract_strided_slice %101 {offsets = [0, 0], sizes = [1, 256], strides = [1, 1]} : vector<1x512xf32> to vector<1x256xf32>
    %c3_31 = arith.constant 3 : index
    %c0_32 = arith.constant 0 : index
    %103 = vector.load %arg8[%c3_31, %c0_32] : memref<8x512xf32, #tpu.memory_space<vmem>>, vector<1x256xf32>
    tpu.vector_store %arg8[%c3_31, %c0_32], %102 {strides = array<i32>} : memref<8x512xf32, #tpu.memory_space<vmem>>, vector<1x256xf32>,
    %104 = vector.extract_strided_slice %101 {offsets = [0, 256], sizes = [1, 256], strides = [1, 1]} : vector<1x512xf32> to vector<1x256xf32>
    %c4 = arith.constant 4 : index
    %c256_33 = arith.constant 256 : index
    %105 = vector.load %arg8[%c4, %c256_33] : memref<8x512xf32, #tpu.memory_space<vmem>>, vector<1x256xf32>
    tpu.vector_store %arg8[%c4, %c256_33], %104 {strides = array<i32>} : memref<8x512xf32, #tpu.memory_space<vmem>>, vector<1x256xf32>,
    %c4_34 = arith.constant 4 : index
    %c0_35 = arith.constant 0 : index
    %106 = vector.load %arg7[%c4_34, %c0_35] : memref<8x2048xf32, #tpu.memory_space<vmem>>, vector<1x2048xf32>
    %107 = arith.truncf %101 : vector<1x512xf32> to vector<1x512xbf16>
    %cst_36 = arith.constant dense<0.000000e+00> : vector<1x2048xf32>
    %108 = tpu.matmul %107, %7, %cst_36 {dimension_numbers = #tpu.dot_dimension_numbers<[1], [0], [0], [1], [0, 0, 1, 1], [], []>} : vector<1x512xbf16>, vector<512x2048xbf16>, vector<1x2048xf32> -> vector<1x2048xf32>
    %109 = arith.addf %106, %108 : vector<1x2048xf32>
    %110 = vector.extract_strided_slice %109 {offsets = [0, 0], sizes = [1, 1536], strides = [1, 1]} : vector<1x2048xf32> to vector<1x1536xf32>
    %111 = arith.negf %110 : vector<1x1536xf32>
    %112 = math.exp %111 : vector<1x1536xf32>
    %cst_37 = arith.constant 1.000000e+00 : f32
    %113 = vector.broadcast %cst_37 : f32 to vector<1x1536xf32>
    %114 = arith.addf %113, %112 : vector<1x1536xf32>
    %115 = arith.divf %113, %114 : vector<1x1536xf32>
    %116 = vector.extract_strided_slice %109 {offsets = [0, 1536], sizes = [1, 512], strides = [1, 1]} : vector<1x2048xf32> to vector<1x512xf32>
    %117 = math.tanh %116 : vector<1x512xf32>
    %118 = vector.extract_strided_slice %115 {offsets = [0, 0], sizes = [1, 512], strides = [1, 1]} : vector<1x1536xf32> to vector<1x512xf32>
    %119 = vector.extract_strided_slice %115 {offsets = [0, 512], sizes = [1, 512], strides = [1, 1]} : vector<1x1536xf32> to vector<1x512xf32>
    %120 = vector.extract_strided_slice %115 {offsets = [0, 1024], sizes = [1, 512], strides = [1, 1]} : vector<1x1536xf32> to vector<1x512xf32>
    %121 = arith.mulf %119, %99 : vector<1x512xf32>
    %122 = arith.mulf %118, %117 : vector<1x512xf32>
    %123 = arith.addf %121, %122 : vector<1x512xf32>
    %124 = math.tanh %123 : vector<1x512xf32>
    %125 = arith.mulf %120, %124 : vector<1x512xf32>
    %126 = vector.extract_strided_slice %125 {offsets = [0, 0], sizes = [1, 256], strides = [1, 1]} : vector<1x512xf32> to vector<1x256xf32>
    %c4_38 = arith.constant 4 : index
    %c0_39 = arith.constant 0 : index
    %127 = vector.load %arg8[%c4_38, %c0_39] : memref<8x512xf32, #tpu.memory_space<vmem>>, vector<1x256xf32>
    tpu.vector_store %arg8[%c4_38, %c0_39], %126 {strides = array<i32>} : memref<8x512xf32, #tpu.memory_space<vmem>>, vector<1x256xf32>,
    %128 = vector.extract_strided_slice %125 {offsets = [0, 256], sizes = [1, 256], strides = [1, 1]} : vector<1x512xf32> to vector<1x256xf32>
    %c3_40 = arith.constant 3 : index
    %c256_41 = arith.constant 256 : index
    %129 = vector.load %arg8[%c3_40, %c256_41] : memref<8x512xf32, #tpu.memory_space<vmem>>, vector<1x256xf32>
    tpu.vector_store %arg8[%c3_40, %c256_41], %128 {strides = array<i32>} : memref<8x512xf32, #tpu.memory_space<vmem>>, vector<1x256xf32>,
    %c5_42 = arith.constant 5 : index
    %c0_43 = arith.constant 0 : index
    %130 = vector.load %arg7[%c5_42, %c0_43] : memref<8x2048xf32, #tpu.memory_space<vmem>>, vector<1x2048xf32>
    %131 = arith.truncf %125 : vector<1x512xf32> to vector<1x512xbf16>
    %cst_44 = arith.constant dense<0.000000e+00> : vector<1x2048xf32>
    %132 = tpu.matmul %131, %7, %cst_44 {dimension_numbers = #tpu.dot_dimension_numbers<[1], [0], [0], [1], [0, 0, 1, 1], [], []>} : vector<1x512xbf16>, vector<512x2048xbf16>, vector<1x2048xf32> -> vector<1x2048xf32>
    %133 = arith.addf %130, %132 : vector<1x2048xf32>
    %134 = vector.extract_strided_slice %133 {offsets = [0, 0], sizes = [1, 1536], strides = [1, 1]} : vector<1x2048xf32> to vector<1x1536xf32>
    %135 = arith.negf %134 : vector<1x1536xf32>
    %136 = math.exp %135 : vector<1x1536xf32>
    %cst_45 = arith.constant 1.000000e+00 : f32
    %137 = vector.broadcast %cst_45 : f32 to vector<1x1536xf32>
    %138 = arith.addf %137, %136 : vector<1x1536xf32>
    %139 = arith.divf %137, %138 : vector<1x1536xf32>
    %140 = vector.extract_strided_slice %133 {offsets = [0, 1536], sizes = [1, 512], strides = [1, 1]} : vector<1x2048xf32> to vector<1x512xf32>
    %141 = math.tanh %140 : vector<1x512xf32>
    %142 = vector.extract_strided_slice %139 {offsets = [0, 0], sizes = [1, 512], strides = [1, 1]} : vector<1x1536xf32> to vector<1x512xf32>
    %143 = vector.extract_strided_slice %139 {offsets = [0, 512], sizes = [1, 512], strides = [1, 1]} : vector<1x1536xf32> to vector<1x512xf32>
    %144 = vector.extract_strided_slice %139 {offsets = [0, 1024], sizes = [1, 512], strides = [1, 1]} : vector<1x1536xf32> to vector<1x512xf32>
    %145 = arith.mulf %143, %123 : vector<1x512xf32>
    %146 = arith.mulf %142, %141 : vector<1x512xf32>
    %147 = arith.addf %145, %146 : vector<1x512xf32>
    %148 = math.tanh %147 : vector<1x512xf32>
    %149 = arith.mulf %144, %148 : vector<1x512xf32>
    %150 = vector.extract_strided_slice %149 {offsets = [0, 0], sizes = [1, 256], strides = [1, 1]} : vector<1x512xf32> to vector<1x256xf32>
    %c5_46 = arith.constant 5 : index
    %c0_47 = arith.constant 0 : index
    %151 = vector.load %arg8[%c5_46, %c0_47] : memref<8x512xf32, #tpu.memory_space<vmem>>, vector<1x256xf32>
    tpu.vector_store %arg8[%c5_46, %c0_47], %150 {strides = array<i32>} : memref<8x512xf32, #tpu.memory_space<vmem>>, vector<1x256xf32>,
    %152 = vector.extract_strided_slice %149 {offsets = [0, 256], sizes = [1, 256], strides = [1, 1]} : vector<1x512xf32> to vector<1x256xf32>
    %c2_48 = arith.constant 2 : index
    %c256_49 = arith.constant 256 : index
    %153 = vector.load %arg8[%c2_48, %c256_49] : memref<8x512xf32, #tpu.memory_space<vmem>>, vector<1x256xf32>
    tpu.vector_store %arg8[%c2_48, %c256_49], %152 {strides = array<i32>} : memref<8x512xf32, #tpu.memory_space<vmem>>, vector<1x256xf32>,
    %c6_50 = arith.constant 6 : index
    %c0_51 = arith.constant 0 : index
    %154 = vector.load %arg7[%c6_50, %c0_51] : memref<8x2048xf32, #tpu.memory_space<vmem>>, vector<1x2048xf32>
    %155 = arith.truncf %149 : vector<1x512xf32> to vector<1x512xbf16>
    %cst_52 = arith.constant dense<0.000000e+00> : vector<1x2048xf32>
    %156 = tpu.matmul %155, %7, %cst_52 {dimension_numbers = #tpu.dot_dimension_numbers<[1], [0], [0], [1], [0, 0, 1, 1], [], []>} : vector<1x512xbf16>, vector<512x2048xbf16>, vector<1x2048xf32> -> vector<1x2048xf32>
    %157 = arith.addf %154, %156 : vector<1x2048xf32>
    %158 = vector.extract_strided_slice %157 {offsets = [0, 0], sizes = [1, 1536], strides = [1, 1]} : vector<1x2048xf32> to vector<1x1536xf32>
    %159 = arith.negf %158 : vector<1x1536xf32>
    %160 = math.exp %159 : vector<1x1536xf32>
    %cst_53 = arith.constant 1.000000e+00 : f32
    %161 = vector.broadcast %cst_53 : f32 to vector<1x1536xf32>
    %162 = arith.addf %161, %160 : vector<1x1536xf32>
    %163 = arith.divf %161, %162 : vector<1x1536xf32>
    %164 = vector.extract_strided_slice %157 {offsets = [0, 1536], sizes = [1, 512], strides = [1, 1]} : vector<1x2048xf32> to vector<1x512xf32>
    %165 = math.tanh %164 : vector<1x512xf32>
    %166 = vector.extract_strided_slice %163 {offsets = [0, 0], sizes = [1, 512], strides = [1, 1]} : vector<1x1536xf32> to vector<1x512xf32>
    %167 = vector.extract_strided_slice %163 {offsets = [0, 512], sizes = [1, 512], strides = [1, 1]} : vector<1x1536xf32> to vector<1x512xf32>
    %168 = vector.extract_strided_slice %163 {offsets = [0, 1024], sizes = [1, 512], strides = [1, 1]} : vector<1x1536xf32> to vector<1x512xf32>
    %169 = arith.mulf %167, %147 : vector<1x512xf32>
    %170 = arith.mulf %166, %165 : vector<1x512xf32>
    %171 = arith.addf %169, %170 : vector<1x512xf32>
    %172 = math.tanh %171 : vector<1x512xf32>
    %173 = arith.mulf %168, %172 : vector<1x512xf32>
    %174 = vector.extract_strided_slice %173 {offsets = [0, 0], sizes = [1, 256], strides = [1, 1]} : vector<1x512xf32> to vector<1x256xf32>
    %c6_54 = arith.constant 6 : index
    %c0_55 = arith.constant 0 : index
    %175 = vector.load %arg8[%c6_54, %c0_55] : memref<8x512xf32, #tpu.memory_space<vmem>>, vector<1x256xf32>
    tpu.vector_store %arg8[%c6_54, %c0_55], %174 {strides = array<i32>} : memref<8x512xf32, #tpu.memory_space<vmem>>, vector<1x256xf32>,
    %176 = vector.extract_strided_slice %173 {offsets = [0, 256], sizes = [1, 256], strides = [1, 1]} : vector<1x512xf32> to vector<1x256xf32>
    %c1_56 = arith.constant 1 : index
    %c256_57 = arith.constant 256 : index
    %177 = vector.load %arg8[%c1_56, %c256_57] : memref<8x512xf32, #tpu.memory_space<vmem>>, vector<1x256xf32>
    tpu.vector_store %arg8[%c1_56, %c256_57], %176 {strides = array<i32>} : memref<8x512xf32, #tpu.memory_space<vmem>>, vector<1x256xf32>,
    %c7_58 = arith.constant 7 : index
    %c0_59 = arith.constant 0 : index
    %178 = vector.load %arg7[%c7_58, %c0_59] : memref<8x2048xf32, #tpu.memory_space<vmem>>, vector<1x2048xf32>
    %179 = arith.truncf %173 : vector<1x512xf32> to vector<1x512xbf16>
    %cst_60 = arith.constant dense<0.000000e+00> : vector<1x2048xf32>
    %180 = tpu.matmul %179, %7, %cst_60 {dimension_numbers = #tpu.dot_dimension_numbers<[1], [0], [0], [1], [0, 0, 1, 1], [], []>} : vector<1x512xbf16>, vector<512x2048xbf16>, vector<1x2048xf32> -> vector<1x2048xf32>
    %181 = arith.addf %178, %180 : vector<1x2048xf32>
    %182 = vector.extract_strided_slice %181 {offsets = [0, 0], sizes = [1, 1536], strides = [1, 1]} : vector<1x2048xf32> to vector<1x1536xf32>
    %183 = arith.negf %182 : vector<1x1536xf32>
    %184 = math.exp %183 : vector<1x1536xf32>
    %cst_61 = arith.constant 1.000000e+00 : f32
    %185 = vector.broadcast %cst_61 : f32 to vector<1x1536xf32>
    %186 = arith.addf %185, %184 : vector<1x1536xf32>
    %187 = arith.divf %185, %186 : vector<1x1536xf32>
    %188 = vector.extract_strided_slice %181 {offsets = [0, 1536], sizes = [1, 512], strides = [1, 1]} : vector<1x2048xf32> to vector<1x512xf32>
    %189 = math.tanh %188 : vector<1x512xf32>
    %190 = vector.extract_strided_slice %187 {offsets = [0, 0], sizes = [1, 512], strides = [1, 1]} : vector<1x1536xf32> to vector<1x512xf32>
    %191 = vector.extract_strided_slice %187 {offsets = [0, 512], sizes = [1, 512], strides = [1, 1]} : vector<1x1536xf32> to vector<1x512xf32>
    %192 = vector.extract_strided_slice %187 {offsets = [0, 1024], sizes = [1, 512], strides = [1, 1]} : vector<1x1536xf32> to vector<1x512xf32>
    %193 = arith.mulf %191, %171 : vector<1x512xf32>
    %194 = arith.mulf %190, %189 : vector<1x512xf32>
    %195 = arith.addf %193, %194 : vector<1x512xf32>
    %196 = math.tanh %195 : vector<1x512xf32>
    %197 = arith.mulf %192, %196 : vector<1x512xf32>
    %198 = vector.extract_strided_slice %197 {offsets = [0, 0], sizes = [1, 256], strides = [1, 1]} : vector<1x512xf32> to vector<1x256xf32>
    %c7_62 = arith.constant 7 : index
    %c0_63 = arith.constant 0 : index
    %199 = vector.load %arg8[%c7_62, %c0_63] : memref<8x512xf32, #tpu.memory_space<vmem>>, vector<1x256xf32>
    tpu.vector_store %arg8[%c7_62, %c0_63], %198 {strides = array<i32>} : memref<8x512xf32, #tpu.memory_space<vmem>>, vector<1x256xf32>,
    %200 = vector.extract_strided_slice %197 {offsets = [0, 256], sizes = [1, 256], strides = [1, 1]} : vector<1x512xf32> to vector<1x256xf32>
    %c0_64 = arith.constant 0 : index
    %c256_65 = arith.constant 256 : index
    %201 = vector.load %arg8[%c0_64, %c256_65] : memref<8x512xf32, #tpu.memory_space<vmem>>, vector<1x256xf32>
    tpu.vector_store %arg8[%c0_64, %c256_65], %200 {strides = array<i32>} : memref<8x512xf32, #tpu.memory_space<vmem>>, vector<1x256xf32>,
    %c0_66 = arith.constant 0 : index
    %c0_67 = arith.constant 0 : index
    %202 = vector.load %arg8[%c0_66, %c0_67] : memref<8x512xf32, #tpu.memory_space<vmem>>, vector<8x512xf32>
    %c0_68 = arith.constant 0 : index
    %c0_69 = arith.constant 0 : index
    %203 = vector.load %arg2[%c0_68, %c0_69] : memref<1392x32xbf16, #tpu.memory_space<vmem>>, vector<512x32xbf16>
    %c512 = arith.constant 512 : index
    %c0_70 = arith.constant 0 : index
    %204 = vector.load %arg2[%c512, %c0_70] : memref<1392x32xbf16, #tpu.memory_space<vmem>>, vector<304x32xbf16>
    %c816 = arith.constant 816 : index
    %c0_71 = arith.constant 0 : index
    %205 = vector.load %arg2[%c816, %c0_71] : memref<1392x32xbf16, #tpu.memory_space<vmem>>, vector<32x32xbf16>
    %c848 = arith.constant 848 : index
    %c0_72 = arith.constant 0 : index
    %206 = vector.load %arg2[%c848, %c0_72] : memref<1392x32xbf16, #tpu.memory_space<vmem>>, vector<32x32xbf16>
    %c880 = arith.constant 880 : index
    %c0_73 = arith.constant 0 : index
    %207 = vector.load %arg2[%c880, %c0_73] : memref<1392x32xbf16, #tpu.memory_space<vmem>>, vector<512x32xbf16>
    %c1_74 = arith.constant 1 : index
    %c0_75 = arith.constant 0 : index
    %208 = vector.load %arg3[%c1_74, %c0_75] : memref<8x2048xf32, #tpu.memory_space<vmem>>, vector<1x304xf32>
    %209 = arith.truncf %208 : vector<1x304xf32> to vector<1x304xbf16>
    %c2_76 = arith.constant 2 : index
    %c0_77 = arith.constant 0 : index
    %210 = vector.load %arg3[%c2_76, %c0_77] : memref<8x2048xf32, #tpu.memory_space<vmem>>, vector<1x32xf32>
    %c3_78 = arith.constant 3 : index
    %c0_79 = arith.constant 0 : index
    %211 = vector.load %arg3[%c3_78, %c0_79] : memref<8x2048xf32, #tpu.memory_space<vmem>>, vector<1x32xf32>
    %c4_80 = arith.constant 4 : index
    %c0_81 = arith.constant 0 : index
    %212 = vector.load %arg3[%c4_80, %c0_81] : memref<8x2048xf32, #tpu.memory_space<vmem>>, vector<1x1xf32>
    %c5_82 = arith.constant 5 : index
    %c0_83 = arith.constant 0 : index
    %213 = vector.load %arg3[%c5_82, %c0_83] : memref<8x2048xf32, #tpu.memory_space<vmem>>, vector<1x31xf32>
    %214 = arith.truncf %202 : vector<8x512xf32> to vector<8x512xbf16>
    %cst_84 = arith.constant dense<0.000000e+00> : vector<1x32xf32>
    %215 = tpu.matmul %209, %204, %cst_84 {dimension_numbers = #tpu.dot_dimension_numbers<[1], [0], [0], [1], [0, 0, 1, 1], [], []>} : vector<1x304xbf16>, vector<304x32xbf16>, vector<1x32xf32> -> vector<1x32xf32>
    %cst_85 = arith.constant dense<0.000000e+00> : vector<8x32xf32>
    %216 = tpu.matmul %214, %203, %cst_85 {dimension_numbers = #tpu.dot_dimension_numbers<[1], [0], [0], [1], [0, 0, 1, 1], [], []>} : vector<8x512xbf16>, vector<512x32xbf16>, vector<8x32xf32> -> vector<8x32xf32>
    %217 = vector.broadcast %215 : vector<1x32xf32> to vector<8x32xf32>
    %218 = arith.addf %216, %217 : vector<8x32xf32>
    %219 = vector.broadcast %210 : vector<1x32xf32> to vector<8x32xf32>
    %220 = arith.addf %218, %219 : vector<8x32xf32>
    %221 = math.tanh %220 : vector<8x32xf32>
    %222 = arith.truncf %221 : vector<8x32xf32> to vector<8x32xbf16>
    %cst_86 = arith.constant dense<0.000000e+00> : vector<8x32xf32>
    %223 = tpu.matmul %222, %205, %cst_86 {dimension_numbers = #tpu.dot_dimension_numbers<[1], [0], [0], [1], [0, 0, 1, 1], [], []>} : vector<8x32xbf16>, vector<32x32xbf16>, vector<8x32xf32> -> vector<8x32xf32>
    %224 = vector.broadcast %211 : vector<1x32xf32> to vector<8x32xf32>
    %225 = arith.addf %223, %224 : vector<8x32xf32>
    %226 = math.tanh %225 : vector<8x32xf32>
    %227 = arith.truncf %226 : vector<8x32xf32> to vector<8x32xbf16>
    %cst_87 = arith.constant dense<0.000000e+00> : vector<8x32xf32>
    %228 = tpu.matmul %227, %206, %cst_87 {dimension_numbers = #tpu.dot_dimension_numbers<[1], [0], [0], [1], [0, 0, 1, 1], [], []>} : vector<8x32xbf16>, vector<32x32xbf16>, vector<8x32xf32> -> vector<8x32xf32>
    %229 = vector.extract_strided_slice %228 {offsets = [0, 0], sizes = [8, 1], strides = [1, 1]} : vector<8x32xf32> to vector<8x1xf32>
    %230 = vector.broadcast %212 : vector<1x1xf32> to vector<8x1xf32>
    %231 = arith.addf %229, %230 : vector<8x1xf32>
    %cst_88 = arith.constant dense<0xFF800000> : vector<1xf32>
    %232 = vector.multi_reduction <maximumf>, %231, %cst_88 [0] : vector<8x1xf32> to vector<1xf32>
    %233 = vector.shape_cast %232 : vector<1xf32> to vector<1x1xf32>
    %234 = vector.broadcast %233 : vector<1x1xf32> to vector<8x1xf32>
    %235 = arith.subf %231, %234 : vector<8x1xf32>
    %236 = math.exp %235 : vector<8x1xf32>
    %cst_89 = arith.constant dense<0.000000e+00> : vector<1xf32>
    %237 = vector.multi_reduction <add>, %236, %cst_89 [0] : vector<8x1xf32> to vector<1xf32>
    %238 = vector.shape_cast %237 : vector<1xf32> to vector<1x1xf32>
    %239 = math.log %238 : vector<1x1xf32>
    %240 = arith.addf %233, %239 : vector<1x1xf32>
    %241 = vector.broadcast %240 : vector<1x1xf32> to vector<8x1xf32>
    %242 = arith.subf %231, %241 : vector<8x1xf32>
    %243 = vector.broadcast %242 : vector<8x1xf32> to vector<8x512xf32>
    %244 = arith.mulf %202, %243 : vector<8x512xf32>
    %cst_90 = arith.constant dense<0.000000e+00> : vector<512xf32>
    %245 = vector.multi_reduction <add>, %244, %cst_90 [0] : vector<8x512xf32> to vector<512xf32>
    %246 = vector.shape_cast %245 : vector<512xf32> to vector<1x512xf32>
    %247 = arith.truncf %246 : vector<1x512xf32> to vector<1x512xbf16>
    %cst_91 = arith.constant dense<0.000000e+00> : vector<1x32xf32>
    %248 = tpu.matmul %247, %207, %cst_91 {dimension_numbers = #tpu.dot_dimension_numbers<[1], [0], [0], [1], [0, 0, 1, 1], [], []>} : vector<1x512xbf16>, vector<512x32xbf16>, vector<1x32xf32> -> vector<1x32xf32>
    %249 = vector.extract_strided_slice %248 {offsets = [0, 0], sizes = [1, 31], strides = [1, 1]} : vector<1x32xf32> to vector<1x31xf32>
    %250 = arith.addf %249, %213 : vector<1x31xf32>
    %cst_92 = arith.constant dense<0xFF800000> : vector<1xf32>
    %251 = vector.multi_reduction <maximumf>, %250, %cst_92 [1] : vector<1x31xf32> to vector<1xf32>
    %252 = vector.shape_cast %251 : vector<1xf32> to vector<1x1xf32>
    %253 = vector.broadcast %252 : vector<1x1xf32> to vector<1x31xf32>
    %254 = arith.subf %250, %253 : vector<1x31xf32>
    %255 = math.exp %254 : vector<1x31xf32>
    %cst_93 = arith.constant dense<0.000000e+00> : vector<1xf32>
    %256 = vector.multi_reduction <add>, %255, %cst_93 [1] : vector<1x31xf32> to vector<1xf32>
    %257 = vector.shape_cast %256 : vector<1xf32> to vector<1x1xf32>
    %258 = math.log %257 : vector<1x1xf32>
    %259 = arith.addf %252, %258 : vector<1x1xf32>
    %260 = vector.broadcast %259 : vector<1x1xf32> to vector<1x31xf32>
    %261 = arith.subf %250, %260 : vector<1x31xf32>
    %c0_94 = arith.constant 0 : index
    %c0_95 = arith.constant 0 : index
    %262 = vector.load %arg4[%c0_94, %c0_95] : memref<1x31xf32, #tpu.memory_space<vmem>>, vector<1x31xf32>
    tpu.vector_store %arg4[%c0_94, %c0_95], %261 {strides = array<i32>} : memref<1x31xf32, #tpu.memory_space<vmem>>, vector<1x31xf32>,
    return
  }
}

</mosaic_0001>

<llo_original>
// kernel: lstmnet_forward.1
$region0: #{lstmnet_forward.1}
  #allocation0 [shape = 'u32[]', space=smem, size = 0x4, offset = 0x4, fixed_abs, tag = 'smem constant byte address 0x4 - core index']
  #allocation1 [shape = 'u32[144,128]{1,0:T(1,128)}', space=vmem, size = 0x12000, scoped, tag = 'internal scratch']
  #allocation2 [shape = 'bf16[512,2048]{1,0:T(16,128)(2,1)}', space=vmem, size = 0x200000, scoped, tag = 'scratch operand']
  #allocation3 [shape = 's32[1]{0}', space=sflag, size = 0x4, scoped, tag = 'scratch operand']
  #allocation4 [shape = 'f32[8,2048]{1,0:T(8,128)}', space=vmem, size = 0x10000, scoped, tag = 'scratch operand']
  #allocation5 [shape = 'f32[8,512]{1,0:T(8,128)}', space=vmem, size = 0x4000, scoped, tag = 'scratch operand']
  #allocation6 [shape = 's32[]', space=sflag, size = 0x4, offset = 0, fixed_abs, tag = 'sflag constant byte address 0x0 - dummy sync flag']
  %s0 = inlined_call_operand.vmem [shape: bf16[80,2048], index: 0, kind: input, shape index: {}]
  %s1 = inlined_call_operand.hbm [shape: bf16[512,2048], index: 1, kind: input, shape index: {}]
  %s2 = inlined_call_operand.vmem [shape: bf16[1392,32], index: 2, kind: input, shape index: {}]
  %s3 = inlined_call_operand.vmem [shape: f32[8,2048], index: 3, kind: input, shape index: {}]
  %s4 = inlined_call_operand.vmem [shape: f32[1,31], index: 4, kind: output, shape index: {}]
  %s5 = sld [smem:[#allocation0]]
  $region22: #{lstmnet_forward.1} parent=0
    _
  %s7 = ssub.s32 1, %s5
  %s8 = scalar_select 0, %s7, %s5
  $region1: #{lstmnet_forward.1} parent=0
    #allocation7 [shape = 'u32[9]{0}', space=smem, size = 0x24, scoped, tag = 'DMA stride descriptor']
    // Predicated region
    $region2: #{lstmnet_forward.1} parent=1 // pred_check
      _
    $region3: #{lstmnet_forward.1} parent=1 // pred_check_branch
      %10 = sbr.rel (0) target = $region5
    $region4: #{lstmnet_forward.1} parent=1 // pred_region
      _
    $region5: #{lstmnet_forward.1} parent=1 // pred_fallthru
      _
    // Predicated region
    $region6: #{lstmnet_forward.1} parent=1 // pred_check
      _
    $region7: #{lstmnet_forward.1} parent=1 // pred_check_branch
      %12 = sbr.rel (0) target = $region9
    $region8: #{lstmnet_forward.1} parent=1 // pred_region
      _
    $region9: #{lstmnet_forward.1} parent=1 // pred_fallthru
      _
    // Predicated region
    $region10: #{lstmnet_forward.1} parent=1 // pred_check
      _
    $region11: #{lstmnet_forward.1} parent=1 // pred_check_branch
      %14 = sbr.rel (0) target = $region13
    $region12: #{lstmnet_forward.1} parent=1 // pred_region
      _
    $region13: #{lstmnet_forward.1} parent=1 // pred_fallthru
      _
    %s17 = sshll.u32 1, 14
    %s18 = sxor.u32 4294967295, %s17
    %s20 = sld [smem:[#allocation0]]
    %s21 = sadd.s32 2, %s20
    %s23 = sshll.u32 7, 26
    %s24 = sxor.u32 4294967295, %s23
    %s25 = sand.u32 0, %s24
    %s26 = sshll.u32 %s21, 26
    %s27 = sor.u32 %s25, %s26
    %s28 = sshll.u32 [#allocation2], 4
    %s29 = int_to_ptr.vmem [resolvable:$true] %s28
    %32 = sst [smem:[#allocation7]] 2048
    %s33 = scalar_lea.smem [#allocation7], 1
    %34 = sst [smem:[%s33]] 2048
    %s35 = scalar_lea.smem [#allocation7], 2
    %36 = sst [smem:[%s35]] 16
    %s37 = scalar_lea.smem [#allocation7], 3
    %38 = sst [smem:[%s37]] 64
    %s39 = scalar_lea.smem [#allocation7], 4
    %40 = sst [smem:[%s39]] 128
    %s41 = scalar_lea.smem [#allocation7], 5
    %42 = sst [smem:[%s41]] 2
    %s43 = scalar_lea.smem [#allocation7], 6
    %44 = sst [smem:[%s43]] 1024
    %s45 = scalar_lea.smem [#allocation7], 7
    %46 = sst [smem:[%s45]] 64
    %s47 = scalar_lea.smem [#allocation7], 8
    %48 = sst [smem:[%s47]] 4
    %50 = dma.general %s1, 65536, %s29, [#allocation3], [#allocation6], [#allocation7], %s27, 0
    %v51 = vld [vmem:[%s0] sm:$0xff]
    %v52 = vld [vmem:[%s0 + $0x8] sm:$0xff]
    %v53 = vld [vmem:[%s0 + $0x10] sm:$0xff]
    %v54 = vld [vmem:[%s0 + $0x18] sm:$0xff]
    %v55 = vld [vmem:[%s0 + $0x20] sm:$0xff]
    %v56 = vld [vmem:[%s0 + $0x28] sm:$0xff]
    %v57 = vld [vmem:[%s0 + $0x30] sm:$0xff]
    %v58 = vld [vmem:[%s0 + $0x38] sm:$0xff]
    %v59 = vld [vmem:[%s0 + $0x40] sm:$0xff]
    %v60 = vld [vmem:[%s0 + $0x48] sm:$0xff]
    %v61 = vld [vmem:[%s0 + $0x50] sm:$0xff]
    %v62 = vld [vmem:[%s0 + $0x58] sm:$0xff]
    %v63 = vld [vmem:[%s0 + $0x60] sm:$0xff]
    %v64 = vld [vmem:[%s0 + $0x68] sm:$0xff]
    %v65 = vld [vmem:[%s0 + $0x70] sm:$0xff]
    %v66 = vld [vmem:[%s0 + $0x78] sm:$0xff]
    %v67 = vld [vmem:[%s0 + $0x80] sm:$0xff]
    %v68 = vld [vmem:[%s0 + $0x88] sm:$0xff]
    %v69 = vld [vmem:[%s0 + $0x90] sm:$0xff]
    %v70 = vld [vmem:[%s0 + $0x98] sm:$0xff]
    %v71 = vld [vmem:[%s0 + $0xa0] sm:$0xff]
    %v72 = vld [vmem:[%s0 + $0xa8] sm:$0xff]
    %v73 = vld [vmem:[%s0 + $0xb0] sm:$0xff]
    %v74 = vld [vmem:[%s0 + $0xb8] sm:$0xff]
    %v75 = vld [vmem:[%s0 + $0xc0] sm:$0xff]
    %v76 = vld [vmem:[%s0 + $0xc8] sm:$0xff]
    %v77 = vld [vmem:[%s0 + $0xd0] sm:$0xff]
    %v78 = vld [vmem:[%s0 + $0xd8] sm:$0xff]
    %v79 = vld [vmem:[%s0 + $0xe0] sm:$0xff]
    %v80 = vld [vmem:[%s0 + $0xe8] sm:$0xff]
    %v81 = vld [vmem:[%s0 + $0xf0] sm:$0xff]
    %v82 = vld [vmem:[%s0 + $0xf8] sm:$0xff]
    %v83 = vld [vmem:[%s0 + $0x100] sm:$0xff]
    %v84 = vld [vmem:[%s0 + $0x108] sm:$0xff]
    %v85 = vld [vmem:[%s0 + $0x110] sm:$0xff]
    %v86 = vld [vmem:[%s0 + $0x118] sm:$0xff]
    %v87 = vld [vmem:[%s0 + $0x120] sm:$0xff]
    %v88 = vld [vmem:[%s0 + $0x128] sm:$0xff]
    %v89 = vld [vmem:[%s0 + $0x130] sm:$0xff]
    %v90 = vld [vmem:[%s0 + $0x138] sm:$0xff]
    %v91 = vld [vmem:[%s0 + $0x140] sm:$0xff]
    %v92 = vld [vmem:[%s0 + $0x148] sm:$0xff]
    %v93 = vld [vmem:[%s0 + $0x150] sm:$0xff]
    %v94 = vld [vmem:[%s0 + $0x158] sm:$0xff]
    %v95 = vld [vmem:[%s0 + $0x160] sm:$0xff]
    %v96 = vld [vmem:[%s0 + $0x168] sm:$0xff]
    %v97 = vld [vmem:[%s0 + $0x170] sm:$0xff]
    %v98 = vld [vmem:[%s0 + $0x178] sm:$0xff]
    %v99 = vld [vmem:[%s0 + $0x180] sm:$0xff]
    %v100 = vld [vmem:[%s0 + $0x188] sm:$0xff]
    %v101 = vld [vmem:[%s0 + $0x190] sm:$0xff]
    %v102 = vld [vmem:[%s0 + $0x198] sm:$0xff]
    %v103 = vld [vmem:[%s0 + $0x1a0] sm:$0xff]
    %v104 = vld [vmem:[%s0 + $0x1a8] sm:$0xff]
    %v105 = vld [vmem:[%s0 + $0x1b0] sm:$0xff]
    %v106 = vld [vmem:[%s0 + $0x1b8] sm:$0xff]
    %v107 = vld [vmem:[%s0 + $0x1c0] sm:$0xff]
    %v108 = vld [vmem:[%s0 + $0x1c8] sm:$0xff]
    %v109 = vld [vmem:[%s0 + $0x1d0] sm:$0xff]
    %v110 = vld [vmem:[%s0 + $0x1d8] sm:$0xff]
    %v111 = vld [vmem:[%s0 + $0x1e0] sm:$0xff]
    %v112 = vld [vmem:[%s0 + $0x1e8] sm:$0xff]
    %v113 = vld [vmem:[%s0 + $0x1f0] sm:$0xff]
    %v114 = vld [vmem:[%s0 + $0x1f8] sm:$0xff]
    %v115 = vld [vmem:[%s0 + $0x200] sm:$0xf]
    %v116 = vld [vmem:[%s3] ss:$8 sm:$0xf]
    %v117 = vld [vmem:[%s3] ss:$8 sm:$0xf0]
    %v118 = vor.u32 %v116, %v117
    %s119 = scalar_lea.vmem %s3, 64
    %v120 = vld [vmem:[%s119] ss:$8 sm:$0xf]
    %v121 = vld [vmem:[%s119] ss:$8 sm:$0xf0]
    %v122 = vor.u32 %v120, %v121
    %v125 = vlaneseq
    %v126 = vshrl.u32 %v125, 7
    %v127 = vsub.s32 0, %v126
    %v128 = vrot.slane %v118, %v127
    %v129 = vlaneseq
    %v130 = vshrl.u32 %v129, 7
    %v131 = vsub.s32 1, %v130
    %v132 = vrot.slane %v118, %v131
    %v133 = vlaneseq
    %v134 = vshrl.u32 %v133, 7
    %v135 = vsub.s32 2, %v134
    %v136 = vrot.slane %v118, %v135
    %v137 = vlaneseq
    %v138 = vshrl.u32 %v137, 7
    %v139 = vsub.s32 3, %v138
    %v140 = vrot.slane %v118, %v139
    %v141 = vlaneseq
    %v142 = vshrl.u32 %v141, 7
    %v143 = vsub.s32 4, %v142
    %v144 = vrot.slane %v118, %v143
    %v145 = vlaneseq
    %v146 = vshrl.u32 %v145, 7
    %v147 = vsub.s32 5, %v146
    %v148 = vrot.slane %v118, %v147
    %v149 = vlaneseq
    %v150 = vshrl.u32 %v149, 7
    %v151 = vsub.s32 6, %v150
    %v152 = vrot.slane %v118, %v151
    %v153 = vlaneseq
    %v154 = vshrl.u32 %v153, 7
    %v155 = vsub.s32 7, %v154
    %v156 = vrot.slane %v118, %v155
    %v157 = vlaneseq
    %v158 = vshrl.u32 %v157, 7
    %v159 = vsub.s32 0, %v158
    %v160 = vrot.slane %v122, %v159
    %v161 = vlaneseq
    %v162 = vshrl.u32 %v161, 7
    %v163 = vsub.s32 1, %v162
    %v164 = vrot.slane %v122, %v163
    %v165 = vlaneseq
    %v166 = vshrl.u32 %v165, 7
    %v167 = vsub.s32 2, %v166
    %v168 = vrot.slane %v122, %v167
    %v169 = vlaneseq
    %v170 = vshrl.u32 %v169, 7
    %v171 = vsub.s32 3, %v170
    %v172 = vrot.slane %v122, %v171
    %v173 = vlaneseq
    %v174 = vshrl.u32 %v173, 7
    %v175 = vsub.s32 4, %v174
    %v176 = vrot.slane %v122, %v175
    %v177 = vlaneseq
    %v178 = vshrl.u32 %v177, 7
    %v179 = vsub.s32 5, %v178
    %v180 = vrot.slane %v122, %v179
    %v181 = vlaneseq
    %v182 = vshrl.u32 %v181, 7
    %v183 = vsub.s32 6, %v182
    %v184 = vrot.slane %v122, %v183
    %v185 = vlaneseq
    %v186 = vshrl.u32 %v185, 7
    %v187 = vsub.s32 7, %v186
    %v188 = vrot.slane %v122, %v187
    %v269 = vunpack.c.l.b16 %v51
    %v270 = vunpack.c.h.b16 %v51
    %v271 = vunpack.c.l.b16 %v52
    %v272 = vunpack.c.h.b16 %v52
    %v273 = vunpack.c.l.b16 %v53
    %v274 = vunpack.c.h.b16 %v53
    %v275 = vunpack.c.l.b16 %v54
    %v276 = vunpack.c.h.b16 %v54
    %v277 = vunpack.c.l.b16 %v55
    %v278 = vunpack.c.h.b16 %v55
    %v279 = vunpack.c.l.b16 %v56
    %v280 = vunpack.c.h.b16 %v56
    %v281 = vunpack.c.l.b16 %v57
    %v282 = vunpack.c.h.b16 %v57
    %v283 = vunpack.c.l.b16 %v58
    %v284 = vunpack.c.h.b16 %v58
    %v285 = vunpack.c.l.b16 %v59
    %v286 = vunpack.c.h.b16 %v59
    %v287 = vunpack.c.l.b16 %v60
    %v288 = vunpack.c.h.b16 %v60
    %v289 = vunpack.c.l.b16 %v61
    %v290 = vunpack.c.h.b16 %v61
    %v291 = vunpack.c.l.b16 %v62
    %v292 = vunpack.c.h.b16 %v62
    %v293 = vunpack.c.l.b16 %v63
    %v294 = vunpack.c.h.b16 %v63
    %v295 = vunpack.c.l.b16 %v64
    %v296 = vunpack.c.h.b16 %v64
    %v297 = vunpack.c.l.b16 %v65
    %v298 = vunpack.c.h.b16 %v65
    %v299 = vunpack.c.l.b16 %v66
    %v300 = vunpack.c.h.b16 %v66
    %v301 = vunpack.c.l.b16 %v67
    %v302 = vunpack.c.h.b16 %v67
    %v303 = vunpack.c.l.b16 %v68
    %v304 = vunpack.c.h.b16 %v68
    %v305 = vunpack.c.l.b16 %v69
    %v306 = vunpack.c.h.b16 %v69
    %v307 = vunpack.c.l.b16 %v70
    %v308 = vunpack.c.h.b16 %v70
    %v309 = vunpack.c.l.b16 %v71
    %v310 = vunpack.c.h.b16 %v71
    %v311 = vunpack.c.l.b16 %v72
    %v312 = vunpack.c.h.b16 %v72
    %v313 = vunpack.c.l.b16 %v73
    %v314 = vunpack.c.h.b16 %v73
    %v315 = vunpack.c.l.b16 %v74
    %v316 = vunpack.c.h.b16 %v74
    %v317 = vunpack.c.l.b16 %v75
    %v318 = vunpack.c.h.b16 %v75
    %v319 = vunpack.c.l.b16 %v76
    %v320 = vunpack.c.h.b16 %v76
    %v321 = vunpack.c.l.b16 %v77
    %v322 = vunpack.c.h.b16 %v77
    %v323 = vunpack.c.l.b16 %v78
    %v324 = vunpack.c.h.b16 %v78
    %v325 = vunpack.c.l.b16 %v79
    %v326 = vunpack.c.h.b16 %v79
    %v327 = vunpack.c.l.b16 %v80
    %v328 = vunpack.c.h.b16 %v80
    %v329 = vunpack.c.l.b16 %v81
    %v330 = vunpack.c.h.b16 %v81
    %v331 = vunpack.c.l.b16 %v82
    %v332 = vunpack.c.h.b16 %v82
    %v333 = vunpack.c.l.b16 %v83
    %v334 = vunpack.c.h.b16 %v83
    %v335 = vunpack.c.l.b16 %v84
    %v336 = vunpack.c.h.b16 %v84
    %v337 = vunpack.c.l.b16 %v85
    %v338 = vunpack.c.h.b16 %v85
    %v339 = vunpack.c.l.b16 %v86
    %v340 = vunpack.c.h.b16 %v86
    %v341 = vunpack.c.l.b16 %v87
    %v342 = vunpack.c.h.b16 %v87
    %v343 = vunpack.c.l.b16 %v88
    %v344 = vunpack.c.h.b16 %v88
    %v345 = vunpack.c.l.b16 %v89
    %v346 = vunpack.c.h.b16 %v89
    %v347 = vunpack.c.l.b16 %v90
    %v348 = vunpack.c.h.b16 %v90
    %v349 = vunpack.c.l.b16 %v91
    %v350 = vunpack.c.h.b16 %v91
    %v351 = vunpack.c.l.b16 %v92
    %v352 = vunpack.c.h.b16 %v92
    %v353 = vunpack.c.l.b16 %v93
    %v354 = vunpack.c.h.b16 %v93
    %v355 = vunpack.c.l.b16 %v94
    %v356 = vunpack.c.h.b16 %v94
    %v357 = vunpack.c.l.b16 %v95
    %v358 = vunpack.c.h.b16 %v95
    %v359 = vunpack.c.l.b16 %v96
    %v360 = vunpack.c.h.b16 %v96
    %v361 = vunpack.c.l.b16 %v97
    %v362 = vunpack.c.h.b16 %v97
    %v363 = vunpack.c.l.b16 %v98
    %v364 = vunpack.c.h.b16 %v98
    %v365 = vunpack.c.l.b16 %v99
    %v366 = vunpack.c.h.b16 %v99
    %v367 = vunpack.c.l.b16 %v100
    %v368 = vunpack.c.h.b16 %v100
    %v369 = vunpack.c.l.b16 %v101
    %v370 = vunpack.c.h.b16 %v101
    %v371 = vunpack.c.l.b16 %v102
    %v372 = vunpack.c.h.b16 %v102
    %v373 = vunpack.c.l.b16 %v103
    %v374 = vunpack.c.h.b16 %v103
    %v375 = vunpack.c.l.b16 %v104
    %v376 = vunpack.c.h.b16 %v104
    %v377 = vunpack.c.l.b16 %v105
    %v378 = vunpack.c.h.b16 %v105
    %v379 = vunpack.c.l.b16 %v106
    %v380 = vunpack.c.h.b16 %v106
    %v381 = vunpack.c.l.b16 %v107
    %v382 = vunpack.c.h.b16 %v107
    %v383 = vunpack.c.l.b16 %v108
    %v384 = vunpack.c.h.b16 %v108
    %v385 = vunpack.c.l.b16 %v109
    %v386 = vunpack.c.h.b16 %v109
    %v387 = vunpack.c.l.b16 %v110
    %v388 = vunpack.c.h.b16 %v110
    %v389 = vunpack.c.l.b16 %v111
    %v390 = vunpack.c.h.b16 %v111
    %v391 = vunpack.c.l.b16 %v112
    %v392 = vunpack.c.h.b16 %v112
    %v393 = vunpack.c.l.b16 %v113
    %v394 = vunpack.c.h.b16 %v113
    %v395 = vunpack.c.l.b16 %v114
    %v396 = vunpack.c.h.b16 %v114
    %v397 = vpack.c.b16 %v285, %v269
    %v398 = vpack.c.b16 %v286, %v270
    %v399 = vpack.c.b16 %v287, %v271
    %v400 = vpack.c.b16 %v288, %v272
    %v401 = vpack.c.b16 %v289, %v273
    %v402 = vpack.c.b16 %v290, %v274
    %v403 = vpack.c.b16 %v291, %v275
    %v404 = vpack.c.b16 %v292, %v276
    %v405 = vpack.c.b16 %v293, %v277
    %v406 = vpack.c.b16 %v294, %v278
    %v407 = vpack.c.b16 %v295, %v279
    %v408 = vpack.c.b16 %v296, %v280
    %v409 = vpack.c.b16 %v297, %v281
    %v410 = vpack.c.b16 %v298, %v282
    %v411 = vpack.c.b16 %v299, %v283
    %v412 = vpack.c.b16 %v300, %v284
    %v413 = vpack.c.b16 %v317, %v301
    %v414 = vpack.c.b16 %v318, %v302
    %v415 = vpack.c.b16 %v319, %v303
    %v416 = vpack.c.b16 %v320, %v304
    %v417 = vpack.c.b16 %v321, %v305
    %v418 = vpack.c.b16 %v322, %v306
    %v419 = vpack.c.b16 %v323, %v307
    %v420 = vpack.c.b16 %v324, %v308
    %v421 = vpack.c.b16 %v325, %v309
    %v422 = vpack.c.b16 %v326, %v310
    %v423 = vpack.c.b16 %v327, %v311
    %v424 = vpack.c.b16 %v328, %v312
    %v425 = vpack.c.b16 %v329, %v313
    %v426 = vpack.c.b16 %v330, %v314
    %v427 = vpack.c.b16 %v331, %v315
    %v428 = vpack.c.b16 %v332, %v316
    %v429 = vpack.c.b16 %v349, %v333
    %v430 = vpack.c.b16 %v350, %v334
    %v431 = vpack.c.b16 %v351, %v335
    %v432 = vpack.c.b16 %v352, %v336
    %v433 = vpack.c.b16 %v353, %v337
    %v434 = vpack.c.b16 %v354, %v338
    %v435 = vpack.c.b16 %v355, %v339
    %v436 = vpack.c.b16 %v356, %v340
    %v437 = vpack.c.b16 %v357, %v341
    %v438 = vpack.c.b16 %v358, %v342
    %v439 = vpack.c.b16 %v359, %v343
    %v440 = vpack.c.b16 %v360, %v344
    %v441 = vpack.c.b16 %v361, %v345
    %v442 = vpack.c.b16 %v362, %v346
    %v443 = vpack.c.b16 %v363, %v347
    %v444 = vpack.c.b16 %v364, %v348
    %v445 = vpack.c.b16 %v381, %v365
    %v446 = vpack.c.b16 %v382, %v366
    %v447 = vpack.c.b16 %v383, %v367
    %v448 = vpack.c.b16 %v384, %v368
    %v449 = vpack.c.b16 %v385, %v369
    %v450 = vpack.c.b16 %v386, %v370
    %v451 = vpack.c.b16 %v387, %v371
    %v452 = vpack.c.b16 %v388, %v372
    %v453 = vpack.c.b16 %v389, %v373
    %v454 = vpack.c.b16 %v390, %v374
    %v455 = vpack.c.b16 %v391, %v375
    %v456 = vpack.c.b16 %v392, %v376
    %v457 = vpack.c.b16 %v393, %v377
    %v458 = vpack.c.b16 %v394, %v378
    %v459 = vpack.c.b16 %v395, %v379
    %v460 = vpack.c.b16 %v396, %v380
    %vm525 = vcmask 523264
    %v527 = vsel %vm525, %v115, 0
    %529 = vmatprep.subr.bf16.mxu0 %v398
    %530 = vmatpush1.bf16.msra.mxu0 %v397
    %531 = vmatprep.subr.bf16.mxu0 %v414
    %532 = vmatpush1.bf16.msra.mxu0 %v413
    %533 = vmatprep.subr.bf16.mxu0 %v430
    %534 = vmatpush1.bf16.msra.mxu0 %v429
    %535 = vmatprep.subr.bf16.mxu0 %v446
    %536 = vmatpush1.bf16.msra.mxu0 %v445
    %537 = vmatprep.subr.bf16.mxu0 0
    %538 = vmatpush1.bf16.msra.mxu0 0
    %539 = vmatprep.subr.bf16.mxu0 0
    %540 = vmatpush1.bf16.msra.mxu0 0
    %541 = vmatprep.subr.bf16.mxu0 0
    %542 = vmatpush1.bf16.msra.mxu0 0
    %543 = vmatprep.subr.bf16.mxu0 0
    %544 = vmatpush1.bf16.msra.mxu0 0
    %545 = vmatprep.subr.bf16.mxu0 0
    %546 = vmatpush1.bf16.msra.mxu0 0
    %547 = vmatprep.subr.bf16.mxu0 0
    %548 = vmatpush1.bf16.msra.mxu0 0
    %549 = vmatprep.subr.bf16.mxu0 0
    %550 = vmatpush1.bf16.msra.mxu0 0
    %551 = vmatprep.subr.bf16.mxu0 0
    %552 = vmatpush1.bf16.msra.mxu0 0
    %553 = vmatprep.subr.bf16.mxu0 0
    %554 = vmatpush1.bf16.msra.mxu0 0
    %555 = vmatprep.subr.bf16.mxu0 0
    %556 = vmatpush1.bf16.msra.mxu0 0
    %557 = vmatprep.subr.bf16.mxu0 0
    %558 = vmatpush1.bf16.msra.mxu0 0
    %559 = vmatprep.subr.bf16.mxu0 0
    %560 = vmatpush1.bf16.msra.mxu0 0
    %561 = vmatprep.mubr.bf16.mxu0 0
    %562 = vmatmul.mubr.bf16.gmra.mrb[0].mxu0 %v527
    %v563 = vpop.f32.mrb[0].mxu0
    %v564 = vadd.f32 %v128, %v563
    %v565 = vpop.f32.mrb[0].mxu0
    %v566 = vadd.f32 %v132, %v565
    %v567 = vpop.f32.mrb[0].mxu0
    %v568 = vpop.f32.mrb[0].mxu0
    %569 = vdwg.mxu0
    %570 = vmatprep.subr.bf16.mxu0 %v400
    %571 = vmatpush1.bf16.msra.mxu0 %v399
    %572 = vmatprep.subr.bf16.mxu0 %v416
    %573 = vmatpush1.bf16.msra.mxu0 %v415
    %574 = vmatprep.subr.bf16.mxu0 %v432
    %575 = vmatpush1.bf16.msra.mxu0 %v431
    %576 = vmatprep.subr.bf16.mxu0 %v448
    %577 = vmatpush1.bf16.msra.mxu0 %v447
    %578 = vmatprep.subr.bf16.mxu0 0
    %579 = vmatpush1.bf16.msra.mxu0 0
    %580 = vmatprep.subr.bf16.mxu0 0
    %581 = vmatpush1.bf16.msra.mxu0 0
    %582 = vmatprep.subr.bf16.mxu0 0
    %583 = vmatpush1.bf16.msra.mxu0 0
    %584 = vmatprep.subr.bf16.mxu0 0
    %585 = vmatpush1.bf16.msra.mxu0 0
    %586 = vmatprep.subr.bf16.mxu0 0
    %587 = vmatpush1.bf16.msra.mxu0 0
    %588 = vmatprep.subr.bf16.mxu0 0
    %589 = vmatpush1.bf16.msra.mxu0 0
    %590 = vmatprep.subr.bf16.mxu0 0
    %591 = vmatpush1.bf16.msra.mxu0 0
    %592 = vmatprep.subr.bf16.mxu0 0
    %593 = vmatpush1.bf16.msra.mxu0 0
    %594 = vmatprep.subr.bf16.mxu0 0
    %595 = vmatpush1.bf16.msra.mxu0 0
    %596 = vmatprep.subr.bf16.mxu0 0
    %597 = vmatpush1.bf16.msra.mxu0 0
    %598 = vmatprep.subr.bf16.mxu0 0
    %599 = vmatpush1.bf16.msra.mxu0 0
    %600 = vmatprep.subr.bf16.mxu0 0
    %601 = vmatpush1.bf16.msra.mxu0 0
    %602 = vmatprep.mubr.bf16.mxu0 0
    %603 = vmatmul.mubr.bf16.gmra.mrb[0].mxu0 %v527
    %v604 = vpop.f32.mrb[0].mxu0
    %v605 = vadd.f32 %v136, %v604
    %v606 = vpop.f32.mrb[0].mxu0
    %v607 = vadd.f32 %v140, %v606
    %v608 = vpop.f32.mrb[0].mxu0
    %v609 = vpop.f32.mrb[0].mxu0
    %610 = vdwg.mxu0
    %611 = vmatprep.subr.bf16.mxu0 %v402
    %612 = vmatpush1.bf16.msra.mxu0 %v401
    %613 = vmatprep.subr.bf16.mxu0 %v418
    %614 = vmatpush1.bf16.msra.mxu0 %v417
    %615 = vmatprep.subr.bf16.mxu0 %v434
    %616 = vmatpush1.bf16.msra.mxu0 %v433
    %617 = vmatprep.subr.bf16.mxu0 %v450
    %618 = vmatpush1.bf16.msra.mxu0 %v449
    %619 = vmatprep.subr.bf16.mxu0 0
    %620 = vmatpush1.bf16.msra.mxu0 0
    %621 = vmatprep.subr.bf16.mxu0 0
    %622 = vmatpush1.bf16.msra.mxu0 0
    %623 = vmatprep.subr.bf16.mxu0 0
    %624 = vmatpush1.bf16.msra.mxu0 0
    %625 = vmatprep.subr.bf16.mxu0 0
    %626 = vmatpush1.bf16.msra.mxu0 0
    %627 = vmatprep.subr.bf16.mxu0 0
    %628 = vmatpush1.bf16.msra.mxu0 0
    %629 = vmatprep.subr.bf16.mxu0 0
    %630 = vmatpush1.bf16.msra.mxu0 0
    %631 = vmatprep.subr.bf16.mxu0 0
    %632 = vmatpush1.bf16.msra.mxu0 0
    %633 = vmatprep.subr.bf16.mxu0 0
    %634 = vmatpush1.bf16.msra.mxu0 0
    %635 = vmatprep.subr.bf16.mxu0 0
    %636 = vmatpush1.bf16.msra.mxu0 0
    %637 = vmatprep.subr.bf16.mxu0 0
    %638 = vmatpush1.bf16.msra.mxu0 0
    %639 = vmatprep.subr.bf16.mxu0 0
    %640 = vmatpush1.bf16.msra.mxu0 0
    %641 = vmatprep.subr.bf16.mxu0 0
    %642 = vmatpush1.bf16.msra.mxu0 0
    %643 = vmatprep.mubr.bf16.mxu0 0
    %644 = vmatmul.mubr.bf16.gmra.mrb[0].mxu0 %v527
    %v645 = vpop.f32.mrb[0].mxu0
    %v646 = vadd.f32 %v144, %v645
    %v647 = vpop.f32.mrb[0].mxu0
    %v648 = vadd.f32 %v148, %v647
    %v649 = vpop.f32.mrb[0].mxu0
    %v650 = vpop.f32.mrb[0].mxu0
    %651 = vdwg.mxu0
    %652 = vmatprep.subr.bf16.mxu0 %v404
    %653 = vmatpush1.bf16.msra.mxu0 %v403
    %654 = vmatprep.subr.bf16.mxu0 %v420
    %655 = vmatpush1.bf16.msra.mxu0 %v419
    %656 = vmatprep.subr.bf16.mxu0 %v436
    %657 = vmatpush1.bf16.msra.mxu0 %v435
    %658 = vmatprep.subr.bf16.mxu0 %v452
    %659 = vmatpush1.bf16.msra.mxu0 %v451
    %660 = vmatprep.subr.bf16.mxu0 0
    %661 = vmatpush1.bf16.msra.mxu0 0
    %662 = vmatprep.subr.bf16.mxu0 0
    %663 = vmatpush1.bf16.msra.mxu0 0
    %664 = vmatprep.subr.bf16.mxu0 0
    %665 = vmatpush1.bf16.msra.mxu0 0
    %666 = vmatprep.subr.bf16.mxu0 0
    %667 = vmatpush1.bf16.msra.mxu0 0
    %668 = vmatprep.subr.bf16.mxu0 0
    %669 = vmatpush1.bf16.msra.mxu0 0
    %670 = vmatprep.subr.bf16.mxu0 0
    %671 = vmatpush1.bf16.msra.mxu0 0
    %672 = vmatprep.subr.bf16.mxu0 0
    %673 = vmatpush1.bf16.msra.mxu0 0
    %674 = vmatprep.subr.bf16.mxu0 0
    %675 = vmatpush1.bf16.msra.mxu0 0
    %676 = vmatprep.subr.bf16.mxu0 0
    %677 = vmatpush1.bf16.msra.mxu0 0
    %678 = vmatprep.subr.bf16.mxu0 0
    %679 = vmatpush1.bf16.msra.mxu0 0
    %680 = vmatprep.subr.bf16.mxu0 0
    %681 = vmatpush1.bf16.msra.mxu0 0
    %682 = vmatprep.subr.bf16.mxu0 0
    %683 = vmatpush1.bf16.msra.mxu0 0
    %684 = vmatprep.mubr.bf16.mxu0 0
    %685 = vmatmul.mubr.bf16.gmra.mrb[0].mxu0 %v527
    %v686 = vpop.f32.mrb[0].mxu0
    %v687 = vadd.f32 %v152, %v686
    %v688 = vpop.f32.mrb[0].mxu0
    %v689 = vadd.f32 %v156, %v688
    %v690 = vpop.f32.mrb[0].mxu0
    %v691 = vpop.f32.mrb[0].mxu0
    %692 = vdwg.mxu0
    %693 = vmatprep.subr.bf16.mxu0 %v406
    %694 = vmatpush1.bf16.msra.mxu0 %v405
    %695 = vmatprep.subr.bf16.mxu0 %v422
    %696 = vmatpush1.bf16.msra.mxu0 %v421
    %697 = vmatprep.subr.bf16.mxu0 %v438
    %698 = vmatpush1.bf16.msra.mxu0 %v437
    %699 = vmatprep.subr.bf16.mxu0 %v454
    %700 = vmatpush1.bf16.msra.mxu0 %v453
    %701 = vmatprep.subr.bf16.mxu0 0
    %702 = vmatpush1.bf16.msra.mxu0 0
    %703 = vmatprep.subr.bf16.mxu0 0
    %704 = vmatpush1.bf16.msra.mxu0 0
    %705 = vmatprep.subr.bf16.mxu0 0
    %706 = vmatpush1.bf16.msra.mxu0 0
    %707 = vmatprep.subr.bf16.mxu0 0
    %708 = vmatpush1.bf16.msra.mxu0 0
    %709 = vmatprep.subr.bf16.mxu0 0
    %710 = vmatpush1.bf16.msra.mxu0 0
    %711 = vmatprep.subr.bf16.mxu0 0
    %712 = vmatpush1.bf16.msra.mxu0 0
    %713 = vmatprep.subr.bf16.mxu0 0
    %714 = vmatpush1.bf16.msra.mxu0 0
    %715 = vmatprep.subr.bf16.mxu0 0
    %716 = vmatpush1.bf16.msra.mxu0 0
    %717 = vmatprep.subr.bf16.mxu0 0
    %718 = vmatpush1.bf16.msra.mxu0 0
    %719 = vmatprep.subr.bf16.mxu0 0
    %720 = vmatpush1.bf16.msra.mxu0 0
    %721 = vmatprep.subr.bf16.mxu0 0
    %722 = vmatpush1.bf16.msra.mxu0 0
    %723 = vmatprep.subr.bf16.mxu0 0
    %724 = vmatpush1.bf16.msra.mxu0 0
    %725 = vmatprep.mubr.bf16.mxu0 0
    %726 = vmatmul.mubr.bf16.gmra.mrb[0].mxu0 %v527
    %v727 = vpop.f32.mrb[0].mxu0
    %v728 = vadd.f32 %v160, %v727
    %v729 = vpop.f32.mrb[0].mxu0
    %v730 = vadd.f32 %v164, %v729
    %v731 = vpop.f32.mrb[0].mxu0
    %v732 = vpop.f32.mrb[0].mxu0
    %733 = vdwg.mxu0
    %734 = vmatprep.subr.bf16.mxu0 %v408
    %735 = vmatpush1.bf16.msra.mxu0 %v407
    %736 = vmatprep.subr.bf16.mxu0 %v424
    %737 = vmatpush1.bf16.msra.mxu0 %v423
    %738 = vmatprep.subr.bf16.mxu0 %v440
    %739 = vmatpush1.bf16.msra.mxu0 %v439
    %740 = vmatprep.subr.bf16.mxu0 %v456
    %741 = vmatpush1.bf16.msra.mxu0 %v455
    %742 = vmatprep.subr.bf16.mxu0 0
    %743 = vmatpush1.bf16.msra.mxu0 0
    %744 = vmatprep.subr.bf16.mxu0 0
    %745 = vmatpush1.bf16.msra.mxu0 0
    %746 = vmatprep.subr.bf16.mxu0 0
    %747 = vmatpush1.bf16.msra.mxu0 0
    %748 = vmatprep.subr.bf16.mxu0 0
    %749 = vmatpush1.bf16.msra.mxu0 0
    %750 = vmatprep.subr.bf16.mxu0 0
    %751 = vmatpush1.bf16.msra.mxu0 0
    %752 = vmatprep.subr.bf16.mxu0 0
    %753 = vmatpush1.bf16.msra.mxu0 0
    %754 = vmatprep.subr.bf16.mxu0 0
    %755 = vmatpush1.bf16.msra.mxu0 0
    %756 = vmatprep.subr.bf16.mxu0 0
    %757 = vmatpush1.bf16.msra.mxu0 0
    %758 = vmatprep.subr.bf16.mxu0 0
    %759 = vmatpush1.bf16.msra.mxu0 0
    %760 = vmatprep.subr.bf16.mxu0 0
    %761 = vmatpush1.bf16.msra.mxu0 0
    %762 = vmatprep.subr.bf16.mxu0 0
    %763 = vmatpush1.bf16.msra.mxu0 0
    %764 = vmatprep.subr.bf16.mxu0 0
    %765 = vmatpush1.bf16.msra.mxu0 0
    %766 = vmatprep.mubr.bf16.mxu0 0
    %767 = vmatmul.mubr.bf16.gmra.mrb[0].mxu0 %v527
    %v768 = vpop.f32.mrb[0].mxu0
    %v769 = vadd.f32 %v168, %v768
    %v770 = vpop.f32.mrb[0].mxu0
    %v771 = vadd.f32 %v172, %v770
    %v772 = vpop.f32.mrb[0].mxu0
    %v773 = vpop.f32.mrb[0].mxu0
    %774 = vdwg.mxu0
    %775 = vmatprep.subr.bf16.mxu0 %v410
    %776 = vmatpush1.bf16.msra.mxu0 %v409
    %777 = vmatprep.subr.bf16.mxu0 %v426
    %778 = vmatpush1.bf16.msra.mxu0 %v425
    %779 = vmatprep.subr.bf16.mxu0 %v442
    %780 = vmatpush1.bf16.msra.mxu0 %v441
    %781 = vmatprep.subr.bf16.mxu0 %v458
    %782 = vmatpush1.bf16.msra.mxu0 %v457
    %783 = vmatprep.subr.bf16.mxu0 0
    %784 = vmatpush1.bf16.msra.mxu0 0
    %785 = vmatprep.subr.bf16.mxu0 0
    %786 = vmatpush1.bf16.msra.mxu0 0
    %787 = vmatprep.subr.bf16.mxu0 0
    %788 = vmatpush1.bf16.msra.mxu0 0
    %789 = vmatprep.subr.bf16.mxu0 0
    %790 = vmatpush1.bf16.msra.mxu0 0
    %791 = vmatprep.subr.bf16.mxu0 0
    %792 = vmatpush1.bf16.msra.mxu0 0
    %793 = vmatprep.subr.bf16.mxu0 0
    %794 = vmatpush1.bf16.msra.mxu0 0
    %795 = vmatprep.subr.bf16.mxu0 0
    %796 = vmatpush1.bf16.msra.mxu0 0
    %797 = vmatprep.subr.bf16.mxu0 0
    %798 = vmatpush1.bf16.msra.mxu0 0
    %799 = vmatprep.subr.bf16.mxu0 0
    %800 = vmatpush1.bf16.msra.mxu0 0
    %801 = vmatprep.subr.bf16.mxu0 0
    %802 = vmatpush1.bf16.msra.mxu0 0
    %803 = vmatprep.subr.bf16.mxu0 0
    %804 = vmatpush1.bf16.msra.mxu0 0
    %805 = vmatprep.subr.bf16.mxu0 0
    %806 = vmatpush1.bf16.msra.mxu0 0
    %807 = vmatprep.mubr.bf16.mxu0 0
    %808 = vmatmul.mubr.bf16.gmra.mrb[0].mxu0 %v527
    %v809 = vpop.f32.mrb[0].mxu0
    %v810 = vadd.f32 %v176, %v809
    %v811 = vpop.f32.mrb[0].mxu0
    %v812 = vadd.f32 %v180, %v811
    %v813 = vpop.f32.mrb[0].mxu0
    %v814 = vpop.f32.mrb[0].mxu0
    %815 = vdwg.mxu0
    %816 = vmatprep.subr.bf16.mxu0 %v412
    %817 = vmatpush1.bf16.msra.mxu0 %v411
    %818 = vmatprep.subr.bf16.mxu0 %v428
    %819 = vmatpush1.bf16.msra.mxu0 %v427
    %820 = vmatprep.subr.bf16.mxu0 %v444
    %821 = vmatpush1.bf16.msra.mxu0 %v443
    %822 = vmatprep.subr.bf16.mxu0 %v460
    %823 = vmatpush1.bf16.msra.mxu0 %v459
    %824 = vmatprep.subr.bf16.mxu0 0
    %825 = vmatpush1.bf16.msra.mxu0 0
    %826 = vmatprep.subr.bf16.mxu0 0
    %827 = vmatpush1.bf16.msra.mxu0 0
    %828 = vmatprep.subr.bf16.mxu0 0
    %829 = vmatpush1.bf16.msra.mxu0 0
    %830 = vmatprep.subr.bf16.mxu0 0
    %831 = vmatpush1.bf16.msra.mxu0 0
    %832 = vmatprep.subr.bf16.mxu0 0
    %833 = vmatpush1.bf16.msra.mxu0 0
    %834 = vmatprep.subr.bf16.mxu0 0
    %835 = vmatpush1.bf16.msra.mxu0 0
    %836 = vmatprep.subr.bf16.mxu0 0
    %837 = vmatpush1.bf16.msra.mxu0 0
    %838 = vmatprep.subr.bf16.mxu0 0
    %839 = vmatpush1.bf16.msra.mxu0 0
    %840 = vmatprep.subr.bf16.mxu0 0
    %841 = vmatpush1.bf16.msra.mxu0 0
    %842 = vmatprep.subr.bf16.mxu0 0
    %843 = vmatpush1.bf16.msra.mxu0 0
    %844 = vmatprep.subr.bf16.mxu0 0
    %845 = vmatpush1.bf16.msra.mxu0 0
    %846 = vmatprep.subr.bf16.mxu0 0
    %847 = vmatpush1.bf16.msra.mxu0 0
    %848 = vmatprep.mubr.bf16.mxu0 0
    %849 = vmatmul.mubr.bf16.gmra.mrb[0].mxu0 %v527
    %v850 = vpop.f32.mrb[0].mxu0
    %v851 = vadd.f32 %v184, %v850
    %v852 = vpop.f32.mrb[0].mxu0
    %v853 = vadd.f32 %v188, %v852
    %v854 = vpop.f32.mrb[0].mxu0
    %v855 = vpop.f32.mrb[0].mxu0
    %856 = vdwg.mxu0
    %857 = vst [vmem:[#allocation4] sm:$0xff] %v564
    %858 = vst [vmem:[#allocation4 + $0x8] sm:$0xff] %v566
    %859 = vst [vmem:[#allocation4 + $0x10] sm:$0xff] %v605
    %860 = vst [vmem:[#allocation4 + $0x18] sm:$0xff] %v607
    %861 = vst [vmem:[#allocation4 + $0x20] sm:$0xff] %v646
    %862 = vst [vmem:[#allocation4 + $0x28] sm:$0xff] %v648
    %863 = vst [vmem:[#allocation4 + $0x30] sm:$0xff] %v687
    %864 = vst [vmem:[#allocation4 + $0x38] sm:$0xff] %v689
    %865 = vst [vmem:[#allocation4 + $0x40] sm:$0xff] %v728
    %866 = vst [vmem:[#allocation4 + $0x48] sm:$0xff] %v730
    %867 = vst [vmem:[#allocation4 + $0x50] sm:$0xff] %v769
    %868 = vst [vmem:[#allocation4 + $0x58] sm:$0xff] %v771
    %869 = vst [vmem:[#allocation4 + $0x60] sm:$0xff] %v810
    %870 = vst [vmem:[#allocation4 + $0x68] sm:$0xff] %v812
    %871 = vst [vmem:[#allocation4 + $0x70] sm:$0xff] %v851
    %872 = vst [vmem:[#allocation4 + $0x78] sm:$0xff] %v853
    %s873 = smul.u32 4, 64
    %s874 = smul.u32 %s873, 16
    %s875 = sshll.u32 %s874, 4
    %876 = dma.done [#allocation3], %s875
    %v877 = vld [vmem:[#allocation2] sm:$0xff]
    %v878 = vld [vmem:[#allocation2 + $0x8] sm:$0xff]
    %v879 = vld [vmem:[#allocation2 + $0x10] sm:$0xff]
    %v880 = vld [vmem:[#allocation2 + $0x18] sm:$0xff]
    %v881 = vld [vmem:[#allocation2 + $0x20] sm:$0xff]
    %v882 = vld [vmem:[#allocation2 + $0x28] sm:$0xff]
    %v883 = vld [vmem:[#allocation2 + $0x30] sm:$0xff]
    %v884 = vld [vmem:[#allocation2 + $0x38] sm:$0xff]
    %v885 = vld [vmem:[#allocation2 + $0x40] sm:$0xff]
    %v886 = vld [vmem:[#allocation2 + $0x48] sm:$0xff]
    %v887 = vld [vmem:[#allocation2 + $0x50] sm:$0xff]
    %v888 = vld [vmem:[#allocation2 + $0x58] sm:$0xff]
    %v889 = vld [vmem:[#allocation2 + $0x60] sm:$0xff]
    %v890 = vld [vmem:[#allocation2 + $0x68] sm:$0xff]
    %v891 = vld [vmem:[#allocation2 + $0x70] sm:$0xff]
    %v892 = vld [vmem:[#allocation2 + $0x78] sm:$0xff]
    %v893 = vld [vmem:[#allocation2 + $0x80] sm:$0xff]
    %v894 = vld [vmem:[#allocation2 + $0x88] sm:$0xff]
    %v895 = vld [vmem:[#allocation2 + $0x90] sm:$0xff]
    %v896 = vld [vmem:[#allocation2 + $0x98] sm:$0xff]
    %v897 = vld [vmem:[#allocation2 + $0xa0] sm:$0xff]
    %v898 = vld [vmem:[#allocation2 + $0xa8] sm:$0xff]
    %v899 = vld [vmem:[#allocation2 + $0xb0] sm:$0xff]
    %v900 = vld [vmem:[#allocation2 + $0xb8] sm:$0xff]
    %v901 = vld [vmem:[#allocation2 + $0xc0] sm:$0xff]
    %v902 = vld [vmem:[#allocation2 + $0xc8] sm:$0xff]
    %v903 = vld [vmem:[#allocation2 + $0xd0] sm:$0xff]
    %v904 = vld [vmem:[#allocation2 + $0xd8] sm:$0xff]
    %v905 = vld [vmem:[#allocation2 + $0xe0] sm:$0xff]
    %v906 = vld [vmem:[#allocation2 + $0xe8] sm:$0xff]
    %v907 = vld [vmem:[#allocation2 + $0xf0] sm:$0xff]
    %v908 = vld [vmem:[#allocation2 + $0xf8] sm:$0xff]
    %v909 = vld [vmem:[#allocation2 + $0x100] sm:$0xff]
    %v910 = vld [vmem:[#allocation2 + $0x108] sm:$0xff]
    %v911 = vld [vmem:[#allocation2 + $0x110] sm:$0xff]
    %v912 = vld [vmem:[#allocation2 + $0x118] sm:$0xff]
    %v913 = vld [vmem:[#allocation2 + $0x120] sm:$0xff]
    %v914 = vld [vmem:[#allocation2 + $0x128] sm:$0xff]
    %v915 = vld [vmem:[#allocation2 + $0x130] sm:$0xff]
    %v916 = vld [vmem:[#allocation2 + $0x138] sm:$0xff]
    %v917 = vld [vmem:[#allocation2 + $0x140] sm:$0xff]
    %v918 = vld [vmem:[#allocation2 + $0x148] sm:$0xff]
    %v919 = vld [vmem:[#allocation2 + $0x150] sm:$0xff]
    %v920 = vld [vmem:[#allocation2 + $0x158] sm:$0xff]
    %v921 = vld [vmem:[#allocation2 + $0x160] sm:$0xff]
    %v922 = vld [vmem:[#allocation2 + $0x168] sm:$0xff]
    %v923 = vld [vmem:[#allocation2 + $0x170] sm:$0xff]
    %v924 = vld [vmem:[#allocation2 + $0x178] sm:$0xff]
    %v925 = vld [vmem:[#allocation2 + $0x180] sm:$0xff]
    %v926 = vld [vmem:[#allocation2 + $0x188] sm:$0xff]
    %v927 = vld [vmem:[#allocation2 + $0x190] sm:$0xff]
    %v928 = vld [vmem:[#allocation2 + $0x198] sm:$0xff]
    %v929 = vld [vmem:[#allocation2 + $0x1a0] sm:$0xff]
    %v930 = vld [vmem:[#allocation2 + $0x1a8] sm:$0xff]
    %v931 = vld [vmem:[#allocation2 + $0x1b0] sm:$0xff]
    %v932 = vld [vmem:[#allocation2 + $0x1b8] sm:$0xff]
    %v933 = vld [vmem:[#allocation2 + $0x1c0] sm:$0xff]
    %v934 = vld [vmem:[#allocation2 + $0x1c8] sm:$0xff]
    %v935 = vld [vmem:[#allocation2 + $0x1d0] sm:$0xff]
    %v936 = vld [vmem:[#allocation2 + $0x1d8] sm:$0xff]
    %v937 = vld [vmem:[#allocation2 + $0x1e0] sm:$0xff]
    %v938 = vld [vmem:[#allocation2 + $0x1e8] sm:$0xff]
    %v939 = vld [vmem:[#allocation2 + $0x1f0] sm:$0xff]
    %v940 = vld [vmem:[#allocation2 + $0x1f8] sm:$0xff]
    %v941 = vld [vmem:[#allocation2 + $0x200] sm:$0xff]
    %v942 = vld [vmem:[#allocation2 + $0x208] sm:$0xff]
    %v943 = vld [vmem:[#allocation2 + $0x210] sm:$0xff]
    %v944 = vld [vmem:[#allocation2 + $0x218] sm:$0xff]
    %v945 = vld [vmem:[#allocation2 + $0x220] sm:$0xff]
    %v946 = vld [vmem:[#allocation2 + $0x228] sm:$0xff]
    %v947 = vld [vmem:[#allocation2 + $0x230] sm:$0xff]
    %v948 = vld [vmem:[#allocation2 + $0x238] sm:$0xff]
    %v949 = vld [vmem:[#allocation2 + $0x240] sm:$0xff]
    %v950 = vld [vmem:[#allocation2 + $0x248] sm:$0xff]
    %v951 = vld [vmem:[#allocation2 + $0x250] sm:$0xff]
    %v952 = vld [vmem:[#allocation2 + $0x258] sm:$0xff]
    %v953 = vld [vmem:[#allocation2 + $0x260] sm:$0xff]
    %v954 = vld [vmem:[#allocation2 + $0x268] sm:$0xff]
    %v955 = vld [vmem:[#allocation2 + $0x270] sm:$0xff]
    %v956 = vld [vmem:[#allocation2 + $0x278] sm:$0xff]
    %v957 = vld [vmem:[#allocation2 + $0x280] sm:$0xff]
    %v958 = vld [vmem:[#allocation2 + $0x288] sm:$0xff]
    %v959 = vld [vmem:[#allocation2 + $0x290] sm:$0xff]
    %v960 = vld [vmem:[#allocation2 + $0x298] sm:$0xff]
    %v961 = vld [vmem:[#allocation2 + $0x2a0] sm:$0xff]
    %v962 = vld [vmem:[#allocation2 + $0x2a8] sm:$0xff]
    %v963 = vld [vmem:[#allocation2 + $0x2b0] sm:$0xff]
    %v964 = vld [vmem:[#allocation2 + $0x2b8] sm:$0xff]
    %v965 = vld [vmem:[#allocation2 + $0x2c0] sm:$0xff]
    %v966 = vld [vmem:[#allocation2 + $0x2c8] sm:$0xff]
    %v967 = vld [vmem:[#allocation2 + $0x2d0] sm:$0xff]
    %v968 = vld [vmem:[#allocation2 + $0x2d8] sm:$0xff]
    %v969 = vld [vmem:[#allocation2 + $0x2e0] sm:$0xff]
    %v970 = vld [vmem:[#allocation2 + $0x2e8] sm:$0xff]
    %v971 = vld [vmem:[#allocation2 + $0x2f0] sm:$0xff]
    %v972 = vld [vmem:[#allocation2 + $0x2f8] sm:$0xff]
    %v973 = vld [vmem:[#allocation2 + $0x300] sm:$0xff]
    %v974 = vld [vmem:[#allocation2 + $0x308] sm:$0xff]
    %v975 = vld [vmem:[#allocation2 + $0x310] sm:$0xff]
    %v976 = vld [vmem:[#allocation2 + $0x318] sm:$0xff]
    %v977 = vld [vmem:[#allocation2 + $0x320] sm:$0xff]
    %v978 = vld [vmem:[#allocation2 + $0x328] sm:$0xff]
    %v979 = vld [vmem:[#allocation2 + $0x330] sm:$0xff]
    %v980 = vld [vmem:[#allocation2 + $0x338] sm:$0xff]
    %v981 = vld [vmem:[#allocation2 + $0x340] sm:$0xff]
    %v982 = vld [vmem:[#allocation2 + $0x348] sm:$0xff]
    %v983 = vld [vmem:[#allocation2 + $0x350] sm:$0xff]
    %v984 = vld [vmem:[#allocation2 + $0x358] sm:$0xff]
    %v985 = vld [vmem:[#allocation2 + $0x360] sm:$0xff]
    %v986 = vld [vmem:[#allocation2 + $0x368] sm:$0xff]
    %v987 = vld [vmem:[#allocation2 + $0x370] sm:$0xff]
    %v988 = vld [vmem:[#allocation2 + $0x378] sm:$0xff]
    %v989 = vld [vmem:[#allocation2 + $0x380] sm:$0xff]
    %v990 = vld [vmem:[#allocation2 + $0x388] sm:$0xff]
    %v991 = vld [vmem:[#allocation2 + $0x390] sm:$0xff]
    %v992 = vld [vmem:[#allocation2 + $0x398] sm:$0xff]
    %v993 = vld [vmem:[#allocation2 + $0x3a0] sm:$0xff]
    %v994 = vld [vmem:[#allocation2 + $0x3a8] sm:$0xff]
    %v995 = vld [vmem:[#allocation2 + $0x3b0] sm:$0xff]
    %v996 = vld [vmem:[#allocation2 + $0x3b8] sm:$0xff]
    %v997 = vld [vmem:[#allocation2 + $0x3c0] sm:$0xff]
    %v998 = vld [vmem:[#allocation2 + $0x3c8] sm:$0xff]
    %v999 = vld [vmem:[#allocation2 + $0x3d0] sm:$0xff]
    %v1000 = vld [vmem:[#allocation2 + $0x3d8] sm:$0xff]
    %v1001 = vld [vmem:[#allocation2 + $0x3e0] sm:$0xff]
    %v1002 = vld [vmem:[#allocation2 + $0x3e8] sm:$0xff]
    %v1003 = vld [vmem:[#allocation2 + $0x3f0] sm:$0xff]
    %v1004 = vld [vmem:[#allocation2 + $0x3f8] sm:$0xff]
    %v1005 = vld [vmem:[#allocation2 + $0x400] sm:$0xff]
    %v1006 = vld [vmem:[#allocation2 + $0x408] sm:$0xff]
    %v1007 = vld [vmem:[#allocation2 + $0x410] sm:$0xff]
    %v1008 = vld [vmem:[#allocation2 + $0x418] sm:$0xff]
    %v1009 = vld [vmem:[#allocation2 + $0x420] sm:$0xff]
    %v1010 = vld [vmem:[#allocation2 + $0x428] sm:$0xff]
    %v1011 = vld [vmem:[#allocation2 + $0x430] sm:$0xff]
    %v1012 = vld [vmem:[#allocation2 + $0x438] sm:$0xff]
    %v1013 = vld [vmem:[#allocation2 + $0x440] sm:$0xff]
    %v1014 = vld [vmem:[#allocation2 + $0x448] sm:$0xff]
    %v1015 = vld [vmem:[#allocation2 + $0x450] sm:$0xff]
    %v1016 = vld [vmem:[#allocation2 + $0x458] sm:$0xff]
    %v1017 = vld [vmem:[#allocation2 + $0x460] sm:$0xff]
    %v1018 = vld [vmem:[#allocation2 + $0x468] sm:$0xff]
    %v1019 = vld [vmem:[#allocation2 + $0x470] sm:$0xff]
    %v1020 = vld [vmem:[#allocation2 + $0x478] sm:$0xff]
    %v1021 = vld [vmem:[#allocation2 + $0x480] sm:$0xff]
    %v1022 = vld [vmem:[#allocation2 + $0x488] sm:$0xff]
    %v1023 = vld [vmem:[#allocation2 + $0x490] sm:$0xff]
    %v1024 = vld [vmem:[#allocation2 + $0x498] sm:$0xff]
    %v1025 = vld [vmem:[#allocation2 + $0x4a0] sm:$0xff]
    %v1026 = vld [vmem:[#allocation2 + $0x4a8] sm:$0xff]
    %v1027 = vld [vmem:[#allocation2 + $0x4b0] sm:$0xff]
    %v1028 = vld [vmem:[#allocation2 + $0x4b8] sm:$0xff]
    %v1029 = vld [vmem:[#allocation2 + $0x4c0] sm:$0xff]
    %v1030 = vld [vmem:[#allocation2 + $0x4c8] sm:$0xff]
    %v1031 = vld [vmem:[#allocation2 + $0x4d0] sm:$0xff]
    %v1032 = vld [vmem:[#allocation2 + $0x4d8] sm:$0xff]
    %v1033 = vld [vmem:[#allocation2 + $0x4e0] sm:$0xff]
    %v1034 = vld [vmem:[#allocation2 + $0x4e8] sm:$0xff]
    %v1035 = vld [vmem:[#allocation2 + $0x4f0] sm:$0xff]
    %v1036 = vld [vmem:[#allocation2 + $0x4f8] sm:$0xff]
    %v1037 = vld [vmem:[#allocation2 + $0x500] sm:$0xff]
    %v1038 = vld [vmem:[#allocation2 + $0x508] sm:$0xff]
    %v1039 = vld [vmem:[#allocation2 + $0x510] sm:$0xff]
    %v1040 = vld [vmem:[#allocation2 + $0x518] sm:$0xff]
    %v1041 = vld [vmem:[#allocation2 + $0x520] sm:$0xff]
    %v1042 = vld [vmem:[#allocation2 + $0x528] sm:$0xff]
    %v1043 = vld [vmem:[#allocation2 + $0x530] sm:$0xff]
    %v1044 = vld [vmem:[#allocation2 + $0x538] sm:$0xff]
    %v1045 = vld [vmem:[#allocation2 + $0x540] sm:$0xff]
    %v1046 = vld [vmem:[#allocation2 + $0x548] sm:$0xff]
    %v1047 = vld [vmem:[#allocation2 + $0x550] sm:$0xff]
    %v1048 = vld [vmem:[#allocation2 + $0x558] sm:$0xff]
    %v1049 = vld [vmem:[#allocation2 + $0x560] sm:$0xff]
    %v1050 = vld [vmem:[#allocation2 + $0x568] sm:$0xff]
    %v1051 = vld [vmem:[#allocation2 + $0x570] sm:$0xff]
    %v1052 = vld [vmem:[#allocation2 + $0x578] sm:$0xff]
    %v1053 = vld [vmem:[#allocation2 + $0x580] sm:$0xff]
    %v1054 = vld [vmem:[#allocation2 + $0x588] sm:$0xff]
    %v1055 = vld [vmem:[#allocation2 + $0x590] sm:$0xff]
    %v1056 = vld [vmem:[#allocation2 + $0x598] sm:$0xff]
    %v1057 = vld [vmem:[#allocation2 + $0x5a0] sm:$0xff]
    %v1058 = vld [vmem:[#allocation2 + $0x5a8] sm:$0xff]
    %v1059 = vld [vmem:[#allocation2 + $0x5b0] sm:$0xff]
    %v1060 = vld [vmem:[#allocation2 + $0x5b8] sm:$0xff]
    %v1061 = vld [vmem:[#allocation2 + $0x5c0] sm:$0xff]
    %v1062 = vld [vmem:[#allocation2 + $0x5c8] sm:$0xff]
    %v1063 = vld [vmem:[#allocation2 + $0x5d0] sm:$0xff]
    %v1064 = vld [vmem:[#allocation2 + $0x5d8] sm:$0xff]
    %v1065 = vld [vmem:[#allocation2 + $0x5e0] sm:$0xff]
    %v1066 = vld [vmem:[#allocation2 + $0x5e8] sm:$0xff]
    %v1067 = vld [vmem:[#allocation2 + $0x5f0] sm:$0xff]
    %v1068 = vld [vmem:[#allocation2 + $0x5f8] sm:$0xff]
    %v1069 = vld [vmem:[#allocation2 + $0x600] sm:$0xff]
    %v1070 = vld [vmem:[#allocation2 + $0x608] sm:$0xff]
    %v1071 = vld [vmem:[#allocation2 + $0x610] sm:$0xff]
    %v1072 = vld [vmem:[#allocation2 + $0x618] sm:$0xff]
    %v1073 = vld [vmem:[#allocation2 + $0x620] sm:$0xff]
    %v1074 = vld [vmem:[#allocation2 + $0x628] sm:$0xff]
    %v1075 = vld [vmem:[#allocation2 + $0x630] sm:$0xff]
    %v1076 = vld [vmem:[#allocation2 + $0x638] sm:$0xff]
    %v1077 = vld [vmem:[#allocation2 + $0x640] sm:$0xff]
    %v1078 = vld [vmem:[#allocation2 + $0x648] sm:$0xff]
    %v1079 = vld [vmem:[#allocation2 + $0x650] sm:$0xff]
    %v1080 = vld [vmem:[#allocation2 + $0x658] sm:$0xff]
    %v1081 = vld [vmem:[#allocation2 + $0x660] sm:$0xff]
    %v1082 = vld [vmem:[#allocation2 + $0x668] sm:$0xff]
    %v1083 = vld [vmem:[#allocation2 + $0x670] sm:$0xff]
    %v1084 = vld [vmem:[#allocation2 + $0x678] sm:$0xff]
    %v1085 = vld [vmem:[#allocation2 + $0x680] sm:$0xff]
    %v1086 = vld [vmem:[#allocation2 + $0x688] sm:$0xff]
    %v1087 = vld [vmem:[#allocation2 + $0x690] sm:$0xff]
    %v1088 = vld [vmem:[#allocation2 + $0x698] sm:$0xff]
    %v1089 = vld [vmem:[#allocation2 + $0x6a0] sm:$0xff]
    %v1090 = vld [vmem:[#allocation2 + $0x6a8] sm:$0xff]
    %v1091 = vld [vmem:[#allocation2 + $0x6b0] sm:$0xff]
    %v1092 = vld [vmem:[#allocation2 + $0x6b8] sm:$0xff]
    %v1093 = vld [vmem:[#allocation2 + $0x6c0] sm:$0xff]
    %v1094 = vld [vmem:[#allocation2 + $0x6c8] sm:$0xff]
    %v1095 = vld [vmem:[#allocation2 + $0x6d0] sm:$0xff]
    %v1096 = vld [vmem:[#allocation2 + $0x6d8] sm:$0xff]
    %v1097 = vld [vmem:[#allocation2 + $0x6e0] sm:$0xff]
    %v1098 = vld [vmem:[#allocation2 + $0x6e8] sm:$0xff]
    %v1099 = vld [vmem:[#allocation2 + $0x6f0] sm:$0xff]
    %v1100 = vld [vmem:[#allocation2 + $0x6f8] sm:$0xff]
    %v1101 = vld [vmem:[#allocation2 + $0x700] sm:$0xff]
    %v1102 = vld [vmem:[#allocation2 + $0x708] sm:$0xff]
    %v1103 = vld [vmem:[#allocation2 + $0x710] sm:$0xff]
    %v1104 = vld [vmem:[#allocation2 + $0x718] sm:$0xff]
    %v1105 = vld [vmem:[#allocation2 + $0x720] sm:$0xff]
    %v1106 = vld [vmem:[#allocation2 + $0x728] sm:$0xff]
    %v1107 = vld [vmem:[#allocation2 + $0x730] sm:$0xff]
    %v1108 = vld [vmem:[#allocation2 + $0x738] sm:$0xff]
    %v1109 = vld [vmem:[#allocation2 + $0x740] sm:$0xff]
    %v1110 = vld [vmem:[#allocation2 + $0x748] sm:$0xff]
    %v1111 = vld [vmem:[#allocation2 + $0x750] sm:$0xff]
    %v1112 = vld [vmem:[#allocation2 + $0x758] sm:$0xff]
    %v1113 = vld [vmem:[#allocation2 + $0x760] sm:$0xff]
    %v1114 = vld [vmem:[#allocation2 + $0x768] sm:$0xff]
    %v1115 = vld [vmem:[#allocation2 + $0x770] sm:$0xff]
    %v1116 = vld [vmem:[#allocation2 + $0x778] sm:$0xff]
    %v1117 = vld [vmem:[#allocation2 + $0x780] sm:$0xff]
    %v1118 = vld [vmem:[#allocation2 + $0x788] sm:$0xff]
    %v1119 = vld [vmem:[#allocation2 + $0x790] sm:$0xff]
    %v1120 = vld [vmem:[#allocation2 + $0x798] sm:$0xff]
    %v1121 = vld [vmem:[#allocation2 + $0x7a0] sm:$0xff]
    %v1122 = vld [vmem:[#allocation2 + $0x7a8] sm:$0xff]
    %v1123 = vld [vmem:[#allocation2 + $0x7b0] sm:$0xff]
    %v1124 = vld [vmem:[#allocation2 + $0x7b8] sm:$0xff]
    %v1125 = vld [vmem:[#allocation2 + $0x7c0] sm:$0xff]
    %v1126 = vld [vmem:[#allocation2 + $0x7c8] sm:$0xff]
    %v1127 = vld [vmem:[#allocation2 + $0x7d0] sm:$0xff]
    %v1128 = vld [vmem:[#allocation2 + $0x7d8] sm:$0xff]
    %v1129 = vld [vmem:[#allocation2 + $0x7e0] sm:$0xff]
    %v1130 = vld [vmem:[#allocation2 + $0x7e8] sm:$0xff]
    %v1131 = vld [vmem:[#allocation2 + $0x7f0] sm:$0xff]
    %v1132 = vld [vmem:[#allocation2 + $0x7f8] sm:$0xff]
    %v1133 = vld [vmem:[#allocation2 + $0x800] sm:$0xff]
    %v1134 = vld [vmem:[#allocation2 + $0x808] sm:$0xff]
    %v1135 = vld [vmem:[#allocation2 + $0x810] sm:$0xff]
    %v1136 = vld [vmem:[#allocation2 + $0x818] sm:$0xff]
    %v1137 = vld [vmem:[#allocation2 + $0x820] sm:$0xff]
    %v1138 = vld [vmem:[#allocation2 + $0x828] sm:$0xff]
    %v1139 = vld [vmem:[#allocation2 + $0x830] sm:$0xff]
    %v1140 = vld [vmem:[#allocation2 + $0x838] sm:$0xff]
    %v1141 = vld [vmem:[#allocation2 + $0x840] sm:$0xff]
    %v1142 = vld [vmem:[#allocation2 + $0x848] sm:$0xff]
    %v1143 = vld [vmem:[#allocation2 + $0x850] sm:$0xff]
    %v1144 = vld [vmem:[#allocation2 + $0x858] sm:$0xff]
    %v1145 = vld [vmem:[#allocation2 + $0x860] sm:$0xff]
    %v1146 = vld [vmem:[#allocation2 + $0x868] sm:$0xff]
    %v1147 = vld [vmem:[#allocation2 + $0x870] sm:$0xff]
    %v1148 = vld [vmem:[#allocation2 + $0x878] sm:$0xff]
    %v1149 = vld [vmem:[#allocation2 + $0x880] sm:$0xff]
    %v1150 = vld [vmem:[#allocation2 + $0x888] sm:$0xff]
    %v1151 = vld [vmem:[#allocation2 + $0x890] sm:$0xff]
    %v1152 = vld [vmem:[#allocation2 + $0x898] sm:$0xff]
    %v1153 = vld [vmem:[#allocation2 + $0x8a0] sm:$0xff]
    %v1154 = vld [vmem:[#allocation2 + $0x8a8] sm:$0xff]
    %v1155 = vld [vmem:[#allocation2 + $0x8b0] sm:$0xff]
    %v1156 = vld [vmem:[#allocation2 + $0x8b8] sm:$0xff]
    %v1157 = vld [vmem:[#allocation2 + $0x8c0] sm:$0xff]
    %v1158 = vld [vmem:[#allocation2 + $0x8c8] sm:$0xff]
    %v1159 = vld [vmem:[#allocation2 + $0x8d0] sm:$0xff]
    %v1160 = vld [vmem:[#allocation2 + $0x8d8] sm:$0xff]
    %v1161 = vld [vmem:[#allocation2 + $0x8e0] sm:$0xff]
    %v1162 = vld [vmem:[#allocation2 + $0x8e8] sm:$0xff]
    %v1163 = vld [vmem:[#allocation2 + $0x8f0] sm:$0xff]
    %v1164 = vld [vmem:[#allocation2 + $0x8f8] sm:$0xff]
    %v1165 = vld [vmem:[#allocation2 + $0x900] sm:$0xff]
    %v1166 = vld [vmem:[#allocation2 + $0x908] sm:$0xff]
    %v1167 = vld [vmem:[#allocation2 + $0x910] sm:$0xff]
    %v1168 = vld [vmem:[#allocation2 + $0x918] sm:$0xff]
    %v1169 = vld [vmem:[#allocation2 + $0x920] sm:$0xff]
    %v1170 = vld [vmem:[#allocation2 + $0x928] sm:$0xff]
    %v1171 = vld [vmem:[#allocation2 + $0x930] sm:$0xff]
    %v1172 = vld [vmem:[#allocation2 + $0x938] sm:$0xff]
    %v1173 = vld [vmem:[#allocation2 + $0x940] sm:$0xff]
    %v1174 = vld [vmem:[#allocation2 + $0x948] sm:$0xff]
    %v1175 = vld [vmem:[#allocation2 + $0x950] sm:$0xff]
    %v1176 = vld [vmem:[#allocation2 + $0x958] sm:$0xff]
    %v1177 = vld [vmem:[#allocation2 + $0x960] sm:$0xff]
    %v1178 = vld [vmem:[#allocation2 + $0x968] sm:$0xff]
    %v1179 = vld [vmem:[#allocation2 + $0x970] sm:$0xff]
    %v1180 = vld [vmem:[#allocation2 + $0x978] sm:$0xff]
    %v1181 = vld [vmem:[#allocation2 + $0x980] sm:$0xff]
    %v1182 = vld [vmem:[#allocation2 + $0x988] sm:$0xff]
    %v1183 = vld [vmem:[#allocation2 + $0x990] sm:$0xff]
    %v1184 = vld [vmem:[#allocation2 + $0x998] sm:$0xff]
    %v1185 = vld [vmem:[#allocation2 + $0x9a0] sm:$0xff]
    %v1186 = vld [vmem:[#allocation2 + $0x9a8] sm:$0xff]
    %v1187 = vld [vmem:[#allocation2 + $0x9b0] sm:$0xff]
    %v1188 = vld [vmem:[#allocation2 + $0x9b8] sm:$0xff]
    %v1189 = vld [vmem:[#allocation2 + $0x9c0] sm:$0xff]
    %v1190 = vld [vmem:[#allocation2 + $0x9c8] sm:$0xff]
    %v1191 = vld [vmem:[#allocation2 + $0x9d0] sm:$0xff]
    %v1192 = vld [vmem:[#allocation2 + $0x9d8] sm:$0xff]
    %v1193 = vld [vmem:[#allocation2 + $0x9e0] sm:$0xff]
    %v1194 = vld [vmem:[#allocation2 + $0x9e8] sm:$0xff]
    %v1195 = vld [vmem:[#allocation2 + $0x9f0] sm:$0xff]
    %v1196 = vld [vmem:[#allocation2 + $0x9f8] sm:$0xff]
    %v1197 = vld [vmem:[#allocation2 + $0xa00] sm:$0xff]
    %v1198 = vld [vmem:[#allocation2 + $0xa08] sm:$0xff]
    %v1199 = vld [vmem:[#allocation2 + $0xa10] sm:$0xff]
    %v1200 = vld [vmem:[#allocation2 + $0xa18] sm:$0xff]
    %v1201 = vld [vmem:[#allocation2 + $0xa20] sm:$0xff]
    %v1202 = vld [vmem:[#allocation2 + $0xa28] sm:$0xff]
    %v1203 = vld [vmem:[#allocation2 + $0xa30] sm:$0xff]
    %v1204 = vld [vmem:[#allocation2 + $0xa38] sm:$0xff]
    %v1205 = vld [vmem:[#allocation2 + $0xa40] sm:$0xff]
    %v1206 = vld [vmem:[#allocation2 + $0xa48] sm:$0xff]
    %v1207 = vld [vmem:[#allocation2 + $0xa50] sm:$0xff]
    %v1208 = vld [vmem:[#allocation2 + $0xa58] sm:$0xff]
    %v1209 = vld [vmem:[#allocation2 + $0xa60] sm:$0xff]
    %v1210 = vld [vmem:[#allocation2 + $0xa68] sm:$0xff]
    %v1211 = vld [vmem:[#allocation2 + $0xa70] sm:$0xff]
    %v1212 = vld [vmem:[#allocation2 + $0xa78] sm:$0xff]
    %v1213 = vld [vmem:[#allocation2 + $0xa80] sm:$0xff]
    %v1214 = vld [vmem:[#allocation2 + $0xa88] sm:$0xff]
    %v1215 = vld [vmem:[#allocation2 + $0xa90] sm:$0xff]
    %v1216 = vld [vmem:[#allocation2 + $0xa98] sm:$0xff]
    %v1217 = vld [vmem:[#allocation2 + $0xaa0] sm:$0xff]
    %v1218 = vld [vmem:[#allocation2 + $0xaa8] sm:$0xff]
    %v1219 = vld [vmem:[#allocation2 + $0xab0] sm:$0xff]
    %v1220 = vld [vmem:[#allocation2 + $0xab8] sm:$0xff]
    %v1221 = vld [vmem:[#allocation2 + $0xac0] sm:$0xff]
    %v1222 = vld [vmem:[#allocation2 + $0xac8] sm:$0xff]
    %v1223 = vld [vmem:[#allocation2 + $0xad0] sm:$0xff]
    %v1224 = vld [vmem:[#allocation2 + $0xad8] sm:$0xff]
    %v1225 = vld [vmem:[#allocation2 + $0xae0] sm:$0xff]
    %v1226 = vld [vmem:[#allocation2 + $0xae8] sm:$0xff]
    %v1227 = vld [vmem:[#allocation2 + $0xaf0] sm:$0xff]
    %v1228 = vld [vmem:[#allocation2 + $0xaf8] sm:$0xff]
    %v1229 = vld [vmem:[#allocation2 + $0xb00] sm:$0xff]
    %v1230 = vld [vmem:[#allocation2 + $0xb08] sm:$0xff]
    %v1231 = vld [vmem:[#allocation2 + $0xb10] sm:$0xff]
    %v1232 = vld [vmem:[#allocation2 + $0xb18] sm:$0xff]
    %v1233 = vld [vmem:[#allocation2 + $0xb20] sm:$0xff]
    %v1234 = vld [vmem:[#allocation2 + $0xb28] sm:$0xff]
    %v1235 = vld [vmem:[#allocation2 + $0xb30] sm:$0xff]
    %v1236 = vld [vmem:[#allocation2 + $0xb38] sm:$0xff]
    %v1237 = vld [vmem:[#allocation2 + $0xb40] sm:$0xff]
    %v1238 = vld [vmem:[#allocation2 + $0xb48] sm:$0xff]
    %v1239 = vld [vmem:[#allocation2 + $0xb50] sm:$0xff]
    %v1240 = vld [vmem:[#allocation2 + $0xb58] sm:$0xff]
    %v1241 = vld [vmem:[#allocation2 + $0xb60] sm:$0xff]
    %v1242 = vld [vmem:[#allocation2 + $0xb68] sm:$0xff]
    %v1243 = vld [vmem:[#allocation2 + $0xb70] sm:$0xff]
    %v1244 = vld [vmem:[#allocation2 + $0xb78] sm:$0xff]
    %v1245 = vld [vmem:[#allocation2 + $0xb80] sm:$0xff]
    %v1246 = vld [vmem:[#allocation2 + $0xb88] sm:$0xff]
    %v1247 = vld [vmem:[#allocation2 + $0xb90] sm:$0xff]
    %v1248 = vld [vmem:[#allocation2 + $0xb98] sm:$0xff]
    %v1249 = vld [vmem:[#allocation2 + $0xba0] sm:$0xff]
    %v1250 = vld [vmem:[#allocation2 + $0xba8] sm:$0xff]
    %v1251 = vld [vmem:[#allocation2 + $0xbb0] sm:$0xff]
    %v1252 = vld [vmem:[#allocation2 + $0xbb8] sm:$0xff]
    %v1253 = vld [vmem:[#allocation2 + $0xbc0] sm:$0xff]
    %v1254 = vld [vmem:[#allocation2 + $0xbc8] sm:$0xff]
    %v1255 = vld [vmem:[#allocation2 + $0xbd0] sm:$0xff]
    %v1256 = vld [vmem:[#allocation2 + $0xbd8] sm:$0xff]
    %v1257 = vld [vmem:[#allocation2 + $0xbe0] sm:$0xff]
    %v1258 = vld [vmem:[#allocation2 + $0xbe8] sm:$0xff]
    %v1259 = vld [vmem:[#allocation2 + $0xbf0] sm:$0xff]
    %v1260 = vld [vmem:[#allocation2 + $0xbf8] sm:$0xff]
    %v1261 = vld [vmem:[#allocation2 + $0xc00] sm:$0xff]
    %v1262 = vld [vmem:[#allocation2 + $0xc08] sm:$0xff]
    %v1263 = vld [vmem:[#allocation2 + $0xc10] sm:$0xff]
    %v1264 = vld [vmem:[#allocation2 + $0xc18] sm:$0xff]
    %v1265 = vld [vmem:[#allocation2 + $0xc20] sm:$0xff]
    %v1266 = vld [vmem:[#allocation2 + $0xc28] sm:$0xff]
    %v1267 = vld [vmem:[#allocation2 + $0xc30] sm:$0xff]
    %v1268 = vld [vmem:[#allocation2 + $0xc38] sm:$0xff]
    %v1269 = vld [vmem:[#allocation2 + $0xc40] sm:$0xff]
    %v1270 = vld [vmem:[#allocation2 + $0xc48] sm:$0xff]
    %v1271 = vld [vmem:[#allocation2 + $0xc50] sm:$0xff]
    %v1272 = vld [vmem:[#allocation2 + $0xc58] sm:$0xff]
    %v1273 = vld [vmem:[#allocation2 + $0xc60] sm:$0xff]
    %v1274 = vld [vmem:[#allocation2 + $0xc68] sm:$0xff]
    %v1275 = vld [vmem:[#allocation2 + $0xc70] sm:$0xff]
    %v1276 = vld [vmem:[#allocation2 + $0xc78] sm:$0xff]
    %v1277 = vld [vmem:[#allocation2 + $0xc80] sm:$0xff]
    %v1278 = vld [vmem:[#allocation2 + $0xc88] sm:$0xff]
    %v1279 = vld [vmem:[#allocation2 + $0xc90] sm:$0xff]
    %v1280 = vld [vmem:[#allocation2 + $0xc98] sm:$0xff]
    %v1281 = vld [vmem:[#allocation2 + $0xca0] sm:$0xff]
    %v1282 = vld [vmem:[#allocation2 + $0xca8] sm:$0xff]
    %v1283 = vld [vmem:[#allocation2 + $0xcb0] sm:$0xff]
    %v1284 = vld [vmem:[#allocation2 + $0xcb8] sm:$0xff]
    %v1285 = vld [vmem:[#allocation2 + $0xcc0] sm:$0xff]
    %v1286 = vld [vmem:[#allocation2 + $0xcc8] sm:$0xff]
    %v1287 = vld [vmem:[#allocation2 + $0xcd0] sm:$0xff]
    %v1288 = vld [vmem:[#allocation2 + $0xcd8] sm:$0xff]
    %v1289 = vld [vmem:[#allocation2 + $0xce0] sm:$0xff]
    %v1290 = vld [vmem:[#allocation2 + $0xce8] sm:$0xff]
    %v1291 = vld [vmem:[#allocation2 + $0xcf0] sm:$0xff]
    %v1292 = vld [vmem:[#allocation2 + $0xcf8] sm:$0xff]
    %v1293 = vld [vmem:[#allocation2 + $0xd00] sm:$0xff]
    %v1294 = vld [vmem:[#allocation2 + $0xd08] sm:$0xff]
    %v1295 = vld [vmem:[#allocation2 + $0xd10] sm:$0xff]
    %v1296 = vld [vmem:[#allocation2 + $0xd18] sm:$0xff]
    %v1297 = vld [vmem:[#allocation2 + $0xd20] sm:$0xff]
    %v1298 = vld [vmem:[#allocation2 + $0xd28] sm:$0xff]
    %v1299 = vld [vmem:[#allocation2 + $0xd30] sm:$0xff]
    %v1300 = vld [vmem:[#allocation2 + $0xd38] sm:$0xff]
    %v1301 = vld [vmem:[#allocation2 + $0xd40] sm:$0xff]
    %v1302 = vld [vmem:[#allocation2 + $0xd48] sm:$0xff]
    %v1303 = vld [vmem:[#allocation2 + $0xd50] sm:$0xff]
    %v1304 = vld [vmem:[#allocation2 + $0xd58] sm:$0xff]
    %v1305 = vld [vmem:[#allocation2 + $0xd60] sm:$0xff]
    %v1306 = vld [vmem:[#allocation2 + $0xd68] sm:$0xff]
    %v1307 = vld [vmem:[#allocation2 + $0xd70] sm:$0xff]
    %v1308 = vld [vmem:[#allocation2 + $0xd78] sm:$0xff]
    %v1309 = vld [vmem:[#allocation2 + $0xd80] sm:$0xff]
    %v1310 = vld [vmem:[#allocation2 + $0xd88] sm:$0xff]
    %v1311 = vld [vmem:[#allocation2 + $0xd90] sm:$0xff]
    %v1312 = vld [vmem:[#allocation2 + $0xd98] sm:$0xff]
    %v1313 = vld [vmem:[#allocation2 + $0xda0] sm:$0xff]
    %v1314 = vld [vmem:[#allocation2 + $0xda8] sm:$0xff]
    %v1315 = vld [vmem:[#allocation2 + $0xdb0] sm:$0xff]
    %v1316 = vld [vmem:[#allocation2 + $0xdb8] sm:$0xff]
    %v1317 = vld [vmem:[#allocation2 + $0xdc0] sm:$0xff]
    %v1318 = vld [vmem:[#allocation2 + $0xdc8] sm:$0xff]
    %v1319 = vld [vmem:[#allocation2 + $0xdd0] sm:$0xff]
    %v1320 = vld [vmem:[#allocation2 + $0xdd8] sm:$0xff]
    %v1321 = vld [vmem:[#allocation2 + $0xde0] sm:$0xff]
    %v1322 = vld [vmem:[#allocation2 + $0xde8] sm:$0xff]
    %v1323 = vld [vmem:[#allocation2 + $0xdf0] sm:$0xff]
    %v1324 = vld [vmem:[#allocation2 + $0xdf8] sm:$0xff]
    %v1325 = vld [vmem:[#allocation2 + $0xe00] sm:$0xff]
    %v1326 = vld [vmem:[#allocation2 + $0xe08] sm:$0xff]
    %v1327 = vld [vmem:[#allocation2 + $0xe10] sm:$0xff]
    %v1328 = vld [vmem:[#allocation2 + $0xe18] sm:$0xff]
    %v1329 = vld [vmem:[#allocation2 + $0xe20] sm:$0xff]
    %v1330 = vld [vmem:[#allocation2 + $0xe28] sm:$0xff]
    %v1331 = vld [vmem:[#allocation2 + $0xe30] sm:$0xff]
    %v1332 = vld [vmem:[#allocation2 + $0xe38] sm:$0xff]
    %v1333 = vld [vmem:[#allocation2 + $0xe40] sm:$0xff]
    %v1334 = vld [vmem:[#allocation2 + $0xe48] sm:$0xff]
    %v1335 = vld [vmem:[#allocation2 + $0xe50] sm:$0xff]
    %v1336 = vld [vmem:[#allocation2 + $0xe58] sm:$0xff]
    %v1337 = vld [vmem:[#allocation2 + $0xe60] sm:$0xff]
    %v1338 = vld [vmem:[#allocation2 + $0xe68] sm:$0xff]
    %v1339 = vld [vmem:[#allocation2 + $0xe70] sm:$0xff]
    %v1340 = vld [vmem:[#allocation2 + $0xe78] sm:$0xff]
    %v1341 = vld [vmem:[#allocation2 + $0xe80] sm:$0xff]
    %v1342 = vld [vmem:[#allocation2 + $0xe88] sm:$0xff]
    %v1343 = vld [vmem:[#allocation2 + $0xe90] sm:$0xff]
    %v1344 = vld [vmem:[#allocation2 + $0xe98] sm:$0xff]
    %v1345 = vld [vmem:[#allocation2 + $0xea0] sm:$0xff]
    %v1346 = vld [vmem:[#allocation2 + $0xea8] sm:$0xff]
    %v1347 = vld [vmem:[#allocation2 + $0xeb0] sm:$0xff]
    %v1348 = vld [vmem:[#allocation2 + $0xeb8] sm:$0xff]
    %v1349 = vld [vmem:[#allocation2 + $0xec0] sm:$0xff]
    %v1350 = vld [vmem:[#allocation2 + $0xec8] sm:$0xff]
    %v1351 = vld [vmem:[#allocation2 + $0xed0] sm:$0xff]
    %v1352 = vld [vmem:[#allocation2 + $0xed8] sm:$0xff]
    %v1353 = vld [vmem:[#allocation2 + $0xee0] sm:$0xff]
    %v1354 = vld [vmem:[#allocation2 + $0xee8] sm:$0xff]
    %v1355 = vld [vmem:[#allocation2 + $0xef0] sm:$0xff]
    %v1356 = vld [vmem:[#allocation2 + $0xef8] sm:$0xff]
    %v1357 = vld [vmem:[#allocation2 + $0xf00] sm:$0xff]
    %v1358 = vld [vmem:[#allocation2 + $0xf08] sm:$0xff]
    %v1359 = vld [vmem:[#allocation2 + $0xf10] sm:$0xff]
    %v1360 = vld [vmem:[#allocation2 + $0xf18] sm:$0xff]
    %v1361 = vld [vmem:[#allocation2 + $0xf20] sm:$0xff]
    %v1362 = vld [vmem:[#allocation2 + $0xf28] sm:$0xff]
    %v1363 = vld [vmem:[#allocation2 + $0xf30] sm:$0xff]
    %v1364 = vld [vmem:[#allocation2 + $0xf38] sm:$0xff]
    %v1365 = vld [vmem:[#allocation2 + $0xf40] sm:$0xff]
    %v1366 = vld [vmem:[#allocation2 + $0xf48] sm:$0xff]
    %v1367 = vld [vmem:[#allocation2 + $0xf50] sm:$0xff]
    %v1368 = vld [vmem:[#allocation2 + $0xf58] sm:$0xff]
    %v1369 = vld [vmem:[#allocation2 + $0xf60] sm:$0xff]
    %v1370 = vld [vmem:[#allocation2 + $0xf68] sm:$0xff]
    %v1371 = vld [vmem:[#allocation2 + $0xf70] sm:$0xff]
    %v1372 = vld [vmem:[#allocation2 + $0xf78] sm:$0xff]
    %v1373 = vld [vmem:[#allocation2 + $0xf80] sm:$0xff]
    %v1374 = vld [vmem:[#allocation2 + $0xf88] sm:$0xff]
    %v1375 = vld [vmem:[#allocation2 + $0xf90] sm:$0xff]
    %v1376 = vld [vmem:[#allocation2 + $0xf98] sm:$0xff]
    %v1377 = vld [vmem:[#allocation2 + $0xfa0] sm:$0xff]
    %v1378 = vld [vmem:[#allocation2 + $0xfa8] sm:$0xff]
    %v1379 = vld [vmem:[#allocation2 + $0xfb0] sm:$0xff]
    %v1380 = vld [vmem:[#allocation2 + $0xfb8] sm:$0xff]
    %v1381 = vld [vmem:[#allocation2 + $0xfc0] sm:$0xff]
    %v1382 = vld [vmem:[#allocation2 + $0xfc8] sm:$0xff]
    %v1383 = vld [vmem:[#allocation2 + $0xfd0] sm:$0xff]
    %v1384 = vld [vmem:[#allocation2 + $0xfd8] sm:$0xff]
    %v1385 = vld [vmem:[#allocation2 + $0xfe0] sm:$0xff]
    %v1386 = vld [vmem:[#allocation2 + $0xfe8] sm:$0xff]
    %v1387 = vld [vmem:[#allocation2 + $0xff0] sm:$0xff]
    %v1388 = vld [vmem:[#allocation2 + $0xff8] sm:$0xff]
    %v1389 = vld [vmem:[#allocation4] ss:$8 sm:$0xf]
    %v1390 = vld [vmem:[#allocation4] ss:$8 sm:$0xf0]
    %v1391 = vor.u32 %v1389, %v1390
    %s1392 = scalar_lea.vmem [#allocation4], 64
    %v1393 = vld [vmem:[%s1392] ss:$8 sm:$0xf]
    %v1394 = vld [vmem:[%s1392] ss:$8 sm:$0xf0]
    %v1395 = vor.u32 %v1393, %v1394
    %1396 = vmatprep.subr.bf16.mxu0 %v878
    %1397 = vmatpush1.bf16.msra.mxu0 %v877
    %1398 = vmatprep.subr.bf16.mxu0 %v894
    %1399 = vmatpush1.bf16.msra.mxu0 %v893
    %1400 = vmatprep.subr.bf16.mxu0 %v910
    %1401 = vmatpush1.bf16.msra.mxu0 %v909
    %1402 = vmatprep.subr.bf16.mxu0 %v926
    %1403 = vmatpush1.bf16.msra.mxu0 %v925
    %1404 = vmatprep.subr.bf16.mxu0 %v942
    %1405 = vmatpush1.bf16.msra.mxu0 %v941
    %1406 = vmatprep.subr.bf16.mxu0 %v958
    %1407 = vmatpush1.bf16.msra.mxu0 %v957
    %1408 = vmatprep.subr.bf16.mxu0 %v974
    %1409 = vmatpush1.bf16.msra.mxu0 %v973
    %1410 = vmatprep.subr.bf16.mxu0 %v990
    %1411 = vmatpush1.bf16.msra.mxu0 %v989
    %1412 = vmatprep.subr.bf16.mxu0 %v1006
    %1413 = vmatpush1.bf16.msra.mxu0 %v1005
    %1414 = vmatprep.subr.bf16.mxu0 %v1022
    %1415 = vmatpush1.bf16.msra.mxu0 %v1021
    %1416 = vmatprep.subr.bf16.mxu0 %v1038
    %1417 = vmatpush1.bf16.msra.mxu0 %v1037
    %1418 = vmatprep.subr.bf16.mxu0 %v1054
    %1419 = vmatpush1.bf16.msra.mxu0 %v1053
    %1420 = vmatprep.subr.bf16.mxu0 %v1070
    %1421 = vmatpush1.bf16.msra.mxu0 %v1069
    %1422 = vmatprep.subr.bf16.mxu0 %v1086
    %1423 = vmatpush1.bf16.msra.mxu0 %v1085
    %1424 = vmatprep.subr.bf16.mxu0 %v1102
    %1425 = vmatpush1.bf16.msra.mxu0 %v1101
    %1426 = vmatprep.subr.bf16.mxu0 %v1118
    %1427 = vmatpush1.bf16.msra.mxu0 %v1117
    %1428 = vmatprep.mubr.bf16.mxu0 0
    %1429 = vmatmul.mubr.bf16.gmra.mrb[0].mxu0 0
    %v1430 = vpop.f32.mrb[0].mxu0
    %v1431 = vadd.f32 0.0, %v1430
    %v1432 = vpop.f32.mrb[0].mxu0
    %v1433 = vadd.f32 0.0, %v1432
    %v1434 = vpop.f32.mrb[0].mxu0
    %v1435 = vpop.f32.mrb[0].mxu0
    %1436 = vdwg.mxu0
    %1437 = vmatprep.subr.bf16.mxu0 %v1134
    %1438 = vmatpush1.bf16.msra.mxu0 %v1133
    %1439 = vmatprep.subr.bf16.mxu0 %v1150
    %1440 = vmatpush1.bf16.msra.mxu0 %v1149
    %1441 = vmatprep.subr.bf16.mxu0 %v1166
    %1442 = vmatpush1.bf16.msra.mxu0 %v1165
    %1443 = vmatprep.subr.bf16.mxu0 %v1182
    %1444 = vmatpush1.bf16.msra.mxu0 %v1181
    %1445 = vmatprep.subr.bf16.mxu0 %v1198
    %1446 = vmatpush1.bf16.msra.mxu0 %v1197
    %1447 = vmatprep.subr.bf16.mxu0 %v1214
    %1448 = vmatpush1.bf16.msra.mxu0 %v1213
    %1449 = vmatprep.subr.bf16.mxu0 %v1230
    %1450 = vmatpush1.bf16.msra.mxu0 %v1229
    %1451 = vmatprep.subr.bf16.mxu0 %v1246
    %1452 = vmatpush1.bf16.msra.mxu0 %v1245
    %1453 = vmatprep.subr.bf16.mxu0 %v1262
    %1454 = vmatpush1.bf16.msra.mxu0 %v1261
    %1455 = vmatprep.subr.bf16.mxu0 %v1278
    %1456 = vmatpush1.bf16.msra.mxu0 %v1277
    %1457 = vmatprep.subr.bf16.mxu0 %v1294
    %1458 = vmatpush1.bf16.msra.mxu0 %v1293
    %1459 = vmatprep.subr.bf16.mxu0 %v1310
    %1460 = vmatpush1.bf16.msra.mxu0 %v1309
    %1461 = vmatprep.subr.bf16.mxu0 %v1326
    %1462 = vmatpush1.bf16.msra.mxu0 %v1325
    %1463 = vmatprep.subr.bf16.mxu0 %v1342
    %1464 = vmatpush1.bf16.msra.mxu0 %v1341
    %1465 = vmatprep.subr.bf16.mxu0 %v1358
    %1466 = vmatpush1.bf16.msra.mxu0 %v1357
    %1467 = vmatprep.subr.bf16.mxu0 %v1374
    %1468 = vmatpush1.bf16.msra.mxu0 %v1373
    %1469 = vmatprep.mubr.bf16.mxu0 0
    %1470 = vmatmul.mubr.bf16.gmra.mrb[0].mxu0 0
    %v1471 = vpop.f32.mrb[0].mxu0
    %v1472 = vadd.f32 %v1431, %v1471
    %v1473 = vpop.f32.mrb[0].mxu0
    %v1474 = vadd.f32 %v1433, %v1473
    %v1475 = vpop.f32.mrb[0].mxu0
    %v1476 = vpop.f32.mrb[0].mxu0
    %1477 = vdwg.mxu0
    %1478 = vmatprep.subr.bf16.mxu0 %v880
    %1479 = vmatpush1.bf16.msra.mxu0 %v879
    %1480 = vmatprep.subr.bf16.mxu0 %v896
    %1481 = vmatpush1.bf16.msra.mxu0 %v895
    %1482 = vmatprep.subr.bf16.mxu0 %v912
    %1483 = vmatpush1.bf16.msra.mxu0 %v911
    %1484 = vmatprep.subr.bf16.mxu0 %v928
    %1485 = vmatpush1.bf16.msra.mxu0 %v927
    %1486 = vmatprep.subr.bf16.mxu0 %v944
    %1487 = vmatpush1.bf16.msra.mxu0 %v943
    %1488 = vmatprep.subr.bf16.mxu0 %v960
    %1489 = vmatpush1.bf16.msra.mxu0 %v959
    %1490 = vmatprep.subr.bf16.mxu0 %v976
    %1491 = vmatpush1.bf16.msra.mxu0 %v975
    %1492 = vmatprep.subr.bf16.mxu0 %v992
    %1493 = vmatpush1.bf16.msra.mxu0 %v991
    %1494 = vmatprep.subr.bf16.mxu0 %v1008
    %1495 = vmatpush1.bf16.msra.mxu0 %v1007
    %1496 = vmatprep.subr.bf16.mxu0 %v1024
    %1497 = vmatpush1.bf16.msra.mxu0 %v1023
    %1498 = vmatprep.subr.bf16.mxu0 %v1040
    %1499 = vmatpush1.bf16.msra.mxu0 %v1039
    %1500 = vmatprep.subr.bf16.mxu0 %v1056
    %1501 = vmatpush1.bf16.msra.mxu0 %v1055
    %1502 = vmatprep.subr.bf16.mxu0 %v1072
    %1503 = vmatpush1.bf16.msra.mxu0 %v1071
    %1504 = vmatprep.subr.bf16.mxu0 %v1088
    %1505 = vmatpush1.bf16.msra.mxu0 %v1087
    %1506 = vmatprep.subr.bf16.mxu0 %v1104
    %1507 = vmatpush1.bf16.msra.mxu0 %v1103
    %1508 = vmatprep.subr.bf16.mxu0 %v1120
    %1509 = vmatpush1.bf16.msra.mxu0 %v1119
    %1510 = vmatprep.mubr.bf16.mxu0 0
    %1511 = vmatmul.mubr.bf16.gmra.mrb[0].mxu0 0
    %v1512 = vpop.f32.mrb[0].mxu0
    %v1513 = vadd.f32 0.0, %v1512
    %v1514 = vpop.f32.mrb[0].mxu0
    %v1515 = vadd.f32 0.0, %v1514
    %v1516 = vpop.f32.mrb[0].mxu0
    %v1517 = vpop.f32.mrb[0].mxu0
    %1518 = vdwg.mxu0
    %1519 = vmatprep.subr.bf16.mxu0 %v1136
    %1520 = vmatpush1.bf16.msra.mxu0 %v1135
    %1521 = vmatprep.subr.bf16.mxu0 %v1152
    %1522 = vmatpush1.bf16.msra.mxu0 %v1151
    %1523 = vmatprep.subr.bf16.mxu0 %v1168
    %1524 = vmatpush1.bf16.msra.mxu0 %v1167
    %1525 = vmatprep.subr.bf16.mxu0 %v1184
    %1526 = vmatpush1.bf16.msra.mxu0 %v1183
    %1527 = vmatprep.subr.bf16.mxu0 %v1200
    %1528 = vmatpush1.bf16.msra.mxu0 %v1199
    %1529 = vmatprep.subr.bf16.mxu0 %v1216
    %1530 = vmatpush1.bf16.msra.mxu0 %v1215
    %1531 = vmatprep.subr.bf16.mxu0 %v1232
    %1532 = vmatpush1.bf16.msra.mxu0 %v1231
    %1533 = vmatprep.subr.bf16.mxu0 %v1248
    %1534 = vmatpush1.bf16.msra.mxu0 %v1247
    %1535 = vmatprep.subr.bf16.mxu0 %v1264
    %1536 = vmatpush1.bf16.msra.mxu0 %v1263
    %1537 = vmatprep.subr.bf16.mxu0 %v1280
    %1538 = vmatpush1.bf16.msra.mxu0 %v1279
    %1539 = vmatprep.subr.bf16.mxu0 %v1296
    %1540 = vmatpush1.bf16.msra.mxu0 %v1295
    %1541 = vmatprep.subr.bf16.mxu0 %v1312
    %1542 = vmatpush1.bf16.msra.mxu0 %v1311
    %1543 = vmatprep.subr.bf16.mxu0 %v1328
    %1544 = vmatpush1.bf16.msra.mxu0 %v1327
    %1545 = vmatprep.subr.bf16.mxu0 %v1344
    %1546 = vmatpush1.bf16.msra.mxu0 %v1343
    %1547 = vmatprep.subr.bf16.mxu0 %v1360
    %1548 = vmatpush1.bf16.msra.mxu0 %v1359
    %1549 = vmatprep.subr.bf16.mxu0 %v1376
    %1550 = vmatpush1.bf16.msra.mxu0 %v1375
    %1551 = vmatprep.mubr.bf16.mxu0 0
    %1552 = vmatmul.mubr.bf16.gmra.mrb[0].mxu0 0
    %v1553 = vpop.f32.mrb[0].mxu0
    %v1554 = vadd.f32 %v1513, %v1553
    %v1555 = vpop.f32.mrb[0].mxu0
    %v1556 = vadd.f32 %v1515, %v1555
    %v1557 = vpop.f32.mrb[0].mxu0
    %v1558 = vpop.f32.mrb[0].mxu0
    %1559 = vdwg.mxu0
    %1560 = vmatprep.subr.bf16.mxu0 %v882
    %1561 = vmatpush1.bf16.msra.mxu0 %v881
    %1562 = vmatprep.subr.bf16.mxu0 %v898
    %1563 = vmatpush1.bf16.msra.mxu0 %v897
    %1564 = vmatprep.subr.bf16.mxu0 %v914
    %1565 = vmatpush1.bf16.msra.mxu0 %v913
    %1566 = vmatprep.subr.bf16.mxu0 %v930
    %1567 = vmatpush1.bf16.msra.mxu0 %v929
    %1568 = vmatprep.subr.bf16.mxu0 %v946
    %1569 = vmatpush1.bf16.msra.mxu0 %v945
    %1570 = vmatprep.subr.bf16.mxu0 %v962
    %1571 = vmatpush1.bf16.msra.mxu0 %v961
    %1572 = vmatprep.subr.bf16.mxu0 %v978
    %1573 = vmatpush1.bf16.msra.mxu0 %v977
    %1574 = vmatprep.subr.bf16.mxu0 %v994
    %1575 = vmatpush1.bf16.msra.mxu0 %v993
    %1576 = vmatprep.subr.bf16.mxu0 %v1010
    %1577 = vmatpush1.bf16.msra.mxu0 %v1009
    %1578 = vmatprep.subr.bf16.mxu0 %v1026
    %1579 = vmatpush1.bf16.msra.mxu0 %v1025
    %1580 = vmatprep.subr.bf16.mxu0 %v1042
    %1581 = vmatpush1.bf16.msra.mxu0 %v1041
    %1582 = vmatprep.subr.bf16.mxu0 %v1058
    %1583 = vmatpush1.bf16.msra.mxu0 %v1057
    %1584 = vmatprep.subr.bf16.mxu0 %v1074
    %1585 = vmatpush1.bf16.msra.mxu0 %v1073
    %1586 = vmatprep.subr.bf16.mxu0 %v1090
    %1587 = vmatpush1.bf16.msra.mxu0 %v1089
    %1588 = vmatprep.subr.bf16.mxu0 %v1106
    %1589 = vmatpush1.bf16.msra.mxu0 %v1105
    %1590 = vmatprep.subr.bf16.mxu0 %v1122
    %1591 = vmatpush1.bf16.msra.mxu0 %v1121
    %1592 = vmatprep.mubr.bf16.mxu0 0
    %1593 = vmatmul.mubr.bf16.gmra.mrb[0].mxu0 0
    %v1594 = vpop.f32.mrb[0].mxu0
    %v1595 = vadd.f32 0.0, %v1594
    %v1596 = vpop.f32.mrb[0].mxu0
    %v1597 = vadd.f32 0.0, %v1596
    %v1598 = vpop.f32.mrb[0].mxu0
    %v1599 = vpop.f32.mrb[0].mxu0
    %1600 = vdwg.mxu0
    %1601 = vmatprep.subr.bf16.mxu0 %v1138
    %1602 = vmatpush1.bf16.msra.mxu0 %v1137
    %1603 = vmatprep.subr.bf16.mxu0 %v1154
    %1604 = vmatpush1.bf16.msra.mxu0 %v1153
    %1605 = vmatprep.subr.bf16.mxu0 %v1170
    %1606 = vmatpush1.bf16.msra.mxu0 %v1169
    %1607 = vmatprep.subr.bf16.mxu0 %v1186
    %1608 = vmatpush1.bf16.msra.mxu0 %v1185
    %1609 = vmatprep.subr.bf16.mxu0 %v1202
    %1610 = vmatpush1.bf16.msra.mxu0 %v1201
    %1611 = vmatprep.subr.bf16.mxu0 %v1218
    %1612 = vmatpush1.bf16.msra.mxu0 %v1217
    %1613 = vmatprep.subr.bf16.mxu0 %v1234
    %1614 = vmatpush1.bf16.msra.mxu0 %v1233
    %1615 = vmatprep.subr.bf16.mxu0 %v1250
    %1616 = vmatpush1.bf16.msra.mxu0 %v1249
    %1617 = vmatprep.subr.bf16.mxu0 %v1266
    %1618 = vmatpush1.bf16.msra.mxu0 %v1265
    %1619 = vmatprep.subr.bf16.mxu0 %v1282
    %1620 = vmatpush1.bf16.msra.mxu0 %v1281
    %1621 = vmatprep.subr.bf16.mxu0 %v1298
    %1622 = vmatpush1.bf16.msra.mxu0 %v1297
    %1623 = vmatprep.subr.bf16.mxu0 %v1314
    %1624 = vmatpush1.bf16.msra.mxu0 %v1313
    %1625 = vmatprep.subr.bf16.mxu0 %v1330
    %1626 = vmatpush1.bf16.msra.mxu0 %v1329
    %1627 = vmatprep.subr.bf16.mxu0 %v1346
    %1628 = vmatpush1.bf16.msra.mxu0 %v1345
    %1629 = vmatprep.subr.bf16.mxu0 %v1362
    %1630 = vmatpush1.bf16.msra.mxu0 %v1361
    %1631 = vmatprep.subr.bf16.mxu0 %v1378
    %1632 = vmatpush1.bf16.msra.mxu0 %v1377
    %1633 = vmatprep.mubr.bf16.mxu0 0
    %1634 = vmatmul.mubr.bf16.gmra.mrb[0].mxu0 0
    %v1635 = vpop.f32.mrb[0].mxu0
    %v1636 = vadd.f32 %v1595, %v1635
    %v1637 = vpop.f32.mrb[0].mxu0
    %v1638 = vadd.f32 %v1597, %v1637
    %v1639 = vpop.f32.mrb[0].mxu0
    %v1640 = vpop.f32.mrb[0].mxu0
    %1641 = vdwg.mxu0
    %1642 = vmatprep.subr.bf16.mxu0 %v884
    %1643 = vmatpush1.bf16.msra.mxu0 %v883
    %1644 = vmatprep.subr.bf16.mxu0 %v900
    %1645 = vmatpush1.bf16.msra.mxu0 %v899
    %1646 = vmatprep.subr.bf16.mxu0 %v916
    %1647 = vmatpush1.bf16.msra.mxu0 %v915
    %1648 = vmatprep.subr.bf16.mxu0 %v932
    %1649 = vmatpush1.bf16.msra.mxu0 %v931
    %1650 = vmatprep.subr.bf16.mxu0 %v948
    %1651 = vmatpush1.bf16.msra.mxu0 %v947
    %1652 = vmatprep.subr.bf16.mxu0 %v964
    %1653 = vmatpush1.bf16.msra.mxu0 %v963
    %1654 = vmatprep.subr.bf16.mxu0 %v980
    %1655 = vmatpush1.bf16.msra.mxu0 %v979
    %1656 = vmatprep.subr.bf16.mxu0 %v996
    %1657 = vmatpush1.bf16.msra.mxu0 %v995
    %1658 = vmatprep.subr.bf16.mxu0 %v1012
    %1659 = vmatpush1.bf16.msra.mxu0 %v1011
    %1660 = vmatprep.subr.bf16.mxu0 %v1028
    %1661 = vmatpush1.bf16.msra.mxu0 %v1027
    %1662 = vmatprep.subr.bf16.mxu0 %v1044
    %1663 = vmatpush1.bf16.msra.mxu0 %v1043
    %1664 = vmatprep.subr.bf16.mxu0 %v1060
    %1665 = vmatpush1.bf16.msra.mxu0 %v1059
    %1666 = vmatprep.subr.bf16.mxu0 %v1076
    %1667 = vmatpush1.bf16.msra.mxu0 %v1075
    %1668 = vmatprep.subr.bf16.mxu0 %v1092
    %1669 = vmatpush1.bf16.msra.mxu0 %v1091
    %1670 = vmatprep.subr.bf16.mxu0 %v1108
    %1671 = vmatpush1.bf16.msra.mxu0 %v1107
    %1672 = vmatprep.subr.bf16.mxu0 %v1124
    %1673 = vmatpush1.bf16.msra.mxu0 %v1123
    %1674 = vmatprep.mubr.bf16.mxu0 0
    %1675 = vmatmul.mubr.bf16.gmra.mrb[0].mxu0 0
    %v1676 = vpop.f32.mrb[0].mxu0
    %v1677 = vadd.f32 0.0, %v1676
    %v1678 = vpop.f32.mrb[0].mxu0
    %v1679 = vadd.f32 0.0, %v1678
    %v1680 = vpop.f32.mrb[0].mxu0
    %v1681 = vpop.f32.mrb[0].mxu0
    %1682 = vdwg.mxu0
    %1683 = vmatprep.subr.bf16.mxu0 %v1140
    %1684 = vmatpush1.bf16.msra.mxu0 %v1139
    %1685 = vmatprep.subr.bf16.mxu0 %v1156
    %1686 = vmatpush1.bf16.msra.mxu0 %v1155
    %1687 = vmatprep.subr.bf16.mxu0 %v1172
    %1688 = vmatpush1.bf16.msra.mxu0 %v1171
    %1689 = vmatprep.subr.bf16.mxu0 %v1188
    %1690 = vmatpush1.bf16.msra.mxu0 %v1187
    %1691 = vmatprep.subr.bf16.mxu0 %v1204
    %1692 = vmatpush1.bf16.msra.mxu0 %v1203
    %1693 = vmatprep.subr.bf16.mxu0 %v1220
    %1694 = vmatpush1.bf16.msra.mxu0 %v1219
    %1695 = vmatprep.subr.bf16.mxu0 %v1236
    %1696 = vmatpush1.bf16.msra.mxu0 %v1235
    %1697 = vmatprep.subr.bf16.mxu0 %v1252
    %1698 = vmatpush1.bf16.msra.mxu0 %v1251
    %1699 = vmatprep.subr.bf16.mxu0 %v1268
    %1700 = vmatpush1.bf16.msra.mxu0 %v1267
    %1701 = vmatprep.subr.bf16.mxu0 %v1284
    %1702 = vmatpush1.bf16.msra.mxu0 %v1283
    %1703 = vmatprep.subr.bf16.mxu0 %v1300
    %1704 = vmatpush1.bf16.msra.mxu0 %v1299
    %1705 = vmatprep.subr.bf16.mxu0 %v1316
    %1706 = vmatpush1.bf16.msra.mxu0 %v1315
    %1707 = vmatprep.subr.bf16.mxu0 %v1332
    %1708 = vmatpush1.bf16.msra.mxu0 %v1331
    %1709 = vmatprep.subr.bf16.mxu0 %v1348
    %1710 = vmatpush1.bf16.msra.mxu0 %v1347
    %1711 = vmatprep.subr.bf16.mxu0 %v1364
    %1712 = vmatpush1.bf16.msra.mxu0 %v1363
    %1713 = vmatprep.subr.bf16.mxu0 %v1380
    %1714 = vmatpush1.bf16.msra.mxu0 %v1379
    %1715 = vmatprep.mubr.bf16.mxu0 0
    %1716 = vmatmul.mubr.bf16.gmra.mrb[0].mxu0 0
    %v1717 = vpop.f32.mrb[0].mxu0
    %v1718 = vadd.f32 %v1677, %v1717
    %v1719 = vpop.f32.mrb[0].mxu0
    %v1720 = vadd.f32 %v1679, %v1719
    %v1721 = vpop.f32.mrb[0].mxu0
    %v1722 = vpop.f32.mrb[0].mxu0
    %1723 = vdwg.mxu0
    %1724 = vmatprep.subr.bf16.mxu0 %v886
    %1725 = vmatpush1.bf16.msra.mxu0 %v885
    %1726 = vmatprep.subr.bf16.mxu0 %v902
    %1727 = vmatpush1.bf16.msra.mxu0 %v901
    %1728 = vmatprep.subr.bf16.mxu0 %v918
    %1729 = vmatpush1.bf16.msra.mxu0 %v917
    %1730 = vmatprep.subr.bf16.mxu0 %v934
    %1731 = vmatpush1.bf16.msra.mxu0 %v933
    %1732 = vmatprep.subr.bf16.mxu0 %v950
    %1733 = vmatpush1.bf16.msra.mxu0 %v949
    %1734 = vmatprep.subr.bf16.mxu0 %v966
    %1735 = vmatpush1.bf16.msra.mxu0 %v965
    %1736 = vmatprep.subr.bf16.mxu0 %v982
    %1737 = vmatpush1.bf16.msra.mxu0 %v981
    %1738 = vmatprep.subr.bf16.mxu0 %v998
    %1739 = vmatpush1.bf16.msra.mxu0 %v997
    %1740 = vmatprep.subr.bf16.mxu0 %v1014
    %1741 = vmatpush1.bf16.msra.mxu0 %v1013
    %1742 = vmatprep.subr.bf16.mxu0 %v1030
    %1743 = vmatpush1.bf16.msra.mxu0 %v1029
    %1744 = vmatprep.subr.bf16.mxu0 %v1046
    %1745 = vmatpush1.bf16.msra.mxu0 %v1045
    %1746 = vmatprep.subr.bf16.mxu0 %v1062
    %1747 = vmatpush1.bf16.msra.mxu0 %v1061
    %1748 = vmatprep.subr.bf16.mxu0 %v1078
    %1749 = vmatpush1.bf16.msra.mxu0 %v1077
    %1750 = vmatprep.subr.bf16.mxu0 %v1094
    %1751 = vmatpush1.bf16.msra.mxu0 %v1093
    %1752 = vmatprep.subr.bf16.mxu0 %v1110
    %1753 = vmatpush1.bf16.msra.mxu0 %v1109
    %1754 = vmatprep.subr.bf16.mxu0 %v1126
    %1755 = vmatpush1.bf16.msra.mxu0 %v1125
    %1756 = vmatprep.mubr.bf16.mxu0 0
    %1757 = vmatmul.mubr.bf16.gmra.mrb[0].mxu0 0
    %v1758 = vpop.f32.mrb[0].mxu0
    %v1759 = vadd.f32 0.0, %v1758
    %v1760 = vpop.f32.mrb[0].mxu0
    %v1761 = vadd.f32 0.0, %v1760
    %v1762 = vpop.f32.mrb[0].mxu0
    %v1763 = vpop.f32.mrb[0].mxu0
    %1764 = vdwg.mxu0
    %1765 = vmatprep.subr.bf16.mxu0 %v1142
    %1766 = vmatpush1.bf16.msra.mxu0 %v1141
    %1767 = vmatprep.subr.bf16.mxu0 %v1158
    %1768 = vmatpush1.bf16.msra.mxu0 %v1157
    %1769 = vmatprep.subr.bf16.mxu0 %v1174
    %1770 = vmatpush1.bf16.msra.mxu0 %v1173
    %1771 = vmatprep.subr.bf16.mxu0 %v1190
    %1772 = vmatpush1.bf16.msra.mxu0 %v1189
    %1773 = vmatprep.subr.bf16.mxu0 %v1206
    %1774 = vmatpush1.bf16.msra.mxu0 %v1205
    %1775 = vmatprep.subr.bf16.mxu0 %v1222
    %1776 = vmatpush1.bf16.msra.mxu0 %v1221
    %1777 = vmatprep.subr.bf16.mxu0 %v1238
    %1778 = vmatpush1.bf16.msra.mxu0 %v1237
    %1779 = vmatprep.subr.bf16.mxu0 %v1254
    %1780 = vmatpush1.bf16.msra.mxu0 %v1253
    %1781 = vmatprep.subr.bf16.mxu0 %v1270
    %1782 = vmatpush1.bf16.msra.mxu0 %v1269
    %1783 = vmatprep.subr.bf16.mxu0 %v1286
    %1784 = vmatpush1.bf16.msra.mxu0 %v1285
    %1785 = vmatprep.subr.bf16.mxu0 %v1302
    %1786 = vmatpush1.bf16.msra.mxu0 %v1301
    %1787 = vmatprep.subr.bf16.mxu0 %v1318
    %1788 = vmatpush1.bf16.msra.mxu0 %v1317
    %1789 = vmatprep.subr.bf16.mxu0 %v1334
    %1790 = vmatpush1.bf16.msra.mxu0 %v1333
    %1791 = vmatprep.subr.bf16.mxu0 %v1350
    %1792 = vmatpush1.bf16.msra.mxu0 %v1349
    %1793 = vmatprep.subr.bf16.mxu0 %v1366
    %1794 = vmatpush1.bf16.msra.mxu0 %v1365
    %1795 = vmatprep.subr.bf16.mxu0 %v1382
    %1796 = vmatpush1.bf16.msra.mxu0 %v1381
    %1797 = vmatprep.mubr.bf16.mxu0 0
    %1798 = vmatmul.mubr.bf16.gmra.mrb[0].mxu0 0
    %v1799 = vpop.f32.mrb[0].mxu0
    %v1800 = vadd.f32 %v1759, %v1799
    %v1801 = vpop.f32.mrb[0].mxu0
    %v1802 = vadd.f32 %v1761, %v1801
    %v1803 = vpop.f32.mrb[0].mxu0
    %v1804 = vpop.f32.mrb[0].mxu0
    %1805 = vdwg.mxu0
    %1806 = vmatprep.subr.bf16.mxu0 %v888
    %1807 = vmatpush1.bf16.msra.mxu0 %v887
    %1808 = vmatprep.subr.bf16.mxu0 %v904
    %1809 = vmatpush1.bf16.msra.mxu0 %v903
    %1810 = vmatprep.subr.bf16.mxu0 %v920
    %1811 = vmatpush1.bf16.msra.mxu0 %v919
    %1812 = vmatprep.subr.bf16.mxu0 %v936
    %1813 = vmatpush1.bf16.msra.mxu0 %v935
    %1814 = vmatprep.subr.bf16.mxu0 %v952
    %1815 = vmatpush1.bf16.msra.mxu0 %v951
    %1816 = vmatprep.subr.bf16.mxu0 %v968
    %1817 = vmatpush1.bf16.msra.mxu0 %v967
    %1818 = vmatprep.subr.bf16.mxu0 %v984
    %1819 = vmatpush1.bf16.msra.mxu0 %v983
    %1820 = vmatprep.subr.bf16.mxu0 %v1000
    %1821 = vmatpush1.bf16.msra.mxu0 %v999
    %1822 = vmatprep.subr.bf16.mxu0 %v1016
    %1823 = vmatpush1.bf16.msra.mxu0 %v1015
    %1824 = vmatprep.subr.bf16.mxu0 %v1032
    %1825 = vmatpush1.bf16.msra.mxu0 %v1031
    %1826 = vmatprep.subr.bf16.mxu0 %v1048
    %1827 = vmatpush1.bf16.msra.mxu0 %v1047
    %1828 = vmatprep.subr.bf16.mxu0 %v1064
    %1829 = vmatpush1.bf16.msra.mxu0 %v1063
    %1830 = vmatprep.subr.bf16.mxu0 %v1080
    %1831 = vmatpush1.bf16.msra.mxu0 %v1079
    %1832 = vmatprep.subr.bf16.mxu0 %v1096
    %1833 = vmatpush1.bf16.msra.mxu0 %v1095
    %1834 = vmatprep.subr.bf16.mxu0 %v1112
    %1835 = vmatpush1.bf16.msra.mxu0 %v1111
    %1836 = vmatprep.subr.bf16.mxu0 %v1128
    %1837 = vmatpush1.bf16.msra.mxu0 %v1127
    %1838 = vmatprep.mubr.bf16.mxu0 0
    %1839 = vmatmul.mubr.bf16.gmra.mrb[0].mxu0 0
    %v1840 = vpop.f32.mrb[0].mxu0
    %v1841 = vadd.f32 0.0, %v1840
    %v1842 = vpop.f32.mrb[0].mxu0
    %v1843 = vadd.f32 0.0, %v1842
    %v1844 = vpop.f32.mrb[0].mxu0
    %v1845 = vpop.f32.mrb[0].mxu0
    %1846 = vdwg.mxu0
    %1847 = vmatprep.subr.bf16.mxu0 %v1144
    %1848 = vmatpush1.bf16.msra.mxu0 %v1143
    %1849 = vmatprep.subr.bf16.mxu0 %v1160
    %1850 = vmatpush1.bf16.msra.mxu0 %v1159
    %1851 = vmatprep.subr.bf16.mxu0 %v1176
    %1852 = vmatpush1.bf16.msra.mxu0 %v1175
    %1853 = vmatprep.subr.bf16.mxu0 %v1192
    %1854 = vmatpush1.bf16.msra.mxu0 %v1191
    %1855 = vmatprep.subr.bf16.mxu0 %v1208
    %1856 = vmatpush1.bf16.msra.mxu0 %v1207
    %1857 = vmatprep.subr.bf16.mxu0 %v1224
    %1858 = vmatpush1.bf16.msra.mxu0 %v1223
    %1859 = vmatprep.subr.bf16.mxu0 %v1240
    %1860 = vmatpush1.bf16.msra.mxu0 %v1239
    %1861 = vmatprep.subr.bf16.mxu0 %v1256
    %1862 = vmatpush1.bf16.msra.mxu0 %v1255
    %1863 = vmatprep.subr.bf16.mxu0 %v1272
    %1864 = vmatpush1.bf16.msra.mxu0 %v1271
    %1865 = vmatprep.subr.bf16.mxu0 %v1288
    %1866 = vmatpush1.bf16.msra.mxu0 %v1287
    %1867 = vmatprep.subr.bf16.mxu0 %v1304
    %1868 = vmatpush1.bf16.msra.mxu0 %v1303
    %1869 = vmatprep.subr.bf16.mxu0 %v1320
    %1870 = vmatpush1.bf16.msra.mxu0 %v1319
    %1871 = vmatprep.subr.bf16.mxu0 %v1336
    %1872 = vmatpush1.bf16.msra.mxu0 %v1335
    %1873 = vmatprep.subr.bf16.mxu0 %v1352
    %1874 = vmatpush1.bf16.msra.mxu0 %v1351
    %1875 = vmatprep.subr.bf16.mxu0 %v1368
    %1876 = vmatpush1.bf16.msra.mxu0 %v1367
    %1877 = vmatprep.subr.bf16.mxu0 %v1384
    %1878 = vmatpush1.bf16.msra.mxu0 %v1383
    %1879 = vmatprep.mubr.bf16.mxu0 0
    %1880 = vmatmul.mubr.bf16.gmra.mrb[0].mxu0 0
    %v1881 = vpop.f32.mrb[0].mxu0
    %v1882 = vadd.f32 %v1841, %v1881
    %v1883 = vpop.f32.mrb[0].mxu0
    %v1884 = vadd.f32 %v1843, %v1883
    %v1885 = vpop.f32.mrb[0].mxu0
    %v1886 = vpop.f32.mrb[0].mxu0
    %1887 = vdwg.mxu0
    %1888 = vmatprep.subr.bf16.mxu0 %v890
    %1889 = vmatpush1.bf16.msra.mxu0 %v889
    %1890 = vmatprep.subr.bf16.mxu0 %v906
    %1891 = vmatpush1.bf16.msra.mxu0 %v905
    %1892 = vmatprep.subr.bf16.mxu0 %v922
    %1893 = vmatpush1.bf16.msra.mxu0 %v921
    %1894 = vmatprep.subr.bf16.mxu0 %v938
    %1895 = vmatpush1.bf16.msra.mxu0 %v937
    %1896 = vmatprep.subr.bf16.mxu0 %v954
    %1897 = vmatpush1.bf16.msra.mxu0 %v953
    %1898 = vmatprep.subr.bf16.mxu0 %v970
    %1899 = vmatpush1.bf16.msra.mxu0 %v969
    %1900 = vmatprep.subr.bf16.mxu0 %v986
    %1901 = vmatpush1.bf16.msra.mxu0 %v985
    %1902 = vmatprep.subr.bf16.mxu0 %v1002
    %1903 = vmatpush1.bf16.msra.mxu0 %v1001
    %1904 = vmatprep.subr.bf16.mxu0 %v1018
    %1905 = vmatpush1.bf16.msra.mxu0 %v1017
    %1906 = vmatprep.subr.bf16.mxu0 %v1034
    %1907 = vmatpush1.bf16.msra.mxu0 %v1033
    %1908 = vmatprep.subr.bf16.mxu0 %v1050
    %1909 = vmatpush1.bf16.msra.mxu0 %v1049
    %1910 = vmatprep.subr.bf16.mxu0 %v1066
    %1911 = vmatpush1.bf16.msra.mxu0 %v1065
    %1912 = vmatprep.subr.bf16.mxu0 %v1082
    %1913 = vmatpush1.bf16.msra.mxu0 %v1081
    %1914 = vmatprep.subr.bf16.mxu0 %v1098
    %1915 = vmatpush1.bf16.msra.mxu0 %v1097
    %1916 = vmatprep.subr.bf16.mxu0 %v1114
    %1917 = vmatpush1.bf16.msra.mxu0 %v1113
    %1918 = vmatprep.subr.bf16.mxu0 %v1130
    %1919 = vmatpush1.bf16.msra.mxu0 %v1129
    %1920 = vmatprep.mubr.bf16.mxu0 0
    %1921 = vmatmul.mubr.bf16.gmra.mrb[0].mxu0 0
    %v1922 = vpop.f32.mrb[0].mxu0
    %v1923 = vadd.f32 0.0, %v1922
    %v1924 = vpop.f32.mrb[0].mxu0
    %v1925 = vadd.f32 0.0, %v1924
    %v1926 = vpop.f32.mrb[0].mxu0
    %v1927 = vpop.f32.mrb[0].mxu0
    %1928 = vdwg.mxu0
    %1929 = vmatprep.subr.bf16.mxu0 %v1146
    %1930 = vmatpush1.bf16.msra.mxu0 %v1145
    %1931 = vmatprep.subr.bf16.mxu0 %v1162
    %1932 = vmatpush1.bf16.msra.mxu0 %v1161
    %1933 = vmatprep.subr.bf16.mxu0 %v1178
    %1934 = vmatpush1.bf16.msra.mxu0 %v1177
    %1935 = vmatprep.subr.bf16.mxu0 %v1194
    %1936 = vmatpush1.bf16.msra.mxu0 %v1193
    %1937 = vmatprep.subr.bf16.mxu0 %v1210
    %1938 = vmatpush1.bf16.msra.mxu0 %v1209
    %1939 = vmatprep.subr.bf16.mxu0 %v1226
    %1940 = vmatpush1.bf16.msra.mxu0 %v1225
    %1941 = vmatprep.subr.bf16.mxu0 %v1242
    %1942 = vmatpush1.bf16.msra.mxu0 %v1241
    %1943 = vmatprep.subr.bf16.mxu0 %v1258
    %1944 = vmatpush1.bf16.msra.mxu0 %v1257
    %1945 = vmatprep.subr.bf16.mxu0 %v1274
    %1946 = vmatpush1.bf16.msra.mxu0 %v1273
    %1947 = vmatprep.subr.bf16.mxu0 %v1290
    %1948 = vmatpush1.bf16.msra.mxu0 %v1289
    %1949 = vmatprep.subr.bf16.mxu0 %v1306
    %1950 = vmatpush1.bf16.msra.mxu0 %v1305
    %1951 = vmatprep.subr.bf16.mxu0 %v1322
    %1952 = vmatpush1.bf16.msra.mxu0 %v1321
    %1953 = vmatprep.subr.bf16.mxu0 %v1338
    %1954 = vmatpush1.bf16.msra.mxu0 %v1337
    %1955 = vmatprep.subr.bf16.mxu0 %v1354
    %1956 = vmatpush1.bf16.msra.mxu0 %v1353
    %1957 = vmatprep.subr.bf16.mxu0 %v1370
    %1958 = vmatpush1.bf16.msra.mxu0 %v1369
    %1959 = vmatprep.subr.bf16.mxu0 %v1386
    %1960 = vmatpush1.bf16.msra.mxu0 %v1385
    %1961 = vmatprep.mubr.bf16.mxu0 0
    %1962 = vmatmul.mubr.bf16.gmra.mrb[0].mxu0 0
    %v1963 = vpop.f32.mrb[0].mxu0
    %v1964 = vadd.f32 %v1923, %v1963
    %v1965 = vpop.f32.mrb[0].mxu0
    %v1966 = vadd.f32 %v1925, %v1965
    %v1967 = vpop.f32.mrb[0].mxu0
    %v1968 = vpop.f32.mrb[0].mxu0
    %1969 = vdwg.mxu0
    %1970 = vmatprep.subr.bf16.mxu0 %v892
    %1971 = vmatpush1.bf16.msra.mxu0 %v891
    %1972 = vmatprep.subr.bf16.mxu0 %v908
    %1973 = vmatpush1.bf16.msra.mxu0 %v907
    %1974 = vmatprep.subr.bf16.mxu0 %v924
    %1975 = vmatpush1.bf16.msra.mxu0 %v923
    %1976 = vmatprep.subr.bf16.mxu0 %v940
    %1977 = vmatpush1.bf16.msra.mxu0 %v939
    %1978 = vmatprep.subr.bf16.mxu0 %v956
    %1979 = vmatpush1.bf16.msra.mxu0 %v955
    %1980 = vmatprep.subr.bf16.mxu0 %v972
    %1981 = vmatpush1.bf16.msra.mxu0 %v971
    %1982 = vmatprep.subr.bf16.mxu0 %v988
    %1983 = vmatpush1.bf16.msra.mxu0 %v987
    %1984 = vmatprep.subr.bf16.mxu0 %v1004
    %1985 = vmatpush1.bf16.msra.mxu0 %v1003
    %1986 = vmatprep.subr.bf16.mxu0 %v1020
    %1987 = vmatpush1.bf16.msra.mxu0 %v1019
    %1988 = vmatprep.subr.bf16.mxu0 %v1036
    %1989 = vmatpush1.bf16.msra.mxu0 %v1035
    %1990 = vmatprep.subr.bf16.mxu0 %v1052
    %1991 = vmatpush1.bf16.msra.mxu0 %v1051
    %1992 = vmatprep.subr.bf16.mxu0 %v1068
    %1993 = vmatpush1.bf16.msra.mxu0 %v1067
    %1994 = vmatprep.subr.bf16.mxu0 %v1084
    %1995 = vmatpush1.bf16.msra.mxu0 %v1083
    %1996 = vmatprep.subr.bf16.mxu0 %v1100
    %1997 = vmatpush1.bf16.msra.mxu0 %v1099
    %1998 = vmatprep.subr.bf16.mxu0 %v1116
    %1999 = vmatpush1.bf16.msra.mxu0 %v1115
    %2000 = vmatprep.subr.bf16.mxu0 %v1132
    %2001 = vmatpush1.bf16.msra.mxu0 %v1131
    %2002 = vmatprep.mubr.bf16.mxu0 0
    %2003 = vmatmul.mubr.bf16.gmra.mrb[0].mxu0 0
    %v2004 = vpop.f32.mrb[0].mxu0
    %v2005 = vadd.f32 0.0, %v2004
    %v2006 = vpop.f32.mrb[0].mxu0
    %v2007 = vadd.f32 0.0, %v2006
    %v2008 = vpop.f32.mrb[0].mxu0
    %v2009 = vpop.f32.mrb[0].mxu0
    %2010 = vdwg.mxu0
    %2011 = vmatprep.subr.bf16.mxu0 %v1148
    %2012 = vmatpush1.bf16.msra.mxu0 %v1147
    %2013 = vmatprep.subr.bf16.mxu0 %v1164
    %2014 = vmatpush1.bf16.msra.mxu0 %v1163
    %2015 = vmatprep.subr.bf16.mxu0 %v1180
    %2016 = vmatpush1.bf16.msra.mxu0 %v1179
    %2017 = vmatprep.subr.bf16.mxu0 %v1196
    %2018 = vmatpush1.bf16.msra.mxu0 %v1195
    %2019 = vmatprep.subr.bf16.mxu0 %v1212
    %2020 = vmatpush1.bf16.msra.mxu0 %v1211
    %2021 = vmatprep.subr.bf16.mxu0 %v1228
    %2022 = vmatpush1.bf16.msra.mxu0 %v1227
    %2023 = vmatprep.subr.bf16.mxu0 %v1244
    %2024 = vmatpush1.bf16.msra.mxu0 %v1243
    %2025 = vmatprep.subr.bf16.mxu0 %v1260
    %2026 = vmatpush1.bf16.msra.mxu0 %v1259
    %2027 = vmatprep.subr.bf16.mxu0 %v1276
    %2028 = vmatpush1.bf16.msra.mxu0 %v1275
    %2029 = vmatprep.subr.bf16.mxu0 %v1292
    %2030 = vmatpush1.bf16.msra.mxu0 %v1291
    %2031 = vmatprep.subr.bf16.mxu0 %v1308
    %2032 = vmatpush1.bf16.msra.mxu0 %v1307
    %2033 = vmatprep.subr.bf16.mxu0 %v1324
    %2034 = vmatpush1.bf16.msra.mxu0 %v1323
    %2035 = vmatprep.subr.bf16.mxu0 %v1340
    %2036 = vmatpush1.bf16.msra.mxu0 %v1339
    %2037 = vmatprep.subr.bf16.mxu0 %v1356
    %2038 = vmatpush1.bf16.msra.mxu0 %v1355
    %2039 = vmatprep.subr.bf16.mxu0 %v1372
    %2040 = vmatpush1.bf16.msra.mxu0 %v1371
    %2041 = vmatprep.subr.bf16.mxu0 %v1388
    %2042 = vmatpush1.bf16.msra.mxu0 %v1387
    %2043 = vmatprep.mubr.bf16.mxu0 0
    %2044 = vmatmul.mubr.bf16.gmra.mrb[0].mxu0 0
    %v2045 = vpop.f32.mrb[0].mxu0
    %v2046 = vadd.f32 %v2005, %v2045
    %v2047 = vpop.f32.mrb[0].mxu0
    %v2048 = vadd.f32 %v2007, %v2047
    %v2049 = vpop.f32.mrb[0].mxu0
    %v2050 = vpop.f32.mrb[0].mxu0
    %2051 = vdwg.mxu0
    %v2068 = vcombine.low %v1472, %v1474
    %v2069 = vcombine.low %v1554, %v1556
    %v2070 = vcombine.low %v1636, %v1638
    %v2071 = vcombine.low %v1718, %v1720
    %v2073 = vunpack.c.l.s4 1966171168
    %v2074 = vunpack.c.0.s8 %v2073
    %v2075 = vlaneseq
    %v2076 = vshrl.u32 %v2075, 7
    %v2077 = vsub.s32 %v2074, %v2076
    %v2078 = vrot.slane %v2068, %v2077
    %v2080 = vunpack.c.l.s4 1966171168
    %v2081 = vunpack.c.0.s8 %v2080
    %v2082 = vlaneseq
    %v2083 = vshrl.u32 %v2082, 7
    %v2084 = vsub.s32 %v2081, %v2083
    %v2085 = vrot.slane %v2069, %v2084
    %v2087 = vunpack.c.l.s4 1966171168
    %v2088 = vunpack.c.0.s8 %v2087
    %v2089 = vlaneseq
    %v2090 = vshrl.u32 %v2089, 7
    %v2091 = vsub.s32 %v2088, %v2090
    %v2092 = vrot.slane %v2070, %v2091
    %v2094 = vunpack.c.l.s4 1966171168
    %v2095 = vunpack.c.0.s8 %v2094
    %v2096 = vlaneseq
    %v2097 = vshrl.u32 %v2096, 7
    %v2098 = vsub.s32 %v2095, %v2097
    %v2099 = vrot.slane %v2071, %v2098
    %v2100 = vcombine.low %v2078, %v2085
    %v2101 = vcombine.low %v2092, %v2099
    %v2103 = vunpack.c.l.s4 1966171168
    %v2104 = vunpack.c.0.s8 %v2103
    %v2105 = vlaneseq
    %v2106 = vshrl.u32 %v2105, 7
    %v2107 = vsub.s32 %v2104, %v2106
    %v2108 = vrot.slane %v2100, %v2107
    %v2110 = vunpack.c.l.s4 1966171168
    %v2111 = vunpack.c.0.s8 %v2110
    %v2112 = vlaneseq
    %v2113 = vshrl.u32 %v2112, 7
    %v2114 = vsub.s32 %v2111, %v2113
    %v2115 = vrot.slane %v2101, %v2114
    %v2116 = vcombine.low %v2108, %v2115
    %v2117 = vcombine.low %v1800, %v1802
    %v2118 = vcombine.low %v1882, %v1884
    %v2119 = vcombine.low %v1964, %v1966
    %v2120 = vcombine.low %v2046, %v2048
    %v2122 = vunpack.c.l.s4 1966171168
    %v2123 = vunpack.c.0.s8 %v2122
    %v2124 = vlaneseq
    %v2125 = vshrl.u32 %v2124, 7
    %v2126 = vsub.s32 %v2123, %v2125
    %v2127 = vrot.slane %v2117, %v2126
    %v2129 = vunpack.c.l.s4 1966171168
    %v2130 = vunpack.c.0.s8 %v2129
    %v2131 = vlaneseq
    %v2132 = vshrl.u32 %v2131, 7
    %v2133 = vsub.s32 %v2130, %v2132
    %v2134 = vrot.slane %v2118, %v2133
    %v2136 = vunpack.c.l.s4 1966171168
    %v2137 = vunpack.c.0.s8 %v2136
    %v2138 = vlaneseq
    %v2139 = vshrl.u32 %v2138, 7
    %v2140 = vsub.s32 %v2137, %v2139
    %v2141 = vrot.slane %v2119, %v2140
    %v2143 = vunpack.c.l.s4 1966171168
    %v2144 = vunpack.c.0.s8 %v2143
    %v2145 = vlaneseq
    %v2146 = vshrl.u32 %v2145, 7
    %v2147 = vsub.s32 %v2144, %v2146
    %v2148 = vrot.slane %v2120, %v2147
    %v2149 = vcombine.low %v2127, %v2134
    %v2150 = vcombine.low %v2141, %v2148
    %v2152 = vunpack.c.l.s4 1966171168
    %v2153 = vunpack.c.0.s8 %v2152
    %v2154 = vlaneseq
    %v2155 = vshrl.u32 %v2154, 7
    %v2156 = vsub.s32 %v2153, %v2155
    %v2157 = vrot.slane %v2149, %v2156
    %v2159 = vunpack.c.l.s4 1966171168
    %v2160 = vunpack.c.0.s8 %v2159
    %v2161 = vlaneseq
    %v2162 = vshrl.u32 %v2161, 7
    %v2163 = vsub.s32 %v2160, %v2162
    %v2164 = vrot.slane %v2150, %v2163
    %v2165 = vcombine.low %v2157, %v2164
    %v2168 = vadd.f32 %v1391, %v2116
    %v2169 = vadd.f32 %v1395, %v2165
    %v2170 = vxor.u32 %v2168, 2147483648
    %v2171 = vxor.u32 %v2169, 2147483648
    %v2172 = vmul.f32 %v2170, 1.442695
    %v2173 = vpow.pop %v2172
    %v2174 = vmul.f32 %v2171, 1.442695
    %v2175 = vpow.pop %v2174
    %v2176 = vadd.f32 %v2173, 1.0
    %v2177 = vadd.f32 %v2175, 1.0
    %v2178 = vrcp.pop %v2176
    %v2179 = vmul.f32 1.0, %v2178
    %v2180 = vrcp.pop %v2177
    %v2181 = vmul.f32 1.0, %v2180
    %v2183 = vrot.slane %v2169, 4
    %v2185 = vtanh.pop %v2183
    %v2187 = vrot.slane %v2179, 4
    %v2189 = vmul.f32 %v2187, 0.0
    %v2190 = vmul.f32 %v2179, %v2185
    %v2191 = vadd.f32 %v2189, %v2190
    %v2192 = vtanh.pop %v2191
    %v2193 = vmul.f32 %v2181, %v2192
    %v2194 = vlaneseq
    %vm2195 = vcmp.ge.s32.totalorder %v2194, 0
    %vm2196 = vcmp.lt.s32.totalorder %v2194, 256
    %vm2197 = vmand %vm2195, %vm2196
    %2198 = vst.msk [vmem:[#allocation5] ss:$8 sm:$0x3] %vm2197, %v2193
    %2199 = vst.msk [vmem:[#allocation5] ss:$8 sm:$0x0] %vm2197, %v2193
    %v2201 = vrot.slane %v2193, 2
    %s2203 = scalar_lea.vmem [#allocation5], 23
    %2204 = vst.msk [vmem:[%s2203] ss:$8 sm:$0x3] %vm2197, %v2201
    %2205 = vst.msk [vmem:[%s2203] ss:$8 sm:$0x0] %vm2197, %v2201
    %s2206 = scalar_lea.vmem [#allocation4], 1
    %v2207 = vld [vmem:[%s2206] ss:$8 sm:$0xf]
    %v2208 = vld [vmem:[%s2206] ss:$8 sm:$0xf0]
    %v2209 = vor.u32 %v2207, %v2208
    %s2210 = scalar_lea.vmem [#allocation4], 65
    %v2211 = vld [vmem:[%s2210] ss:$8 sm:$0xf]
    %v2212 = vld [vmem:[%s2210] ss:$8 sm:$0xf0]
    %v2213 = vor.u32 %v2211, %v2212
    %v2214 = vlaneseq
    %v2215 = vshrl.u32 %v2214, 7
    %v2216 = vsub.s32 0, %v2215
    %v2217 = vrot.slane %v2193, %v2216
    %v2218 = vlaneseq
    %v2219 = vshrl.u32 %v2218, 7
    %v2220 = vsub.s32 1, %v2219
    %v2221 = vrot.slane %v2193, %v2220
    %v2222 = vlaneseq
    %v2223 = vshrl.u32 %v2222, 7
    %v2224 = vsub.s32 2, %v2223
    %v2225 = vrot.slane %v2193, %v2224
    %v2226 = vlaneseq
    %v2227 = vshrl.u32 %v2226, 7
    %v2228 = vsub.s32 3, %v2227
    %v2229 = vrot.slane %v2193, %v2228
    %v2234 = vpack.c.bf16 %v2217, %v2217
    %v2235 = vpack.c.bf16 %v2221, %v2221
    %v2236 = vpack.c.bf16 %v2225, %v2225
    %v2237 = vpack.c.bf16 %v2229, %v2229
    %2238 = vmatprep.subr.bf16.mxu0 %v878
    %2239 = vmatpush1.bf16.msra.mxu0 %v877
    %2240 = vmatprep.subr.bf16.mxu0 %v894
    %2241 = vmatpush1.bf16.msra.mxu0 %v893
    %2242 = vmatprep.subr.bf16.mxu0 %v910
    %2243 = vmatpush1.bf16.msra.mxu0 %v909
    %2244 = vmatprep.subr.bf16.mxu0 %v926
    %2245 = vmatpush1.bf16.msra.mxu0 %v925
    %2246 = vmatprep.subr.bf16.mxu0 %v942
    %2247 = vmatpush1.bf16.msra.mxu0 %v941
    %2248 = vmatprep.subr.bf16.mxu0 %v958
    %2249 = vmatpush1.bf16.msra.mxu0 %v957
    %2250 = vmatprep.subr.bf16.mxu0 %v974
    %2251 = vmatpush1.bf16.msra.mxu0 %v973
    %2252 = vmatprep.subr.bf16.mxu0 %v990
    %2253 = vmatpush1.bf16.msra.mxu0 %v989
    %2254 = vmatprep.subr.bf16.mxu0 %v1006
    %2255 = vmatpush1.bf16.msra.mxu0 %v1005
    %2256 = vmatprep.subr.bf16.mxu0 %v1022
    %2257 = vmatpush1.bf16.msra.mxu0 %v1021
    %2258 = vmatprep.subr.bf16.mxu0 %v1038
    %2259 = vmatpush1.bf16.msra.mxu0 %v1037
    %2260 = vmatprep.subr.bf16.mxu0 %v1054
    %2261 = vmatpush1.bf16.msra.mxu0 %v1053
    %2262 = vmatprep.subr.bf16.mxu0 %v1070
    %2263 = vmatpush1.bf16.msra.mxu0 %v1069
    %2264 = vmatprep.subr.bf16.mxu0 %v1086
    %2265 = vmatpush1.bf16.msra.mxu0 %v1085
    %2266 = vmatprep.subr.bf16.mxu0 %v1102
    %2267 = vmatpush1.bf16.msra.mxu0 %v1101
    %2268 = vmatprep.subr.bf16.mxu0 %v1118
    %2269 = vmatpush1.bf16.msra.mxu0 %v1117
    %2270 = vmatprep.mubr.bf16.mxu0 %v2235
    %2271 = vmatmul.mubr.bf16.gmra.mrb[0].mxu0 %v2234
    %v2272 = vpop.f32.mrb[0].mxu0
    %v2273 = vadd.f32 0.0, %v2272
    %v2274 = vpop.f32.mrb[0].mxu0
    %v2275 = vadd.f32 0.0, %v2274
    %v2276 = vpop.f32.mrb[0].mxu0
    %v2277 = vpop.f32.mrb[0].mxu0
    %2278 = vdwg.mxu0
    %2279 = vmatprep.subr.bf16.mxu0 %v1134
    %2280 = vmatpush1.bf16.msra.mxu0 %v1133
    %2281 = vmatprep.subr.bf16.mxu0 %v1150
    %2282 = vmatpush1.bf16.msra.mxu0 %v1149
    %2283 = vmatprep.subr.bf16.mxu0 %v1166
    %2284 = vmatpush1.bf16.msra.mxu0 %v1165
    %2285 = vmatprep.subr.bf16.mxu0 %v1182
    %2286 = vmatpush1.bf16.msra.mxu0 %v1181
    %2287 = vmatprep.subr.bf16.mxu0 %v1198
    %2288 = vmatpush1.bf16.msra.mxu0 %v1197
    %2289 = vmatprep.subr.bf16.mxu0 %v1214
    %2290 = vmatpush1.bf16.msra.mxu0 %v1213
    %2291 = vmatprep.subr.bf16.mxu0 %v1230
    %2292 = vmatpush1.bf16.msra.mxu0 %v1229
    %2293 = vmatprep.subr.bf16.mxu0 %v1246
    %2294 = vmatpush1.bf16.msra.mxu0 %v1245
    %2295 = vmatprep.subr.bf16.mxu0 %v1262
    %2296 = vmatpush1.bf16.msra.mxu0 %v1261
    %2297 = vmatprep.subr.bf16.mxu0 %v1278
    %2298 = vmatpush1.bf16.msra.mxu0 %v1277
    %2299 = vmatprep.subr.bf16.mxu0 %v1294
    %2300 = vmatpush1.bf16.msra.mxu0 %v1293
    %2301 = vmatprep.subr.bf16.mxu0 %v1310
    %2302 = vmatpush1.bf16.msra.mxu0 %v1309
    %2303 = vmatprep.subr.bf16.mxu0 %v1326
    %2304 = vmatpush1.bf16.msra.mxu0 %v1325
    %2305 = vmatprep.subr.bf16.mxu0 %v1342
    %2306 = vmatpush1.bf16.msra.mxu0 %v1341
    %2307 = vmatprep.subr.bf16.mxu0 %v1358
    %2308 = vmatpush1.bf16.msra.mxu0 %v1357
    %2309 = vmatprep.subr.bf16.mxu0 %v1374
    %2310 = vmatpush1.bf16.msra.mxu0 %v1373
    %2311 = vmatprep.mubr.bf16.mxu0 %v2237
    %2312 = vmatmul.mubr.bf16.gmra.mrb[0].mxu0 %v2236
    %v2313 = vpop.f32.mrb[0].mxu0
    %v2314 = vadd.f32 %v2273, %v2313
    %v2315 = vpop.f32.mrb[0].mxu0
    %v2316 = vadd.f32 %v2275, %v2315
    %v2317 = vpop.f32.mrb[0].mxu0
    %v2318 = vpop.f32.mrb[0].mxu0
    %2319 = vdwg.mxu0
    %2320 = vmatprep.subr.bf16.mxu0 %v880
    %2321 = vmatpush1.bf16.msra.mxu0 %v879
    %2322 = vmatprep.subr.bf16.mxu0 %v896
    %2323 = vmatpush1.bf16.msra.mxu0 %v895
    %2324 = vmatprep.subr.bf16.mxu0 %v912
    %2325 = vmatpush1.bf16.msra.mxu0 %v911
    %2326 = vmatprep.subr.bf16.mxu0 %v928
    %2327 = vmatpush1.bf16.msra.mxu0 %v927
    %2328 = vmatprep.subr.bf16.mxu0 %v944
    %2329 = vmatpush1.bf16.msra.mxu0 %v943
    %2330 = vmatprep.subr.bf16.mxu0 %v960
    %2331 = vmatpush1.bf16.msra.mxu0 %v959
    %2332 = vmatprep.subr.bf16.mxu0 %v976
    %2333 = vmatpush1.bf16.msra.mxu0 %v975
    %2334 = vmatprep.subr.bf16.mxu0 %v992
    %2335 = vmatpush1.bf16.msra.mxu0 %v991
    %2336 = vmatprep.subr.bf16.mxu0 %v1008
    %2337 = vmatpush1.bf16.msra.mxu0 %v1007
    %2338 = vmatprep.subr.bf16.mxu0 %v1024
    %2339 = vmatpush1.bf16.msra.mxu0 %v1023
    %2340 = vmatprep.subr.bf16.mxu0 %v1040
    %2341 = vmatpush1.bf16.msra.mxu0 %v1039
    %2342 = vmatprep.subr.bf16.mxu0 %v1056
    %2343 = vmatpush1.bf16.msra.mxu0 %v1055
    %2344 = vmatprep.subr.bf16.mxu0 %v1072
    %2345 = vmatpush1.bf16.msra.mxu0 %v1071
    %2346 = vmatprep.subr.bf16.mxu0 %v1088
    %2347 = vmatpush1.bf16.msra.mxu0 %v1087
    %2348 = vmatprep.subr.bf16.mxu0 %v1104
    %2349 = vmatpush1.bf16.msra.mxu0 %v1103
    %2350 = vmatprep.subr.bf16.mxu0 %v1120
    %2351 = vmatpush1.bf16.msra.mxu0 %v1119
    %2352 = vmatprep.mubr.bf16.mxu0 %v2235
    %2353 = vmatmul.mubr.bf16.gmra.mrb[0].mxu0 %v2234
    %v2354 = vpop.f32.mrb[0].mxu0
    %v2355 = vadd.f32 0.0, %v2354
    %v2356 = vpop.f32.mrb[0].mxu0
    %v2357 = vadd.f32 0.0, %v2356
    %v2358 = vpop.f32.mrb[0].mxu0
    %v2359 = vpop.f32.mrb[0].mxu0
    %2360 = vdwg.mxu0
    %2361 = vmatprep.subr.bf16.mxu0 %v1136
    %2362 = vmatpush1.bf16.msra.mxu0 %v1135
    %2363 = vmatprep.subr.bf16.mxu0 %v1152
    %2364 = vmatpush1.bf16.msra.mxu0 %v1151
    %2365 = vmatprep.subr.bf16.mxu0 %v1168
    %2366 = vmatpush1.bf16.msra.mxu0 %v1167
    %2367 = vmatprep.subr.bf16.mxu0 %v1184
    %2368 = vmatpush1.bf16.msra.mxu0 %v1183
    %2369 = vmatprep.subr.bf16.mxu0 %v1200
    %2370 = vmatpush1.bf16.msra.mxu0 %v1199
    %2371 = vmatprep.subr.bf16.mxu0 %v1216
    %2372 = vmatpush1.bf16.msra.mxu0 %v1215
    %2373 = vmatprep.subr.bf16.mxu0 %v1232
    %2374 = vmatpush1.bf16.msra.mxu0 %v1231
    %2375 = vmatprep.subr.bf16.mxu0 %v1248
    %2376 = vmatpush1.bf16.msra.mxu0 %v1247
    %2377 = vmatprep.subr.bf16.mxu0 %v1264
    %2378 = vmatpush1.bf16.msra.mxu0 %v1263
    %2379 = vmatprep.subr.bf16.mxu0 %v1280
    %2380 = vmatpush1.bf16.msra.mxu0 %v1279
    %2381 = vmatprep.subr.bf16.mxu0 %v1296
    %2382 = vmatpush1.bf16.msra.mxu0 %v1295
    %2383 = vmatprep.subr.bf16.mxu0 %v1312
    %2384 = vmatpush1.bf16.msra.mxu0 %v1311
    %2385 = vmatprep.subr.bf16.mxu0 %v1328
    %2386 = vmatpush1.bf16.msra.mxu0 %v1327
    %2387 = vmatprep.subr.bf16.mxu0 %v1344
    %2388 = vmatpush1.bf16.msra.mxu0 %v1343
    %2389 = vmatprep.subr.bf16.mxu0 %v1360
    %2390 = vmatpush1.bf16.msra.mxu0 %v1359
    %2391 = vmatprep.subr.bf16.mxu0 %v1376
    %2392 = vmatpush1.bf16.msra.mxu0 %v1375
    %2393 = vmatprep.mubr.bf16.mxu0 %v2237
    %2394 = vmatmul.mubr.bf16.gmra.mrb[0].mxu0 %v2236
    %v2395 = vpop.f32.mrb[0].mxu0
    %v2396 = vadd.f32 %v2355, %v2395
    %v2397 = vpop.f32.mrb[0].mxu0
    %v2398 = vadd.f32 %v2357, %v2397
    %v2399 = vpop.f32.mrb[0].mxu0
    %v2400 = vpop.f32.mrb[0].mxu0
    %2401 = vdwg.mxu0
    %2402 = vmatprep.subr.bf16.mxu0 %v882
    %2403 = vmatpush1.bf16.msra.mxu0 %v881
    %2404 = vmatprep.subr.bf16.mxu0 %v898
    %2405 = vmatpush1.bf16.msra.mxu0 %v897
    %2406 = vmatprep.subr.bf16.mxu0 %v914
    %2407 = vmatpush1.bf16.msra.mxu0 %v913
    %2408 = vmatprep.subr.bf16.mxu0 %v930
    %2409 = vmatpush1.bf16.msra.mxu0 %v929
    %2410 = vmatprep.subr.bf16.mxu0 %v946
    %2411 = vmatpush1.bf16.msra.mxu0 %v945
    %2412 = vmatprep.subr.bf16.mxu0 %v962
    %2413 = vmatpush1.bf16.msra.mxu0 %v961
    %2414 = vmatprep.subr.bf16.mxu0 %v978
    %2415 = vmatpush1.bf16.msra.mxu0 %v977
    %2416 = vmatprep.subr.bf16.mxu0 %v994
    %2417 = vmatpush1.bf16.msra.mxu0 %v993
    %2418 = vmatprep.subr.bf16.mxu0 %v1010
    %2419 = vmatpush1.bf16.msra.mxu0 %v1009
    %2420 = vmatprep.subr.bf16.mxu0 %v1026
    %2421 = vmatpush1.bf16.msra.mxu0 %v1025
    %2422 = vmatprep.subr.bf16.mxu0 %v1042
    %2423 = vmatpush1.bf16.msra.mxu0 %v1041
    %2424 = vmatprep.subr.bf16.mxu0 %v1058
    %2425 = vmatpush1.bf16.msra.mxu0 %v1057
    %2426 = vmatprep.subr.bf16.mxu0 %v1074
    %2427 = vmatpush1.bf16.msra.mxu0 %v1073
    %2428 = vmatprep.subr.bf16.mxu0 %v1090
    %2429 = vmatpush1.bf16.msra.mxu0 %v1089
    %2430 = vmatprep.subr.bf16.mxu0 %v1106
    %2431 = vmatpush1.bf16.msra.mxu0 %v1105
    %2432 = vmatprep.subr.bf16.mxu0 %v1122
    %2433 = vmatpush1.bf16.msra.mxu0 %v1121
    %2434 = vmatprep.mubr.bf16.mxu0 %v2235
    %2435 = vmatmul.mubr.bf16.gmra.mrb[0].mxu0 %v2234
    %v2436 = vpop.f32.mrb[0].mxu0
    %v2437 = vadd.f32 0.0, %v2436
    %v2438 = vpop.f32.mrb[0].mxu0
    %v2439 = vadd.f32 0.0, %v2438
    %v2440 = vpop.f32.mrb[0].mxu0
    %v2441 = vpop.f32.mrb[0].mxu0
    %2442 = vdwg.mxu0
    %2443 = vmatprep.subr.bf16.mxu0 %v1138
    %2444 = vmatpush1.bf16.msra.mxu0 %v1137
    %2445 = vmatprep.subr.bf16.mxu0 %v1154
    %2446 = vmatpush1.bf16.msra.mxu0 %v1153
    %2447 = vmatprep.subr.bf16.mxu0 %v1170
    %2448 = vmatpush1.bf16.msra.mxu0 %v1169
    %2449 = vmatprep.subr.bf16.mxu0 %v1186
    %2450 = vmatpush1.bf16.msra.mxu0 %v1185
    %2451 = vmatprep.subr.bf16.mxu0 %v1202
    %2452 = vmatpush1.bf16.msra.mxu0 %v1201
    %2453 = vmatprep.subr.bf16.mxu0 %v1218
    %2454 = vmatpush1.bf16.msra.mxu0 %v1217
    %2455 = vmatprep.subr.bf16.mxu0 %v1234
    %2456 = vmatpush1.bf16.msra.mxu0 %v1233
    %2457 = vmatprep.subr.bf16.mxu0 %v1250
    %2458 = vmatpush1.bf16.msra.mxu0 %v1249
    %2459 = vmatprep.subr.bf16.mxu0 %v1266
    %2460 = vmatpush1.bf16.msra.mxu0 %v1265
    %2461 = vmatprep.subr.bf16.mxu0 %v1282
    %2462 = vmatpush1.bf16.msra.mxu0 %v1281
    %2463 = vmatprep.subr.bf16.mxu0 %v1298
    %2464 = vmatpush1.bf16.msra.mxu0 %v1297
    %2465 = vmatprep.subr.bf16.mxu0 %v1314
    %2466 = vmatpush1.bf16.msra.mxu0 %v1313
    %2467 = vmatprep.subr.bf16.mxu0 %v1330
    %2468 = vmatpush1.bf16.msra.mxu0 %v1329
    %2469 = vmatprep.subr.bf16.mxu0 %v1346
    %2470 = vmatpush1.bf16.msra.mxu0 %v1345
    %2471 = vmatprep.subr.bf16.mxu0 %v1362
    %2472 = vmatpush1.bf16.msra.mxu0 %v1361
    %2473 = vmatprep.subr.bf16.mxu0 %v1378
    %2474 = vmatpush1.bf16.msra.mxu0 %v1377
    %2475 = vmatprep.mubr.bf16.mxu0 %v2237
    %2476 = vmatmul.mubr.bf16.gmra.mrb[0].mxu0 %v2236
    %v2477 = vpop.f32.mrb[0].mxu0
    %v2478 = vadd.f32 %v2437, %v2477
    %v2479 = vpop.f32.mrb[0].mxu0
    %v2480 = vadd.f32 %v2439, %v2479
    %v2481 = vpop.f32.mrb[0].mxu0
    %v2482 = vpop.f32.mrb[0].mxu0
    %2483 = vdwg.mxu0
    %2484 = vmatprep.subr.bf16.mxu0 %v884
    %2485 = vmatpush1.bf16.msra.mxu0 %v883
    %2486 = vmatprep.subr.bf16.mxu0 %v900
    %2487 = vmatpush1.bf16.msra.mxu0 %v899
    %2488 = vmatprep.subr.bf16.mxu0 %v916
    %2489 = vmatpush1.bf16.msra.mxu0 %v915
    %2490 = vmatprep.subr.bf16.mxu0 %v932
    %2491 = vmatpush1.bf16.msra.mxu0 %v931
    %2492 = vmatprep.subr.bf16.mxu0 %v948
    %2493 = vmatpush1.bf16.msra.mxu0 %v947
    %2494 = vmatprep.subr.bf16.mxu0 %v964
    %2495 = vmatpush1.bf16.msra.mxu0 %v963
    %2496 = vmatprep.subr.bf16.mxu0 %v980
    %2497 = vmatpush1.bf16.msra.mxu0 %v979
    %2498 = vmatprep.subr.bf16.mxu0 %v996
    %2499 = vmatpush1.bf16.msra.mxu0 %v995
    %2500 = vmatprep.subr.bf16.mxu0 %v1012
    %2501 = vmatpush1.bf16.msra.mxu0 %v1011
    %2502 = vmatprep.subr.bf16.mxu0 %v1028
    %2503 = vmatpush1.bf16.msra.mxu0 %v1027
    %2504 = vmatprep.subr.bf16.mxu0 %v1044
    %2505 = vmatpush1.bf16.msra.mxu0 %v1043
    %2506 = vmatprep.subr.bf16.mxu0 %v1060
    %2507 = vmatpush1.bf16.msra.mxu0 %v1059
    %2508 = vmatprep.subr.bf16.mxu0 %v1076
    %2509 = vmatpush1.bf16.msra.mxu0 %v1075
    %2510 = vmatprep.subr.bf16.mxu0 %v1092
    %2511 = vmatpush1.bf16.msra.mxu0 %v1091
    %2512 = vmatprep.subr.bf16.mxu0 %v1108
    %2513 = vmatpush1.bf16.msra.mxu0 %v1107
    %2514 = vmatprep.subr.bf16.mxu0 %v1124
    %2515 = vmatpush1.bf16.msra.mxu0 %v1123
    %2516 = vmatprep.mubr.bf16.mxu0 %v2235
    %2517 = vmatmul.mubr.bf16.gmra.mrb[0].mxu0 %v2234
    %v2518 = vpop.f32.mrb[0].mxu0
    %v2519 = vadd.f32 0.0, %v2518
    %v2520 = vpop.f32.mrb[0].mxu0
    %v2521 = vadd.f32 0.0, %v2520
    %v2522 = vpop.f32.mrb[0].mxu0
    %v2523 = vpop.f32.mrb[0].mxu0
    %2524 = vdwg.mxu0
    %2525 = vmatprep.subr.bf16.mxu0 %v1140
    %2526 = vmatpush1.bf16.msra.mxu0 %v1139
    %2527 = vmatprep.subr.bf16.mxu0 %v1156
    %2528 = vmatpush1.bf16.msra.mxu0 %v1155
    %2529 = vmatprep.subr.bf16.mxu0 %v1172
    %2530 = vmatpush1.bf16.msra.mxu0 %v1171
    %2531 = vmatprep.subr.bf16.mxu0 %v1188
    %2532 = vmatpush1.bf16.msra.mxu0 %v1187
    %2533 = vmatprep.subr.bf16.mxu0 %v1204
    %2534 = vmatpush1.bf16.msra.mxu0 %v1203
    %2535 = vmatprep.subr.bf16.mxu0 %v1220
    %2536 = vmatpush1.bf16.msra.mxu0 %v1219
    %2537 = vmatprep.subr.bf16.mxu0 %v1236
    %2538 = vmatpush1.bf16.msra.mxu0 %v1235
    %2539 = vmatprep.subr.bf16.mxu0 %v1252
    %2540 = vmatpush1.bf16.msra.mxu0 %v1251
    %2541 = vmatprep.subr.bf16.mxu0 %v1268
    %2542 = vmatpush1.bf16.msra.mxu0 %v1267
    %2543 = vmatprep.subr.bf16.mxu0 %v1284
    %2544 = vmatpush1.bf16.msra.mxu0 %v1283
    %2545 = vmatprep.subr.bf16.mxu0 %v1300
    %2546 = vmatpush1.bf16.msra.mxu0 %v1299
    %2547 = vmatprep.subr.bf16.mxu0 %v1316
    %2548 = vmatpush1.bf16.msra.mxu0 %v1315
    %2549 = vmatprep.subr.bf16.mxu0 %v1332
    %2550 = vmatpush1.bf16.msra.mxu0 %v1331
    %2551 = vmatprep.subr.bf16.mxu0 %v1348
    %2552 = vmatpush1.bf16.msra.mxu0 %v1347
    %2553 = vmatprep.subr.bf16.mxu0 %v1364
    %2554 = vmatpush1.bf16.msra.mxu0 %v1363
    %2555 = vmatprep.subr.bf16.mxu0 %v1380
    %2556 = vmatpush1.bf16.msra.mxu0 %v1379
    %2557 = vmatprep.mubr.bf16.mxu0 %v2237
    %2558 = vmatmul.mubr.bf16.gmra.mrb[0].mxu0 %v2236
    %v2559 = vpop.f32.mrb[0].mxu0
    %v2560 = vadd.f32 %v2519, %v2559
    %v2561 = vpop.f32.mrb[0].mxu0
    %v2562 = vadd.f32 %v2521, %v2561
    %v2563 = vpop.f32.mrb[0].mxu0
    %v2564 = vpop.f32.mrb[0].mxu0
    %2565 = vdwg.mxu0
    %2566 = vmatprep.subr.bf16.mxu0 %v886
    %2567 = vmatpush1.bf16.msra.mxu0 %v885
    %2568 = vmatprep.subr.bf16.mxu0 %v902
    %2569 = vmatpush1.bf16.msra.mxu0 %v901
    %2570 = vmatprep.subr.bf16.mxu0 %v918
    %2571 = vmatpush1.bf16.msra.mxu0 %v917
    %2572 = vmatprep.subr.bf16.mxu0 %v934
    %2573 = vmatpush1.bf16.msra.mxu0 %v933
    %2574 = vmatprep.subr.bf16.mxu0 %v950
    %2575 = vmatpush1.bf16.msra.mxu0 %v949
    %2576 = vmatprep.subr.bf16.mxu0 %v966
    %2577 = vmatpush1.bf16.msra.mxu0 %v965
    %2578 = vmatprep.subr.bf16.mxu0 %v982
    %2579 = vmatpush1.bf16.msra.mxu0 %v981
    %2580 = vmatprep.subr.bf16.mxu0 %v998
    %2581 = vmatpush1.bf16.msra.mxu0 %v997
    %2582 = vmatprep.subr.bf16.mxu0 %v1014
    %2583 = vmatpush1.bf16.msra.mxu0 %v1013
    %2584 = vmatprep.subr.bf16.mxu0 %v1030
    %2585 = vmatpush1.bf16.msra.mxu0 %v1029
    %2586 = vmatprep.subr.bf16.mxu0 %v1046
    %2587 = vmatpush1.bf16.msra.mxu0 %v1045
    %2588 = vmatprep.subr.bf16.mxu0 %v1062
    %2589 = vmatpush1.bf16.msra.mxu0 %v1061
    %2590 = vmatprep.subr.bf16.mxu0 %v1078
    %2591 = vmatpush1.bf16.msra.mxu0 %v1077
    %2592 = vmatprep.subr.bf16.mxu0 %v1094
    %2593 = vmatpush1.bf16.msra.mxu0 %v1093
    %2594 = vmatprep.subr.bf16.mxu0 %v1110
    %2595 = vmatpush1.bf16.msra.mxu0 %v1109
    %2596 = vmatprep.subr.bf16.mxu0 %v1126
    %2597 = vmatpush1.bf16.msra.mxu0 %v1125
    %2598 = vmatprep.mubr.bf16.mxu0 %v2235
    %2599 = vmatmul.mubr.bf16.gmra.mrb[0].mxu0 %v2234
    %v2600 = vpop.f32.mrb[0].mxu0
    %v2601 = vadd.f32 0.0, %v2600
    %v2602 = vpop.f32.mrb[0].mxu0
    %v2603 = vadd.f32 0.0, %v2602
    %v2604 = vpop.f32.mrb[0].mxu0
    %v2605 = vpop.f32.mrb[0].mxu0
    %2606 = vdwg.mxu0
    %2607 = vmatprep.subr.bf16.mxu0 %v1142
    %2608 = vmatpush1.bf16.msra.mxu0 %v1141
    %2609 = vmatprep.subr.bf16.mxu0 %v1158
    %2610 = vmatpush1.bf16.msra.mxu0 %v1157
    %2611 = vmatprep.subr.bf16.mxu0 %v1174
    %2612 = vmatpush1.bf16.msra.mxu0 %v1173
    %2613 = vmatprep.subr.bf16.mxu0 %v1190
    %2614 = vmatpush1.bf16.msra.mxu0 %v1189
    %2615 = vmatprep.subr.bf16.mxu0 %v1206
    %2616 = vmatpush1.bf16.msra.mxu0 %v1205
    %2617 = vmatprep.subr.bf16.mxu0 %v1222
    %2618 = vmatpush1.bf16.msra.mxu0 %v1221
    %2619 = vmatprep.subr.bf16.mxu0 %v1238
    %2620 = vmatpush1.bf16.msra.mxu0 %v1237
    %2621 = vmatprep.subr.bf16.mxu0 %v1254
    %2622 = vmatpush1.bf16.msra.mxu0 %v1253
    %2623 = vmatprep.subr.bf16.mxu0 %v1270
    %2624 = vmatpush1.bf16.msra.mxu0 %v1269
    %2625 = vmatprep.subr.bf16.mxu0 %v1286
    %2626 = vmatpush1.bf16.msra.mxu0 %v1285
    %2627 = vmatprep.subr.bf16.mxu0 %v1302
    %2628 = vmatpush1.bf16.msra.mxu0 %v1301
    %2629 = vmatprep.subr.bf16.mxu0 %v1318
    %2630 = vmatpush1.bf16.msra.mxu0 %v1317
    %2631 = vmatprep.subr.bf16.mxu0 %v1334
    %2632 = vmatpush1.bf16.msra.mxu0 %v1333
    %2633 = vmatprep.subr.bf16.mxu0 %v1350
    %2634 = vmatpush1.bf16.msra.mxu0 %v1349
    %2635 = vmatprep.subr.bf16.mxu0 %v1366
    %2636 = vmatpush1.bf16.msra.mxu0 %v1365
    %2637 = vmatprep.subr.bf16.mxu0 %v1382
    %2638 = vmatpush1.bf16.msra.mxu0 %v1381
    %2639 = vmatprep.mubr.bf16.mxu0 %v2237
    %2640 = vmatmul.mubr.bf16.gmra.mrb[0].mxu0 %v2236
    %v2641 = vpop.f32.mrb[0].mxu0
    %v2642 = vadd.f32 %v2601, %v2641
    %v2643 = vpop.f32.mrb[0].mxu0
    %v2644 = vadd.f32 %v2603, %v2643
    %v2645 = vpop.f32.mrb[0].mxu0
    %v2646 = vpop.f32.mrb[0].mxu0
    %2647 = vdwg.mxu0
    %2648 = vmatprep.subr.bf16.mxu0 %v888
    %2649 = vmatpush1.bf16.msra.mxu0 %v887
    %2650 = vmatprep.subr.bf16.mxu0 %v904
    %2651 = vmatpush1.bf16.msra.mxu0 %v903
    %2652 = vmatprep.subr.bf16.mxu0 %v920
    %2653 = vmatpush1.bf16.msra.mxu0 %v919
    %2654 = vmatprep.subr.bf16.mxu0 %v936
    %2655 = vmatpush1.bf16.msra.mxu0 %v935
    %2656 = vmatprep.subr.bf16.mxu0 %v952
    %2657 = vmatpush1.bf16.msra.mxu0 %v951
    %2658 = vmatprep.subr.bf16.mxu0 %v968
    %2659 = vmatpush1.bf16.msra.mxu0 %v967
    %2660 = vmatprep.subr.bf16.mxu0 %v984
    %2661 = vmatpush1.bf16.msra.mxu0 %v983
    %2662 = vmatprep.subr.bf16.mxu0 %v1000
    %2663 = vmatpush1.bf16.msra.mxu0 %v999
    %2664 = vmatprep.subr.bf16.mxu0 %v1016
    %2665 = vmatpush1.bf16.msra.mxu0 %v1015
    %2666 = vmatprep.subr.bf16.mxu0 %v1032
    %2667 = vmatpush1.bf16.msra.mxu0 %v1031
    %2668 = vmatprep.subr.bf16.mxu0 %v1048
    %2669 = vmatpush1.bf16.msra.mxu0 %v1047
    %2670 = vmatprep.subr.bf16.mxu0 %v1064
    %2671 = vmatpush1.bf16.msra.mxu0 %v1063
    %2672 = vmatprep.subr.bf16.mxu0 %v1080
    %2673 = vmatpush1.bf16.msra.mxu0 %v1079
    %2674 = vmatprep.subr.bf16.mxu0 %v1096
    %2675 = vmatpush1.bf16.msra.mxu0 %v1095
    %2676 = vmatprep.subr.bf16.mxu0 %v1112
    %2677 = vmatpush1.bf16.msra.mxu0 %v1111
    %2678 = vmatprep.subr.bf16.mxu0 %v1128
    %2679 = vmatpush1.bf16.msra.mxu0 %v1127
    %2680 = vmatprep.mubr.bf16.mxu0 %v2235
    %2681 = vmatmul.mubr.bf16.gmra.mrb[0].mxu0 %v2234
    %v2682 = vpop.f32.mrb[0].mxu0
    %v2683 = vadd.f32 0.0, %v2682
    %v2684 = vpop.f32.mrb[0].mxu0
    %v2685 = vadd.f32 0.0, %v2684
    %v2686 = vpop.f32.mrb[0].mxu0
    %v2687 = vpop.f32.mrb[0].mxu0
    %2688 = vdwg.mxu0
    %2689 = vmatprep.subr.bf16.mxu0 %v1144
    %2690 = vmatpush1.bf16.msra.mxu0 %v1143
    %2691 = vmatprep.subr.bf16.mxu0 %v1160
    %2692 = vmatpush1.bf16.msra.mxu0 %v1159
    %2693 = vmatprep.subr.bf16.mxu0 %v1176
    %2694 = vmatpush1.bf16.msra.mxu0 %v1175
    %2695 = vmatprep.subr.bf16.mxu0 %v1192
    %2696 = vmatpush1.bf16.msra.mxu0 %v1191
    %2697 = vmatprep.subr.bf16.mxu0 %v1208
    %2698 = vmatpush1.bf16.msra.mxu0 %v1207
    %2699 = vmatprep.subr.bf16.mxu0 %v1224
    %2700 = vmatpush1.bf16.msra.mxu0 %v1223
    %2701 = vmatprep.subr.bf16.mxu0 %v1240
    %2702 = vmatpush1.bf16.msra.mxu0 %v1239
    %2703 = vmatprep.subr.bf16.mxu0 %v1256
    %2704 = vmatpush1.bf16.msra.mxu0 %v1255
    %2705 = vmatprep.subr.bf16.mxu0 %v1272
    %2706 = vmatpush1.bf16.msra.mxu0 %v1271
    %2707 = vmatprep.subr.bf16.mxu0 %v1288
    %2708 = vmatpush1.bf16.msra.mxu0 %v1287
    %2709 = vmatprep.subr.bf16.mxu0 %v1304
    %2710 = vmatpush1.bf16.msra.mxu0 %v1303
    %2711 = vmatprep.subr.bf16.mxu0 %v1320
    %2712 = vmatpush1.bf16.msra.mxu0 %v1319
    %2713 = vmatprep.subr.bf16.mxu0 %v1336
    %2714 = vmatpush1.bf16.msra.mxu0 %v1335
    %2715 = vmatprep.subr.bf16.mxu0 %v1352
    %2716 = vmatpush1.bf16.msra.mxu0 %v1351
    %2717 = vmatprep.subr.bf16.mxu0 %v1368
    %2718 = vmatpush1.bf16.msra.mxu0 %v1367
    %2719 = vmatprep.subr.bf16.mxu0 %v1384
    %2720 = vmatpush1.bf16.msra.mxu0 %v1383
    %2721 = vmatprep.mubr.bf16.mxu0 %v2237
    %2722 = vmatmul.mubr.bf16.gmra.mrb[0].mxu0 %v2236
    %v2723 = vpop.f32.mrb[0].mxu0
    %v2724 = vadd.f32 %v2683, %v2723
    %v2725 = vpop.f32.mrb[0].mxu0
    %v2726 = vadd.f32 %v2685, %v2725
    %v2727 = vpop.f32.mrb[0].mxu0
    %v2728 = vpop.f32.mrb[0].mxu0
    %2729 = vdwg.mxu0
    %2730 = vmatprep.subr.bf16.mxu0 %v890
    %2731 = vmatpush1.bf16.msra.mxu0 %v889
    %2732 = vmatprep.subr.bf16.mxu0 %v906
    %2733 = vmatpush1.bf16.msra.mxu0 %v905
    %2734 = vmatprep.subr.bf16.mxu0 %v922
    %2735 = vmatpush1.bf16.msra.mxu0 %v921
    %2736 = vmatprep.subr.bf16.mxu0 %v938
    %2737 = vmatpush1.bf16.msra.mxu0 %v937
    %2738 = vmatprep.subr.bf16.mxu0 %v954
    %2739 = vmatpush1.bf16.msra.mxu0 %v953
    %2740 = vmatprep.subr.bf16.mxu0 %v970
    %2741 = vmatpush1.bf16.msra.mxu0 %v969
    %2742 = vmatprep.subr.bf16.mxu0 %v986
    %2743 = vmatpush1.bf16.msra.mxu0 %v985
    %2744 = vmatprep.subr.bf16.mxu0 %v1002
    %2745 = vmatpush1.bf16.msra.mxu0 %v1001
    %2746 = vmatprep.subr.bf16.mxu0 %v1018
    %2747 = vmatpush1.bf16.msra.mxu0 %v1017
    %2748 = vmatprep.subr.bf16.mxu0 %v1034
    %2749 = vmatpush1.bf16.msra.mxu0 %v1033
    %2750 = vmatprep.subr.bf16.mxu0 %v1050
    %2751 = vmatpush1.bf16.msra.mxu0 %v1049
    %2752 = vmatprep.subr.bf16.mxu0 %v1066
    %2753 = vmatpush1.bf16.msra.mxu0 %v1065
    %2754 = vmatprep.subr.bf16.mxu0 %v1082
    %2755 = vmatpush1.bf16.msra.mxu0 %v1081
    %2756 = vmatprep.subr.bf16.mxu0 %v1098
    %2757 = vmatpush1.bf16.msra.mxu0 %v1097
    %2758 = vmatprep.subr.bf16.mxu0 %v1114
    %2759 = vmatpush1.bf16.msra.mxu0 %v1113
    %2760 = vmatprep.subr.bf16.mxu0 %v1130
    %2761 = vmatpush1.bf16.msra.mxu0 %v1129
    %2762 = vmatprep.mubr.bf16.mxu0 %v2235
    %2763 = vmatmul.mubr.bf16.gmra.mrb[0].mxu0 %v2234
    %v2764 = vpop.f32.mrb[0].mxu0
    %v2765 = vadd.f32 0.0, %v2764
    %v2766 = vpop.f32.mrb[0].mxu0
    %v2767 = vadd.f32 0.0, %v2766
    %v2768 = vpop.f32.mrb[0].mxu0
    %v2769 = vpop.f32.mrb[0].mxu0
    %2770 = vdwg.mxu0
    %2771 = vmatprep.subr.bf16.mxu0 %v1146
    %2772 = vmatpush1.bf16.msra.mxu0 %v1145
    %2773 = vmatprep.subr.bf16.mxu0 %v1162
    %2774 = vmatpush1.bf16.msra.mxu0 %v1161
    %2775 = vmatprep.subr.bf16.mxu0 %v1178
    %2776 = vmatpush1.bf16.msra.mxu0 %v1177
    %2777 = vmatprep.subr.bf16.mxu0 %v1194
    %2778 = vmatpush1.bf16.msra.mxu0 %v1193
    %2779 = vmatprep.subr.bf16.mxu0 %v1210
    %2780 = vmatpush1.bf16.msra.mxu0 %v1209
    %2781 = vmatprep.subr.bf16.mxu0 %v1226
    %2782 = vmatpush1.bf16.msra.mxu0 %v1225
    %2783 = vmatprep.subr.bf16.mxu0 %v1242
    %2784 = vmatpush1.bf16.msra.mxu0 %v1241
    %2785 = vmatprep.subr.bf16.mxu0 %v1258
    %2786 = vmatpush1.bf16.msra.mxu0 %v1257
    %2787 = vmatprep.subr.bf16.mxu0 %v1274
    %2788 = vmatpush1.bf16.msra.mxu0 %v1273
    %2789 = vmatprep.subr.bf16.mxu0 %v1290
    %2790 = vmatpush1.bf16.msra.mxu0 %v1289
    %2791 = vmatprep.subr.bf16.mxu0 %v1306
    %2792 = vmatpush1.bf16.msra.mxu0 %v1305
    %2793 = vmatprep.subr.bf16.mxu0 %v1322
    %2794 = vmatpush1.bf16.msra.mxu0 %v1321
    %2795 = vmatprep.subr.bf16.mxu0 %v1338
    %2796 = vmatpush1.bf16.msra.mxu0 %v1337
    %2797 = vmatprep.subr.bf16.mxu0 %v1354
    %2798 = vmatpush1.bf16.msra.mxu0 %v1353
    %2799 = vmatprep.subr.bf16.mxu0 %v1370
    %2800 = vmatpush1.bf16.msra.mxu0 %v1369
    %2801 = vmatprep.subr.bf16.mxu0 %v1386
    %2802 = vmatpush1.bf16.msra.mxu0 %v1385
    %2803 = vmatprep.mubr.bf16.mxu0 %v2237
    %2804 = vmatmul.mubr.bf16.gmra.mrb[0].mxu0 %v2236
    %v2805 = vpop.f32.mrb[0].mxu0
    %v2806 = vadd.f32 %v2765, %v2805
    %v2807 = vpop.f32.mrb[0].mxu0
    %v2808 = vadd.f32 %v2767, %v2807
    %v2809 = vpop.f32.mrb[0].mxu0
    %v2810 = vpop.f32.mrb[0].mxu0
    %2811 = vdwg.mxu0
    %2812 = vmatprep.subr.bf16.mxu0 %v892
    %2813 = vmatpush1.bf16.msra.mxu0 %v891
    %2814 = vmatprep.subr.bf16.mxu0 %v908
    %2815 = vmatpush1.bf16.msra.mxu0 %v907
    %2816 = vmatprep.subr.bf16.mxu0 %v924
    %2817 = vmatpush1.bf16.msra.mxu0 %v923
    %2818 = vmatprep.subr.bf16.mxu0 %v940
    %2819 = vmatpush1.bf16.msra.mxu0 %v939
    %2820 = vmatprep.subr.bf16.mxu0 %v956
    %2821 = vmatpush1.bf16.msra.mxu0 %v955
    %2822 = vmatprep.subr.bf16.mxu0 %v972
    %2823 = vmatpush1.bf16.msra.mxu0 %v971
    %2824 = vmatprep.subr.bf16.mxu0 %v988
    %2825 = vmatpush1.bf16.msra.mxu0 %v987
    %2826 = vmatprep.subr.bf16.mxu0 %v1004
    %2827 = vmatpush1.bf16.msra.mxu0 %v1003
    %2828 = vmatprep.subr.bf16.mxu0 %v1020
    %2829 = vmatpush1.bf16.msra.mxu0 %v1019
    %2830 = vmatprep.subr.bf16.mxu0 %v1036
    %2831 = vmatpush1.bf16.msra.mxu0 %v1035
    %2832 = vmatprep.subr.bf16.mxu0 %v1052
    %2833 = vmatpush1.bf16.msra.mxu0 %v1051
    %2834 = vmatprep.subr.bf16.mxu0 %v1068
    %2835 = vmatpush1.bf16.msra.mxu0 %v1067
    %2836 = vmatprep.subr.bf16.mxu0 %v1084
    %2837 = vmatpush1.bf16.msra.mxu0 %v1083
    %2838 = vmatprep.subr.bf16.mxu0 %v1100
    %2839 = vmatpush1.bf16.msra.mxu0 %v1099
    %2840 = vmatprep.subr.bf16.mxu0 %v1116
    %2841 = vmatpush1.bf16.msra.mxu0 %v1115
    %2842 = vmatprep.subr.bf16.mxu0 %v1132
    %2843 = vmatpush1.bf16.msra.mxu0 %v1131
    %2844 = vmatprep.mubr.bf16.mxu0 %v2235
    %2845 = vmatmul.mubr.bf16.gmra.mrb[0].mxu0 %v2234
    %v2846 = vpop.f32.mrb[0].mxu0
    %v2847 = vadd.f32 0.0, %v2846
    %v2848 = vpop.f32.mrb[0].mxu0
    %v2849 = vadd.f32 0.0, %v2848
    %v2850 = vpop.f32.mrb[0].mxu0
    %v2851 = vpop.f32.mrb[0].mxu0
    %2852 = vdwg.mxu0
    %2853 = vmatprep.subr.bf16.mxu0 %v1148
    %2854 = vmatpush1.bf16.msra.mxu0 %v1147
    %2855 = vmatprep.subr.bf16.mxu0 %v1164
    %2856 = vmatpush1.bf16.msra.mxu0 %v1163
    %2857 = vmatprep.subr.bf16.mxu0 %v1180
    %2858 = vmatpush1.bf16.msra.mxu0 %v1179
    %2859 = vmatprep.subr.bf16.mxu0 %v1196
    %2860 = vmatpush1.bf16.msra.mxu0 %v1195
    %2861 = vmatprep.subr.bf16.mxu0 %v1212
    %2862 = vmatpush1.bf16.msra.mxu0 %v1211
    %2863 = vmatprep.subr.bf16.mxu0 %v1228
    %2864 = vmatpush1.bf16.msra.mxu0 %v1227
    %2865 = vmatprep.subr.bf16.mxu0 %v1244
    %2866 = vmatpush1.bf16.msra.mxu0 %v1243
    %2867 = vmatprep.subr.bf16.mxu0 %v1260
    %2868 = vmatpush1.bf16.msra.mxu0 %v1259
    %2869 = vmatprep.subr.bf16.mxu0 %v1276
    %2870 = vmatpush1.bf16.msra.mxu0 %v1275
    %2871 = vmatprep.subr.bf16.mxu0 %v1292
    %2872 = vmatpush1.bf16.msra.mxu0 %v1291
    %2873 = vmatprep.subr.bf16.mxu0 %v1308
    %2874 = vmatpush1.bf16.msra.mxu0 %v1307
    %2875 = vmatprep.subr.bf16.mxu0 %v1324
    %2876 = vmatpush1.bf16.msra.mxu0 %v1323
    %2877 = vmatprep.subr.bf16.mxu0 %v1340
    %2878 = vmatpush1.bf16.msra.mxu0 %v1339
    %2879 = vmatprep.subr.bf16.mxu0 %v1356
    %2880 = vmatpush1.bf16.msra.mxu0 %v1355
    %2881 = vmatprep.subr.bf16.mxu0 %v1372
    %2882 = vmatpush1.bf16.msra.mxu0 %v1371
    %2883 = vmatprep.subr.bf16.mxu0 %v1388
    %2884 = vmatpush1.bf16.msra.mxu0 %v1387
    %2885 = vmatprep.mubr.bf16.mxu0 %v2237
    %2886 = vmatmul.mubr.bf16.gmra.mrb[0].mxu0 %v2236
    %v2887 = vpop.f32.mrb[0].mxu0
    %v2888 = vadd.f32 %v2847, %v2887
    %v2889 = vpop.f32.mrb[0].mxu0
    %v2890 = vadd.f32 %v2849, %v2889
    %v2891 = vpop.f32.mrb[0].mxu0
    %v2892 = vpop.f32.mrb[0].mxu0
    %2893 = vdwg.mxu0
    %v2910 = vcombine.low %v2314, %v2316
    %v2911 = vcombine.low %v2396, %v2398
    %v2912 = vcombine.low %v2478, %v2480
    %v2913 = vcombine.low %v2560, %v2562
    %v2915 = vunpack.c.l.s4 1966171168
    %v2916 = vunpack.c.0.s8 %v2915
    %v2917 = vlaneseq
    %v2918 = vshrl.u32 %v2917, 7
    %v2919 = vsub.s32 %v2916, %v2918
    %v2920 = vrot.slane %v2910, %v2919
    %v2922 = vunpack.c.l.s4 1966171168
    %v2923 = vunpack.c.0.s8 %v2922
    %v2924 = vlaneseq
    %v2925 = vshrl.u32 %v2924, 7
    %v2926 = vsub.s32 %v2923, %v2925
    %v2927 = vrot.slane %v2911, %v2926
    %v2929 = vunpack.c.l.s4 1966171168
    %v2930 = vunpack.c.0.s8 %v2929
    %v2931 = vlaneseq
    %v2932 = vshrl.u32 %v2931, 7
    %v2933 = vsub.s32 %v2930, %v2932
    %v2934 = vrot.slane %v2912, %v2933
    %v2936 = vunpack.c.l.s4 1966171168
    %v2937 = vunpack.c.0.s8 %v2936
    %v2938 = vlaneseq
    %v2939 = vshrl.u32 %v2938, 7
    %v2940 = vsub.s32 %v2937, %v2939
    %v2941 = vrot.slane %v2913, %v2940
    %v2942 = vcombine.low %v2920, %v2927
    %v2943 = vcombine.low %v2934, %v2941
    %v2945 = vunpack.c.l.s4 1966171168
    %v2946 = vunpack.c.0.s8 %v2945
    %v2947 = vlaneseq
    %v2948 = vshrl.u32 %v2947, 7
    %v2949 = vsub.s32 %v2946, %v2948
    %v2950 = vrot.slane %v2942, %v2949
    %v2952 = vunpack.c.l.s4 1966171168
    %v2953 = vunpack.c.0.s8 %v2952
    %v2954 = vlaneseq
    %v2955 = vshrl.u32 %v2954, 7
    %v2956 = vsub.s32 %v2953, %v2955
    %v2957 = vrot.slane %v2943, %v2956
    %v2958 = vcombine.low %v2950, %v2957
    %v2959 = vcombine.low %v2642, %v2644
    %v2960 = vcombine.low %v2724, %v2726
    %v2961 = vcombine.low %v2806, %v2808
    %v2962 = vcombine.low %v2888, %v2890
    %v2964 = vunpack.c.l.s4 1966171168
    %v2965 = vunpack.c.0.s8 %v2964
    %v2966 = vlaneseq
    %v2967 = vshrl.u32 %v2966, 7
    %v2968 = vsub.s32 %v2965, %v2967
    %v2969 = vrot.slane %v2959, %v2968
    %v2971 = vunpack.c.l.s4 1966171168
    %v2972 = vunpack.c.0.s8 %v2971
    %v2973 = vlaneseq
    %v2974 = vshrl.u32 %v2973, 7
    %v2975 = vsub.s32 %v2972, %v2974
    %v2976 = vrot.slane %v2960, %v2975
    %v2978 = vunpack.c.l.s4 1966171168
    %v2979 = vunpack.c.0.s8 %v2978
    %v2980 = vlaneseq
    %v2981 = vshrl.u32 %v2980, 7
    %v2982 = vsub.s32 %v2979, %v2981
    %v2983 = vrot.slane %v2961, %v2982
    %v2985 = vunpack.c.l.s4 1966171168
    %v2986 = vunpack.c.0.s8 %v2985
    %v2987 = vlaneseq
    %v2988 = vshrl.u32 %v2987, 7
    %v2989 = vsub.s32 %v2986, %v2988
    %v2990 = vrot.slane %v2962, %v2989
    %v2991 = vcombine.low %v2969, %v2976
    %v2992 = vcombine.low %v2983, %v2990
    %v2994 = vunpack.c.l.s4 1966171168
    %v2995 = vunpack.c.0.s8 %v2994
    %v2996 = vlaneseq
    %v2997 = vshrl.u32 %v2996, 7
    %v2998 = vsub.s32 %v2995, %v2997
    %v2999 = vrot.slane %v2991, %v2998
    %v3001 = vunpack.c.l.s4 1966171168
    %v3002 = vunpack.c.0.s8 %v3001
    %v3003 = vlaneseq
    %v3004 = vshrl.u32 %v3003, 7
    %v3005 = vsub.s32 %v3002, %v3004
    %v3006 = vrot.slane %v2992, %v3005
    %v3007 = vcombine.low %v2999, %v3006
    %v3010 = vadd.f32 %v2209, %v2958
    %v3011 = vadd.f32 %v2213, %v3007
    %v3012 = vxor.u32 %v3010, 2147483648
    %v3013 = vxor.u32 %v3011, 2147483648
    %v3014 = vmul.f32 %v3012, 1.442695
    %v3015 = vpow.pop %v3014
    %v3016 = vmul.f32 %v3013, 1.442695
    %v3017 = vpow.pop %v3016
    %v3018 = vadd.f32 %v3015, 1.0
    %v3019 = vadd.f32 %v3017, 1.0
    %v3020 = vrcp.pop %v3018
    %v3021 = vmul.f32 1.0, %v3020
    %v3022 = vrcp.pop %v3019
    %v3023 = vmul.f32 1.0, %v3022
    %v3025 = vrot.slane %v3011, 4
    %v3027 = vtanh.pop %v3025
    %v3029 = vrot.slane %v3021, 4
    %v3031 = vmul.f32 %v3029, %v2191
    %v3032 = vmul.f32 %v3021, %v3027
    %v3033 = vadd.f32 %v3031, %v3032
    %v3034 = vtanh.pop %v3033
    %v3035 = vmul.f32 %v3023, %v3034
    %s3036 = scalar_lea.vmem [#allocation5], 1
    %3037 = vst.msk [vmem:[%s3036] ss:$8 sm:$0x3] %vm2197, %v3035
    %3038 = vst.msk [vmem:[%s3036] ss:$8 sm:$0x0] %vm2197, %v3035
    %v3040 = vrot.slane %v3035, 2
    %s3042 = scalar_lea.vmem [#allocation5], 22
    %3043 = vst.msk [vmem:[%s3042] ss:$8 sm:$0x3] %vm2197, %v3040
    %3044 = vst.msk [vmem:[%s3042] ss:$8 sm:$0x0] %vm2197, %v3040
    %s3045 = scalar_lea.vmem [#allocation4], 2
    %v3046 = vld [vmem:[%s3045] ss:$8 sm:$0xf]
    %v3047 = vld [vmem:[%s3045] ss:$8 sm:$0xf0]
    %v3048 = vor.u32 %v3046, %v3047
    %s3049 = scalar_lea.vmem [#allocation4], 66
    %v3050 = vld [vmem:[%s3049] ss:$8 sm:$0xf]
    %v3051 = vld [vmem:[%s3049] ss:$8 sm:$0xf0]
    %v3052 = vor.u32 %v3050, %v3051
    %v3053 = vlaneseq
    %v3054 = vshrl.u32 %v3053, 7
    %v3055 = vsub.s32 0, %v3054
    %v3056 = vrot.slane %v3035, %v3055
    %v3057 = vlaneseq
    %v3058 = vshrl.u32 %v3057, 7
    %v3059 = vsub.s32 1, %v3058
    %v3060 = vrot.slane %v3035, %v3059
    %v3061 = vlaneseq
    %v3062 = vshrl.u32 %v3061, 7
    %v3063 = vsub.s32 2, %v3062
    %v3064 = vrot.slane %v3035, %v3063
    %v3065 = vlaneseq
    %v3066 = vshrl.u32 %v3065, 7
    %v3067 = vsub.s32 3, %v3066
    %v3068 = vrot.slane %v3035, %v3067
    %v3073 = vpack.c.bf16 %v3056, %v3056
    %v3074 = vpack.c.bf16 %v3060, %v3060
    %v3075 = vpack.c.bf16 %v3064, %v3064
    %v3076 = vpack.c.bf16 %v3068, %v3068
    %3077 = vmatprep.subr.bf16.mxu0 %v878
    %3078 = vmatpush1.bf16.msra.mxu0 %v877
    %3079 = vmatprep.subr.bf16.mxu0 %v894
    %3080 = vmatpush1.bf16.msra.mxu0 %v893
    %3081 = vmatprep.subr.bf16.mxu0 %v910
    %3082 = vmatpush1.bf16.msra.mxu0 %v909
    %3083 = vmatprep.subr.bf16.mxu0 %v926
    %3084 = vmatpush1.bf16.msra.mxu0 %v925
    %3085 = vmatprep.subr.bf16.mxu0 %v942
    %3086 = vmatpush1.bf16.msra.mxu0 %v941
    %3087 = vmatprep.subr.bf16.mxu0 %v958
    %3088 = vmatpush1.bf16.msra.mxu0 %v957
    %3089 = vmatprep.subr.bf16.mxu0 %v974
    %3090 = vmatpush1.bf16.msra.mxu0 %v973
    %3091 = vmatprep.subr.bf16.mxu0 %v990
    %3092 = vmatpush1.bf16.msra.mxu0 %v989
    %3093 = vmatprep.subr.bf16.mxu0 %v1006
    %3094 = vmatpush1.bf16.msra.mxu0 %v1005
    %3095 = vmatprep.subr.bf16.mxu0 %v1022
    %3096 = vmatpush1.bf16.msra.mxu0 %v1021
    %3097 = vmatprep.subr.bf16.mxu0 %v1038
    %3098 = vmatpush1.bf16.msra.mxu0 %v1037
    %3099 = vmatprep.subr.bf16.mxu0 %v1054
    %3100 = vmatpush1.bf16.msra.mxu0 %v1053
    %3101 = vmatprep.subr.bf16.mxu0 %v1070
    %3102 = vmatpush1.bf16.msra.mxu0 %v1069
    %3103 = vmatprep.subr.bf16.mxu0 %v1086
    %3104 = vmatpush1.bf16.msra.mxu0 %v1085
    %3105 = vmatprep.subr.bf16.mxu0 %v1102
    %3106 = vmatpush1.bf16.msra.mxu0 %v1101
    %3107 = vmatprep.subr.bf16.mxu0 %v1118
    %3108 = vmatpush1.bf16.msra.mxu0 %v1117
    %3109 = vmatprep.mubr.bf16.mxu0 %v3074
    %3110 = vmatmul.mubr.bf16.gmra.mrb[0].mxu0 %v3073
    %v3111 = vpop.f32.mrb[0].mxu0
    %v3112 = vadd.f32 0.0, %v3111
    %v3113 = vpop.f32.mrb[0].mxu0
    %v3114 = vadd.f32 0.0, %v3113
    %v3115 = vpop.f32.mrb[0].mxu0
    %v3116 = vpop.f32.mrb[0].mxu0
    %3117 = vdwg.mxu0
    %3118 = vmatprep.subr.bf16.mxu0 %v1134
    %3119 = vmatpush1.bf16.msra.mxu0 %v1133
    %3120 = vmatprep.subr.bf16.mxu0 %v1150
    %3121 = vmatpush1.bf16.msra.mxu0 %v1149
    %3122 = vmatprep.subr.bf16.mxu0 %v1166
    %3123 = vmatpush1.bf16.msra.mxu0 %v1165
    %3124 = vmatprep.subr.bf16.mxu0 %v1182
    %3125 = vmatpush1.bf16.msra.mxu0 %v1181
    %3126 = vmatprep.subr.bf16.mxu0 %v1198
    %3127 = vmatpush1.bf16.msra.mxu0 %v1197
    %3128 = vmatprep.subr.bf16.mxu0 %v1214
    %3129 = vmatpush1.bf16.msra.mxu0 %v1213
    %3130 = vmatprep.subr.bf16.mxu0 %v1230
    %3131 = vmatpush1.bf16.msra.mxu0 %v1229
    %3132 = vmatprep.subr.bf16.mxu0 %v1246
    %3133 = vmatpush1.bf16.msra.mxu0 %v1245
    %3134 = vmatprep.subr.bf16.mxu0 %v1262
    %3135 = vmatpush1.bf16.msra.mxu0 %v1261
    %3136 = vmatprep.subr.bf16.mxu0 %v1278
    %3137 = vmatpush1.bf16.msra.mxu0 %v1277
    %3138 = vmatprep.subr.bf16.mxu0 %v1294
    %3139 = vmatpush1.bf16.msra.mxu0 %v1293
    %3140 = vmatprep.subr.bf16.mxu0 %v1310
    %3141 = vmatpush1.bf16.msra.mxu0 %v1309
    %3142 = vmatprep.subr.bf16.mxu0 %v1326
    %3143 = vmatpush1.bf16.msra.mxu0 %v1325
    %3144 = vmatprep.subr.bf16.mxu0 %v1342
    %3145 = vmatpush1.bf16.msra.mxu0 %v1341
    %3146 = vmatprep.subr.bf16.mxu0 %v1358
    %3147 = vmatpush1.bf16.msra.mxu0 %v1357
    %3148 = vmatprep.subr.bf16.mxu0 %v1374
    %3149 = vmatpush1.bf16.msra.mxu0 %v1373
    %3150 = vmatprep.mubr.bf16.mxu0 %v3076
    %3151 = vmatmul.mubr.bf16.gmra.mrb[0].mxu0 %v3075
    %v3152 = vpop.f32.mrb[0].mxu0
    %v3153 = vadd.f32 %v3112, %v3152
    %v3154 = vpop.f32.mrb[0].mxu0
    %v3155 = vadd.f32 %v3114, %v3154
    %v3156 = vpop.f32.mrb[0].mxu0
    %v3157 = vpop.f32.mrb[0].mxu0
    %3158 = vdwg.mxu0
    %3159 = vmatprep.subr.bf16.mxu0 %v880
    %3160 = vmatpush1.bf16.msra.mxu0 %v879
    %3161 = vmatprep.subr.bf16.mxu0 %v896
    %3162 = vmatpush1.bf16.msra.mxu0 %v895
    %3163 = vmatprep.subr.bf16.mxu0 %v912
    %3164 = vmatpush1.bf16.msra.mxu0 %v911
    %3165 = vmatprep.subr.bf16.mxu0 %v928
    %3166 = vmatpush1.bf16.msra.mxu0 %v927
    %3167 = vmatprep.subr.bf16.mxu0 %v944
    %3168 = vmatpush1.bf16.msra.mxu0 %v943
    %3169 = vmatprep.subr.bf16.mxu0 %v960
    %3170 = vmatpush1.bf16.msra.mxu0 %v959
    %3171 = vmatprep.subr.bf16.mxu0 %v976
    %3172 = vmatpush1.bf16.msra.mxu0 %v975
    %3173 = vmatprep.subr.bf16.mxu0 %v992
    %3174 = vmatpush1.bf16.msra.mxu0 %v991
    %3175 = vmatprep.subr.bf16.mxu0 %v1008
    %3176 = vmatpush1.bf16.msra.mxu0 %v1007
    %3177 = vmatprep.subr.bf16.mxu0 %v1024
    %3178 = vmatpush1.bf16.msra.mxu0 %v1023
    %3179 = vmatprep.subr.bf16.mxu0 %v1040
    %3180 = vmatpush1.bf16.msra.mxu0 %v1039
    %3181 = vmatprep.subr.bf16.mxu0 %v1056
    %3182 = vmatpush1.bf16.msra.mxu0 %v1055
    %3183 = vmatprep.subr.bf16.mxu0 %v1072
    %3184 = vmatpush1.bf16.msra.mxu0 %v1071
    %3185 = vmatprep.subr.bf16.mxu0 %v1088
    %3186 = vmatpush1.bf16.msra.mxu0 %v1087
    %3187 = vmatprep.subr.bf16.mxu0 %v1104
    %3188 = vmatpush1.bf16.msra.mxu0 %v1103
    %3189 = vmatprep.subr.bf16.mxu0 %v1120
    %3190 = vmatpush1.bf16.msra.mxu0 %v1119
    %3191 = vmatprep.mubr.bf16.mxu0 %v3074
    %3192 = vmatmul.mubr.bf16.gmra.mrb[0].mxu0 %v3073
    %v3193 = vpop.f32.mrb[0].mxu0
    %v3194 = vadd.f32 0.0, %v3193
    %v3195 = vpop.f32.mrb[0].mxu0
    %v3196 = vadd.f32 0.0, %v3195
    %v3197 = vpop.f32.mrb[0].mxu0
    %v3198 = vpop.f32.mrb[0].mxu0
    %3199 = vdwg.mxu0
    %3200 = vmatprep.subr.bf16.mxu0 %v1136
    %3201 = vmatpush1.bf16.msra.mxu0 %v1135
    %3202 = vmatprep.subr.bf16.mxu0 %v1152
    %3203 = vmatpush1.bf16.msra.mxu0 %v1151
    %3204 = vmatprep.subr.bf16.mxu0 %v1168
    %3205 = vmatpush1.bf16.msra.mxu0 %v1167
    %3206 = vmatprep.subr.bf16.mxu0 %v1184
    %3207 = vmatpush1.bf16.msra.mxu0 %v1183
    %3208 = vmatprep.subr.bf16.mxu0 %v1200
    %3209 = vmatpush1.bf16.msra.mxu0 %v1199
    %3210 = vmatprep.subr.bf16.mxu0 %v1216
    %3211 = vmatpush1.bf16.msra.mxu0 %v1215
    %3212 = vmatprep.subr.bf16.mxu0 %v1232
    %3213 = vmatpush1.bf16.msra.mxu0 %v1231
    %3214 = vmatprep.subr.bf16.mxu0 %v1248
    %3215 = vmatpush1.bf16.msra.mxu0 %v1247
    %3216 = vmatprep.subr.bf16.mxu0 %v1264
    %3217 = vmatpush1.bf16.msra.mxu0 %v1263
    %3218 = vmatprep.subr.bf16.mxu0 %v1280
    %3219 = vmatpush1.bf16.msra.mxu0 %v1279
    %3220 = vmatprep.subr.bf16.mxu0 %v1296
    %3221 = vmatpush1.bf16.msra.mxu0 %v1295
    %3222 = vmatprep.subr.bf16.mxu0 %v1312
    %3223 = vmatpush1.bf16.msra.mxu0 %v1311
    %3224 = vmatprep.subr.bf16.mxu0 %v1328
    %3225 = vmatpush1.bf16.msra.mxu0 %v1327
    %3226 = vmatprep.subr.bf16.mxu0 %v1344
    %3227 = vmatpush1.bf16.msra.mxu0 %v1343
    %3228 = vmatprep.subr.bf16.mxu0 %v1360
    %3229 = vmatpush1.bf16.msra.mxu0 %v1359
    %3230 = vmatprep.subr.bf16.mxu0 %v1376
    %3231 = vmatpush1.bf16.msra.mxu0 %v1375
    %3232 = vmatprep.mubr.bf16.mxu0 %v3076
    %3233 = vmatmul.mubr.bf16.gmra.mrb[0].mxu0 %v3075
    %v3234 = vpop.f32.mrb[0].mxu0
    %v3235 = vadd.f32 %v3194, %v3234
    %v3236 = vpop.f32.mrb[0].mxu0
    %v3237 = vadd.f32 %v3196, %v3236
    %v3238 = vpop.f32.mrb[0].mxu0
    %v3239 = vpop.f32.mrb[0].mxu0
    %3240 = vdwg.mxu0
    %3241 = vmatprep.subr.bf16.mxu0 %v882
    %3242 = vmatpush1.bf16.msra.mxu0 %v881
    %3243 = vmatprep.subr.bf16.mxu0 %v898
    %3244 = vmatpush1.bf16.msra.mxu0 %v897
    %3245 = vmatprep.subr.bf16.mxu0 %v914
    %3246 = vmatpush1.bf16.msra.mxu0 %v913
    %3247 = vmatprep.subr.bf16.mxu0 %v930
    %3248 = vmatpush1.bf16.msra.mxu0 %v929
    %3249 = vmatprep.subr.bf16.mxu0 %v946
    %3250 = vmatpush1.bf16.msra.mxu0 %v945
    %3251 = vmatprep.subr.bf16.mxu0 %v962
    %3252 = vmatpush1.bf16.msra.mxu0 %v961
    %3253 = vmatprep.subr.bf16.mxu0 %v978
    %3254 = vmatpush1.bf16.msra.mxu0 %v977
    %3255 = vmatprep.subr.bf16.mxu0 %v994
    %3256 = vmatpush1.bf16.msra.mxu0 %v993
    %3257 = vmatprep.subr.bf16.mxu0 %v1010
    %3258 = vmatpush1.bf16.msra.mxu0 %v1009
    %3259 = vmatprep.subr.bf16.mxu0 %v1026
    %3260 = vmatpush1.bf16.msra.mxu0 %v1025
    %3261 = vmatprep.subr.bf16.mxu0 %v1042
    %3262 = vmatpush1.bf16.msra.mxu0 %v1041
    %3263 = vmatprep.subr.bf16.mxu0 %v1058
    %3264 = vmatpush1.bf16.msra.mxu0 %v1057
    %3265 = vmatprep.subr.bf16.mxu0 %v1074
    %3266 = vmatpush1.bf16.msra.mxu0 %v1073
    %3267 = vmatprep.subr.bf16.mxu0 %v1090
    %3268 = vmatpush1.bf16.msra.mxu0 %v1089
    %3269 = vmatprep.subr.bf16.mxu0 %v1106
    %3270 = vmatpush1.bf16.msra.mxu0 %v1105
    %3271 = vmatprep.subr.bf16.mxu0 %v1122
    %3272 = vmatpush1.bf16.msra.mxu0 %v1121
    %3273 = vmatprep.mubr.bf16.mxu0 %v3074
    %3274 = vmatmul.mubr.bf16.gmra.mrb[0].mxu0 %v3073
    %v3275 = vpop.f32.mrb[0].mxu0
    %v3276 = vadd.f32 0.0, %v3275
    %v3277 = vpop.f32.mrb[0].mxu0
    %v3278 = vadd.f32 0.0, %v3277
    %v3279 = vpop.f32.mrb[0].mxu0
    %v3280 = vpop.f32.mrb[0].mxu0
    %3281 = vdwg.mxu0
    %3282 = vmatprep.subr.bf16.mxu0 %v1138
    %3283 = vmatpush1.bf16.msra.mxu0 %v1137
    %3284 = vmatprep.subr.bf16.mxu0 %v1154
    %3285 = vmatpush1.bf16.msra.mxu0 %v1153
    %3286 = vmatprep.subr.bf16.mxu0 %v1170
    %3287 = vmatpush1.bf16.msra.mxu0 %v1169
    %3288 = vmatprep.subr.bf16.mxu0 %v1186
    %3289 = vmatpush1.bf16.msra.mxu0 %v1185
    %3290 = vmatprep.subr.bf16.mxu0 %v1202
    %3291 = vmatpush1.bf16.msra.mxu0 %v1201
    %3292 = vmatprep.subr.bf16.mxu0 %v1218
    %3293 = vmatpush1.bf16.msra.mxu0 %v1217
    %3294 = vmatprep.subr.bf16.mxu0 %v1234
    %3295 = vmatpush1.bf16.msra.mxu0 %v1233
    %3296 = vmatprep.subr.bf16.mxu0 %v1250
    %3297 = vmatpush1.bf16.msra.mxu0 %v1249
    %3298 = vmatprep.subr.bf16.mxu0 %v1266
    %3299 = vmatpush1.bf16.msra.mxu0 %v1265
    %3300 = vmatprep.subr.bf16.mxu0 %v1282
    %3301 = vmatpush1.bf16.msra.mxu0 %v1281
    %3302 = vmatprep.subr.bf16.mxu0 %v1298
    %3303 = vmatpush1.bf16.msra.mxu0 %v1297
    %3304 = vmatprep.subr.bf16.mxu0 %v1314
    %3305 = vmatpush1.bf16.msra.mxu0 %v1313
    %3306 = vmatprep.subr.bf16.mxu0 %v1330
    %3307 = vmatpush1.bf16.msra.mxu0 %v1329
    %3308 = vmatprep.subr.bf16.mxu0 %v1346
    %3309 = vmatpush1.bf16.msra.mxu0 %v1345
    %3310 = vmatprep.subr.bf16.mxu0 %v1362
    %3311 = vmatpush1.bf16.msra.mxu0 %v1361
    %3312 = vmatprep.subr.bf16.mxu0 %v1378
    %3313 = vmatpush1.bf16.msra.mxu0 %v1377
    %3314 = vmatprep.mubr.bf16.mxu0 %v3076
    %3315 = vmatmul.mubr.bf16.gmra.mrb[0].mxu0 %v3075
    %v3316 = vpop.f32.mrb[0].mxu0
    %v3317 = vadd.f32 %v3276, %v3316
    %v3318 = vpop.f32.mrb[0].mxu0
    %v3319 = vadd.f32 %v3278, %v3318
    %v3320 = vpop.f32.mrb[0].mxu0
    %v3321 = vpop.f32.mrb[0].mxu0
    %3322 = vdwg.mxu0
    %3323 = vmatprep.subr.bf16.mxu0 %v884
    %3324 = vmatpush1.bf16.msra.mxu0 %v883
    %3325 = vmatprep.subr.bf16.mxu0 %v900
    %3326 = vmatpush1.bf16.msra.mxu0 %v899
    %3327 = vmatprep.subr.bf16.mxu0 %v916
    %3328 = vmatpush1.bf16.msra.mxu0 %v915
    %3329 = vmatprep.subr.bf16.mxu0 %v932
    %3330 = vmatpush1.bf16.msra.mxu0 %v931
    %3331 = vmatprep.subr.bf16.mxu0 %v948
    %3332 = vmatpush1.bf16.msra.mxu0 %v947
    %3333 = vmatprep.subr.bf16.mxu0 %v964
    %3334 = vmatpush1.bf16.msra.mxu0 %v963
    %3335 = vmatprep.subr.bf16.mxu0 %v980
    %3336 = vmatpush1.bf16.msra.mxu0 %v979
    %3337 = vmatprep.subr.bf16.mxu0 %v996
    %3338 = vmatpush1.bf16.msra.mxu0 %v995
    %3339 = vmatprep.subr.bf16.mxu0 %v1012
    %3340 = vmatpush1.bf16.msra.mxu0 %v1011
    %3341 = vmatprep.subr.bf16.mxu0 %v1028
    %3342 = vmatpush1.bf16.msra.mxu0 %v1027
    %3343 = vmatprep.subr.bf16.mxu0 %v1044
    %3344 = vmatpush1.bf16.msra.mxu0 %v1043
    %3345 = vmatprep.subr.bf16.mxu0 %v1060
    %3346 = vmatpush1.bf16.msra.mxu0 %v1059
    %3347 = vmatprep.subr.bf16.mxu0 %v1076
    %3348 = vmatpush1.bf16.msra.mxu0 %v1075
    %3349 = vmatprep.subr.bf16.mxu0 %v1092
    %3350 = vmatpush1.bf16.msra.mxu0 %v1091
    %3351 = vmatprep.subr.bf16.mxu0 %v1108
    %3352 = vmatpush1.bf16.msra.mxu0 %v1107
    %3353 = vmatprep.subr.bf16.mxu0 %v1124
    %3354 = vmatpush1.bf16.msra.mxu0 %v1123
    %3355 = vmatprep.mubr.bf16.mxu0 %v3074
    %3356 = vmatmul.mubr.bf16.gmra.mrb[0].mxu0 %v3073
    %v3357 = vpop.f32.mrb[0].mxu0
    %v3358 = vadd.f32 0.0, %v3357
    %v3359 = vpop.f32.mrb[0].mxu0
    %v3360 = vadd.f32 0.0, %v3359
    %v3361 = vpop.f32.mrb[0].mxu0
    %v3362 = vpop.f32.mrb[0].mxu0
    %3363 = vdwg.mxu0
    %3364 = vmatprep.subr.bf16.mxu0 %v1140
    %3365 = vmatpush1.bf16.msra.mxu0 %v1139
    %3366 = vmatprep.subr.bf16.mxu0 %v1156
    %3367 = vmatpush1.bf16.msra.mxu0 %v1155
    %3368 = vmatprep.subr.bf16.mxu0 %v1172
    %3369 = vmatpush1.bf16.msra.mxu0 %v1171
    %3370 = vmatprep.subr.bf16.mxu0 %v1188
    %3371 = vmatpush1.bf16.msra.mxu0 %v1187
    %3372 = vmatprep.subr.bf16.mxu0 %v1204
    %3373 = vmatpush1.bf16.msra.mxu0 %v1203
    %3374 = vmatprep.subr.bf16.mxu0 %v1220
    %3375 = vmatpush1.bf16.msra.mxu0 %v1219
    %3376 = vmatprep.subr.bf16.mxu0 %v1236
    %3377 = vmatpush1.bf16.msra.mxu0 %v1235
    %3378 = vmatprep.subr.bf16.mxu0 %v1252
    %3379 = vmatpush1.bf16.msra.mxu0 %v1251
    %3380 = vmatprep.subr.bf16.mxu0 %v1268
    %3381 = vmatpush1.bf16.msra.mxu0 %v1267
    %3382 = vmatprep.subr.bf16.mxu0 %v1284
    %3383 = vmatpush1.bf16.msra.mxu0 %v1283
    %3384 = vmatprep.subr.bf16.mxu0 %v1300
    %3385 = vmatpush1.bf16.msra.mxu0 %v1299
    %3386 = vmatprep.subr.bf16.mxu0 %v1316
    %3387 = vmatpush1.bf16.msra.mxu0 %v1315
    %3388 = vmatprep.subr.bf16.mxu0 %v1332
    %3389 = vmatpush1.bf16.msra.mxu0 %v1331
    %3390 = vmatprep.subr.bf16.mxu0 %v1348
    %3391 = vmatpush1.bf16.msra.mxu0 %v1347
    %3392 = vmatprep.subr.bf16.mxu0 %v1364
    %3393 = vmatpush1.bf16.msra.mxu0 %v1363
    %3394 = vmatprep.subr.bf16.mxu0 %v1380
    %3395 = vmatpush1.bf16.msra.mxu0 %v1379
    %3396 = vmatprep.mubr.bf16.mxu0 %v3076
    %3397 = vmatmul.mubr.bf16.gmra.mrb[0].mxu0 %v3075
    %v3398 = vpop.f32.mrb[0].mxu0
    %v3399 = vadd.f32 %v3358, %v3398
    %v3400 = vpop.f32.mrb[0].mxu0
    %v3401 = vadd.f32 %v3360, %v3400
    %v3402 = vpop.f32.mrb[0].mxu0
    %v3403 = vpop.f32.mrb[0].mxu0
    %3404 = vdwg.mxu0
    %3405 = vmatprep.subr.bf16.mxu0 %v886
    %3406 = vmatpush1.bf16.msra.mxu0 %v885
    %3407 = vmatprep.subr.bf16.mxu0 %v902
    %3408 = vmatpush1.bf16.msra.mxu0 %v901
    %3409 = vmatprep.subr.bf16.mxu0 %v918
    %3410 = vmatpush1.bf16.msra.mxu0 %v917
    %3411 = vmatprep.subr.bf16.mxu0 %v934
    %3412 = vmatpush1.bf16.msra.mxu0 %v933
    %3413 = vmatprep.subr.bf16.mxu0 %v950
    %3414 = vmatpush1.bf16.msra.mxu0 %v949
    %3415 = vmatprep.subr.bf16.mxu0 %v966
    %3416 = vmatpush1.bf16.msra.mxu0 %v965
    %3417 = vmatprep.subr.bf16.mxu0 %v982
    %3418 = vmatpush1.bf16.msra.mxu0 %v981
    %3419 = vmatprep.subr.bf16.mxu0 %v998
    %3420 = vmatpush1.bf16.msra.mxu0 %v997
    %3421 = vmatprep.subr.bf16.mxu0 %v1014
    %3422 = vmatpush1.bf16.msra.mxu0 %v1013
    %3423 = vmatprep.subr.bf16.mxu0 %v1030
    %3424 = vmatpush1.bf16.msra.mxu0 %v1029
    %3425 = vmatprep.subr.bf16.mxu0 %v1046
    %3426 = vmatpush1.bf16.msra.mxu0 %v1045
    %3427 = vmatprep.subr.bf16.mxu0 %v1062
    %3428 = vmatpush1.bf16.msra.mxu0 %v1061
    %3429 = vmatprep.subr.bf16.mxu0 %v1078
    %3430 = vmatpush1.bf16.msra.mxu0 %v1077
    %3431 = vmatprep.subr.bf16.mxu0 %v1094
    %3432 = vmatpush1.bf16.msra.mxu0 %v1093
    %3433 = vmatprep.subr.bf16.mxu0 %v1110
    %3434 = vmatpush1.bf16.msra.mxu0 %v1109
    %3435 = vmatprep.subr.bf16.mxu0 %v1126
    %3436 = vmatpush1.bf16.msra.mxu0 %v1125
    %3437 = vmatprep.mubr.bf16.mxu0 %v3074
    %3438 = vmatmul.mubr.bf16.gmra.mrb[0].mxu0 %v3073
    %v3439 = vpop.f32.mrb[0].mxu0
    %v3440 = vadd.f32 0.0, %v3439
    %v3441 = vpop.f32.mrb[0].mxu0
    %v3442 = vadd.f32 0.0, %v3441
    %v3443 = vpop.f32.mrb[0].mxu0
    %v3444 = vpop.f32.mrb[0].mxu0
    %3445 = vdwg.mxu0
    %3446 = vmatprep.subr.bf16.mxu0 %v1142
    %3447 = vmatpush1.bf16.msra.mxu0 %v1141
    %3448 = vmatprep.subr.bf16.mxu0 %v1158
    %3449 = vmatpush1.bf16.msra.mxu0 %v1157
    %3450 = vmatprep.subr.bf16.mxu0 %v1174
    %3451 = vmatpush1.bf16.msra.mxu0 %v1173
    %3452 = vmatprep.subr.bf16.mxu0 %v1190
    %3453 = vmatpush1.bf16.msra.mxu0 %v1189
    %3454 = vmatprep.subr.bf16.mxu0 %v1206
    %3455 = vmatpush1.bf16.msra.mxu0 %v1205
    %3456 = vmatprep.subr.bf16.mxu0 %v1222
    %3457 = vmatpush1.bf16.msra.mxu0 %v1221
    %3458 = vmatprep.subr.bf16.mxu0 %v1238
    %3459 = vmatpush1.bf16.msra.mxu0 %v1237
    %3460 = vmatprep.subr.bf16.mxu0 %v1254
    %3461 = vmatpush1.bf16.msra.mxu0 %v1253
    %3462 = vmatprep.subr.bf16.mxu0 %v1270
    %3463 = vmatpush1.bf16.msra.mxu0 %v1269
    %3464 = vmatprep.subr.bf16.mxu0 %v1286
    %3465 = vmatpush1.bf16.msra.mxu0 %v1285
    %3466 = vmatprep.subr.bf16.mxu0 %v1302
    %3467 = vmatpush1.bf16.msra.mxu0 %v1301
    %3468 = vmatprep.subr.bf16.mxu0 %v1318
    %3469 = vmatpush1.bf16.msra.mxu0 %v1317
    %3470 = vmatprep.subr.bf16.mxu0 %v1334
    %3471 = vmatpush1.bf16.msra.mxu0 %v1333
    %3472 = vmatprep.subr.bf16.mxu0 %v1350
    %3473 = vmatpush1.bf16.msra.mxu0 %v1349
    %3474 = vmatprep.subr.bf16.mxu0 %v1366
    %3475 = vmatpush1.bf16.msra.mxu0 %v1365
    %3476 = vmatprep.subr.bf16.mxu0 %v1382
    %3477 = vmatpush1.bf16.msra.mxu0 %v1381
    %3478 = vmatprep.mubr.bf16.mxu0 %v3076
    %3479 = vmatmul.mubr.bf16.gmra.mrb[0].mxu0 %v3075
    %v3480 = vpop.f32.mrb[0].mxu0
    %v3481 = vadd.f32 %v3440, %v3480
    %v3482 = vpop.f32.mrb[0].mxu0
    %v3483 = vadd.f32 %v3442, %v3482
    %v3484 = vpop.f32.mrb[0].mxu0
    %v3485 = vpop.f32.mrb[0].mxu0
    %3486 = vdwg.mxu0
    %3487 = vmatprep.subr.bf16.mxu0 %v888
    %3488 = vmatpush1.bf16.msra.mxu0 %v887
    %3489 = vmatprep.subr.bf16.mxu0 %v904
    %3490 = vmatpush1.bf16.msra.mxu0 %v903
    %3491 = vmatprep.subr.bf16.mxu0 %v920
    %3492 = vmatpush1.bf16.msra.mxu0 %v919
    %3493 = vmatprep.subr.bf16.mxu0 %v936
    %3494 = vmatpush1.bf16.msra.mxu0 %v935
    %3495 = vmatprep.subr.bf16.mxu0 %v952
    %3496 = vmatpush1.bf16.msra.mxu0 %v951
    %3497 = vmatprep.subr.bf16.mxu0 %v968
    %3498 = vmatpush1.bf16.msra.mxu0 %v967
    %3499 = vmatprep.subr.bf16.mxu0 %v984
    %3500 = vmatpush1.bf16.msra.mxu0 %v983
    %3501 = vmatprep.subr.bf16.mxu0 %v1000
    %3502 = vmatpush1.bf16.msra.mxu0 %v999
    %3503 = vmatprep.subr.bf16.mxu0 %v1016
    %3504 = vmatpush1.bf16.msra.mxu0 %v1015
    %3505 = vmatprep.subr.bf16.mxu0 %v1032
    %3506 = vmatpush1.bf16.msra.mxu0 %v1031
    %3507 = vmatprep.subr.bf16.mxu0 %v1048
    %3508 = vmatpush1.bf16.msra.mxu0 %v1047
    %3509 = vmatprep.subr.bf16.mxu0 %v1064
    %3510 = vmatpush1.bf16.msra.mxu0 %v1063
    %3511 = vmatprep.subr.bf16.mxu0 %v1080
    %3512 = vmatpush1.bf16.msra.mxu0 %v1079
    %3513 = vmatprep.subr.bf16.mxu0 %v1096
    %3514 = vmatpush1.bf16.msra.mxu0 %v1095
    %3515 = vmatprep.subr.bf16.mxu0 %v1112
    %3516 = vmatpush1.bf16.msra.mxu0 %v1111
    %3517 = vmatprep.subr.bf16.mxu0 %v1128
    %3518 = vmatpush1.bf16.msra.mxu0 %v1127
    %3519 = vmatprep.mubr.bf16.mxu0 %v3074
    %3520 = vmatmul.mubr.bf16.gmra.mrb[0].mxu0 %v3073
    %v3521 = vpop.f32.mrb[0].mxu0
    %v3522 = vadd.f32 0.0, %v3521
    %v3523 = vpop.f32.mrb[0].mxu0
    %v3524 = vadd.f32 0.0, %v3523
    %v3525 = vpop.f32.mrb[0].mxu0
    %v3526 = vpop.f32.mrb[0].mxu0
    %3527 = vdwg.mxu0
    %3528 = vmatprep.subr.bf16.mxu0 %v1144
    %3529 = vmatpush1.bf16.msra.mxu0 %v1143
    %3530 = vmatprep.subr.bf16.mxu0 %v1160
    %3531 = vmatpush1.bf16.msra.mxu0 %v1159
    %3532 = vmatprep.subr.bf16.mxu0 %v1176
    %3533 = vmatpush1.bf16.msra.mxu0 %v1175
    %3534 = vmatprep.subr.bf16.mxu0 %v1192
    %3535 = vmatpush1.bf16.msra.mxu0 %v1191
    %3536 = vmatprep.subr.bf16.mxu0 %v1208
    %3537 = vmatpush1.bf16.msra.mxu0 %v1207
    %3538 = vmatprep.subr.bf16.mxu0 %v1224
    %3539 = vmatpush1.bf16.msra.mxu0 %v1223
    %3540 = vmatprep.subr.bf16.mxu0 %v1240
    %3541 = vmatpush1.bf16.msra.mxu0 %v1239
    %3542 = vmatprep.subr.bf16.mxu0 %v1256
    %3543 = vmatpush1.bf16.msra.mxu0 %v1255
    %3544 = vmatprep.subr.bf16.mxu0 %v1272
    %3545 = vmatpush1.bf16.msra.mxu0 %v1271
    %3546 = vmatprep.subr.bf16.mxu0 %v1288
    %3547 = vmatpush1.bf16.msra.mxu0 %v1287
    %3548 = vmatprep.subr.bf16.mxu0 %v1304
    %3549 = vmatpush1.bf16.msra.mxu0 %v1303
    %3550 = vmatprep.subr.bf16.mxu0 %v1320
    %3551 = vmatpush1.bf16.msra.mxu0 %v1319
    %3552 = vmatprep.subr.bf16.mxu0 %v1336
    %3553 = vmatpush1.bf16.msra.mxu0 %v1335
    %3554 = vmatprep.subr.bf16.mxu0 %v1352
    %3555 = vmatpush1.bf16.msra.mxu0 %v1351
    %3556 = vmatprep.subr.bf16.mxu0 %v1368
    %3557 = vmatpush1.bf16.msra.mxu0 %v1367
    %3558 = vmatprep.subr.bf16.mxu0 %v1384
    %3559 = vmatpush1.bf16.msra.mxu0 %v1383
    %3560 = vmatprep.mubr.bf16.mxu0 %v3076
    %3561 = vmatmul.mubr.bf16.gmra.mrb[0].mxu0 %v3075
    %v3562 = vpop.f32.mrb[0].mxu0
    %v3563 = vadd.f32 %v3522, %v3562
    %v3564 = vpop.f32.mrb[0].mxu0
    %v3565 = vadd.f32 %v3524, %v3564
    %v3566 = vpop.f32.mrb[0].mxu0
    %v3567 = vpop.f32.mrb[0].mxu0
    %3568 = vdwg.mxu0
    %3569 = vmatprep.subr.bf16.mxu0 %v890
    %3570 = vmatpush1.bf16.msra.mxu0 %v889
    %3571 = vmatprep.subr.bf16.mxu0 %v906
    %3572 = vmatpush1.bf16.msra.mxu0 %v905
    %3573 = vmatprep.subr.bf16.mxu0 %v922
    %3574 = vmatpush1.bf16.msra.mxu0 %v921
    %3575 = vmatprep.subr.bf16.mxu0 %v938
    %3576 = vmatpush1.bf16.msra.mxu0 %v937
    %3577 = vmatprep.subr.bf16.mxu0 %v954
    %3578 = vmatpush1.bf16.msra.mxu0 %v953
    %3579 = vmatprep.subr.bf16.mxu0 %v970
    %3580 = vmatpush1.bf16.msra.mxu0 %v969
    %3581 = vmatprep.subr.bf16.mxu0 %v986
    %3582 = vmatpush1.bf16.msra.mxu0 %v985
    %3583 = vmatprep.subr.bf16.mxu0 %v1002
    %3584 = vmatpush1.bf16.msra.mxu0 %v1001
    %3585 = vmatprep.subr.bf16.mxu0 %v1018
    %3586 = vmatpush1.bf16.msra.mxu0 %v1017
    %3587 = vmatprep.subr.bf16.mxu0 %v1034
    %3588 = vmatpush1.bf16.msra.mxu0 %v1033
    %3589 = vmatprep.subr.bf16.mxu0 %v1050
    %3590 = vmatpush1.bf16.msra.mxu0 %v1049
    %3591 = vmatprep.subr.bf16.mxu0 %v1066
    %3592 = vmatpush1.bf16.msra.mxu0 %v1065
    %3593 = vmatprep.subr.bf16.mxu0 %v1082
    %3594 = vmatpush1.bf16.msra.mxu0 %v1081
    %3595 = vmatprep.subr.bf16.mxu0 %v1098
    %3596 = vmatpush1.bf16.msra.mxu0 %v1097
    %3597 = vmatprep.subr.bf16.mxu0 %v1114
    %3598 = vmatpush1.bf16.msra.mxu0 %v1113
    %3599 = vmatprep.subr.bf16.mxu0 %v1130
    %3600 = vmatpush1.bf16.msra.mxu0 %v1129
    %3601 = vmatprep.mubr.bf16.mxu0 %v3074
    %3602 = vmatmul.mubr.bf16.gmra.mrb[0].mxu0 %v3073
    %v3603 = vpop.f32.mrb[0].mxu0
    %v3604 = vadd.f32 0.0, %v3603
    %v3605 = vpop.f32.mrb[0].mxu0
    %v3606 = vadd.f32 0.0, %v3605
    %v3607 = vpop.f32.mrb[0].mxu0
    %v3608 = vpop.f32.mrb[0].mxu0
    %3609 = vdwg.mxu0
    %3610 = vmatprep.subr.bf16.mxu0 %v1146
    %3611 = vmatpush1.bf16.msra.mxu0 %v1145
    %3612 = vmatprep.subr.bf16.mxu0 %v1162
    %3613 = vmatpush1.bf16.msra.mxu0 %v1161
    %3614 = vmatprep.subr.bf16.mxu0 %v1178
    %3615 = vmatpush1.bf16.msra.mxu0 %v1177
    %3616 = vmatprep.subr.bf16.mxu0 %v1194
    %3617 = vmatpush1.bf16.msra.mxu0 %v1193
    %3618 = vmatprep.subr.bf16.mxu0 %v1210
    %3619 = vmatpush1.bf16.msra.mxu0 %v1209
    %3620 = vmatprep.subr.bf16.mxu0 %v1226
    %3621 = vmatpush1.bf16.msra.mxu0 %v1225
    %3622 = vmatprep.subr.bf16.mxu0 %v1242
    %3623 = vmatpush1.bf16.msra.mxu0 %v1241
    %3624 = vmatprep.subr.bf16.mxu0 %v1258
    %3625 = vmatpush1.bf16.msra.mxu0 %v1257
    %3626 = vmatprep.subr.bf16.mxu0 %v1274
    %3627 = vmatpush1.bf16.msra.mxu0 %v1273
    %3628 = vmatprep.subr.bf16.mxu0 %v1290
    %3629 = vmatpush1.bf16.msra.mxu0 %v1289
    %3630 = vmatprep.subr.bf16.mxu0 %v1306
    %3631 = vmatpush1.bf16.msra.mxu0 %v1305
    %3632 = vmatprep.subr.bf16.mxu0 %v1322
    %3633 = vmatpush1.bf16.msra.mxu0 %v1321
    %3634 = vmatprep.subr.bf16.mxu0 %v1338
    %3635 = vmatpush1.bf16.msra.mxu0 %v1337
    %3636 = vmatprep.subr.bf16.mxu0 %v1354
    %3637 = vmatpush1.bf16.msra.mxu0 %v1353
    %3638 = vmatprep.subr.bf16.mxu0 %v1370
    %3639 = vmatpush1.bf16.msra.mxu0 %v1369
    %3640 = vmatprep.subr.bf16.mxu0 %v1386
    %3641 = vmatpush1.bf16.msra.mxu0 %v1385
    %3642 = vmatprep.mubr.bf16.mxu0 %v3076
    %3643 = vmatmul.mubr.bf16.gmra.mrb[0].mxu0 %v3075
    %v3644 = vpop.f32.mrb[0].mxu0
    %v3645 = vadd.f32 %v3604, %v3644
    %v3646 = vpop.f32.mrb[0].mxu0
    %v3647 = vadd.f32 %v3606, %v3646
    %v3648 = vpop.f32.mrb[0].mxu0
    %v3649 = vpop.f32.mrb[0].mxu0
    %3650 = vdwg.mxu0
    %3651 = vmatprep.subr.bf16.mxu0 %v892
    %3652 = vmatpush1.bf16.msra.mxu0 %v891
    %3653 = vmatprep.subr.bf16.mxu0 %v908
    %3654 = vmatpush1.bf16.msra.mxu0 %v907
    %3655 = vmatprep.subr.bf16.mxu0 %v924
    %3656 = vmatpush1.bf16.msra.mxu0 %v923
    %3657 = vmatprep.subr.bf16.mxu0 %v940
    %3658 = vmatpush1.bf16.msra.mxu0 %v939
    %3659 = vmatprep.subr.bf16.mxu0 %v956
    %3660 = vmatpush1.bf16.msra.mxu0 %v955
    %3661 = vmatprep.subr.bf16.mxu0 %v972
    %3662 = vmatpush1.bf16.msra.mxu0 %v971
    %3663 = vmatprep.subr.bf16.mxu0 %v988
    %3664 = vmatpush1.bf16.msra.mxu0 %v987
    %3665 = vmatprep.subr.bf16.mxu0 %v1004
    %3666 = vmatpush1.bf16.msra.mxu0 %v1003
    %3667 = vmatprep.subr.bf16.mxu0 %v1020
    %3668 = vmatpush1.bf16.msra.mxu0 %v1019
    %3669 = vmatprep.subr.bf16.mxu0 %v1036
    %3670 = vmatpush1.bf16.msra.mxu0 %v1035
    %3671 = vmatprep.subr.bf16.mxu0 %v1052
    %3672 = vmatpush1.bf16.msra.mxu0 %v1051
    %3673 = vmatprep.subr.bf16.mxu0 %v1068
    %3674 = vmatpush1.bf16.msra.mxu0 %v1067
    %3675 = vmatprep.subr.bf16.mxu0 %v1084
    %3676 = vmatpush1.bf16.msra.mxu0 %v1083
    %3677 = vmatprep.subr.bf16.mxu0 %v1100
    %3678 = vmatpush1.bf16.msra.mxu0 %v1099
    %3679 = vmatprep.subr.bf16.mxu0 %v1116
    %3680 = vmatpush1.bf16.msra.mxu0 %v1115
    %3681 = vmatprep.subr.bf16.mxu0 %v1132
    %3682 = vmatpush1.bf16.msra.mxu0 %v1131
    %3683 = vmatprep.mubr.bf16.mxu0 %v3074
    %3684 = vmatmul.mubr.bf16.gmra.mrb[0].mxu0 %v3073
    %v3685 = vpop.f32.mrb[0].mxu0
    %v3686 = vadd.f32 0.0, %v3685
    %v3687 = vpop.f32.mrb[0].mxu0
    %v3688 = vadd.f32 0.0, %v3687
    %v3689 = vpop.f32.mrb[0].mxu0
    %v3690 = vpop.f32.mrb[0].mxu0
    %3691 = vdwg.mxu0
    %3692 = vmatprep.subr.bf16.mxu0 %v1148
    %3693 = vmatpush1.bf16.msra.mxu0 %v1147
    %3694 = vmatprep.subr.bf16.mxu0 %v1164
    %3695 = vmatpush1.bf16.msra.mxu0 %v1163
    %3696 = vmatprep.subr.bf16.mxu0 %v1180
    %3697 = vmatpush1.bf16.msra.mxu0 %v1179
    %3698 = vmatprep.subr.bf16.mxu0 %v1196
    %3699 = vmatpush1.bf16.msra.mxu0 %v1195
    %3700 = vmatprep.subr.bf16.mxu0 %v1212
    %3701 = vmatpush1.bf16.msra.mxu0 %v1211
    %3702 = vmatprep.subr.bf16.mxu0 %v1228
    %3703 = vmatpush1.bf16.msra.mxu0 %v1227
    %3704 = vmatprep.subr.bf16.mxu0 %v1244
    %3705 = vmatpush1.bf16.msra.mxu0 %v1243
    %3706 = vmatprep.subr.bf16.mxu0 %v1260
    %3707 = vmatpush1.bf16.msra.mxu0 %v1259
    %3708 = vmatprep.subr.bf16.mxu0 %v1276
    %3709 = vmatpush1.bf16.msra.mxu0 %v1275
    %3710 = vmatprep.subr.bf16.mxu0 %v1292
    %3711 = vmatpush1.bf16.msra.mxu0 %v1291
    %3712 = vmatprep.subr.bf16.mxu0 %v1308
    %3713 = vmatpush1.bf16.msra.mxu0 %v1307
    %3714 = vmatprep.subr.bf16.mxu0 %v1324
    %3715 = vmatpush1.bf16.msra.mxu0 %v1323
    %3716 = vmatprep.subr.bf16.mxu0 %v1340
    %3717 = vmatpush1.bf16.msra.mxu0 %v1339
    %3718 = vmatprep.subr.bf16.mxu0 %v1356
    %3719 = vmatpush1.bf16.msra.mxu0 %v1355
    %3720 = vmatprep.subr.bf16.mxu0 %v1372
    %3721 = vmatpush1.bf16.msra.mxu0 %v1371
    %3722 = vmatprep.subr.bf16.mxu0 %v1388
    %3723 = vmatpush1.bf16.msra.mxu0 %v1387
    %3724 = vmatprep.mubr.bf16.mxu0 %v3076
    %3725 = vmatmul.mubr.bf16.gmra.mrb[0].mxu0 %v3075
    %v3726 = vpop.f32.mrb[0].mxu0
    %v3727 = vadd.f32 %v3686, %v3726
    %v3728 = vpop.f32.mrb[0].mxu0
    %v3729 = vadd.f32 %v3688, %v3728
    %v3730 = vpop.f32.mrb[0].mxu0
    %v3731 = vpop.f32.mrb[0].mxu0
    %3732 = vdwg.mxu0
    %v3749 = vcombine.low %v3153, %v3155
    %v3750 = vcombine.low %v3235, %v3237
    %v3751 = vcombine.low %v3317, %v3319
    %v3752 = vcombine.low %v3399, %v3401
    %v3754 = vunpack.c.l.s4 1966171168
    %v3755 = vunpack.c.0.s8 %v3754
    %v3756 = vlaneseq
    %v3757 = vshrl.u32 %v3756, 7
    %v3758 = vsub.s32 %v3755, %v3757
    %v3759 = vrot.slane %v3749, %v3758
    %v3761 = vunpack.c.l.s4 1966171168
    %v3762 = vunpack.c.0.s8 %v3761
    %v3763 = vlaneseq
    %v3764 = vshrl.u32 %v3763, 7
    %v3765 = vsub.s32 %v3762, %v3764
    %v3766 = vrot.slane %v3750, %v3765
    %v3768 = vunpack.c.l.s4 1966171168
    %v3769 = vunpack.c.0.s8 %v3768
    %v3770 = vlaneseq
    %v3771 = vshrl.u32 %v3770, 7
    %v3772 = vsub.s32 %v3769, %v3771
    %v3773 = vrot.slane %v3751, %v3772
    %v3775 = vunpack.c.l.s4 1966171168
    %v3776 = vunpack.c.0.s8 %v3775
    %v3777 = vlaneseq
    %v3778 = vshrl.u32 %v3777, 7
    %v3779 = vsub.s32 %v3776, %v3778
    %v3780 = vrot.slane %v3752, %v3779
    %v3781 = vcombine.low %v3759, %v3766
    %v3782 = vcombine.low %v3773, %v3780
    %v3784 = vunpack.c.l.s4 1966171168
    %v3785 = vunpack.c.0.s8 %v3784
    %v3786 = vlaneseq
    %v3787 = vshrl.u32 %v3786, 7
    %v3788 = vsub.s32 %v3785, %v3787
    %v3789 = vrot.slane %v3781, %v3788
    %v3791 = vunpack.c.l.s4 1966171168
    %v3792 = vunpack.c.0.s8 %v3791
    %v3793 = vlaneseq
    %v3794 = vshrl.u32 %v3793, 7
    %v3795 = vsub.s32 %v3792, %v3794
    %v3796 = vrot.slane %v3782, %v3795
    %v3797 = vcombine.low %v3789, %v3796
    %v3798 = vcombine.low %v3481, %v3483
    %v3799 = vcombine.low %v3563, %v3565
    %v3800 = vcombine.low %v3645, %v3647
    %v3801 = vcombine.low %v3727, %v3729
    %v3803 = vunpack.c.l.s4 1966171168
    %v3804 = vunpack.c.0.s8 %v3803
    %v3805 = vlaneseq
    %v3806 = vshrl.u32 %v3805, 7
    %v3807 = vsub.s32 %v3804, %v3806
    %v3808 = vrot.slane %v3798, %v3807
    %v3810 = vunpack.c.l.s4 1966171168
    %v3811 = vunpack.c.0.s8 %v3810
    %v3812 = vlaneseq
    %v3813 = vshrl.u32 %v3812, 7
    %v3814 = vsub.s32 %v3811, %v3813
    %v3815 = vrot.slane %v3799, %v3814
    %v3817 = vunpack.c.l.s4 1966171168
    %v3818 = vunpack.c.0.s8 %v3817
    %v3819 = vlaneseq
    %v3820 = vshrl.u32 %v3819, 7
    %v3821 = vsub.s32 %v3818, %v3820
    %v3822 = vrot.slane %v3800, %v3821
    %v3824 = vunpack.c.l.s4 1966171168
    %v3825 = vunpack.c.0.s8 %v3824
    %v3826 = vlaneseq
    %v3827 = vshrl.u32 %v3826, 7
    %v3828 = vsub.s32 %v3825, %v3827
    %v3829 = vrot.slane %v3801, %v3828
    %v3830 = vcombine.low %v3808, %v3815
    %v3831 = vcombine.low %v3822, %v3829
    %v3833 = vunpack.c.l.s4 1966171168
    %v3834 = vunpack.c.0.s8 %v3833
    %v3835 = vlaneseq
    %v3836 = vshrl.u32 %v3835, 7
    %v3837 = vsub.s32 %v3834, %v3836
    %v3838 = vrot.slane %v3830, %v3837
    %v3840 = vunpack.c.l.s4 1966171168
    %v3841 = vunpack.c.0.s8 %v3840
    %v3842 = vlaneseq
    %v3843 = vshrl.u32 %v3842, 7
    %v3844 = vsub.s32 %v3841, %v3843
    %v3845 = vrot.slane %v3831, %v3844
    %v3846 = vcombine.low %v3838, %v3845
    %v3849 = vadd.f32 %v3048, %v3797
    %v3850 = vadd.f32 %v3052, %v3846
    %v3851 = vxor.u32 %v3849, 2147483648
    %v3852 = vxor.u32 %v3850, 2147483648
    %v3853 = vmul.f32 %v3851, 1.442695
    %v3854 = vpow.pop %v3853
    %v3855 = vmul.f32 %v3852, 1.442695
    %v3856 = vpow.pop %v3855
    %v3857 = vadd.f32 %v3854, 1.0
    %v3858 = vadd.f32 %v3856, 1.0
    %v3859 = vrcp.pop %v3857
    %v3860 = vmul.f32 1.0, %v3859
    %v3861 = vrcp.pop %v3858
    %v3862 = vmul.f32 1.0, %v3861
    %v3864 = vrot.slane %v3850, 4
    %v3866 = vtanh.pop %v3864
    %v3868 = vrot.slane %v3860, 4
    %v3870 = vmul.f32 %v3868, %v3033
    %v3871 = vmul.f32 %v3860, %v3866
    %v3872 = vadd.f32 %v3870, %v3871
    %v3873 = vtanh.pop %v3872
    %v3874 = vmul.f32 %v3862, %v3873
    %s3875 = scalar_lea.vmem [#allocation5], 2
    %3876 = vst.msk [vmem:[%s3875] ss:$8 sm:$0x3] %vm2197, %v3874
    %3877 = vst.msk [vmem:[%s3875] ss:$8 sm:$0x0] %vm2197, %v3874
    %v3879 = vrot.slane %v3874, 2
    %s3881 = scalar_lea.vmem [#allocation5], 21
    %3882 = vst.msk [vmem:[%s3881] ss:$8 sm:$0x3] %vm2197, %v3879
    %3883 = vst.msk [vmem:[%s3881] ss:$8 sm:$0x0] %vm2197, %v3879
    %s3884 = scalar_lea.vmem [#allocation4], 3
    %v3885 = vld [vmem:[%s3884] ss:$8 sm:$0xf]
    %v3886 = vld [vmem:[%s3884] ss:$8 sm:$0xf0]
    %v3887 = vor.u32 %v3885, %v3886
    %s3888 = scalar_lea.vmem [#allocation4], 67
    %v3889 = vld [vmem:[%s3888] ss:$8 sm:$0xf]
    %v3890 = vld [vmem:[%s3888] ss:$8 sm:$0xf0]
    %v3891 = vor.u32 %v3889, %v3890
    %v3892 = vlaneseq
    %v3893 = vshrl.u32 %v3892, 7
    %v3894 = vsub.s32 0, %v3893
    %v3895 = vrot.slane %v3874, %v3894
    %v3896 = vlaneseq
    %v3897 = vshrl.u32 %v3896, 7
    %v3898 = vsub.s32 1, %v3897
    %v3899 = vrot.slane %v3874, %v3898
    %v3900 = vlaneseq
    %v3901 = vshrl.u32 %v3900, 7
    %v3902 = vsub.s32 2, %v3901
    %v3903 = vrot.slane %v3874, %v3902
    %v3904 = vlaneseq
    %v3905 = vshrl.u32 %v3904, 7
    %v3906 = vsub.s32 3, %v3905
    %v3907 = vrot.slane %v3874, %v3906
    %v3912 = vpack.c.bf16 %v3895, %v3895
    %v3913 = vpack.c.bf16 %v3899, %v3899
    %v3914 = vpack.c.bf16 %v3903, %v3903
    %v3915 = vpack.c.bf16 %v3907, %v3907
    %3916 = vmatprep.subr.bf16.mxu0 %v878
    %3917 = vmatpush1.bf16.msra.mxu0 %v877
    %3918 = vmatprep.subr.bf16.mxu0 %v894
    %3919 = vmatpush1.bf16.msra.mxu0 %v893
    %3920 = vmatprep.subr.bf16.mxu0 %v910
    %3921 = vmatpush1.bf16.msra.mxu0 %v909
    %3922 = vmatprep.subr.bf16.mxu0 %v926
    %3923 = vmatpush1.bf16.msra.mxu0 %v925
    %3924 = vmatprep.subr.bf16.mxu0 %v942
    %3925 = vmatpush1.bf16.msra.mxu0 %v941
    %3926 = vmatprep.subr.bf16.mxu0 %v958
    %3927 = vmatpush1.bf16.msra.mxu0 %v957
    %3928 = vmatprep.subr.bf16.mxu0 %v974
    %3929 = vmatpush1.bf16.msra.mxu0 %v973
    %3930 = vmatprep.subr.bf16.mxu0 %v990
    %3931 = vmatpush1.bf16.msra.mxu0 %v989
    %3932 = vmatprep.subr.bf16.mxu0 %v1006
    %3933 = vmatpush1.bf16.msra.mxu0 %v1005
    %3934 = vmatprep.subr.bf16.mxu0 %v1022
    %3935 = vmatpush1.bf16.msra.mxu0 %v1021
    %3936 = vmatprep.subr.bf16.mxu0 %v1038
    %3937 = vmatpush1.bf16.msra.mxu0 %v1037
    %3938 = vmatprep.subr.bf16.mxu0 %v1054
    %3939 = vmatpush1.bf16.msra.mxu0 %v1053
    %3940 = vmatprep.subr.bf16.mxu0 %v1070
    %3941 = vmatpush1.bf16.msra.mxu0 %v1069
    %3942 = vmatprep.subr.bf16.mxu0 %v1086
    %3943 = vmatpush1.bf16.msra.mxu0 %v1085
    %3944 = vmatprep.subr.bf16.mxu0 %v1102
    %3945 = vmatpush1.bf16.msra.mxu0 %v1101
    %3946 = vmatprep.subr.bf16.mxu0 %v1118
    %3947 = vmatpush1.bf16.msra.mxu0 %v1117
    %3948 = vmatprep.mubr.bf16.mxu0 %v3913
    %3949 = vmatmul.mubr.bf16.gmra.mrb[0].mxu0 %v3912
    %v3950 = vpop.f32.mrb[0].mxu0
    %v3951 = vadd.f32 0.0, %v3950
    %v3952 = vpop.f32.mrb[0].mxu0
    %v3953 = vadd.f32 0.0, %v3952
    %v3954 = vpop.f32.mrb[0].mxu0
    %v3955 = vpop.f32.mrb[0].mxu0
    %3956 = vdwg.mxu0
    %3957 = vmatprep.subr.bf16.mxu0 %v1134
    %3958 = vmatpush1.bf16.msra.mxu0 %v1133
    %3959 = vmatprep.subr.bf16.mxu0 %v1150
    %3960 = vmatpush1.bf16.msra.mxu0 %v1149
    %3961 = vmatprep.subr.bf16.mxu0 %v1166
    %3962 = vmatpush1.bf16.msra.mxu0 %v1165
    %3963 = vmatprep.subr.bf16.mxu0 %v1182
    %3964 = vmatpush1.bf16.msra.mxu0 %v1181
    %3965 = vmatprep.subr.bf16.mxu0 %v1198
    %3966 = vmatpush1.bf16.msra.mxu0 %v1197
    %3967 = vmatprep.subr.bf16.mxu0 %v1214
    %3968 = vmatpush1.bf16.msra.mxu0 %v1213
    %3969 = vmatprep.subr.bf16.mxu0 %v1230
    %3970 = vmatpush1.bf16.msra.mxu0 %v1229
    %3971 = vmatprep.subr.bf16.mxu0 %v1246
    %3972 = vmatpush1.bf16.msra.mxu0 %v1245
    %3973 = vmatprep.subr.bf16.mxu0 %v1262
    %3974 = vmatpush1.bf16.msra.mxu0 %v1261
    %3975 = vmatprep.subr.bf16.mxu0 %v1278
    %3976 = vmatpush1.bf16.msra.mxu0 %v1277
    %3977 = vmatprep.subr.bf16.mxu0 %v1294
    %3978 = vmatpush1.bf16.msra.mxu0 %v1293
    %3979 = vmatprep.subr.bf16.mxu0 %v1310
    %3980 = vmatpush1.bf16.msra.mxu0 %v1309
    %3981 = vmatprep.subr.bf16.mxu0 %v1326
    %3982 = vmatpush1.bf16.msra.mxu0 %v1325
    %3983 = vmatprep.subr.bf16.mxu0 %v1342
    %3984 = vmatpush1.bf16.msra.mxu0 %v1341
    %3985 = vmatprep.subr.bf16.mxu0 %v1358
    %3986 = vmatpush1.bf16.msra.mxu0 %v1357
    %3987 = vmatprep.subr.bf16.mxu0 %v1374
    %3988 = vmatpush1.bf16.msra.mxu0 %v1373
    %3989 = vmatprep.mubr.bf16.mxu0 %v3915
    %3990 = vmatmul.mubr.bf16.gmra.mrb[0].mxu0 %v3914
    %v3991 = vpop.f32.mrb[0].mxu0
    %v3992 = vadd.f32 %v3951, %v3991
    %v3993 = vpop.f32.mrb[0].mxu0
    %v3994 = vadd.f32 %v3953, %v3993
    %v3995 = vpop.f32.mrb[0].mxu0
    %v3996 = vpop.f32.mrb[0].mxu0
    %3997 = vdwg.mxu0
    %3998 = vmatprep.subr.bf16.mxu0 %v880
    %3999 = vmatpush1.bf16.msra.mxu0 %v879
    %4000 = vmatprep.subr.bf16.mxu0 %v896
    %4001 = vmatpush1.bf16.msra.mxu0 %v895
    %4002 = vmatprep.subr.bf16.mxu0 %v912
    %4003 = vmatpush1.bf16.msra.mxu0 %v911
    %4004 = vmatprep.subr.bf16.mxu0 %v928
    %4005 = vmatpush1.bf16.msra.mxu0 %v927
    %4006 = vmatprep.subr.bf16.mxu0 %v944
    %4007 = vmatpush1.bf16.msra.mxu0 %v943
    %4008 = vmatprep.subr.bf16.mxu0 %v960
    %4009 = vmatpush1.bf16.msra.mxu0 %v959
    %4010 = vmatprep.subr.bf16.mxu0 %v976
    %4011 = vmatpush1.bf16.msra.mxu0 %v975
    %4012 = vmatprep.subr.bf16.mxu0 %v992
    %4013 = vmatpush1.bf16.msra.mxu0 %v991
    %4014 = vmatprep.subr.bf16.mxu0 %v1008
    %4015 = vmatpush1.bf16.msra.mxu0 %v1007
    %4016 = vmatprep.subr.bf16.mxu0 %v1024
    %4017 = vmatpush1.bf16.msra.mxu0 %v1023
    %4018 = vmatprep.subr.bf16.mxu0 %v1040
    %4019 = vmatpush1.bf16.msra.mxu0 %v1039
    %4020 = vmatprep.subr.bf16.mxu0 %v1056
    %4021 = vmatpush1.bf16.msra.mxu0 %v1055
    %4022 = vmatprep.subr.bf16.mxu0 %v1072
    %4023 = vmatpush1.bf16.msra.mxu0 %v1071
    %4024 = vmatprep.subr.bf16.mxu0 %v1088
    %4025 = vmatpush1.bf16.msra.mxu0 %v1087
    %4026 = vmatprep.subr.bf16.mxu0 %v1104
    %4027 = vmatpush1.bf16.msra.mxu0 %v1103
    %4028 = vmatprep.subr.bf16.mxu0 %v1120
    %4029 = vmatpush1.bf16.msra.mxu0 %v1119
    %4030 = vmatprep.mubr.bf16.mxu0 %v3913
    %4031 = vmatmul.mubr.bf16.gmra.mrb[0].mxu0 %v3912
    %v4032 = vpop.f32.mrb[0].mxu0
    %v4033 = vadd.f32 0.0, %v4032
    %v4034 = vpop.f32.mrb[0].mxu0
    %v4035 = vadd.f32 0.0, %v4034
    %v4036 = vpop.f32.mrb[0].mxu0
    %v4037 = vpop.f32.mrb[0].mxu0
    %4038 = vdwg.mxu0
    %4039 = vmatprep.subr.bf16.mxu0 %v1136
    %4040 = vmatpush1.bf16.msra.mxu0 %v1135
    %4041 = vmatprep.subr.bf16.mxu0 %v1152
    %4042 = vmatpush1.bf16.msra.mxu0 %v1151
    %4043 = vmatprep.subr.bf16.mxu0 %v1168
    %4044 = vmatpush1.bf16.msra.mxu0 %v1167
    %4045 = vmatprep.subr.bf16.mxu0 %v1184
    %4046 = vmatpush1.bf16.msra.mxu0 %v1183
    %4047 = vmatprep.subr.bf16.mxu0 %v1200
    %4048 = vmatpush1.bf16.msra.mxu0 %v1199
    %4049 = vmatprep.subr.bf16.mxu0 %v1216
    %4050 = vmatpush1.bf16.msra.mxu0 %v1215
    %4051 = vmatprep.subr.bf16.mxu0 %v1232
    %4052 = vmatpush1.bf16.msra.mxu0 %v1231
    %4053 = vmatprep.subr.bf16.mxu0 %v1248
    %4054 = vmatpush1.bf16.msra.mxu0 %v1247
    %4055 = vmatprep.subr.bf16.mxu0 %v1264
    %4056 = vmatpush1.bf16.msra.mxu0 %v1263
    %4057 = vmatprep.subr.bf16.mxu0 %v1280
    %4058 = vmatpush1.bf16.msra.mxu0 %v1279
    %4059 = vmatprep.subr.bf16.mxu0 %v1296
    %4060 = vmatpush1.bf16.msra.mxu0 %v1295
    %4061 = vmatprep.subr.bf16.mxu0 %v1312
    %4062 = vmatpush1.bf16.msra.mxu0 %v1311
    %4063 = vmatprep.subr.bf16.mxu0 %v1328
    %4064 = vmatpush1.bf16.msra.mxu0 %v1327
    %4065 = vmatprep.subr.bf16.mxu0 %v1344
    %4066 = vmatpush1.bf16.msra.mxu0 %v1343
    %4067 = vmatprep.subr.bf16.mxu0 %v1360
    %4068 = vmatpush1.bf16.msra.mxu0 %v1359
    %4069 = vmatprep.subr.bf16.mxu0 %v1376
    %4070 = vmatpush1.bf16.msra.mxu0 %v1375
    %4071 = vmatprep.mubr.bf16.mxu0 %v3915
    %4072 = vmatmul.mubr.bf16.gmra.mrb[0].mxu0 %v3914
    %v4073 = vpop.f32.mrb[0].mxu0
    %v4074 = vadd.f32 %v4033, %v4073
    %v4075 = vpop.f32.mrb[0].mxu0
    %v4076 = vadd.f32 %v4035, %v4075
    %v4077 = vpop.f32.mrb[0].mxu0
    %v4078 = vpop.f32.mrb[0].mxu0
    %4079 = vdwg.mxu0
    %4080 = vmatprep.subr.bf16.mxu0 %v882
    %4081 = vmatpush1.bf16.msra.mxu0 %v881
    %4082 = vmatprep.subr.bf16.mxu0 %v898
    %4083 = vmatpush1.bf16.msra.mxu0 %v897
    %4084 = vmatprep.subr.bf16.mxu0 %v914
    %4085 = vmatpush1.bf16.msra.mxu0 %v913
    %4086 = vmatprep.subr.bf16.mxu0 %v930
    %4087 = vmatpush1.bf16.msra.mxu0 %v929
    %4088 = vmatprep.subr.bf16.mxu0 %v946
    %4089 = vmatpush1.bf16.msra.mxu0 %v945
    %4090 = vmatprep.subr.bf16.mxu0 %v962
    %4091 = vmatpush1.bf16.msra.mxu0 %v961
    %4092 = vmatprep.subr.bf16.mxu0 %v978
    %4093 = vmatpush1.bf16.msra.mxu0 %v977
    %4094 = vmatprep.subr.bf16.mxu0 %v994
    %4095 = vmatpush1.bf16.msra.mxu0 %v993
    %4096 = vmatprep.subr.bf16.mxu0 %v1010
    %4097 = vmatpush1.bf16.msra.mxu0 %v1009
    %4098 = vmatprep.subr.bf16.mxu0 %v1026
    %4099 = vmatpush1.bf16.msra.mxu0 %v1025
    %4100 = vmatprep.subr.bf16.mxu0 %v1042
    %4101 = vmatpush1.bf16.msra.mxu0 %v1041
    %4102 = vmatprep.subr.bf16.mxu0 %v1058
    %4103 = vmatpush1.bf16.msra.mxu0 %v1057
    %4104 = vmatprep.subr.bf16.mxu0 %v1074
    %4105 = vmatpush1.bf16.msra.mxu0 %v1073
    %4106 = vmatprep.subr.bf16.mxu0 %v1090
    %4107 = vmatpush1.bf16.msra.mxu0 %v1089
    %4108 = vmatprep.subr.bf16.mxu0 %v1106
    %4109 = vmatpush1.bf16.msra.mxu0 %v1105
    %4110 = vmatprep.subr.bf16.mxu0 %v1122
    %4111 = vmatpush1.bf16.msra.mxu0 %v1121
    %4112 = vmatprep.mubr.bf16.mxu0 %v3913
    %4113 = vmatmul.mubr.bf16.gmra.mrb[0].mxu0 %v3912
    %v4114 = vpop.f32.mrb[0].mxu0
    %v4115 = vadd.f32 0.0, %v4114
    %v4116 = vpop.f32.mrb[0].mxu0
    %v4117 = vadd.f32 0.0, %v4116
    %v4118 = vpop.f32.mrb[0].mxu0
    %v4119 = vpop.f32.mrb[0].mxu0
    %4120 = vdwg.mxu0
    %4121 = vmatprep.subr.bf16.mxu0 %v1138
    %4122 = vmatpush1.bf16.msra.mxu0 %v1137
    %4123 = vmatprep.subr.bf16.mxu0 %v1154
    %4124 = vmatpush1.bf16.msra.mxu0 %v1153
    %4125 = vmatprep.subr.bf16.mxu0 %v1170
    %4126 = vmatpush1.bf16.msra.mxu0 %v1169
    %4127 = vmatprep.subr.bf16.mxu0 %v1186
    %4128 = vmatpush1.bf16.msra.mxu0 %v1185
    %4129 = vmatprep.subr.bf16.mxu0 %v1202
    %4130 = vmatpush1.bf16.msra.mxu0 %v1201
    %4131 = vmatprep.subr.bf16.mxu0 %v1218
    %4132 = vmatpush1.bf16.msra.mxu0 %v1217
    %4133 = vmatprep.subr.bf16.mxu0 %v1234
    %4134 = vmatpush1.bf16.msra.mxu0 %v1233
    %4135 = vmatprep.subr.bf16.mxu0 %v1250
    %4136 = vmatpush1.bf16.msra.mxu0 %v1249
    %4137 = vmatprep.subr.bf16.mxu0 %v1266
    %4138 = vmatpush1.bf16.msra.mxu0 %v1265
    %4139 = vmatprep.subr.bf16.mxu0 %v1282
    %4140 = vmatpush1.bf16.msra.mxu0 %v1281
    %4141 = vmatprep.subr.bf16.mxu0 %v1298
    %4142 = vmatpush1.bf16.msra.mxu0 %v1297
    %4143 = vmatprep.subr.bf16.mxu0 %v1314
    %4144 = vmatpush1.bf16.msra.mxu0 %v1313
    %4145 = vmatprep.subr.bf16.mxu0 %v1330
    %4146 = vmatpush1.bf16.msra.mxu0 %v1329
    %4147 = vmatprep.subr.bf16.mxu0 %v1346
    %4148 = vmatpush1.bf16.msra.mxu0 %v1345
    %4149 = vmatprep.subr.bf16.mxu0 %v1362
    %4150 = vmatpush1.bf16.msra.mxu0 %v1361
    %4151 = vmatprep.subr.bf16.mxu0 %v1378
    %4152 = vmatpush1.bf16.msra.mxu0 %v1377
    %4153 = vmatprep.mubr.bf16.mxu0 %v3915
    %4154 = vmatmul.mubr.bf16.gmra.mrb[0].mxu0 %v3914
    %v4155 = vpop.f32.mrb[0].mxu0
    %v4156 = vadd.f32 %v4115, %v4155
    %v4157 = vpop.f32.mrb[0].mxu0
    %v4158 = vadd.f32 %v4117, %v4157
    %v4159 = vpop.f32.mrb[0].mxu0
    %v4160 = vpop.f32.mrb[0].mxu0
    %4161 = vdwg.mxu0
    %4162 = vmatprep.subr.bf16.mxu0 %v884
    %4163 = vmatpush1.bf16.msra.mxu0 %v883
    %4164 = vmatprep.subr.bf16.mxu0 %v900
    %4165 = vmatpush1.bf16.msra.mxu0 %v899
    %4166 = vmatprep.subr.bf16.mxu0 %v916
    %4167 = vmatpush1.bf16.msra.mxu0 %v915
    %4168 = vmatprep.subr.bf16.mxu0 %v932
    %4169 = vmatpush1.bf16.msra.mxu0 %v931
    %4170 = vmatprep.subr.bf16.mxu0 %v948
    %4171 = vmatpush1.bf16.msra.mxu0 %v947
    %4172 = vmatprep.subr.bf16.mxu0 %v964
    %4173 = vmatpush1.bf16.msra.mxu0 %v963
    %4174 = vmatprep.subr.bf16.mxu0 %v980
    %4175 = vmatpush1.bf16.msra.mxu0 %v979
    %4176 = vmatprep.subr.bf16.mxu0 %v996
    %4177 = vmatpush1.bf16.msra.mxu0 %v995
    %4178 = vmatprep.subr.bf16.mxu0 %v1012
    %4179 = vmatpush1.bf16.msra.mxu0 %v1011
    %4180 = vmatprep.subr.bf16.mxu0 %v1028
    %4181 = vmatpush1.bf16.msra.mxu0 %v1027
    %4182 = vmatprep.subr.bf16.mxu0 %v1044
    %4183 = vmatpush1.bf16.msra.mxu0 %v1043
    %4184 = vmatprep.subr.bf16.mxu0 %v1060
    %4185 = vmatpush1.bf16.msra.mxu0 %v1059
    %4186 = vmatprep.subr.bf16.mxu0 %v1076
    %4187 = vmatpush1.bf16.msra.mxu0 %v1075
    %4188 = vmatprep.subr.bf16.mxu0 %v1092
    %4189 = vmatpush1.bf16.msra.mxu0 %v1091
    %4190 = vmatprep.subr.bf16.mxu0 %v1108
    %4191 = vmatpush1.bf16.msra.mxu0 %v1107
    %4192 = vmatprep.subr.bf16.mxu0 %v1124
    %4193 = vmatpush1.bf16.msra.mxu0 %v1123
    %4194 = vmatprep.mubr.bf16.mxu0 %v3913
    %4195 = vmatmul.mubr.bf16.gmra.mrb[0].mxu0 %v3912
    %v4196 = vpop.f32.mrb[0].mxu0
    %v4197 = vadd.f32 0.0, %v4196
    %v4198 = vpop.f32.mrb[0].mxu0
    %v4199 = vadd.f32 0.0, %v4198
    %v4200 = vpop.f32.mrb[0].mxu0
    %v4201 = vpop.f32.mrb[0].mxu0
    %4202 = vdwg.mxu0
    %4203 = vmatprep.subr.bf16.mxu0 %v1140
    %4204 = vmatpush1.bf16.msra.mxu0 %v1139
    %4205 = vmatprep.subr.bf16.mxu0 %v1156
    %4206 = vmatpush1.bf16.msra.mxu0 %v1155
    %4207 = vmatprep.subr.bf16.mxu0 %v1172
    %4208 = vmatpush1.bf16.msra.mxu0 %v1171
    %4209 = vmatprep.subr.bf16.mxu0 %v1188
    %4210 = vmatpush1.bf16.msra.mxu0 %v1187
    %4211 = vmatprep.subr.bf16.mxu0 %v1204
    %4212 = vmatpush1.bf16.msra.mxu0 %v1203
    %4213 = vmatprep.subr.bf16.mxu0 %v1220
    %4214 = vmatpush1.bf16.msra.mxu0 %v1219
    %4215 = vmatprep.subr.bf16.mxu0 %v1236
    %4216 = vmatpush1.bf16.msra.mxu0 %v1235
    %4217 = vmatprep.subr.bf16.mxu0 %v1252
    %4218 = vmatpush1.bf16.msra.mxu0 %v1251
    %4219 = vmatprep.subr.bf16.mxu0 %v1268
    %4220 = vmatpush1.bf16.msra.mxu0 %v1267
    %4221 = vmatprep.subr.bf16.mxu0 %v1284
    %4222 = vmatpush1.bf16.msra.mxu0 %v1283
    %4223 = vmatprep.subr.bf16.mxu0 %v1300
    %4224 = vmatpush1.bf16.msra.mxu0 %v1299
    %4225 = vmatprep.subr.bf16.mxu0 %v1316
    %4226 = vmatpush1.bf16.msra.mxu0 %v1315
    %4227 = vmatprep.subr.bf16.mxu0 %v1332
    %4228 = vmatpush1.bf16.msra.mxu0 %v1331
    %4229 = vmatprep.subr.bf16.mxu0 %v1348
    %4230 = vmatpush1.bf16.msra.mxu0 %v1347
    %4231 = vmatprep.subr.bf16.mxu0 %v1364
    %4232 = vmatpush1.bf16.msra.mxu0 %v1363
    %4233 = vmatprep.subr.bf16.mxu0 %v1380
    %4234 = vmatpush1.bf16.msra.mxu0 %v1379
    %4235 = vmatprep.mubr.bf16.mxu0 %v3915
    %4236 = vmatmul.mubr.bf16.gmra.mrb[0].mxu0 %v3914
    %v4237 = vpop.f32.mrb[0].mxu0
    %v4238 = vadd.f32 %v4197, %v4237
    %v4239 = vpop.f32.mrb[0].mxu0
    %v4240 = vadd.f32 %v4199, %v4239
    %v4241 = vpop.f32.mrb[0].mxu0
    %v4242 = vpop.f32.mrb[0].mxu0
    %4243 = vdwg.mxu0
    %4244 = vmatprep.subr.bf16.mxu0 %v886
    %4245 = vmatpush1.bf16.msra.mxu0 %v885
    %4246 = vmatprep.subr.bf16.mxu0 %v902
    %4247 = vmatpush1.bf16.msra.mxu0 %v901
    %4248 = vmatprep.subr.bf16.mxu0 %v918
    %4249 = vmatpush1.bf16.msra.mxu0 %v917
    %4250 = vmatprep.subr.bf16.mxu0 %v934
    %4251 = vmatpush1.bf16.msra.mxu0 %v933
    %4252 = vmatprep.subr.bf16.mxu0 %v950
    %4253 = vmatpush1.bf16.msra.mxu0 %v949
    %4254 = vmatprep.subr.bf16.mxu0 %v966
    %4255 = vmatpush1.bf16.msra.mxu0 %v965
    %4256 = vmatprep.subr.bf16.mxu0 %v982
    %4257 = vmatpush1.bf16.msra.mxu0 %v981
    %4258 = vmatprep.subr.bf16.mxu0 %v998
    %4259 = vmatpush1.bf16.msra.mxu0 %v997
    %4260 = vmatprep.subr.bf16.mxu0 %v1014
    %4261 = vmatpush1.bf16.msra.mxu0 %v1013
    %4262 = vmatprep.subr.bf16.mxu0 %v1030
    %4263 = vmatpush1.bf16.msra.mxu0 %v1029
    %4264 = vmatprep.subr.bf16.mxu0 %v1046
    %4265 = vmatpush1.bf16.msra.mxu0 %v1045
    %4266 = vmatprep.subr.bf16.mxu0 %v1062
    %4267 = vmatpush1.bf16.msra.mxu0 %v1061
    %4268 = vmatprep.subr.bf16.mxu0 %v1078
    %4269 = vmatpush1.bf16.msra.mxu0 %v1077
    %4270 = vmatprep.subr.bf16.mxu0 %v1094
    %4271 = vmatpush1.bf16.msra.mxu0 %v1093
    %4272 = vmatprep.subr.bf16.mxu0 %v1110
    %4273 = vmatpush1.bf16.msra.mxu0 %v1109
    %4274 = vmatprep.subr.bf16.mxu0 %v1126
    %4275 = vmatpush1.bf16.msra.mxu0 %v1125
    %4276 = vmatprep.mubr.bf16.mxu0 %v3913
    %4277 = vmatmul.mubr.bf16.gmra.mrb[0].mxu0 %v3912
    %v4278 = vpop.f32.mrb[0].mxu0
    %v4279 = vadd.f32 0.0, %v4278
    %v4280 = vpop.f32.mrb[0].mxu0
    %v4281 = vadd.f32 0.0, %v4280
    %v4282 = vpop.f32.mrb[0].mxu0
    %v4283 = vpop.f32.mrb[0].mxu0
    %4284 = vdwg.mxu0
    %4285 = vmatprep.subr.bf16.mxu0 %v1142
    %4286 = vmatpush1.bf16.msra.mxu0 %v1141
    %4287 = vmatprep.subr.bf16.mxu0 %v1158
    %4288 = vmatpush1.bf16.msra.mxu0 %v1157
    %4289 = vmatprep.subr.bf16.mxu0 %v1174
    %4290 = vmatpush1.bf16.msra.mxu0 %v1173
    %4291 = vmatprep.subr.bf16.mxu0 %v1190
    %4292 = vmatpush1.bf16.msra.mxu0 %v1189
    %4293 = vmatprep.subr.bf16.mxu0 %v1206
    %4294 = vmatpush1.bf16.msra.mxu0 %v1205
    %4295 = vmatprep.subr.bf16.mxu0 %v1222
    %4296 = vmatpush1.bf16.msra.mxu0 %v1221
    %4297 = vmatprep.subr.bf16.mxu0 %v1238
    %4298 = vmatpush1.bf16.msra.mxu0 %v1237
    %4299 = vmatprep.subr.bf16.mxu0 %v1254
    %4300 = vmatpush1.bf16.msra.mxu0 %v1253
    %4301 = vmatprep.subr.bf16.mxu0 %v1270
    %4302 = vmatpush1.bf16.msra.mxu0 %v1269
    %4303 = vmatprep.subr.bf16.mxu0 %v1286
    %4304 = vmatpush1.bf16.msra.mxu0 %v1285
    %4305 = vmatprep.subr.bf16.mxu0 %v1302
    %4306 = vmatpush1.bf16.msra.mxu0 %v1301
    %4307 = vmatprep.subr.bf16.mxu0 %v1318
    %4308 = vmatpush1.bf16.msra.mxu0 %v1317
    %4309 = vmatprep.subr.bf16.mxu0 %v1334
    %4310 = vmatpush1.bf16.msra.mxu0 %v1333
    %4311 = vmatprep.subr.bf16.mxu0 %v1350
    %4312 = vmatpush1.bf16.msra.mxu0 %v1349
    %4313 = vmatprep.subr.bf16.mxu0 %v1366
    %4314 = vmatpush1.bf16.msra.mxu0 %v1365
    %4315 = vmatprep.subr.bf16.mxu0 %v1382
    %4316 = vmatpush1.bf16.msra.mxu0 %v1381
    %4317 = vmatprep.mubr.bf16.mxu0 %v3915
    %4318 = vmatmul.mubr.bf16.gmra.mrb[0].mxu0 %v3914
    %v4319 = vpop.f32.mrb[0].mxu0
    %v4320 = vadd.f32 %v4279, %v4319
    %v4321 = vpop.f32.mrb[0].mxu0
    %v4322 = vadd.f32 %v4281, %v4321
    %v4323 = vpop.f32.mrb[0].mxu0
    %v4324 = vpop.f32.mrb[0].mxu0
    %4325 = vdwg.mxu0
    %4326 = vmatprep.subr.bf16.mxu0 %v888
    %4327 = vmatpush1.bf16.msra.mxu0 %v887
    %4328 = vmatprep.subr.bf16.mxu0 %v904
    %4329 = vmatpush1.bf16.msra.mxu0 %v903
    %4330 = vmatprep.subr.bf16.mxu0 %v920
    %4331 = vmatpush1.bf16.msra.mxu0 %v919
    %4332 = vmatprep.subr.bf16.mxu0 %v936
    %4333 = vmatpush1.bf16.msra.mxu0 %v935
    %4334 = vmatprep.subr.bf16.mxu0 %v952
    %4335 = vmatpush1.bf16.msra.mxu0 %v951
    %4336 = vmatprep.subr.bf16.mxu0 %v968
    %4337 = vmatpush1.bf16.msra.mxu0 %v967
    %4338 = vmatprep.subr.bf16.mxu0 %v984
    %4339 = vmatpush1.bf16.msra.mxu0 %v983
    %4340 = vmatprep.subr.bf16.mxu0 %v1000
    %4341 = vmatpush1.bf16.msra.mxu0 %v999
    %4342 = vmatprep.subr.bf16.mxu0 %v1016
    %4343 = vmatpush1.bf16.msra.mxu0 %v1015
    %4344 = vmatprep.subr.bf16.mxu0 %v1032
    %4345 = vmatpush1.bf16.msra.mxu0 %v1031
    %4346 = vmatprep.subr.bf16.mxu0 %v1048
    %4347 = vmatpush1.bf16.msra.mxu0 %v1047
    %4348 = vmatprep.subr.bf16.mxu0 %v1064
    %4349 = vmatpush1.bf16.msra.mxu0 %v1063
    %4350 = vmatprep.subr.bf16.mxu0 %v1080
    %4351 = vmatpush1.bf16.msra.mxu0 %v1079
    %4352 = vmatprep.subr.bf16.mxu0 %v1096
    %4353 = vmatpush1.bf16.msra.mxu0 %v1095
    %4354 = vmatprep.subr.bf16.mxu0 %v1112
    %4355 = vmatpush1.bf16.msra.mxu0 %v1111
    %4356 = vmatprep.subr.bf16.mxu0 %v1128
    %4357 = vmatpush1.bf16.msra.mxu0 %v1127
    %4358 = vmatprep.mubr.bf16.mxu0 %v3913
    %4359 = vmatmul.mubr.bf16.gmra.mrb[0].mxu0 %v3912
    %v4360 = vpop.f32.mrb[0].mxu0
    %v4361 = vadd.f32 0.0, %v4360
    %v4362 = vpop.f32.mrb[0].mxu0
    %v4363 = vadd.f32 0.0, %v4362
    %v4364 = vpop.f32.mrb[0].mxu0
    %v4365 = vpop.f32.mrb[0].mxu0
    %4366 = vdwg.mxu0
    %4367 = vmatprep.subr.bf16.mxu0 %v1144
    %4368 = vmatpush1.bf16.msra.mxu0 %v1143
    %4369 = vmatprep.subr.bf16.mxu0 %v1160
    %4370 = vmatpush1.bf16.msra.mxu0 %v1159
    %4371 = vmatprep.subr.bf16.mxu0 %v1176
    %4372 = vmatpush1.bf16.msra.mxu0 %v1175
    %4373 = vmatprep.subr.bf16.mxu0 %v1192
    %4374 = vmatpush1.bf16.msra.mxu0 %v1191
    %4375 = vmatprep.subr.bf16.mxu0 %v1208
    %4376 = vmatpush1.bf16.msra.mxu0 %v1207
    %4377 = vmatprep.subr.bf16.mxu0 %v1224
    %4378 = vmatpush1.bf16.msra.mxu0 %v1223
    %4379 = vmatprep.subr.bf16.mxu0 %v1240
    %4380 = vmatpush1.bf16.msra.mxu0 %v1239
    %4381 = vmatprep.subr.bf16.mxu0 %v1256
    %4382 = vmatpush1.bf16.msra.mxu0 %v1255
    %4383 = vmatprep.subr.bf16.mxu0 %v1272
    %4384 = vmatpush1.bf16.msra.mxu0 %v1271
    %4385 = vmatprep.subr.bf16.mxu0 %v1288
    %4386 = vmatpush1.bf16.msra.mxu0 %v1287
    %4387 = vmatprep.subr.bf16.mxu0 %v1304
    %4388 = vmatpush1.bf16.msra.mxu0 %v1303
    %4389 = vmatprep.subr.bf16.mxu0 %v1320
    %4390 = vmatpush1.bf16.msra.mxu0 %v1319
    %4391 = vmatprep.subr.bf16.mxu0 %v1336
    %4392 = vmatpush1.bf16.msra.mxu0 %v1335
    %4393 = vmatprep.subr.bf16.mxu0 %v1352
    %4394 = vmatpush1.bf16.msra.mxu0 %v1351
    %4395 = vmatprep.subr.bf16.mxu0 %v1368
    %4396 = vmatpush1.bf16.msra.mxu0 %v1367
    %4397 = vmatprep.subr.bf16.mxu0 %v1384
    %4398 = vmatpush1.bf16.msra.mxu0 %v1383
    %4399 = vmatprep.mubr.bf16.mxu0 %v3915
    %4400 = vmatmul.mubr.bf16.gmra.mrb[0].mxu0 %v3914
    %v4401 = vpop.f32.mrb[0].mxu0
    %v4402 = vadd.f32 %v4361, %v4401
    %v4403 = vpop.f32.mrb[0].mxu0
    %v4404 = vadd.f32 %v4363, %v4403
    %v4405 = vpop.f32.mrb[0].mxu0
    %v4406 = vpop.f32.mrb[0].mxu0
    %4407 = vdwg.mxu0
    %4408 = vmatprep.subr.bf16.mxu0 %v890
    %4409 = vmatpush1.bf16.msra.mxu0 %v889
    %4410 = vmatprep.subr.bf16.mxu0 %v906
    %4411 = vmatpush1.bf16.msra.mxu0 %v905
    %4412 = vmatprep.subr.bf16.mxu0 %v922
    %4413 = vmatpush1.bf16.msra.mxu0 %v921
    %4414 = vmatprep.subr.bf16.mxu0 %v938
    %4415 = vmatpush1.bf16.msra.mxu0 %v937
    %4416 = vmatprep.subr.bf16.mxu0 %v954
    %4417 = vmatpush1.bf16.msra.mxu0 %v953
    %4418 = vmatprep.subr.bf16.mxu0 %v970
    %4419 = vmatpush1.bf16.msra.mxu0 %v969
    %4420 = vmatprep.subr.bf16.mxu0 %v986
    %4421 = vmatpush1.bf16.msra.mxu0 %v985
    %4422 = vmatprep.subr.bf16.mxu0 %v1002
    %4423 = vmatpush1.bf16.msra.mxu0 %v1001
    %4424 = vmatprep.subr.bf16.mxu0 %v1018
    %4425 = vmatpush1.bf16.msra.mxu0 %v1017
    %4426 = vmatprep.subr.bf16.mxu0 %v1034
    %4427 = vmatpush1.bf16.msra.mxu0 %v1033
    %4428 = vmatprep.subr.bf16.mxu0 %v1050
    %4429 = vmatpush1.bf16.msra.mxu0 %v1049
    %4430 = vmatprep.subr.bf16.mxu0 %v1066
    %4431 = vmatpush1.bf16.msra.mxu0 %v1065
    %4432 = vmatprep.subr.bf16.mxu0 %v1082
    %4433 = vmatpush1.bf16.msra.mxu0 %v1081
    %4434 = vmatprep.subr.bf16.mxu0 %v1098
    %4435 = vmatpush1.bf16.msra.mxu0 %v1097
    %4436 = vmatprep.subr.bf16.mxu0 %v1114
    %4437 = vmatpush1.bf16.msra.mxu0 %v1113
    %4438 = vmatprep.subr.bf16.mxu0 %v1130
    %4439 = vmatpush1.bf16.msra.mxu0 %v1129
    %4440 = vmatprep.mubr.bf16.mxu0 %v3913
    %4441 = vmatmul.mubr.bf16.gmra.mrb[0].mxu0 %v3912
    %v4442 = vpop.f32.mrb[0].mxu0
    %v4443 = vadd.f32 0.0, %v4442
    %v4444 = vpop.f32.mrb[0].mxu0
    %v4445 = vadd.f32 0.0, %v4444
    %v4446 = vpop.f32.mrb[0].mxu0
    %v4447 = vpop.f32.mrb[0].mxu0
    %4448 = vdwg.mxu0
    %4449 = vmatprep.subr.bf16.mxu0 %v1146
    %4450 = vmatpush1.bf16.msra.mxu0 %v1145
    %4451 = vmatprep.subr.bf16.mxu0 %v1162
    %4452 = vmatpush1.bf16.msra.mxu0 %v1161
    %4453 = vmatprep.subr.bf16.mxu0 %v1178
    %4454 = vmatpush1.bf16.msra.mxu0 %v1177
    %4455 = vmatprep.subr.bf16.mxu0 %v1194
    %4456 = vmatpush1.bf16.msra.mxu0 %v1193
    %4457 = vmatprep.subr.bf16.mxu0 %v1210
    %4458 = vmatpush1.bf16.msra.mxu0 %v1209
    %4459 = vmatprep.subr.bf16.mxu0 %v1226
    %4460 = vmatpush1.bf16.msra.mxu0 %v1225
    %4461 = vmatprep.subr.bf16.mxu0 %v1242
    %4462 = vmatpush1.bf16.msra.mxu0 %v1241
    %4463 = vmatprep.subr.bf16.mxu0 %v1258
    %4464 = vmatpush1.bf16.msra.mxu0 %v1257
    %4465 = vmatprep.subr.bf16.mxu0 %v1274
    %4466 = vmatpush1.bf16.msra.mxu0 %v1273
    %4467 = vmatprep.subr.bf16.mxu0 %v1290
    %4468 = vmatpush1.bf16.msra.mxu0 %v1289
    %4469 = vmatprep.subr.bf16.mxu0 %v1306
    %4470 = vmatpush1.bf16.msra.mxu0 %v1305
    %4471 = vmatprep.subr.bf16.mxu0 %v1322
    %4472 = vmatpush1.bf16.msra.mxu0 %v1321
    %4473 = vmatprep.subr.bf16.mxu0 %v1338
    %4474 = vmatpush1.bf16.msra.mxu0 %v1337
    %4475 = vmatprep.subr.bf16.mxu0 %v1354
    %4476 = vmatpush1.bf16.msra.mxu0 %v1353
    %4477 = vmatprep.subr.bf16.mxu0 %v1370
    %4478 = vmatpush1.bf16.msra.mxu0 %v1369
    %4479 = vmatprep.subr.bf16.mxu0 %v1386
    %4480 = vmatpush1.bf16.msra.mxu0 %v1385
    %4481 = vmatprep.mubr.bf16.mxu0 %v3915
    %4482 = vmatmul.mubr.bf16.gmra.mrb[0].mxu0 %v3914
    %v4483 = vpop.f32.mrb[0].mxu0
    %v4484 = vadd.f32 %v4443, %v4483
    %v4485 = vpop.f32.mrb[0].mxu0
    %v4486 = vadd.f32 %v4445, %v4485
    %v4487 = vpop.f32.mrb[0].mxu0
    %v4488 = vpop.f32.mrb[0].mxu0
    %4489 = vdwg.mxu0
    %4490 = vmatprep.subr.bf16.mxu0 %v892
    %4491 = vmatpush1.bf16.msra.mxu0 %v891
    %4492 = vmatprep.subr.bf16.mxu0 %v908
    %4493 = vmatpush1.bf16.msra.mxu0 %v907
    %4494 = vmatprep.subr.bf16.mxu0 %v924
    %4495 = vmatpush1.bf16.msra.mxu0 %v923
    %4496 = vmatprep.subr.bf16.mxu0 %v940
    %4497 = vmatpush1.bf16.msra.mxu0 %v939
    %4498 = vmatprep.subr.bf16.mxu0 %v956
    %4499 = vmatpush1.bf16.msra.mxu0 %v955
    %4500 = vmatprep.subr.bf16.mxu0 %v972
    %4501 = vmatpush1.bf16.msra.mxu0 %v971
    %4502 = vmatprep.subr.bf16.mxu0 %v988
    %4503 = vmatpush1.bf16.msra.mxu0 %v987
    %4504 = vmatprep.subr.bf16.mxu0 %v1004
    %4505 = vmatpush1.bf16.msra.mxu0 %v1003
    %4506 = vmatprep.subr.bf16.mxu0 %v1020
    %4507 = vmatpush1.bf16.msra.mxu0 %v1019
    %4508 = vmatprep.subr.bf16.mxu0 %v1036
    %4509 = vmatpush1.bf16.msra.mxu0 %v1035
    %4510 = vmatprep.subr.bf16.mxu0 %v1052
    %4511 = vmatpush1.bf16.msra.mxu0 %v1051
    %4512 = vmatprep.subr.bf16.mxu0 %v1068
    %4513 = vmatpush1.bf16.msra.mxu0 %v1067
    %4514 = vmatprep.subr.bf16.mxu0 %v1084
    %4515 = vmatpush1.bf16.msra.mxu0 %v1083
    %4516 = vmatprep.subr.bf16.mxu0 %v1100
    %4517 = vmatpush1.bf16.msra.mxu0 %v1099
    %4518 = vmatprep.subr.bf16.mxu0 %v1116
    %4519 = vmatpush1.bf16.msra.mxu0 %v1115
    %4520 = vmatprep.subr.bf16.mxu0 %v1132
    %4521 = vmatpush1.bf16.msra.mxu0 %v1131
    %4522 = vmatprep.mubr.bf16.mxu0 %v3913
    %4523 = vmatmul.mubr.bf16.gmra.mrb[0].mxu0 %v3912
    %v4524 = vpop.f32.mrb[0].mxu0
    %v4525 = vadd.f32 0.0, %v4524
    %v4526 = vpop.f32.mrb[0].mxu0
    %v4527 = vadd.f32 0.0, %v4526
    %v4528 = vpop.f32.mrb[0].mxu0
    %v4529 = vpop.f32.mrb[0].mxu0
    %4530 = vdwg.mxu0
    %4531 = vmatprep.subr.bf16.mxu0 %v1148
    %4532 = vmatpush1.bf16.msra.mxu0 %v1147
    %4533 = vmatprep.subr.bf16.mxu0 %v1164
    %4534 = vmatpush1.bf16.msra.mxu0 %v1163
    %4535 = vmatprep.subr.bf16.mxu0 %v1180
    %4536 = vmatpush1.bf16.msra.mxu0 %v1179
    %4537 = vmatprep.subr.bf16.mxu0 %v1196
    %4538 = vmatpush1.bf16.msra.mxu0 %v1195
    %4539 = vmatprep.subr.bf16.mxu0 %v1212
    %4540 = vmatpush1.bf16.msra.mxu0 %v1211
    %4541 = vmatprep.subr.bf16.mxu0 %v1228
    %4542 = vmatpush1.bf16.msra.mxu0 %v1227
    %4543 = vmatprep.subr.bf16.mxu0 %v1244
    %4544 = vmatpush1.bf16.msra.mxu0 %v1243
    %4545 = vmatprep.subr.bf16.mxu0 %v1260
    %4546 = vmatpush1.bf16.msra.mxu0 %v1259
    %4547 = vmatprep.subr.bf16.mxu0 %v1276
    %4548 = vmatpush1.bf16.msra.mxu0 %v1275
    %4549 = vmatprep.subr.bf16.mxu0 %v1292
    %4550 = vmatpush1.bf16.msra.mxu0 %v1291
    %4551 = vmatprep.subr.bf16.mxu0 %v1308
    %4552 = vmatpush1.bf16.msra.mxu0 %v1307
    %4553 = vmatprep.subr.bf16.mxu0 %v1324
    %4554 = vmatpush1.bf16.msra.mxu0 %v1323
    %4555 = vmatprep.subr.bf16.mxu0 %v1340
    %4556 = vmatpush1.bf16.msra.mxu0 %v1339
    %4557 = vmatprep.subr.bf16.mxu0 %v1356
    %4558 = vmatpush1.bf16.msra.mxu0 %v1355
    %4559 = vmatprep.subr.bf16.mxu0 %v1372
    %4560 = vmatpush1.bf16.msra.mxu0 %v1371
    %4561 = vmatprep.subr.bf16.mxu0 %v1388
    %4562 = vmatpush1.bf16.msra.mxu0 %v1387
    %4563 = vmatprep.mubr.bf16.mxu0 %v3915
    %4564 = vmatmul.mubr.bf16.gmra.mrb[0].mxu0 %v3914
    %v4565 = vpop.f32.mrb[0].mxu0
    %v4566 = vadd.f32 %v4525, %v4565
    %v4567 = vpop.f32.mrb[0].mxu0
    %v4568 = vadd.f32 %v4527, %v4567
    %v4569 = vpop.f32.mrb[0].mxu0
    %v4570 = vpop.f32.mrb[0].mxu0
    %4571 = vdwg.mxu0
    %v4588 = vcombine.low %v3992, %v3994
    %v4589 = vcombine.low %v4074, %v4076
    %v4590 = vcombine.low %v4156, %v4158
    %v4591 = vcombine.low %v4238, %v4240
    %v4593 = vunpack.c.l.s4 1966171168
    %v4594 = vunpack.c.0.s8 %v4593
    %v4595 = vlaneseq
    %v4596 = vshrl.u32 %v4595, 7
    %v4597 = vsub.s32 %v4594, %v4596
    %v4598 = vrot.slane %v4588, %v4597
    %v4600 = vunpack.c.l.s4 1966171168
    %v4601 = vunpack.c.0.s8 %v4600
    %v4602 = vlaneseq
    %v4603 = vshrl.u32 %v4602, 7
    %v4604 = vsub.s32 %v4601, %v4603
    %v4605 = vrot.slane %v4589, %v4604
    %v4607 = vunpack.c.l.s4 1966171168
    %v4608 = vunpack.c.0.s8 %v4607
    %v4609 = vlaneseq
    %v4610 = vshrl.u32 %v4609, 7
    %v4611 = vsub.s32 %v4608, %v4610
    %v4612 = vrot.slane %v4590, %v4611
    %v4614 = vunpack.c.l.s4 1966171168
    %v4615 = vunpack.c.0.s8 %v4614
    %v4616 = vlaneseq
    %v4617 = vshrl.u32 %v4616, 7
    %v4618 = vsub.s32 %v4615, %v4617
    %v4619 = vrot.slane %v4591, %v4618
    %v4620 = vcombine.low %v4598, %v4605
    %v4621 = vcombine.low %v4612, %v4619
    %v4623 = vunpack.c.l.s4 1966171168
    %v4624 = vunpack.c.0.s8 %v4623
    %v4625 = vlaneseq
    %v4626 = vshrl.u32 %v4625, 7
    %v4627 = vsub.s32 %v4624, %v4626
    %v4628 = vrot.slane %v4620, %v4627
    %v4630 = vunpack.c.l.s4 1966171168
    %v4631 = vunpack.c.0.s8 %v4630
    %v4632 = vlaneseq
    %v4633 = vshrl.u32 %v4632, 7
    %v4634 = vsub.s32 %v4631, %v4633
    %v4635 = vrot.slane %v4621, %v4634
    %v4636 = vcombine.low %v4628, %v4635
    %v4637 = vcombine.low %v4320, %v4322
    %v4638 = vcombine.low %v4402, %v4404
    %v4639 = vcombine.low %v4484, %v4486
    %v4640 = vcombine.low %v4566, %v4568
    %v4642 = vunpack.c.l.s4 1966171168
    %v4643 = vunpack.c.0.s8 %v4642
    %v4644 = vlaneseq
    %v4645 = vshrl.u32 %v4644, 7
    %v4646 = vsub.s32 %v4643, %v4645
    %v4647 = vrot.slane %v4637, %v4646
    %v4649 = vunpack.c.l.s4 1966171168
    %v4650 = vunpack.c.0.s8 %v4649
    %v4651 = vlaneseq
    %v4652 = vshrl.u32 %v4651, 7
    %v4653 = vsub.s32 %v4650, %v4652
    %v4654 = vrot.slane %v4638, %v4653
    %v4656 = vunpack.c.l.s4 1966171168
    %v4657 = vunpack.c.0.s8 %v4656
    %v4658 = vlaneseq
    %v4659 = vshrl.u32 %v4658, 7
    %v4660 = vsub.s32 %v4657, %v4659
    %v4661 = vrot.slane %v4639, %v4660
    %v4663 = vunpack.c.l.s4 1966171168
    %v4664 = vunpack.c.0.s8 %v4663
    %v4665 = vlaneseq
    %v4666 = vshrl.u32 %v4665, 7
    %v4667 = vsub.s32 %v4664, %v4666
    %v4668 = vrot.slane %v4640, %v4667
    %v4669 = vcombine.low %v4647, %v4654
    %v4670 = vcombine.low %v4661, %v4668
    %v4672 = vunpack.c.l.s4 1966171168
    %v4673 = vunpack.c.0.s8 %v4672
    %v4674 = vlaneseq
    %v4675 = vshrl.u32 %v4674, 7
    %v4676 = vsub.s32 %v4673, %v4675
    %v4677 = vrot.slane %v4669, %v4676
    %v4679 = vunpack.c.l.s4 1966171168
    %v4680 = vunpack.c.0.s8 %v4679
    %v4681 = vlaneseq
    %v4682 = vshrl.u32 %v4681, 7
    %v4683 = vsub.s32 %v4680, %v4682
    %v4684 = vrot.slane %v4670, %v4683
    %v4685 = vcombine.low %v4677, %v4684
    %v4688 = vadd.f32 %v3887, %v4636
    %v4689 = vadd.f32 %v3891, %v4685
    %v4690 = vxor.u32 %v4688, 2147483648
    %v4691 = vxor.u32 %v4689, 2147483648
    %v4692 = vmul.f32 %v4690, 1.442695
    %v4693 = vpow.pop %v4692
    %v4694 = vmul.f32 %v4691, 1.442695
    %v4695 = vpow.pop %v4694
    %v4696 = vadd.f32 %v4693, 1.0
    %v4697 = vadd.f32 %v4695, 1.0
    %v4698 = vrcp.pop %v4696
    %v4699 = vmul.f32 1.0, %v4698
    %v4700 = vrcp.pop %v4697
    %v4701 = vmul.f32 1.0, %v4700
    %v4703 = vrot.slane %v4689, 4
    %v4705 = vtanh.pop %v4703
    %v4707 = vrot.slane %v4699, 4
    %v4709 = vmul.f32 %v4707, %v3872
    %v4710 = vmul.f32 %v4699, %v4705
    %v4711 = vadd.f32 %v4709, %v4710
    %v4712 = vtanh.pop %v4711
    %v4713 = vmul.f32 %v4701, %v4712
    %s4714 = scalar_lea.vmem [#allocation5], 3
    %4715 = vst.msk [vmem:[%s4714] ss:$8 sm:$0x3] %vm2197, %v4713
    %4716 = vst.msk [vmem:[%s4714] ss:$8 sm:$0x0] %vm2197, %v4713
    %v4718 = vrot.slane %v4713, 2
    %s4720 = scalar_lea.vmem [#allocation5], 20
    %4721 = vst.msk [vmem:[%s4720] ss:$8 sm:$0x3] %vm2197, %v4718
    %4722 = vst.msk [vmem:[%s4720] ss:$8 sm:$0x0] %vm2197, %v4718
    %s4723 = scalar_lea.vmem [#allocation4], 4
    %v4724 = vld [vmem:[%s4723] ss:$8 sm:$0xf]
    %v4725 = vld [vmem:[%s4723] ss:$8 sm:$0xf0]
    %v4726 = vor.u32 %v4724, %v4725
    %s4727 = scalar_lea.vmem [#allocation4], 68
    %v4728 = vld [vmem:[%s4727] ss:$8 sm:$0xf]
    %v4729 = vld [vmem:[%s4727] ss:$8 sm:$0xf0]
    %v4730 = vor.u32 %v4728, %v4729
    %v4731 = vlaneseq
    %v4732 = vshrl.u32 %v4731, 7
    %v4733 = vsub.s32 0, %v4732
    %v4734 = vrot.slane %v4713, %v4733
    %v4735 = vlaneseq
    %v4736 = vshrl.u32 %v4735, 7
    %v4737 = vsub.s32 1, %v4736
    %v4738 = vrot.slane %v4713, %v4737
    %v4739 = vlaneseq
    %v4740 = vshrl.u32 %v4739, 7
    %v4741 = vsub.s32 2, %v4740
    %v4742 = vrot.slane %v4713, %v4741
    %v4743 = vlaneseq
    %v4744 = vshrl.u32 %v4743, 7
    %v4745 = vsub.s32 3, %v4744
    %v4746 = vrot.slane %v4713, %v4745
    %v4751 = vpack.c.bf16 %v4734, %v4734
    %v4752 = vpack.c.bf16 %v4738, %v4738
    %v4753 = vpack.c.bf16 %v4742, %v4742
    %v4754 = vpack.c.bf16 %v4746, %v4746
    %4755 = vmatprep.subr.bf16.mxu0 %v878
    %4756 = vmatpush1.bf16.msra.mxu0 %v877
    %4757 = vmatprep.subr.bf16.mxu0 %v894
    %4758 = vmatpush1.bf16.msra.mxu0 %v893
    %4759 = vmatprep.subr.bf16.mxu0 %v910
    %4760 = vmatpush1.bf16.msra.mxu0 %v909
    %4761 = vmatprep.subr.bf16.mxu0 %v926
    %4762 = vmatpush1.bf16.msra.mxu0 %v925
    %4763 = vmatprep.subr.bf16.mxu0 %v942
    %4764 = vmatpush1.bf16.msra.mxu0 %v941
    %4765 = vmatprep.subr.bf16.mxu0 %v958
    %4766 = vmatpush1.bf16.msra.mxu0 %v957
    %4767 = vmatprep.subr.bf16.mxu0 %v974
    %4768 = vmatpush1.bf16.msra.mxu0 %v973
    %4769 = vmatprep.subr.bf16.mxu0 %v990
    %4770 = vmatpush1.bf16.msra.mxu0 %v989
    %4771 = vmatprep.subr.bf16.mxu0 %v1006
    %4772 = vmatpush1.bf16.msra.mxu0 %v1005
    %4773 = vmatprep.subr.bf16.mxu0 %v1022
    %4774 = vmatpush1.bf16.msra.mxu0 %v1021
    %4775 = vmatprep.subr.bf16.mxu0 %v1038
    %4776 = vmatpush1.bf16.msra.mxu0 %v1037
    %4777 = vmatprep.subr.bf16.mxu0 %v1054
    %4778 = vmatpush1.bf16.msra.mxu0 %v1053
    %4779 = vmatprep.subr.bf16.mxu0 %v1070
    %4780 = vmatpush1.bf16.msra.mxu0 %v1069
    %4781 = vmatprep.subr.bf16.mxu0 %v1086
    %4782 = vmatpush1.bf16.msra.mxu0 %v1085
    %4783 = vmatprep.subr.bf16.mxu0 %v1102
    %4784 = vmatpush1.bf16.msra.mxu0 %v1101
    %4785 = vmatprep.subr.bf16.mxu0 %v1118
    %4786 = vmatpush1.bf16.msra.mxu0 %v1117
    %4787 = vmatprep.mubr.bf16.mxu0 %v4752
    %4788 = vmatmul.mubr.bf16.gmra.mrb[0].mxu0 %v4751
    %v4789 = vpop.f32.mrb[0].mxu0
    %v4790 = vadd.f32 0.0, %v4789
    %v4791 = vpop.f32.mrb[0].mxu0
    %v4792 = vadd.f32 0.0, %v4791
    %v4793 = vpop.f32.mrb[0].mxu0
    %v4794 = vpop.f32.mrb[0].mxu0
    %4795 = vdwg.mxu0
    %4796 = vmatprep.subr.bf16.mxu0 %v1134
    %4797 = vmatpush1.bf16.msra.mxu0 %v1133
    %4798 = vmatprep.subr.bf16.mxu0 %v1150
    %4799 = vmatpush1.bf16.msra.mxu0 %v1149
    %4800 = vmatprep.subr.bf16.mxu0 %v1166
    %4801 = vmatpush1.bf16.msra.mxu0 %v1165
    %4802 = vmatprep.subr.bf16.mxu0 %v1182
    %4803 = vmatpush1.bf16.msra.mxu0 %v1181
    %4804 = vmatprep.subr.bf16.mxu0 %v1198
    %4805 = vmatpush1.bf16.msra.mxu0 %v1197
    %4806 = vmatprep.subr.bf16.mxu0 %v1214
    %4807 = vmatpush1.bf16.msra.mxu0 %v1213
    %4808 = vmatprep.subr.bf16.mxu0 %v1230
    %4809 = vmatpush1.bf16.msra.mxu0 %v1229
    %4810 = vmatprep.subr.bf16.mxu0 %v1246
    %4811 = vmatpush1.bf16.msra.mxu0 %v1245
    %4812 = vmatprep.subr.bf16.mxu0 %v1262
    %4813 = vmatpush1.bf16.msra.mxu0 %v1261
    %4814 = vmatprep.subr.bf16.mxu0 %v1278
    %4815 = vmatpush1.bf16.msra.mxu0 %v1277
    %4816 = vmatprep.subr.bf16.mxu0 %v1294
    %4817 = vmatpush1.bf16.msra.mxu0 %v1293
    %4818 = vmatprep.subr.bf16.mxu0 %v1310
    %4819 = vmatpush1.bf16.msra.mxu0 %v1309
    %4820 = vmatprep.subr.bf16.mxu0 %v1326
    %4821 = vmatpush1.bf16.msra.mxu0 %v1325
    %4822 = vmatprep.subr.bf16.mxu0 %v1342
    %4823 = vmatpush1.bf16.msra.mxu0 %v1341
    %4824 = vmatprep.subr.bf16.mxu0 %v1358
    %4825 = vmatpush1.bf16.msra.mxu0 %v1357
    %4826 = vmatprep.subr.bf16.mxu0 %v1374
    %4827 = vmatpush1.bf16.msra.mxu0 %v1373
    %4828 = vmatprep.mubr.bf16.mxu0 %v4754
    %4829 = vmatmul.mubr.bf16.gmra.mrb[0].mxu0 %v4753
    %v4830 = vpop.f32.mrb[0].mxu0
    %v4831 = vadd.f32 %v4790, %v4830
    %v4832 = vpop.f32.mrb[0].mxu0
    %v4833 = vadd.f32 %v4792, %v4832
    %v4834 = vpop.f32.mrb[0].mxu0
    %v4835 = vpop.f32.mrb[0].mxu0
    %4836 = vdwg.mxu0
    %4837 = vmatprep.subr.bf16.mxu0 %v880
    %4838 = vmatpush1.bf16.msra.mxu0 %v879
    %4839 = vmatprep.subr.bf16.mxu0 %v896
    %4840 = vmatpush1.bf16.msra.mxu0 %v895
    %4841 = vmatprep.subr.bf16.mxu0 %v912
    %4842 = vmatpush1.bf16.msra.mxu0 %v911
    %4843 = vmatprep.subr.bf16.mxu0 %v928
    %4844 = vmatpush1.bf16.msra.mxu0 %v927
    %4845 = vmatprep.subr.bf16.mxu0 %v944
    %4846 = vmatpush1.bf16.msra.mxu0 %v943
    %4847 = vmatprep.subr.bf16.mxu0 %v960
    %4848 = vmatpush1.bf16.msra.mxu0 %v959
    %4849 = vmatprep.subr.bf16.mxu0 %v976
    %4850 = vmatpush1.bf16.msra.mxu0 %v975
    %4851 = vmatprep.subr.bf16.mxu0 %v992
    %4852 = vmatpush1.bf16.msra.mxu0 %v991
    %4853 = vmatprep.subr.bf16.mxu0 %v1008
    %4854 = vmatpush1.bf16.msra.mxu0 %v1007
    %4855 = vmatprep.subr.bf16.mxu0 %v1024
    %4856 = vmatpush1.bf16.msra.mxu0 %v1023
    %4857 = vmatprep.subr.bf16.mxu0 %v1040
    %4858 = vmatpush1.bf16.msra.mxu0 %v1039
    %4859 = vmatprep.subr.bf16.mxu0 %v1056
    %4860 = vmatpush1.bf16.msra.mxu0 %v1055
    %4861 = vmatprep.subr.bf16.mxu0 %v1072
    %4862 = vmatpush1.bf16.msra.mxu0 %v1071
    %4863 = vmatprep.subr.bf16.mxu0 %v1088
    %4864 = vmatpush1.bf16.msra.mxu0 %v1087
    %4865 = vmatprep.subr.bf16.mxu0 %v1104
    %4866 = vmatpush1.bf16.msra.mxu0 %v1103
    %4867 = vmatprep.subr.bf16.mxu0 %v1120
    %4868 = vmatpush1.bf16.msra.mxu0 %v1119
    %4869 = vmatprep.mubr.bf16.mxu0 %v4752
    %4870 = vmatmul.mubr.bf16.gmra.mrb[0].mxu0 %v4751
    %v4871 = vpop.f32.mrb[0].mxu0
    %v4872 = vadd.f32 0.0, %v4871
    %v4873 = vpop.f32.mrb[0].mxu0
    %v4874 = vadd.f32 0.0, %v4873
    %v4875 = vpop.f32.mrb[0].mxu0
    %v4876 = vpop.f32.mrb[0].mxu0
    %4877 = vdwg.mxu0
    %4878 = vmatprep.subr.bf16.mxu0 %v1136
    %4879 = vmatpush1.bf16.msra.mxu0 %v1135
    %4880 = vmatprep.subr.bf16.mxu0 %v1152
    %4881 = vmatpush1.bf16.msra.mxu0 %v1151
    %4882 = vmatprep.subr.bf16.mxu0 %v1168
    %4883 = vmatpush1.bf16.msra.mxu0 %v1167
    %4884 = vmatprep.subr.bf16.mxu0 %v1184
    %4885 = vmatpush1.bf16.msra.mxu0 %v1183
    %4886 = vmatprep.subr.bf16.mxu0 %v1200
    %4887 = vmatpush1.bf16.msra.mxu0 %v1199
    %4888 = vmatprep.subr.bf16.mxu0 %v1216
    %4889 = vmatpush1.bf16.msra.mxu0 %v1215
    %4890 = vmatprep.subr.bf16.mxu0 %v1232
    %4891 = vmatpush1.bf16.msra.mxu0 %v1231
    %4892 = vmatprep.subr.bf16.mxu0 %v1248
    %4893 = vmatpush1.bf16.msra.mxu0 %v1247
    %4894 = vmatprep.subr.bf16.mxu0 %v1264
    %4895 = vmatpush1.bf16.msra.mxu0 %v1263
    %4896 = vmatprep.subr.bf16.mxu0 %v1280
    %4897 = vmatpush1.bf16.msra.mxu0 %v1279
    %4898 = vmatprep.subr.bf16.mxu0 %v1296
    %4899 = vmatpush1.bf16.msra.mxu0 %v1295
    %4900 = vmatprep.subr.bf16.mxu0 %v1312
    %4901 = vmatpush1.bf16.msra.mxu0 %v1311
    %4902 = vmatprep.subr.bf16.mxu0 %v1328
    %4903 = vmatpush1.bf16.msra.mxu0 %v1327
    %4904 = vmatprep.subr.bf16.mxu0 %v1344
    %4905 = vmatpush1.bf16.msra.mxu0 %v1343
    %4906 = vmatprep.subr.bf16.mxu0 %v1360
    %4907 = vmatpush1.bf16.msra.mxu0 %v1359
    %4908 = vmatprep.subr.bf16.mxu0 %v1376
    %4909 = vmatpush1.bf16.msra.mxu0 %v1375
    %4910 = vmatprep.mubr.bf16.mxu0 %v4754
    %4911 = vmatmul.mubr.bf16.gmra.mrb[0].mxu0 %v4753
    %v4912 = vpop.f32.mrb[0].mxu0
    %v4913 = vadd.f32 %v4872, %v4912
    %v4914 = vpop.f32.mrb[0].mxu0
    %v4915 = vadd.f32 %v4874, %v4914
    %v4916 = vpop.f32.mrb[0].mxu0
    %v4917 = vpop.f32.mrb[0].mxu0
    %4918 = vdwg.mxu0
    %4919 = vmatprep.subr.bf16.mxu0 %v882
    %4920 = vmatpush1.bf16.msra.mxu0 %v881
    %4921 = vmatprep.subr.bf16.mxu0 %v898
    %4922 = vmatpush1.bf16.msra.mxu0 %v897
    %4923 = vmatprep.subr.bf16.mxu0 %v914
    %4924 = vmatpush1.bf16.msra.mxu0 %v913
    %4925 = vmatprep.subr.bf16.mxu0 %v930
    %4926 = vmatpush1.bf16.msra.mxu0 %v929
    %4927 = vmatprep.subr.bf16.mxu0 %v946
    %4928 = vmatpush1.bf16.msra.mxu0 %v945
    %4929 = vmatprep.subr.bf16.mxu0 %v962
    %4930 = vmatpush1.bf16.msra.mxu0 %v961
    %4931 = vmatprep.subr.bf16.mxu0 %v978
    %4932 = vmatpush1.bf16.msra.mxu0 %v977
    %4933 = vmatprep.subr.bf16.mxu0 %v994
    %4934 = vmatpush1.bf16.msra.mxu0 %v993
    %4935 = vmatprep.subr.bf16.mxu0 %v1010
    %4936 = vmatpush1.bf16.msra.mxu0 %v1009
    %4937 = vmatprep.subr.bf16.mxu0 %v1026
    %4938 = vmatpush1.bf16.msra.mxu0 %v1025
    %4939 = vmatprep.subr.bf16.mxu0 %v1042
    %4940 = vmatpush1.bf16.msra.mxu0 %v1041
    %4941 = vmatprep.subr.bf16.mxu0 %v1058
    %4942 = vmatpush1.bf16.msra.mxu0 %v1057
    %4943 = vmatprep.subr.bf16.mxu0 %v1074
    %4944 = vmatpush1.bf16.msra.mxu0 %v1073
    %4945 = vmatprep.subr.bf16.mxu0 %v1090
    %4946 = vmatpush1.bf16.msra.mxu0 %v1089
    %4947 = vmatprep.subr.bf16.mxu0 %v1106
    %4948 = vmatpush1.bf16.msra.mxu0 %v1105
    %4949 = vmatprep.subr.bf16.mxu0 %v1122
    %4950 = vmatpush1.bf16.msra.mxu0 %v1121
    %4951 = vmatprep.mubr.bf16.mxu0 %v4752
    %4952 = vmatmul.mubr.bf16.gmra.mrb[0].mxu0 %v4751
    %v4953 = vpop.f32.mrb[0].mxu0
    %v4954 = vadd.f32 0.0, %v4953
    %v4955 = vpop.f32.mrb[0].mxu0
    %v4956 = vadd.f32 0.0, %v4955
    %v4957 = vpop.f32.mrb[0].mxu0
    %v4958 = vpop.f32.mrb[0].mxu0
    %4959 = vdwg.mxu0
    %4960 = vmatprep.subr.bf16.mxu0 %v1138
    %4961 = vmatpush1.bf16.msra.mxu0 %v1137
    %4962 = vmatprep.subr.bf16.mxu0 %v1154
    %4963 = vmatpush1.bf16.msra.mxu0 %v1153
    %4964 = vmatprep.subr.bf16.mxu0 %v1170
    %4965 = vmatpush1.bf16.msra.mxu0 %v1169
    %4966 = vmatprep.subr.bf16.mxu0 %v1186
    %4967 = vmatpush1.bf16.msra.mxu0 %v1185
    %4968 = vmatprep.subr.bf16.mxu0 %v1202
    %4969 = vmatpush1.bf16.msra.mxu0 %v1201
    %4970 = vmatprep.subr.bf16.mxu0 %v1218
    %4971 = vmatpush1.bf16.msra.mxu0 %v1217
    %4972 = vmatprep.subr.bf16.mxu0 %v1234
    %4973 = vmatpush1.bf16.msra.mxu0 %v1233
    %4974 = vmatprep.subr.bf16.mxu0 %v1250
    %4975 = vmatpush1.bf16.msra.mxu0 %v1249
    %4976 = vmatprep.subr.bf16.mxu0 %v1266
    %4977 = vmatpush1.bf16.msra.mxu0 %v1265
    %4978 = vmatprep.subr.bf16.mxu0 %v1282
    %4979 = vmatpush1.bf16.msra.mxu0 %v1281
    %4980 = vmatprep.subr.bf16.mxu0 %v1298
    %4981 = vmatpush1.bf16.msra.mxu0 %v1297
    %4982 = vmatprep.subr.bf16.mxu0 %v1314
    %4983 = vmatpush1.bf16.msra.mxu0 %v1313
    %4984 = vmatprep.subr.bf16.mxu0 %v1330
    %4985 = vmatpush1.bf16.msra.mxu0 %v1329
    %4986 = vmatprep.subr.bf16.mxu0 %v1346
    %4987 = vmatpush1.bf16.msra.mxu0 %v1345
    %4988 = vmatprep.subr.bf16.mxu0 %v1362
    %4989 = vmatpush1.bf16.msra.mxu0 %v1361
    %4990 = vmatprep.subr.bf16.mxu0 %v1378
    %4991 = vmatpush1.bf16.msra.mxu0 %v1377
    %4992 = vmatprep.mubr.bf16.mxu0 %v4754
    %4993 = vmatmul.mubr.bf16.gmra.mrb[0].mxu0 %v4753
    %v4994 = vpop.f32.mrb[0].mxu0
    %v4995 = vadd.f32 %v4954, %v4994
    %v4996 = vpop.f32.mrb[0].mxu0
    %v4997 = vadd.f32 %v4956, %v4996
    %v4998 = vpop.f32.mrb[0].mxu0
    %v4999 = vpop.f32.mrb[0].mxu0
    %5000 = vdwg.mxu0
    %5001 = vmatprep.subr.bf16.mxu0 %v884
    %5002 = vmatpush1.bf16.msra.mxu0 %v883
    %5003 = vmatprep.subr.bf16.mxu0 %v900
    %5004 = vmatpush1.bf16.msra.mxu0 %v899
    %5005 = vmatprep.subr.bf16.mxu0 %v916
    %5006 = vmatpush1.bf16.msra.mxu0 %v915
    %5007 = vmatprep.subr.bf16.mxu0 %v932
    %5008 = vmatpush1.bf16.msra.mxu0 %v931
    %5009 = vmatprep.subr.bf16.mxu0 %v948
    %5010 = vmatpush1.bf16.msra.mxu0 %v947
    %5011 = vmatprep.subr.bf16.mxu0 %v964
    %5012 = vmatpush1.bf16.msra.mxu0 %v963
    %5013 = vmatprep.subr.bf16.mxu0 %v980
    %5014 = vmatpush1.bf16.msra.mxu0 %v979
    %5015 = vmatprep.subr.bf16.mxu0 %v996
    %5016 = vmatpush1.bf16.msra.mxu0 %v995
    %5017 = vmatprep.subr.bf16.mxu0 %v1012
    %5018 = vmatpush1.bf16.msra.mxu0 %v1011
    %5019 = vmatprep.subr.bf16.mxu0 %v1028
    %5020 = vmatpush1.bf16.msra.mxu0 %v1027
    %5021 = vmatprep.subr.bf16.mxu0 %v1044
    %5022 = vmatpush1.bf16.msra.mxu0 %v1043
    %5023 = vmatprep.subr.bf16.mxu0 %v1060
    %5024 = vmatpush1.bf16.msra.mxu0 %v1059
    %5025 = vmatprep.subr.bf16.mxu0 %v1076
    %5026 = vmatpush1.bf16.msra.mxu0 %v1075
    %5027 = vmatprep.subr.bf16.mxu0 %v1092
    %5028 = vmatpush1.bf16.msra.mxu0 %v1091
    %5029 = vmatprep.subr.bf16.mxu0 %v1108
    %5030 = vmatpush1.bf16.msra.mxu0 %v1107
    %5031 = vmatprep.subr.bf16.mxu0 %v1124
    %5032 = vmatpush1.bf16.msra.mxu0 %v1123
    %5033 = vmatprep.mubr.bf16.mxu0 %v4752
    %5034 = vmatmul.mubr.bf16.gmra.mrb[0].mxu0 %v4751
    %v5035 = vpop.f32.mrb[0].mxu0
    %v5036 = vadd.f32 0.0, %v5035
    %v5037 = vpop.f32.mrb[0].mxu0
    %v5038 = vadd.f32 0.0, %v5037
    %v5039 = vpop.f32.mrb[0].mxu0
    %v5040 = vpop.f32.mrb[0].mxu0
    %5041 = vdwg.mxu0
    %5042 = vmatprep.subr.bf16.mxu0 %v1140
    %5043 = vmatpush1.bf16.msra.mxu0 %v1139
    %5044 = vmatprep.subr.bf16.mxu0 %v1156
    %5045 = vmatpush1.bf16.msra.mxu0 %v1155
    %5046 = vmatprep.subr.bf16.mxu0 %v1172
    %5047 = vmatpush1.bf16.msra.mxu0 %v1171
    %5048 = vmatprep.subr.bf16.mxu0 %v1188
    %5049 = vmatpush1.bf16.msra.mxu0 %v1187
    %5050 = vmatprep.subr.bf16.mxu0 %v1204
    %5051 = vmatpush1.bf16.msra.mxu0 %v1203
    %5052 = vmatprep.subr.bf16.mxu0 %v1220
    %5053 = vmatpush1.bf16.msra.mxu0 %v1219
    %5054 = vmatprep.subr.bf16.mxu0 %v1236
    %5055 = vmatpush1.bf16.msra.mxu0 %v1235
    %5056 = vmatprep.subr.bf16.mxu0 %v1252
    %5057 = vmatpush1.bf16.msra.mxu0 %v1251
    %5058 = vmatprep.subr.bf16.mxu0 %v1268
    %5059 = vmatpush1.bf16.msra.mxu0 %v1267
    %5060 = vmatprep.subr.bf16.mxu0 %v1284
    %5061 = vmatpush1.bf16.msra.mxu0 %v1283
    %5062 = vmatprep.subr.bf16.mxu0 %v1300
    %5063 = vmatpush1.bf16.msra.mxu0 %v1299
    %5064 = vmatprep.subr.bf16.mxu0 %v1316
    %5065 = vmatpush1.bf16.msra.mxu0 %v1315
    %5066 = vmatprep.subr.bf16.mxu0 %v1332
    %5067 = vmatpush1.bf16.msra.mxu0 %v1331
    %5068 = vmatprep.subr.bf16.mxu0 %v1348
    %5069 = vmatpush1.bf16.msra.mxu0 %v1347
    %5070 = vmatprep.subr.bf16.mxu0 %v1364
    %5071 = vmatpush1.bf16.msra.mxu0 %v1363
    %5072 = vmatprep.subr.bf16.mxu0 %v1380
    %5073 = vmatpush1.bf16.msra.mxu0 %v1379
    %5074 = vmatprep.mubr.bf16.mxu0 %v4754
    %5075 = vmatmul.mubr.bf16.gmra.mrb[0].mxu0 %v4753
    %v5076 = vpop.f32.mrb[0].mxu0
    %v5077 = vadd.f32 %v5036, %v5076
    %v5078 = vpop.f32.mrb[0].mxu0
    %v5079 = vadd.f32 %v5038, %v5078
    %v5080 = vpop.f32.mrb[0].mxu0
    %v5081 = vpop.f32.mrb[0].mxu0
    %5082 = vdwg.mxu0
    %5083 = vmatprep.subr.bf16.mxu0 %v886
    %5084 = vmatpush1.bf16.msra.mxu0 %v885
    %5085 = vmatprep.subr.bf16.mxu0 %v902
    %5086 = vmatpush1.bf16.msra.mxu0 %v901
    %5087 = vmatprep.subr.bf16.mxu0 %v918
    %5088 = vmatpush1.bf16.msra.mxu0 %v917
    %5089 = vmatprep.subr.bf16.mxu0 %v934
    %5090 = vmatpush1.bf16.msra.mxu0 %v933
    %5091 = vmatprep.subr.bf16.mxu0 %v950
    %5092 = vmatpush1.bf16.msra.mxu0 %v949
    %5093 = vmatprep.subr.bf16.mxu0 %v966
    %5094 = vmatpush1.bf16.msra.mxu0 %v965
    %5095 = vmatprep.subr.bf16.mxu0 %v982
    %5096 = vmatpush1.bf16.msra.mxu0 %v981
    %5097 = vmatprep.subr.bf16.mxu0 %v998
    %5098 = vmatpush1.bf16.msra.mxu0 %v997
    %5099 = vmatprep.subr.bf16.mxu0 %v1014
    %5100 = vmatpush1.bf16.msra.mxu0 %v1013
    %5101 = vmatprep.subr.bf16.mxu0 %v1030
    %5102 = vmatpush1.bf16.msra.mxu0 %v1029
    %5103 = vmatprep.subr.bf16.mxu0 %v1046
    %5104 = vmatpush1.bf16.msra.mxu0 %v1045
    %5105 = vmatprep.subr.bf16.mxu0 %v1062
    %5106 = vmatpush1.bf16.msra.mxu0 %v1061
    %5107 = vmatprep.subr.bf16.mxu0 %v1078
    %5108 = vmatpush1.bf16.msra.mxu0 %v1077
    %5109 = vmatprep.subr.bf16.mxu0 %v1094
    %5110 = vmatpush1.bf16.msra.mxu0 %v1093
    %5111 = vmatprep.subr.bf16.mxu0 %v1110
    %5112 = vmatpush1.bf16.msra.mxu0 %v1109
    %5113 = vmatprep.subr.bf16.mxu0 %v1126
    %5114 = vmatpush1.bf16.msra.mxu0 %v1125
    %5115 = vmatprep.mubr.bf16.mxu0 %v4752
    %5116 = vmatmul.mubr.bf16.gmra.mrb[0].mxu0 %v4751
    %v5117 = vpop.f32.mrb[0].mxu0
    %v5118 = vadd.f32 0.0, %v5117
    %v5119 = vpop.f32.mrb[0].mxu0
    %v5120 = vadd.f32 0.0, %v5119
    %v5121 = vpop.f32.mrb[0].mxu0
    %v5122 = vpop.f32.mrb[0].mxu0
    %5123 = vdwg.mxu0
    %5124 = vmatprep.subr.bf16.mxu0 %v1142
    %5125 = vmatpush1.bf16.msra.mxu0 %v1141
    %5126 = vmatprep.subr.bf16.mxu0 %v1158
    %5127 = vmatpush1.bf16.msra.mxu0 %v1157
    %5128 = vmatprep.subr.bf16.mxu0 %v1174
    %5129 = vmatpush1.bf16.msra.mxu0 %v1173
    %5130 = vmatprep.subr.bf16.mxu0 %v1190
    %5131 = vmatpush1.bf16.msra.mxu0 %v1189
    %5132 = vmatprep.subr.bf16.mxu0 %v1206
    %5133 = vmatpush1.bf16.msra.mxu0 %v1205
    %5134 = vmatprep.subr.bf16.mxu0 %v1222
    %5135 = vmatpush1.bf16.msra.mxu0 %v1221
    %5136 = vmatprep.subr.bf16.mxu0 %v1238
    %5137 = vmatpush1.bf16.msra.mxu0 %v1237
    %5138 = vmatprep.subr.bf16.mxu0 %v1254
    %5139 = vmatpush1.bf16.msra.mxu0 %v1253
    %5140 = vmatprep.subr.bf16.mxu0 %v1270
    %5141 = vmatpush1.bf16.msra.mxu0 %v1269
    %5142 = vmatprep.subr.bf16.mxu0 %v1286
    %5143 = vmatpush1.bf16.msra.mxu0 %v1285
    %5144 = vmatprep.subr.bf16.mxu0 %v1302
    %5145 = vmatpush1.bf16.msra.mxu0 %v1301
    %5146 = vmatprep.subr.bf16.mxu0 %v1318
    %5147 = vmatpush1.bf16.msra.mxu0 %v1317
    %5148 = vmatprep.subr.bf16.mxu0 %v1334
    %5149 = vmatpush1.bf16.msra.mxu0 %v1333
    %5150 = vmatprep.subr.bf16.mxu0 %v1350
    %5151 = vmatpush1.bf16.msra.mxu0 %v1349
    %5152 = vmatprep.subr.bf16.mxu0 %v1366
    %5153 = vmatpush1.bf16.msra.mxu0 %v1365
    %5154 = vmatprep.subr.bf16.mxu0 %v1382
    %5155 = vmatpush1.bf16.msra.mxu0 %v1381
    %5156 = vmatprep.mubr.bf16.mxu0 %v4754
    %5157 = vmatmul.mubr.bf16.gmra.mrb[0].mxu0 %v4753
    %v5158 = vpop.f32.mrb[0].mxu0
    %v5159 = vadd.f32 %v5118, %v5158
    %v5160 = vpop.f32.mrb[0].mxu0
    %v5161 = vadd.f32 %v5120, %v5160
    %v5162 = vpop.f32.mrb[0].mxu0
    %v5163 = vpop.f32.mrb[0].mxu0
    %5164 = vdwg.mxu0
    %5165 = vmatprep.subr.bf16.mxu0 %v888
    %5166 = vmatpush1.bf16.msra.mxu0 %v887
    %5167 = vmatprep.subr.bf16.mxu0 %v904
    %5168 = vmatpush1.bf16.msra.mxu0 %v903
    %5169 = vmatprep.subr.bf16.mxu0 %v920
    %5170 = vmatpush1.bf16.msra.mxu0 %v919
    %5171 = vmatprep.subr.bf16.mxu0 %v936
    %5172 = vmatpush1.bf16.msra.mxu0 %v935
    %5173 = vmatprep.subr.bf16.mxu0 %v952
    %5174 = vmatpush1.bf16.msra.mxu0 %v951
    %5175 = vmatprep.subr.bf16.mxu0 %v968
    %5176 = vmatpush1.bf16.msra.mxu0 %v967
    %5177 = vmatprep.subr.bf16.mxu0 %v984
    %5178 = vmatpush1.bf16.msra.mxu0 %v983
    %5179 = vmatprep.subr.bf16.mxu0 %v1000
    %5180 = vmatpush1.bf16.msra.mxu0 %v999
    %5181 = vmatprep.subr.bf16.mxu0 %v1016
    %5182 = vmatpush1.bf16.msra.mxu0 %v1015
    %5183 = vmatprep.subr.bf16.mxu0 %v1032
    %5184 = vmatpush1.bf16.msra.mxu0 %v1031
    %5185 = vmatprep.subr.bf16.mxu0 %v1048
    %5186 = vmatpush1.bf16.msra.mxu0 %v1047
    %5187 = vmatprep.subr.bf16.mxu0 %v1064
    %5188 = vmatpush1.bf16.msra.mxu0 %v1063
    %5189 = vmatprep.subr.bf16.mxu0 %v1080
    %5190 = vmatpush1.bf16.msra.mxu0 %v1079
    %5191 = vmatprep.subr.bf16.mxu0 %v1096
    %5192 = vmatpush1.bf16.msra.mxu0 %v1095
    %5193 = vmatprep.subr.bf16.mxu0 %v1112
    %5194 = vmatpush1.bf16.msra.mxu0 %v1111
    %5195 = vmatprep.subr.bf16.mxu0 %v1128
    %5196 = vmatpush1.bf16.msra.mxu0 %v1127
    %5197 = vmatprep.mubr.bf16.mxu0 %v4752
    %5198 = vmatmul.mubr.bf16.gmra.mrb[0].mxu0 %v4751
    %v5199 = vpop.f32.mrb[0].mxu0
    %v5200 = vadd.f32 0.0, %v5199
    %v5201 = vpop.f32.mrb[0].mxu0
    %v5202 = vadd.f32 0.0, %v5201
    %v5203 = vpop.f32.mrb[0].mxu0
    %v5204 = vpop.f32.mrb[0].mxu0
    %5205 = vdwg.mxu0
    %5206 = vmatprep.subr.bf16.mxu0 %v1144
    %5207 = vmatpush1.bf16.msra.mxu0 %v1143
    %5208 = vmatprep.subr.bf16.mxu0 %v1160
    %5209 = vmatpush1.bf16.msra.mxu0 %v1159
    %5210 = vmatprep.subr.bf16.mxu0 %v1176
    %5211 = vmatpush1.bf16.msra.mxu0 %v1175
    %5212 = vmatprep.subr.bf16.mxu0 %v1192
    %5213 = vmatpush1.bf16.msra.mxu0 %v1191
    %5214 = vmatprep.subr.bf16.mxu0 %v1208
    %5215 = vmatpush1.bf16.msra.mxu0 %v1207
    %5216 = vmatprep.subr.bf16.mxu0 %v1224
    %5217 = vmatpush1.bf16.msra.mxu0 %v1223
    %5218 = vmatprep.subr.bf16.mxu0 %v1240
    %5219 = vmatpush1.bf16.msra.mxu0 %v1239
    %5220 = vmatprep.subr.bf16.mxu0 %v1256
    %5221 = vmatpush1.bf16.msra.mxu0 %v1255
    %5222 = vmatprep.subr.bf16.mxu0 %v1272
    %5223 = vmatpush1.bf16.msra.mxu0 %v1271
    %5224 = vmatprep.subr.bf16.mxu0 %v1288
    %5225 = vmatpush1.bf16.msra.mxu0 %v1287
    %5226 = vmatprep.subr.bf16.mxu0 %v1304
    %5227 = vmatpush1.bf16.msra.mxu0 %v1303
    %5228 = vmatprep.subr.bf16.mxu0 %v1320
    %5229 = vmatpush1.bf16.msra.mxu0 %v1319
    %5230 = vmatprep.subr.bf16.mxu0 %v1336
    %5231 = vmatpush1.bf16.msra.mxu0 %v1335
    %5232 = vmatprep.subr.bf16.mxu0 %v1352
    %5233 = vmatpush1.bf16.msra.mxu0 %v1351
    %5234 = vmatprep.subr.bf16.mxu0 %v1368
    %5235 = vmatpush1.bf16.msra.mxu0 %v1367
    %5236 = vmatprep.subr.bf16.mxu0 %v1384
    %5237 = vmatpush1.bf16.msra.mxu0 %v1383
    %5238 = vmatprep.mubr.bf16.mxu0 %v4754
    %5239 = vmatmul.mubr.bf16.gmra.mrb[0].mxu0 %v4753
    %v5240 = vpop.f32.mrb[0].mxu0
    %v5241 = vadd.f32 %v5200, %v5240
    %v5242 = vpop.f32.mrb[0].mxu0
    %v5243 = vadd.f32 %v5202, %v5242
    %v5244 = vpop.f32.mrb[0].mxu0
    %v5245 = vpop.f32.mrb[0].mxu0
    %5246 = vdwg.mxu0
    %5247 = vmatprep.subr.bf16.mxu0 %v890
    %5248 = vmatpush1.bf16.msra.mxu0 %v889
    %5249 = vmatprep.subr.bf16.mxu0 %v906
    %5250 = vmatpush1.bf16.msra.mxu0 %v905
    %5251 = vmatprep.subr.bf16.mxu0 %v922
    %5252 = vmatpush1.bf16.msra.mxu0 %v921
    %5253 = vmatprep.subr.bf16.mxu0 %v938
    %5254 = vmatpush1.bf16.msra.mxu0 %v937
    %5255 = vmatprep.subr.bf16.mxu0 %v954
    %5256 = vmatpush1.bf16.msra.mxu0 %v953
    %5257 = vmatprep.subr.bf16.mxu0 %v970
    %5258 = vmatpush1.bf16.msra.mxu0 %v969
    %5259 = vmatprep.subr.bf16.mxu0 %v986
    %5260 = vmatpush1.bf16.msra.mxu0 %v985
    %5261 = vmatprep.subr.bf16.mxu0 %v1002
    %5262 = vmatpush1.bf16.msra.mxu0 %v1001
    %5263 = vmatprep.subr.bf16.mxu0 %v1018
    %5264 = vmatpush1.bf16.msra.mxu0 %v1017
    %5265 = vmatprep.subr.bf16.mxu0 %v1034
    %5266 = vmatpush1.bf16.msra.mxu0 %v1033
    %5267 = vmatprep.subr.bf16.mxu0 %v1050
    %5268 = vmatpush1.bf16.msra.mxu0 %v1049
    %5269 = vmatprep.subr.bf16.mxu0 %v1066
    %5270 = vmatpush1.bf16.msra.mxu0 %v1065
    %5271 = vmatprep.subr.bf16.mxu0 %v1082
    %5272 = vmatpush1.bf16.msra.mxu0 %v1081
    %5273 = vmatprep.subr.bf16.mxu0 %v1098
    %5274 = vmatpush1.bf16.msra.mxu0 %v1097
    %5275 = vmatprep.subr.bf16.mxu0 %v1114
    %5276 = vmatpush1.bf16.msra.mxu0 %v1113
    %5277 = vmatprep.subr.bf16.mxu0 %v1130
    %5278 = vmatpush1.bf16.msra.mxu0 %v1129
    %5279 = vmatprep.mubr.bf16.mxu0 %v4752
    %5280 = vmatmul.mubr.bf16.gmra.mrb[0].mxu0 %v4751
    %v5281 = vpop.f32.mrb[0].mxu0
    %v5282 = vadd.f32 0.0, %v5281
    %v5283 = vpop.f32.mrb[0].mxu0
    %v5284 = vadd.f32 0.0, %v5283
    %v5285 = vpop.f32.mrb[0].mxu0
    %v5286 = vpop.f32.mrb[0].mxu0
    %5287 = vdwg.mxu0
    %5288 = vmatprep.subr.bf16.mxu0 %v1146
    %5289 = vmatpush1.bf16.msra.mxu0 %v1145
    %5290 = vmatprep.subr.bf16.mxu0 %v1162
    %5291 = vmatpush1.bf16.msra.mxu0 %v1161
    %5292 = vmatprep.subr.bf16.mxu0 %v1178
    %5293 = vmatpush1.bf16.msra.mxu0 %v1177
    %5294 = vmatprep.subr.bf16.mxu0 %v1194
    %5295 = vmatpush1.bf16.msra.mxu0 %v1193
    %5296 = vmatprep.subr.bf16.mxu0 %v1210
    %5297 = vmatpush1.bf16.msra.mxu0 %v1209
    %5298 = vmatprep.subr.bf16.mxu0 %v1226
    %5299 = vmatpush1.bf16.msra.mxu0 %v1225
    %5300 = vmatprep.subr.bf16.mxu0 %v1242
    %5301 = vmatpush1.bf16.msra.mxu0 %v1241
    %5302 = vmatprep.subr.bf16.mxu0 %v1258
    %5303 = vmatpush1.bf16.msra.mxu0 %v1257
    %5304 = vmatprep.subr.bf16.mxu0 %v1274
    %5305 = vmatpush1.bf16.msra.mxu0 %v1273
    %5306 = vmatprep.subr.bf16.mxu0 %v1290
    %5307 = vmatpush1.bf16.msra.mxu0 %v1289
    %5308 = vmatprep.subr.bf16.mxu0 %v1306
    %5309 = vmatpush1.bf16.msra.mxu0 %v1305
    %5310 = vmatprep.subr.bf16.mxu0 %v1322
    %5311 = vmatpush1.bf16.msra.mxu0 %v1321
    %5312 = vmatprep.subr.bf16.mxu0 %v1338
    %5313 = vmatpush1.bf16.msra.mxu0 %v1337
    %5314 = vmatprep.subr.bf16.mxu0 %v1354
    %5315 = vmatpush1.bf16.msra.mxu0 %v1353
    %5316 = vmatprep.subr.bf16.mxu0 %v1370
    %5317 = vmatpush1.bf16.msra.mxu0 %v1369
    %5318 = vmatprep.subr.bf16.mxu0 %v1386
    %5319 = vmatpush1.bf16.msra.mxu0 %v1385
    %5320 = vmatprep.mubr.bf16.mxu0 %v4754
    %5321 = vmatmul.mubr.bf16.gmra.mrb[0].mxu0 %v4753
    %v5322 = vpop.f32.mrb[0].mxu0
    %v5323 = vadd.f32 %v5282, %v5322
    %v5324 = vpop.f32.mrb[0].mxu0
    %v5325 = vadd.f32 %v5284, %v5324
    %v5326 = vpop.f32.mrb[0].mxu0
    %v5327 = vpop.f32.mrb[0].mxu0
    %5328 = vdwg.mxu0
    %5329 = vmatprep.subr.bf16.mxu0 %v892
    %5330 = vmatpush1.bf16.msra.mxu0 %v891
    %5331 = vmatprep.subr.bf16.mxu0 %v908
    %5332 = vmatpush1.bf16.msra.mxu0 %v907
    %5333 = vmatprep.subr.bf16.mxu0 %v924
    %5334 = vmatpush1.bf16.msra.mxu0 %v923
    %5335 = vmatprep.subr.bf16.mxu0 %v940
    %5336 = vmatpush1.bf16.msra.mxu0 %v939
    %5337 = vmatprep.subr.bf16.mxu0 %v956
    %5338 = vmatpush1.bf16.msra.mxu0 %v955
    %5339 = vmatprep.subr.bf16.mxu0 %v972
    %5340 = vmatpush1.bf16.msra.mxu0 %v971
    %5341 = vmatprep.subr.bf16.mxu0 %v988
    %5342 = vmatpush1.bf16.msra.mxu0 %v987
    %5343 = vmatprep.subr.bf16.mxu0 %v1004
    %5344 = vmatpush1.bf16.msra.mxu0 %v1003
    %5345 = vmatprep.subr.bf16.mxu0 %v1020
    %5346 = vmatpush1.bf16.msra.mxu0 %v1019
    %5347 = vmatprep.subr.bf16.mxu0 %v1036
    %5348 = vmatpush1.bf16.msra.mxu0 %v1035
    %5349 = vmatprep.subr.bf16.mxu0 %v1052
    %5350 = vmatpush1.bf16.msra.mxu0 %v1051
    %5351 = vmatprep.subr.bf16.mxu0 %v1068
    %5352 = vmatpush1.bf16.msra.mxu0 %v1067
    %5353 = vmatprep.subr.bf16.mxu0 %v1084
    %5354 = vmatpush1.bf16.msra.mxu0 %v1083
    %5355 = vmatprep.subr.bf16.mxu0 %v1100
    %5356 = vmatpush1.bf16.msra.mxu0 %v1099
    %5357 = vmatprep.subr.bf16.mxu0 %v1116
    %5358 = vmatpush1.bf16.msra.mxu0 %v1115
    %5359 = vmatprep.subr.bf16.mxu0 %v1132
    %5360 = vmatpush1.bf16.msra.mxu0 %v1131
    %5361 = vmatprep.mubr.bf16.mxu0 %v4752
    %5362 = vmatmul.mubr.bf16.gmra.mrb[0].mxu0 %v4751
    %v5363 = vpop.f32.mrb[0].mxu0
    %v5364 = vadd.f32 0.0, %v5363
    %v5365 = vpop.f32.mrb[0].mxu0
    %v5366 = vadd.f32 0.0, %v5365
    %v5367 = vpop.f32.mrb[0].mxu0
    %v5368 = vpop.f32.mrb[0].mxu0
    %5369 = vdwg.mxu0
    %5370 = vmatprep.subr.bf16.mxu0 %v1148
    %5371 = vmatpush1.bf16.msra.mxu0 %v1147
    %5372 = vmatprep.subr.bf16.mxu0 %v1164
    %5373 = vmatpush1.bf16.msra.mxu0 %v1163
    %5374 = vmatprep.subr.bf16.mxu0 %v1180
    %5375 = vmatpush1.bf16.msra.mxu0 %v1179
    %5376 = vmatprep.subr.bf16.mxu0 %v1196
    %5377 = vmatpush1.bf16.msra.mxu0 %v1195
    %5378 = vmatprep.subr.bf16.mxu0 %v1212
    %5379 = vmatpush1.bf16.msra.mxu0 %v1211
    %5380 = vmatprep.subr.bf16.mxu0 %v1228
    %5381 = vmatpush1.bf16.msra.mxu0 %v1227
    %5382 = vmatprep.subr.bf16.mxu0 %v1244
    %5383 = vmatpush1.bf16.msra.mxu0 %v1243
    %5384 = vmatprep.subr.bf16.mxu0 %v1260
    %5385 = vmatpush1.bf16.msra.mxu0 %v1259
    %5386 = vmatprep.subr.bf16.mxu0 %v1276
    %5387 = vmatpush1.bf16.msra.mxu0 %v1275
    %5388 = vmatprep.subr.bf16.mxu0 %v1292
    %5389 = vmatpush1.bf16.msra.mxu0 %v1291
    %5390 = vmatprep.subr.bf16.mxu0 %v1308
    %5391 = vmatpush1.bf16.msra.mxu0 %v1307
    %5392 = vmatprep.subr.bf16.mxu0 %v1324
    %5393 = vmatpush1.bf16.msra.mxu0 %v1323
    %5394 = vmatprep.subr.bf16.mxu0 %v1340
    %5395 = vmatpush1.bf16.msra.mxu0 %v1339
    %5396 = vmatprep.subr.bf16.mxu0 %v1356
    %5397 = vmatpush1.bf16.msra.mxu0 %v1355
    %5398 = vmatprep.subr.bf16.mxu0 %v1372
    %5399 = vmatpush1.bf16.msra.mxu0 %v1371
    %5400 = vmatprep.subr.bf16.mxu0 %v1388
    %5401 = vmatpush1.bf16.msra.mxu0 %v1387
    %5402 = vmatprep.mubr.bf16.mxu0 %v4754
    %5403 = vmatmul.mubr.bf16.gmra.mrb[0].mxu0 %v4753
    %v5404 = vpop.f32.mrb[0].mxu0
    %v5405 = vadd.f32 %v5364, %v5404
    %v5406 = vpop.f32.mrb[0].mxu0
    %v5407 = vadd.f32 %v5366, %v5406
    %v5408 = vpop.f32.mrb[0].mxu0
    %v5409 = vpop.f32.mrb[0].mxu0
    %5410 = vdwg.mxu0
    %v5427 = vcombine.low %v4831, %v4833
    %v5428 = vcombine.low %v4913, %v4915
    %v5429 = vcombine.low %v4995, %v4997
    %v5430 = vcombine.low %v5077, %v5079
    %v5432 = vunpack.c.l.s4 1966171168
    %v5433 = vunpack.c.0.s8 %v5432
    %v5434 = vlaneseq
    %v5435 = vshrl.u32 %v5434, 7
    %v5436 = vsub.s32 %v5433, %v5435
    %v5437 = vrot.slane %v5427, %v5436
    %v5439 = vunpack.c.l.s4 1966171168
    %v5440 = vunpack.c.0.s8 %v5439
    %v5441 = vlaneseq
    %v5442 = vshrl.u32 %v5441, 7
    %v5443 = vsub.s32 %v5440, %v5442
    %v5444 = vrot.slane %v5428, %v5443
    %v5446 = vunpack.c.l.s4 1966171168
    %v5447 = vunpack.c.0.s8 %v5446
    %v5448 = vlaneseq
    %v5449 = vshrl.u32 %v5448, 7
    %v5450 = vsub.s32 %v5447, %v5449
    %v5451 = vrot.slane %v5429, %v5450
    %v5453 = vunpack.c.l.s4 1966171168
    %v5454 = vunpack.c.0.s8 %v5453
    %v5455 = vlaneseq
    %v5456 = vshrl.u32 %v5455, 7
    %v5457 = vsub.s32 %v5454, %v5456
    %v5458 = vrot.slane %v5430, %v5457
    %v5459 = vcombine.low %v5437, %v5444
    %v5460 = vcombine.low %v5451, %v5458
    %v5462 = vunpack.c.l.s4 1966171168
    %v5463 = vunpack.c.0.s8 %v5462
    %v5464 = vlaneseq
    %v5465 = vshrl.u32 %v5464, 7
    %v5466 = vsub.s32 %v5463, %v5465
    %v5467 = vrot.slane %v5459, %v5466
    %v5469 = vunpack.c.l.s4 1966171168
    %v5470 = vunpack.c.0.s8 %v5469
    %v5471 = vlaneseq
    %v5472 = vshrl.u32 %v5471, 7
    %v5473 = vsub.s32 %v5470, %v5472
    %v5474 = vrot.slane %v5460, %v5473
    %v5475 = vcombine.low %v5467, %v5474
    %v5476 = vcombine.low %v5159, %v5161
    %v5477 = vcombine.low %v5241, %v5243
    %v5478 = vcombine.low %v5323, %v5325
    %v5479 = vcombine.low %v5405, %v5407
    %v5481 = vunpack.c.l.s4 1966171168
    %v5482 = vunpack.c.0.s8 %v5481
    %v5483 = vlaneseq
    %v5484 = vshrl.u32 %v5483, 7
    %v5485 = vsub.s32 %v5482, %v5484
    %v5486 = vrot.slane %v5476, %v5485
    %v5488 = vunpack.c.l.s4 1966171168
    %v5489 = vunpack.c.0.s8 %v5488
    %v5490 = vlaneseq
    %v5491 = vshrl.u32 %v5490, 7
    %v5492 = vsub.s32 %v5489, %v5491
    %v5493 = vrot.slane %v5477, %v5492
    %v5495 = vunpack.c.l.s4 1966171168
    %v5496 = vunpack.c.0.s8 %v5495
    %v5497 = vlaneseq
    %v5498 = vshrl.u32 %v5497, 7
    %v5499 = vsub.s32 %v5496, %v5498
    %v5500 = vrot.slane %v5478, %v5499
    %v5502 = vunpack.c.l.s4 1966171168
    %v5503 = vunpack.c.0.s8 %v5502
    %v5504 = vlaneseq
    %v5505 = vshrl.u32 %v5504, 7
    %v5506 = vsub.s32 %v5503, %v5505
    %v5507 = vrot.slane %v5479, %v5506
    %v5508 = vcombine.low %v5486, %v5493
    %v5509 = vcombine.low %v5500, %v5507
    %v5511 = vunpack.c.l.s4 1966171168
    %v5512 = vunpack.c.0.s8 %v5511
    %v5513 = vlaneseq
    %v5514 = vshrl.u32 %v5513, 7
    %v5515 = vsub.s32 %v5512, %v5514
    %v5516 = vrot.slane %v5508, %v5515
    %v5518 = vunpack.c.l.s4 1966171168
    %v5519 = vunpack.c.0.s8 %v5518
    %v5520 = vlaneseq
    %v5521 = vshrl.u32 %v5520, 7
    %v5522 = vsub.s32 %v5519, %v5521
    %v5523 = vrot.slane %v5509, %v5522
    %v5524 = vcombine.low %v5516, %v5523
    %v5527 = vadd.f32 %v4726, %v5475
    %v5528 = vadd.f32 %v4730, %v5524
    %v5529 = vxor.u32 %v5527, 2147483648
    %v5530 = vxor.u32 %v5528, 2147483648
    %v5531 = vmul.f32 %v5529, 1.442695
    %v5532 = vpow.pop %v5531
    %v5533 = vmul.f32 %v5530, 1.442695
    %v5534 = vpow.pop %v5533
    %v5535 = vadd.f32 %v5532, 1.0
    %v5536 = vadd.f32 %v5534, 1.0
    %v5537 = vrcp.pop %v5535
    %v5538 = vmul.f32 1.0, %v5537
    %v5539 = vrcp.pop %v5536
    %v5540 = vmul.f32 1.0, %v5539
    %v5542 = vrot.slane %v5528, 4
    %v5544 = vtanh.pop %v5542
    %v5546 = vrot.slane %v5538, 4
    %v5548 = vmul.f32 %v5546, %v4711
    %v5549 = vmul.f32 %v5538, %v5544
    %v5550 = vadd.f32 %v5548, %v5549
    %v5551 = vtanh.pop %v5550
    %v5552 = vmul.f32 %v5540, %v5551
    %s5553 = scalar_lea.vmem [#allocation5], 4
    %5554 = vst.msk [vmem:[%s5553] ss:$8 sm:$0x3] %vm2197, %v5552
    %5555 = vst.msk [vmem:[%s5553] ss:$8 sm:$0x0] %vm2197, %v5552
    %v5557 = vrot.slane %v5552, 2
    %s5559 = scalar_lea.vmem [#allocation5], 19
    %5560 = vst.msk [vmem:[%s5559] ss:$8 sm:$0x3] %vm2197, %v5557
    %5561 = vst.msk [vmem:[%s5559] ss:$8 sm:$0x0] %vm2197, %v5557
    %s5562 = scalar_lea.vmem [#allocation4], 5
    %v5563 = vld [vmem:[%s5562] ss:$8 sm:$0xf]
    %v5564 = vld [vmem:[%s5562] ss:$8 sm:$0xf0]
    %v5565 = vor.u32 %v5563, %v5564
    %s5566 = scalar_lea.vmem [#allocation4], 69
    %v5567 = vld [vmem:[%s5566] ss:$8 sm:$0xf]
    %v5568 = vld [vmem:[%s5566] ss:$8 sm:$0xf0]
    %v5569 = vor.u32 %v5567, %v5568
    %v5570 = vlaneseq
    %v5571 = vshrl.u32 %v5570, 7
    %v5572 = vsub.s32 0, %v5571
    %v5573 = vrot.slane %v5552, %v5572
    %v5574 = vlaneseq
    %v5575 = vshrl.u32 %v5574, 7
    %v5576 = vsub.s32 1, %v5575
    %v5577 = vrot.slane %v5552, %v5576
    %v5578 = vlaneseq
    %v5579 = vshrl.u32 %v5578, 7
    %v5580 = vsub.s32 2, %v5579
    %v5581 = vrot.slane %v5552, %v5580
    %v5582 = vlaneseq
    %v5583 = vshrl.u32 %v5582, 7
    %v5584 = vsub.s32 3, %v5583
    %v5585 = vrot.slane %v5552, %v5584
    %v5590 = vpack.c.bf16 %v5573, %v5573
    %v5591 = vpack.c.bf16 %v5577, %v5577
    %v5592 = vpack.c.bf16 %v5581, %v5581
    %v5593 = vpack.c.bf16 %v5585, %v5585
    %5594 = vmatprep.subr.bf16.mxu0 %v878
    %5595 = vmatpush1.bf16.msra.mxu0 %v877
    %5596 = vmatprep.subr.bf16.mxu0 %v894
    %5597 = vmatpush1.bf16.msra.mxu0 %v893
    %5598 = vmatprep.subr.bf16.mxu0 %v910
    %5599 = vmatpush1.bf16.msra.mxu0 %v909
    %5600 = vmatprep.subr.bf16.mxu0 %v926
    %5601 = vmatpush1.bf16.msra.mxu0 %v925
    %5602 = vmatprep.subr.bf16.mxu0 %v942
    %5603 = vmatpush1.bf16.msra.mxu0 %v941
    %5604 = vmatprep.subr.bf16.mxu0 %v958
    %5605 = vmatpush1.bf16.msra.mxu0 %v957
    %5606 = vmatprep.subr.bf16.mxu0 %v974
    %5607 = vmatpush1.bf16.msra.mxu0 %v973
    %5608 = vmatprep.subr.bf16.mxu0 %v990
    %5609 = vmatpush1.bf16.msra.mxu0 %v989
    %5610 = vmatprep.subr.bf16.mxu0 %v1006
    %5611 = vmatpush1.bf16.msra.mxu0 %v1005
    %5612 = vmatprep.subr.bf16.mxu0 %v1022
    %5613 = vmatpush1.bf16.msra.mxu0 %v1021
    %5614 = vmatprep.subr.bf16.mxu0 %v1038
    %5615 = vmatpush1.bf16.msra.mxu0 %v1037
    %5616 = vmatprep.subr.bf16.mxu0 %v1054
    %5617 = vmatpush1.bf16.msra.mxu0 %v1053
    %5618 = vmatprep.subr.bf16.mxu0 %v1070
    %5619 = vmatpush1.bf16.msra.mxu0 %v1069
    %5620 = vmatprep.subr.bf16.mxu0 %v1086
    %5621 = vmatpush1.bf16.msra.mxu0 %v1085
    %5622 = vmatprep.subr.bf16.mxu0 %v1102
    %5623 = vmatpush1.bf16.msra.mxu0 %v1101
    %5624 = vmatprep.subr.bf16.mxu0 %v1118
    %5625 = vmatpush1.bf16.msra.mxu0 %v1117
    %5626 = vmatprep.mubr.bf16.mxu0 %v5591
    %5627 = vmatmul.mubr.bf16.gmra.mrb[0].mxu0 %v5590
    %v5628 = vpop.f32.mrb[0].mxu0
    %v5629 = vadd.f32 0.0, %v5628
    %v5630 = vpop.f32.mrb[0].mxu0
    %v5631 = vadd.f32 0.0, %v5630
    %v5632 = vpop.f32.mrb[0].mxu0
    %v5633 = vpop.f32.mrb[0].mxu0
    %5634 = vdwg.mxu0
    %5635 = vmatprep.subr.bf16.mxu0 %v1134
    %5636 = vmatpush1.bf16.msra.mxu0 %v1133
    %5637 = vmatprep.subr.bf16.mxu0 %v1150
    %5638 = vmatpush1.bf16.msra.mxu0 %v1149
    %5639 = vmatprep.subr.bf16.mxu0 %v1166
    %5640 = vmatpush1.bf16.msra.mxu0 %v1165
    %5641 = vmatprep.subr.bf16.mxu0 %v1182
    %5642 = vmatpush1.bf16.msra.mxu0 %v1181
    %5643 = vmatprep.subr.bf16.mxu0 %v1198
    %5644 = vmatpush1.bf16.msra.mxu0 %v1197
    %5645 = vmatprep.subr.bf16.mxu0 %v1214
    %5646 = vmatpush1.bf16.msra.mxu0 %v1213
    %5647 = vmatprep.subr.bf16.mxu0 %v1230
    %5648 = vmatpush1.bf16.msra.mxu0 %v1229
    %5649 = vmatprep.subr.bf16.mxu0 %v1246
    %5650 = vmatpush1.bf16.msra.mxu0 %v1245
    %5651 = vmatprep.subr.bf16.mxu0 %v1262
    %5652 = vmatpush1.bf16.msra.mxu0 %v1261
    %5653 = vmatprep.subr.bf16.mxu0 %v1278
    %5654 = vmatpush1.bf16.msra.mxu0 %v1277
    %5655 = vmatprep.subr.bf16.mxu0 %v1294
    %5656 = vmatpush1.bf16.msra.mxu0 %v1293
    %5657 = vmatprep.subr.bf16.mxu0 %v1310
    %5658 = vmatpush1.bf16.msra.mxu0 %v1309
    %5659 = vmatprep.subr.bf16.mxu0 %v1326
    %5660 = vmatpush1.bf16.msra.mxu0 %v1325
    %5661 = vmatprep.subr.bf16.mxu0 %v1342
    %5662 = vmatpush1.bf16.msra.mxu0 %v1341
    %5663 = vmatprep.subr.bf16.mxu0 %v1358
    %5664 = vmatpush1.bf16.msra.mxu0 %v1357
    %5665 = vmatprep.subr.bf16.mxu0 %v1374
    %5666 = vmatpush1.bf16.msra.mxu0 %v1373
    %5667 = vmatprep.mubr.bf16.mxu0 %v5593
    %5668 = vmatmul.mubr.bf16.gmra.mrb[0].mxu0 %v5592
    %v5669 = vpop.f32.mrb[0].mxu0
    %v5670 = vadd.f32 %v5629, %v5669
    %v5671 = vpop.f32.mrb[0].mxu0
    %v5672 = vadd.f32 %v5631, %v5671
    %v5673 = vpop.f32.mrb[0].mxu0
    %v5674 = vpop.f32.mrb[0].mxu0
    %5675 = vdwg.mxu0
    %5676 = vmatprep.subr.bf16.mxu0 %v880
    %5677 = vmatpush1.bf16.msra.mxu0 %v879
    %5678 = vmatprep.subr.bf16.mxu0 %v896
    %5679 = vmatpush1.bf16.msra.mxu0 %v895
    %5680 = vmatprep.subr.bf16.mxu0 %v912
    %5681 = vmatpush1.bf16.msra.mxu0 %v911
    %5682 = vmatprep.subr.bf16.mxu0 %v928
    %5683 = vmatpush1.bf16.msra.mxu0 %v927
    %5684 = vmatprep.subr.bf16.mxu0 %v944
    %5685 = vmatpush1.bf16.msra.mxu0 %v943
    %5686 = vmatprep.subr.bf16.mxu0 %v960
    %5687 = vmatpush1.bf16.msra.mxu0 %v959
    %5688 = vmatprep.subr.bf16.mxu0 %v976
    %5689 = vmatpush1.bf16.msra.mxu0 %v975
    %5690 = vmatprep.subr.bf16.mxu0 %v992
    %5691 = vmatpush1.bf16.msra.mxu0 %v991
    %5692 = vmatprep.subr.bf16.mxu0 %v1008
    %5693 = vmatpush1.bf16.msra.mxu0 %v1007
    %5694 = vmatprep.subr.bf16.mxu0 %v1024
    %5695 = vmatpush1.bf16.msra.mxu0 %v1023
    %5696 = vmatprep.subr.bf16.mxu0 %v1040
    %5697 = vmatpush1.bf16.msra.mxu0 %v1039
    %5698 = vmatprep.subr.bf16.mxu0 %v1056
    %5699 = vmatpush1.bf16.msra.mxu0 %v1055
    %5700 = vmatprep.subr.bf16.mxu0 %v1072
    %5701 = vmatpush1.bf16.msra.mxu0 %v1071
    %5702 = vmatprep.subr.bf16.mxu0 %v1088
    %5703 = vmatpush1.bf16.msra.mxu0 %v1087
    %5704 = vmatprep.subr.bf16.mxu0 %v1104
    %5705 = vmatpush1.bf16.msra.mxu0 %v1103
    %5706 = vmatprep.subr.bf16.mxu0 %v1120
    %5707 = vmatpush1.bf16.msra.mxu0 %v1119
    %5708 = vmatprep.mubr.bf16.mxu0 %v5591
    %5709 = vmatmul.mubr.bf16.gmra.mrb[0].mxu0 %v5590
    %v5710 = vpop.f32.mrb[0].mxu0
    %v5711 = vadd.f32 0.0, %v5710
    %v5712 = vpop.f32.mrb[0].mxu0
    %v5713 = vadd.f32 0.0, %v5712
    %v5714 = vpop.f32.mrb[0].mxu0
    %v5715 = vpop.f32.mrb[0].mxu0
    %5716 = vdwg.mxu0
    %5717 = vmatprep.subr.bf16.mxu0 %v1136
    %5718 = vmatpush1.bf16.msra.mxu0 %v1135
    %5719 = vmatprep.subr.bf16.mxu0 %v1152
    %5720 = vmatpush1.bf16.msra.mxu0 %v1151
    %5721 = vmatprep.subr.bf16.mxu0 %v1168
    %5722 = vmatpush1.bf16.msra.mxu0 %v1167
    %5723 = vmatprep.subr.bf16.mxu0 %v1184
    %5724 = vmatpush1.bf16.msra.mxu0 %v1183
    %5725 = vmatprep.subr.bf16.mxu0 %v1200
    %5726 = vmatpush1.bf16.msra.mxu0 %v1199
    %5727 = vmatprep.subr.bf16.mxu0 %v1216
    %5728 = vmatpush1.bf16.msra.mxu0 %v1215
    %5729 = vmatprep.subr.bf16.mxu0 %v1232
    %5730 = vmatpush1.bf16.msra.mxu0 %v1231
    %5731 = vmatprep.subr.bf16.mxu0 %v1248
    %5732 = vmatpush1.bf16.msra.mxu0 %v1247
    %5733 = vmatprep.subr.bf16.mxu0 %v1264
    %5734 = vmatpush1.bf16.msra.mxu0 %v1263
    %5735 = vmatprep.subr.bf16.mxu0 %v1280
    %5736 = vmatpush1.bf16.msra.mxu0 %v1279
    %5737 = vmatprep.subr.bf16.mxu0 %v1296
    %5738 = vmatpush1.bf16.msra.mxu0 %v1295
    %5739 = vmatprep.subr.bf16.mxu0 %v1312
    %5740 = vmatpush1.bf16.msra.mxu0 %v1311
    %5741 = vmatprep.subr.bf16.mxu0 %v1328
    %5742 = vmatpush1.bf16.msra.mxu0 %v1327
    %5743 = vmatprep.subr.bf16.mxu0 %v1344
    %5744 = vmatpush1.bf16.msra.mxu0 %v1343
    %5745 = vmatprep.subr.bf16.mxu0 %v1360
    %5746 = vmatpush1.bf16.msra.mxu0 %v1359
    %5747 = vmatprep.subr.bf16.mxu0 %v1376
    %5748 = vmatpush1.bf16.msra.mxu0 %v1375
    %5749 = vmatprep.mubr.bf16.mxu0 %v5593
    %5750 = vmatmul.mubr.bf16.gmra.mrb[0].mxu0 %v5592
    %v5751 = vpop.f32.mrb[0].mxu0
    %v5752 = vadd.f32 %v5711, %v5751
    %v5753 = vpop.f32.mrb[0].mxu0
    %v5754 = vadd.f32 %v5713, %v5753
    %v5755 = vpop.f32.mrb[0].mxu0
    %v5756 = vpop.f32.mrb[0].mxu0
    %5757 = vdwg.mxu0
    %5758 = vmatprep.subr.bf16.mxu0 %v882
    %5759 = vmatpush1.bf16.msra.mxu0 %v881
    %5760 = vmatprep.subr.bf16.mxu0 %v898
    %5761 = vmatpush1.bf16.msra.mxu0 %v897
    %5762 = vmatprep.subr.bf16.mxu0 %v914
    %5763 = vmatpush1.bf16.msra.mxu0 %v913
    %5764 = vmatprep.subr.bf16.mxu0 %v930
    %5765 = vmatpush1.bf16.msra.mxu0 %v929
    %5766 = vmatprep.subr.bf16.mxu0 %v946
    %5767 = vmatpush1.bf16.msra.mxu0 %v945
    %5768 = vmatprep.subr.bf16.mxu0 %v962
    %5769 = vmatpush1.bf16.msra.mxu0 %v961
    %5770 = vmatprep.subr.bf16.mxu0 %v978
    %5771 = vmatpush1.bf16.msra.mxu0 %v977
    %5772 = vmatprep.subr.bf16.mxu0 %v994
    %5773 = vmatpush1.bf16.msra.mxu0 %v993
    %5774 = vmatprep.subr.bf16.mxu0 %v1010
    %5775 = vmatpush1.bf16.msra.mxu0 %v1009
    %5776 = vmatprep.subr.bf16.mxu0 %v1026
    %5777 = vmatpush1.bf16.msra.mxu0 %v1025
    %5778 = vmatprep.subr.bf16.mxu0 %v1042
    %5779 = vmatpush1.bf16.msra.mxu0 %v1041
    %5780 = vmatprep.subr.bf16.mxu0 %v1058
    %5781 = vmatpush1.bf16.msra.mxu0 %v1057
    %5782 = vmatprep.subr.bf16.mxu0 %v1074
    %5783 = vmatpush1.bf16.msra.mxu0 %v1073
    %5784 = vmatprep.subr.bf16.mxu0 %v1090
    %5785 = vmatpush1.bf16.msra.mxu0 %v1089
    %5786 = vmatprep.subr.bf16.mxu0 %v1106
    %5787 = vmatpush1.bf16.msra.mxu0 %v1105
    %5788 = vmatprep.subr.bf16.mxu0 %v1122
    %5789 = vmatpush1.bf16.msra.mxu0 %v1121
    %5790 = vmatprep.mubr.bf16.mxu0 %v5591
    %5791 = vmatmul.mubr.bf16.gmra.mrb[0].mxu0 %v5590
    %v5792 = vpop.f32.mrb[0].mxu0
    %v5793 = vadd.f32 0.0, %v5792
    %v5794 = vpop.f32.mrb[0].mxu0
    %v5795 = vadd.f32 0.0, %v5794
    %v5796 = vpop.f32.mrb[0].mxu0
    %v5797 = vpop.f32.mrb[0].mxu0
    %5798 = vdwg.mxu0
    %5799 = vmatprep.subr.bf16.mxu0 %v1138
    %5800 = vmatpush1.bf16.msra.mxu0 %v1137
    %5801 = vmatprep.subr.bf16.mxu0 %v1154
    %5802 = vmatpush1.bf16.msra.mxu0 %v1153
    %5803 = vmatprep.subr.bf16.mxu0 %v1170
    %5804 = vmatpush1.bf16.msra.mxu0 %v1169
    %5805 = vmatprep.subr.bf16.mxu0 %v1186
    %5806 = vmatpush1.bf16.msra.mxu0 %v1185
    %5807 = vmatprep.subr.bf16.mxu0 %v1202
    %5808 = vmatpush1.bf16.msra.mxu0 %v1201
    %5809 = vmatprep.subr.bf16.mxu0 %v1218
    %5810 = vmatpush1.bf16.msra.mxu0 %v1217
    %5811 = vmatprep.subr.bf16.mxu0 %v1234
    %5812 = vmatpush1.bf16.msra.mxu0 %v1233
    %5813 = vmatprep.subr.bf16.mxu0 %v1250
    %5814 = vmatpush1.bf16.msra.mxu0 %v1249
    %5815 = vmatprep.subr.bf16.mxu0 %v1266
    %5816 = vmatpush1.bf16.msra.mxu0 %v1265
    %5817 = vmatprep.subr.bf16.mxu0 %v1282
    %5818 = vmatpush1.bf16.msra.mxu0 %v1281
    %5819 = vmatprep.subr.bf16.mxu0 %v1298
    %5820 = vmatpush1.bf16.msra.mxu0 %v1297
    %5821 = vmatprep.subr.bf16.mxu0 %v1314
    %5822 = vmatpush1.bf16.msra.mxu0 %v1313
    %5823 = vmatprep.subr.bf16.mxu0 %v1330
    %5824 = vmatpush1.bf16.msra.mxu0 %v1329
    %5825 = vmatprep.subr.bf16.mxu0 %v1346
    %5826 = vmatpush1.bf16.msra.mxu0 %v1345
    %5827 = vmatprep.subr.bf16.mxu0 %v1362
    %5828 = vmatpush1.bf16.msra.mxu0 %v1361
    %5829 = vmatprep.subr.bf16.mxu0 %v1378
    %5830 = vmatpush1.bf16.msra.mxu0 %v1377
    %5831 = vmatprep.mubr.bf16.mxu0 %v5593
    %5832 = vmatmul.mubr.bf16.gmra.mrb[0].mxu0 %v5592
    %v5833 = vpop.f32.mrb[0].mxu0
    %v5834 = vadd.f32 %v5793, %v5833
    %v5835 = vpop.f32.mrb[0].mxu0
    %v5836 = vadd.f32 %v5795, %v5835
    %v5837 = vpop.f32.mrb[0].mxu0
    %v5838 = vpop.f32.mrb[0].mxu0
    %5839 = vdwg.mxu0
    %5840 = vmatprep.subr.bf16.mxu0 %v884
    %5841 = vmatpush1.bf16.msra.mxu0 %v883
    %5842 = vmatprep.subr.bf16.mxu0 %v900
    %5843 = vmatpush1.bf16.msra.mxu0 %v899
    %5844 = vmatprep.subr.bf16.mxu0 %v916
    %5845 = vmatpush1.bf16.msra.mxu0 %v915
    %5846 = vmatprep.subr.bf16.mxu0 %v932
    %5847 = vmatpush1.bf16.msra.mxu0 %v931
    %5848 = vmatprep.subr.bf16.mxu0 %v948
    %5849 = vmatpush1.bf16.msra.mxu0 %v947
    %5850 = vmatprep.subr.bf16.mxu0 %v964
    %5851 = vmatpush1.bf16.msra.mxu0 %v963
    %5852 = vmatprep.subr.bf16.mxu0 %v980
    %5853 = vmatpush1.bf16.msra.mxu0 %v979
    %5854 = vmatprep.subr.bf16.mxu0 %v996
    %5855 = vmatpush1.bf16.msra.mxu0 %v995
    %5856 = vmatprep.subr.bf16.mxu0 %v1012
    %5857 = vmatpush1.bf16.msra.mxu0 %v1011
    %5858 = vmatprep.subr.bf16.mxu0 %v1028
    %5859 = vmatpush1.bf16.msra.mxu0 %v1027
    %5860 = vmatprep.subr.bf16.mxu0 %v1044
    %5861 = vmatpush1.bf16.msra.mxu0 %v1043
    %5862 = vmatprep.subr.bf16.mxu0 %v1060
    %5863 = vmatpush1.bf16.msra.mxu0 %v1059
    %5864 = vmatprep.subr.bf16.mxu0 %v1076
    %5865 = vmatpush1.bf16.msra.mxu0 %v1075
    %5866 = vmatprep.subr.bf16.mxu0 %v1092
    %5867 = vmatpush1.bf16.msra.mxu0 %v1091
    %5868 = vmatprep.subr.bf16.mxu0 %v1108
    %5869 = vmatpush1.bf16.msra.mxu0 %v1107
    %5870 = vmatprep.subr.bf16.mxu0 %v1124
    %5871 = vmatpush1.bf16.msra.mxu0 %v1123
    %5872 = vmatprep.mubr.bf16.mxu0 %v5591
    %5873 = vmatmul.mubr.bf16.gmra.mrb[0].mxu0 %v5590
    %v5874 = vpop.f32.mrb[0].mxu0
    %v5875 = vadd.f32 0.0, %v5874
    %v5876 = vpop.f32.mrb[0].mxu0
    %v5877 = vadd.f32 0.0, %v5876
    %v5878 = vpop.f32.mrb[0].mxu0
    %v5879 = vpop.f32.mrb[0].mxu0
    %5880 = vdwg.mxu0
    %5881 = vmatprep.subr.bf16.mxu0 %v1140
    %5882 = vmatpush1.bf16.msra.mxu0 %v1139
    %5883 = vmatprep.subr.bf16.mxu0 %v1156
    %5884 = vmatpush1.bf16.msra.mxu0 %v1155
    %5885 = vmatprep.subr.bf16.mxu0 %v1172
    %5886 = vmatpush1.bf16.msra.mxu0 %v1171
    %5887 = vmatprep.subr.bf16.mxu0 %v1188
    %5888 = vmatpush1.bf16.msra.mxu0 %v1187
    %5889 = vmatprep.subr.bf16.mxu0 %v1204
    %5890 = vmatpush1.bf16.msra.mxu0 %v1203
    %5891 = vmatprep.subr.bf16.mxu0 %v1220
    %5892 = vmatpush1.bf16.msra.mxu0 %v1219
    %5893 = vmatprep.subr.bf16.mxu0 %v1236
    %5894 = vmatpush1.bf16.msra.mxu0 %v1235
    %5895 = vmatprep.subr.bf16.mxu0 %v1252
    %5896 = vmatpush1.bf16.msra.mxu0 %v1251
    %5897 = vmatprep.subr.bf16.mxu0 %v1268
    %5898 = vmatpush1.bf16.msra.mxu0 %v1267
    %5899 = vmatprep.subr.bf16.mxu0 %v1284
    %5900 = vmatpush1.bf16.msra.mxu0 %v1283
    %5901 = vmatprep.subr.bf16.mxu0 %v1300
    %5902 = vmatpush1.bf16.msra.mxu0 %v1299
    %5903 = vmatprep.subr.bf16.mxu0 %v1316
    %5904 = vmatpush1.bf16.msra.mxu0 %v1315
    %5905 = vmatprep.subr.bf16.mxu0 %v1332
    %5906 = vmatpush1.bf16.msra.mxu0 %v1331
    %5907 = vmatprep.subr.bf16.mxu0 %v1348
    %5908 = vmatpush1.bf16.msra.mxu0 %v1347
    %5909 = vmatprep.subr.bf16.mxu0 %v1364
    %5910 = vmatpush1.bf16.msra.mxu0 %v1363
    %5911 = vmatprep.subr.bf16.mxu0 %v1380
    %5912 = vmatpush1.bf16.msra.mxu0 %v1379
    %5913 = vmatprep.mubr.bf16.mxu0 %v5593
    %5914 = vmatmul.mubr.bf16.gmra.mrb[0].mxu0 %v5592
    %v5915 = vpop.f32.mrb[0].mxu0
    %v5916 = vadd.f32 %v5875, %v5915
    %v5917 = vpop.f32.mrb[0].mxu0
    %v5918 = vadd.f32 %v5877, %v5917
    %v5919 = vpop.f32.mrb[0].mxu0
    %v5920 = vpop.f32.mrb[0].mxu0
    %5921 = vdwg.mxu0
    %5922 = vmatprep.subr.bf16.mxu0 %v886
    %5923 = vmatpush1.bf16.msra.mxu0 %v885
    %5924 = vmatprep.subr.bf16.mxu0 %v902
    %5925 = vmatpush1.bf16.msra.mxu0 %v901
    %5926 = vmatprep.subr.bf16.mxu0 %v918
    %5927 = vmatpush1.bf16.msra.mxu0 %v917
    %5928 = vmatprep.subr.bf16.mxu0 %v934
    %5929 = vmatpush1.bf16.msra.mxu0 %v933
    %5930 = vmatprep.subr.bf16.mxu0 %v950
    %5931 = vmatpush1.bf16.msra.mxu0 %v949
    %5932 = vmatprep.subr.bf16.mxu0 %v966
    %5933 = vmatpush1.bf16.msra.mxu0 %v965
    %5934 = vmatprep.subr.bf16.mxu0 %v982
    %5935 = vmatpush1.bf16.msra.mxu0 %v981
    %5936 = vmatprep.subr.bf16.mxu0 %v998
    %5937 = vmatpush1.bf16.msra.mxu0 %v997
    %5938 = vmatprep.subr.bf16.mxu0 %v1014
    %5939 = vmatpush1.bf16.msra.mxu0 %v1013
    %5940 = vmatprep.subr.bf16.mxu0 %v1030
    %5941 = vmatpush1.bf16.msra.mxu0 %v1029
    %5942 = vmatprep.subr.bf16.mxu0 %v1046
    %5943 = vmatpush1.bf16.msra.mxu0 %v1045
    %5944 = vmatprep.subr.bf16.mxu0 %v1062
    %5945 = vmatpush1.bf16.msra.mxu0 %v1061
    %5946 = vmatprep.subr.bf16.mxu0 %v1078
    %5947 = vmatpush1.bf16.msra.mxu0 %v1077
    %5948 = vmatprep.subr.bf16.mxu0 %v1094
    %5949 = vmatpush1.bf16.msra.mxu0 %v1093
    %5950 = vmatprep.subr.bf16.mxu0 %v1110
    %5951 = vmatpush1.bf16.msra.mxu0 %v1109
    %5952 = vmatprep.subr.bf16.mxu0 %v1126
    %5953 = vmatpush1.bf16.msra.mxu0 %v1125
    %5954 = vmatprep.mubr.bf16.mxu0 %v5591
    %5955 = vmatmul.mubr.bf16.gmra.mrb[0].mxu0 %v5590
    %v5956 = vpop.f32.mrb[0].mxu0
    %v5957 = vadd.f32 0.0, %v5956
    %v5958 = vpop.f32.mrb[0].mxu0
    %v5959 = vadd.f32 0.0, %v5958
    %v5960 = vpop.f32.mrb[0].mxu0
    %v5961 = vpop.f32.mrb[0].mxu0
    %5962 = vdwg.mxu0
    %5963 = vmatprep.subr.bf16.mxu0 %v1142
    %5964 = vmatpush1.bf16.msra.mxu0 %v1141
    %5965 = vmatprep.subr.bf16.mxu0 %v1158
    %5966 = vmatpush1.bf16.msra.mxu0 %v1157
    %5967 = vmatprep.subr.bf16.mxu0 %v1174
    %5968 = vmatpush1.bf16.msra.mxu0 %v1173
    %5969 = vmatprep.subr.bf16.mxu0 %v1190
    %5970 = vmatpush1.bf16.msra.mxu0 %v1189
    %5971 = vmatprep.subr.bf16.mxu0 %v1206
    %5972 = vmatpush1.bf16.msra.mxu0 %v1205
    %5973 = vmatprep.subr.bf16.mxu0 %v1222
    %5974 = vmatpush1.bf16.msra.mxu0 %v1221
    %5975 = vmatprep.subr.bf16.mxu0 %v1238
    %5976 = vmatpush1.bf16.msra.mxu0 %v1237
    %5977 = vmatprep.subr.bf16.mxu0 %v1254
    %5978 = vmatpush1.bf16.msra.mxu0 %v1253
    %5979 = vmatprep.subr.bf16.mxu0 %v1270
    %5980 = vmatpush1.bf16.msra.mxu0 %v1269
    %5981 = vmatprep.subr.bf16.mxu0 %v1286
    %5982 = vmatpush1.bf16.msra.mxu0 %v1285
    %5983 = vmatprep.subr.bf16.mxu0 %v1302
    %5984 = vmatpush1.bf16.msra.mxu0 %v1301
    %5985 = vmatprep.subr.bf16.mxu0 %v1318
    %5986 = vmatpush1.bf16.msra.mxu0 %v1317
    %5987 = vmatprep.subr.bf16.mxu0 %v1334
    %5988 = vmatpush1.bf16.msra.mxu0 %v1333
    %5989 = vmatprep.subr.bf16.mxu0 %v1350
    %5990 = vmatpush1.bf16.msra.mxu0 %v1349
    %5991 = vmatprep.subr.bf16.mxu0 %v1366
    %5992 = vmatpush1.bf16.msra.mxu0 %v1365
    %5993 = vmatprep.subr.bf16.mxu0 %v1382
    %5994 = vmatpush1.bf16.msra.mxu0 %v1381
    %5995 = vmatprep.mubr.bf16.mxu0 %v5593
    %5996 = vmatmul.mubr.bf16.gmra.mrb[0].mxu0 %v5592
    %v5997 = vpop.f32.mrb[0].mxu0
    %v5998 = vadd.f32 %v5957, %v5997
    %v5999 = vpop.f32.mrb[0].mxu0
    %v6000 = vadd.f32 %v5959, %v5999
    %v6001 = vpop.f32.mrb[0].mxu0
    %v6002 = vpop.f32.mrb[0].mxu0
    %6003 = vdwg.mxu0
    %6004 = vmatprep.subr.bf16.mxu0 %v888
    %6005 = vmatpush1.bf16.msra.mxu0 %v887
    %6006 = vmatprep.subr.bf16.mxu0 %v904
    %6007 = vmatpush1.bf16.msra.mxu0 %v903
    %6008 = vmatprep.subr.bf16.mxu0 %v920
    %6009 = vmatpush1.bf16.msra.mxu0 %v919
    %6010 = vmatprep.subr.bf16.mxu0 %v936
    %6011 = vmatpush1.bf16.msra.mxu0 %v935
    %6012 = vmatprep.subr.bf16.mxu0 %v952
    %6013 = vmatpush1.bf16.msra.mxu0 %v951
    %6014 = vmatprep.subr.bf16.mxu0 %v968
    %6015 = vmatpush1.bf16.msra.mxu0 %v967
    %6016 = vmatprep.subr.bf16.mxu0 %v984
    %6017 = vmatpush1.bf16.msra.mxu0 %v983
    %6018 = vmatprep.subr.bf16.mxu0 %v1000
    %6019 = vmatpush1.bf16.msra.mxu0 %v999
    %6020 = vmatprep.subr.bf16.mxu0 %v1016
    %6021 = vmatpush1.bf16.msra.mxu0 %v1015
    %6022 = vmatprep.subr.bf16.mxu0 %v1032
    %6023 = vmatpush1.bf16.msra.mxu0 %v1031
    %6024 = vmatprep.subr.bf16.mxu0 %v1048
    %6025 = vmatpush1.bf16.msra.mxu0 %v1047
    %6026 = vmatprep.subr.bf16.mxu0 %v1064
    %6027 = vmatpush1.bf16.msra.mxu0 %v1063
    %6028 = vmatprep.subr.bf16.mxu0 %v1080
    %6029 = vmatpush1.bf16.msra.mxu0 %v1079
    %6030 = vmatprep.subr.bf16.mxu0 %v1096
    %6031 = vmatpush1.bf16.msra.mxu0 %v1095
    %6032 = vmatprep.subr.bf16.mxu0 %v1112
    %6033 = vmatpush1.bf16.msra.mxu0 %v1111
    %6034 = vmatprep.subr.bf16.mxu0 %v1128
    %6035 = vmatpush1.bf16.msra.mxu0 %v1127
    %6036 = vmatprep.mubr.bf16.mxu0 %v5591
    %6037 = vmatmul.mubr.bf16.gmra.mrb[0].mxu0 %v5590
    %v6038 = vpop.f32.mrb[0].mxu0
    %v6039 = vadd.f32 0.0, %v6038
    %v6040 = vpop.f32.mrb[0].mxu0
    %v6041 = vadd.f32 0.0, %v6040
    %v6042 = vpop.f32.mrb[0].mxu0
    %v6043 = vpop.f32.mrb[0].mxu0
    %6044 = vdwg.mxu0
    %6045 = vmatprep.subr.bf16.mxu0 %v1144
    %6046 = vmatpush1.bf16.msra.mxu0 %v1143
    %6047 = vmatprep.subr.bf16.mxu0 %v1160
    %6048 = vmatpush1.bf16.msra.mxu0 %v1159
    %6049 = vmatprep.subr.bf16.mxu0 %v1176
    %6050 = vmatpush1.bf16.msra.mxu0 %v1175
    %6051 = vmatprep.subr.bf16.mxu0 %v1192
    %6052 = vmatpush1.bf16.msra.mxu0 %v1191
    %6053 = vmatprep.subr.bf16.mxu0 %v1208
    %6054 = vmatpush1.bf16.msra.mxu0 %v1207
    %6055 = vmatprep.subr.bf16.mxu0 %v1224
    %6056 = vmatpush1.bf16.msra.mxu0 %v1223
    %6057 = vmatprep.subr.bf16.mxu0 %v1240
    %6058 = vmatpush1.bf16.msra.mxu0 %v1239
    %6059 = vmatprep.subr.bf16.mxu0 %v1256
    %6060 = vmatpush1.bf16.msra.mxu0 %v1255
    %6061 = vmatprep.subr.bf16.mxu0 %v1272
    %6062 = vmatpush1.bf16.msra.mxu0 %v1271
    %6063 = vmatprep.subr.bf16.mxu0 %v1288
    %6064 = vmatpush1.bf16.msra.mxu0 %v1287
    %6065 = vmatprep.subr.bf16.mxu0 %v1304
    %6066 = vmatpush1.bf16.msra.mxu0 %v1303
    %6067 = vmatprep.subr.bf16.mxu0 %v1320
    %6068 = vmatpush1.bf16.msra.mxu0 %v1319
    %6069 = vmatprep.subr.bf16.mxu0 %v1336
    %6070 = vmatpush1.bf16.msra.mxu0 %v1335
    %6071 = vmatprep.subr.bf16.mxu0 %v1352
    %6072 = vmatpush1.bf16.msra.mxu0 %v1351
    %6073 = vmatprep.subr.bf16.mxu0 %v1368
    %6074 = vmatpush1.bf16.msra.mxu0 %v1367
    %6075 = vmatprep.subr.bf16.mxu0 %v1384
    %6076 = vmatpush1.bf16.msra.mxu0 %v1383
    %6077 = vmatprep.mubr.bf16.mxu0 %v5593
    %6078 = vmatmul.mubr.bf16.gmra.mrb[0].mxu0 %v5592
    %v6079 = vpop.f32.mrb[0].mxu0
    %v6080 = vadd.f32 %v6039, %v6079
    %v6081 = vpop.f32.mrb[0].mxu0
    %v6082 = vadd.f32 %v6041, %v6081
    %v6083 = vpop.f32.mrb[0].mxu0
    %v6084 = vpop.f32.mrb[0].mxu0
    %6085 = vdwg.mxu0
    %6086 = vmatprep.subr.bf16.mxu0 %v890
    %6087 = vmatpush1.bf16.msra.mxu0 %v889
    %6088 = vmatprep.subr.bf16.mxu0 %v906
    %6089 = vmatpush1.bf16.msra.mxu0 %v905
    %6090 = vmatprep.subr.bf16.mxu0 %v922
    %6091 = vmatpush1.bf16.msra.mxu0 %v921
    %6092 = vmatprep.subr.bf16.mxu0 %v938
    %6093 = vmatpush1.bf16.msra.mxu0 %v937
    %6094 = vmatprep.subr.bf16.mxu0 %v954
    %6095 = vmatpush1.bf16.msra.mxu0 %v953
    %6096 = vmatprep.subr.bf16.mxu0 %v970
    %6097 = vmatpush1.bf16.msra.mxu0 %v969
    %6098 = vmatprep.subr.bf16.mxu0 %v986
    %6099 = vmatpush1.bf16.msra.mxu0 %v985
    %6100 = vmatprep.subr.bf16.mxu0 %v1002
    %6101 = vmatpush1.bf16.msra.mxu0 %v1001
    %6102 = vmatprep.subr.bf16.mxu0 %v1018
    %6103 = vmatpush1.bf16.msra.mxu0 %v1017
    %6104 = vmatprep.subr.bf16.mxu0 %v1034
    %6105 = vmatpush1.bf16.msra.mxu0 %v1033
    %6106 = vmatprep.subr.bf16.mxu0 %v1050
    %6107 = vmatpush1.bf16.msra.mxu0 %v1049
    %6108 = vmatprep.subr.bf16.mxu0 %v1066
    %6109 = vmatpush1.bf16.msra.mxu0 %v1065
    %6110 = vmatprep.subr.bf16.mxu0 %v1082
    %6111 = vmatpush1.bf16.msra.mxu0 %v1081
    %6112 = vmatprep.subr.bf16.mxu0 %v1098
    %6113 = vmatpush1.bf16.msra.mxu0 %v1097
    %6114 = vmatprep.subr.bf16.mxu0 %v1114
    %6115 = vmatpush1.bf16.msra.mxu0 %v1113
    %6116 = vmatprep.subr.bf16.mxu0 %v1130
    %6117 = vmatpush1.bf16.msra.mxu0 %v1129
    %6118 = vmatprep.mubr.bf16.mxu0 %v5591
    %6119 = vmatmul.mubr.bf16.gmra.mrb[0].mxu0 %v5590
    %v6120 = vpop.f32.mrb[0].mxu0
    %v6121 = vadd.f32 0.0, %v6120
    %v6122 = vpop.f32.mrb[0].mxu0
    %v6123 = vadd.f32 0.0, %v6122
    %v6124 = vpop.f32.mrb[0].mxu0
    %v6125 = vpop.f32.mrb[0].mxu0
    %6126 = vdwg.mxu0
    %6127 = vmatprep.subr.bf16.mxu0 %v1146
    %6128 = vmatpush1.bf16.msra.mxu0 %v1145
    %6129 = vmatprep.subr.bf16.mxu0 %v1162
    %6130 = vmatpush1.bf16.msra.mxu0 %v1161
    %6131 = vmatprep.subr.bf16.mxu0 %v1178
    %6132 = vmatpush1.bf16.msra.mxu0 %v1177
    %6133 = vmatprep.subr.bf16.mxu0 %v1194
    %6134 = vmatpush1.bf16.msra.mxu0 %v1193
    %6135 = vmatprep.subr.bf16.mxu0 %v1210
    %6136 = vmatpush1.bf16.msra.mxu0 %v1209
    %6137 = vmatprep.subr.bf16.mxu0 %v1226
    %6138 = vmatpush1.bf16.msra.mxu0 %v1225
    %6139 = vmatprep.subr.bf16.mxu0 %v1242
    %6140 = vmatpush1.bf16.msra.mxu0 %v1241
    %6141 = vmatprep.subr.bf16.mxu0 %v1258
    %6142 = vmatpush1.bf16.msra.mxu0 %v1257
    %6143 = vmatprep.subr.bf16.mxu0 %v1274
    %6144 = vmatpush1.bf16.msra.mxu0 %v1273
    %6145 = vmatprep.subr.bf16.mxu0 %v1290
    %6146 = vmatpush1.bf16.msra.mxu0 %v1289
    %6147 = vmatprep.subr.bf16.mxu0 %v1306
    %6148 = vmatpush1.bf16.msra.mxu0 %v1305
    %6149 = vmatprep.subr.bf16.mxu0 %v1322
    %6150 = vmatpush1.bf16.msra.mxu0 %v1321
    %6151 = vmatprep.subr.bf16.mxu0 %v1338
    %6152 = vmatpush1.bf16.msra.mxu0 %v1337
    %6153 = vmatprep.subr.bf16.mxu0 %v1354
    %6154 = vmatpush1.bf16.msra.mxu0 %v1353
    %6155 = vmatprep.subr.bf16.mxu0 %v1370
    %6156 = vmatpush1.bf16.msra.mxu0 %v1369
    %6157 = vmatprep.subr.bf16.mxu0 %v1386
    %6158 = vmatpush1.bf16.msra.mxu0 %v1385
    %6159 = vmatprep.mubr.bf16.mxu0 %v5593
    %6160 = vmatmul.mubr.bf16.gmra.mrb[0].mxu0 %v5592
    %v6161 = vpop.f32.mrb[0].mxu0
    %v6162 = vadd.f32 %v6121, %v6161
    %v6163 = vpop.f32.mrb[0].mxu0
    %v6164 = vadd.f32 %v6123, %v6163
    %v6165 = vpop.f32.mrb[0].mxu0
    %v6166 = vpop.f32.mrb[0].mxu0
    %6167 = vdwg.mxu0
    %6168 = vmatprep.subr.bf16.mxu0 %v892
    %6169 = vmatpush1.bf16.msra.mxu0 %v891
    %6170 = vmatprep.subr.bf16.mxu0 %v908
    %6171 = vmatpush1.bf16.msra.mxu0 %v907
    %6172 = vmatprep.subr.bf16.mxu0 %v924
    %6173 = vmatpush1.bf16.msra.mxu0 %v923
    %6174 = vmatprep.subr.bf16.mxu0 %v940
    %6175 = vmatpush1.bf16.msra.mxu0 %v939
    %6176 = vmatprep.subr.bf16.mxu0 %v956
    %6177 = vmatpush1.bf16.msra.mxu0 %v955
    %6178 = vmatprep.subr.bf16.mxu0 %v972
    %6179 = vmatpush1.bf16.msra.mxu0 %v971
    %6180 = vmatprep.subr.bf16.mxu0 %v988
    %6181 = vmatpush1.bf16.msra.mxu0 %v987
    %6182 = vmatprep.subr.bf16.mxu0 %v1004
    %6183 = vmatpush1.bf16.msra.mxu0 %v1003
    %6184 = vmatprep.subr.bf16.mxu0 %v1020
    %6185 = vmatpush1.bf16.msra.mxu0 %v1019
    %6186 = vmatprep.subr.bf16.mxu0 %v1036
    %6187 = vmatpush1.bf16.msra.mxu0 %v1035
    %6188 = vmatprep.subr.bf16.mxu0 %v1052
    %6189 = vmatpush1.bf16.msra.mxu0 %v1051
    %6190 = vmatprep.subr.bf16.mxu0 %v1068
    %6191 = vmatpush1.bf16.msra.mxu0 %v1067
    %6192 = vmatprep.subr.bf16.mxu0 %v1084
    %6193 = vmatpush1.bf16.msra.mxu0 %v1083
    %6194 = vmatprep.subr.bf16.mxu0 %v1100
    %6195 = vmatpush1.bf16.msra.mxu0 %v1099
    %6196 = vmatprep.subr.bf16.mxu0 %v1116
    %6197 = vmatpush1.bf16.msra.mxu0 %v1115
    %6198 = vmatprep.subr.bf16.mxu0 %v1132
    %6199 = vmatpush1.bf16.msra.mxu0 %v1131
    %6200 = vmatprep.mubr.bf16.mxu0 %v5591
    %6201 = vmatmul.mubr.bf16.gmra.mrb[0].mxu0 %v5590
    %v6202 = vpop.f32.mrb[0].mxu0
    %v6203 = vadd.f32 0.0, %v6202
    %v6204 = vpop.f32.mrb[0].mxu0
    %v6205 = vadd.f32 0.0, %v6204
    %v6206 = vpop.f32.mrb[0].mxu0
    %v6207 = vpop.f32.mrb[0].mxu0
    %6208 = vdwg.mxu0
    %6209 = vmatprep.subr.bf16.mxu0 %v1148
    %6210 = vmatpush1.bf16.msra.mxu0 %v1147
    %6211 = vmatprep.subr.bf16.mxu0 %v1164
    %6212 = vmatpush1.bf16.msra.mxu0 %v1163
    %6213 = vmatprep.subr.bf16.mxu0 %v1180
    %6214 = vmatpush1.bf16.msra.mxu0 %v1179
    %6215 = vmatprep.subr.bf16.mxu0 %v1196
    %6216 = vmatpush1.bf16.msra.mxu0 %v1195
    %6217 = vmatprep.subr.bf16.mxu0 %v1212
    %6218 = vmatpush1.bf16.msra.mxu0 %v1211
    %6219 = vmatprep.subr.bf16.mxu0 %v1228
    %6220 = vmatpush1.bf16.msra.mxu0 %v1227
    %6221 = vmatprep.subr.bf16.mxu0 %v1244
    %6222 = vmatpush1.bf16.msra.mxu0 %v1243
    %6223 = vmatprep.subr.bf16.mxu0 %v1260
    %6224 = vmatpush1.bf16.msra.mxu0 %v1259
    %6225 = vmatprep.subr.bf16.mxu0 %v1276
    %6226 = vmatpush1.bf16.msra.mxu0 %v1275
    %6227 = vmatprep.subr.bf16.mxu0 %v1292
    %6228 = vmatpush1.bf16.msra.mxu0 %v1291
    %6229 = vmatprep.subr.bf16.mxu0 %v1308
    %6230 = vmatpush1.bf16.msra.mxu0 %v1307
    %6231 = vmatprep.subr.bf16.mxu0 %v1324
    %6232 = vmatpush1.bf16.msra.mxu0 %v1323
    %6233 = vmatprep.subr.bf16.mxu0 %v1340
    %6234 = vmatpush1.bf16.msra.mxu0 %v1339
    %6235 = vmatprep.subr.bf16.mxu0 %v1356
    %6236 = vmatpush1.bf16.msra.mxu0 %v1355
    %6237 = vmatprep.subr.bf16.mxu0 %v1372
    %6238 = vmatpush1.bf16.msra.mxu0 %v1371
    %6239 = vmatprep.subr.bf16.mxu0 %v1388
    %6240 = vmatpush1.bf16.msra.mxu0 %v1387
    %6241 = vmatprep.mubr.bf16.mxu0 %v5593
    %6242 = vmatmul.mubr.bf16.gmra.mrb[0].mxu0 %v5592
    %v6243 = vpop.f32.mrb[0].mxu0
    %v6244 = vadd.f32 %v6203, %v6243
    %v6245 = vpop.f32.mrb[0].mxu0
    %v6246 = vadd.f32 %v6205, %v6245
    %v6247 = vpop.f32.mrb[0].mxu0
    %v6248 = vpop.f32.mrb[0].mxu0
    %6249 = vdwg.mxu0
    %v6266 = vcombine.low %v5670, %v5672
    %v6267 = vcombine.low %v5752, %v5754
    %v6268 = vcombine.low %v5834, %v5836
    %v6269 = vcombine.low %v5916, %v5918
    %v6271 = vunpack.c.l.s4 1966171168
    %v6272 = vunpack.c.0.s8 %v6271
    %v6273 = vlaneseq
    %v6274 = vshrl.u32 %v6273, 7
    %v6275 = vsub.s32 %v6272, %v6274
    %v6276 = vrot.slane %v6266, %v6275
    %v6278 = vunpack.c.l.s4 1966171168
    %v6279 = vunpack.c.0.s8 %v6278
    %v6280 = vlaneseq
    %v6281 = vshrl.u32 %v6280, 7
    %v6282 = vsub.s32 %v6279, %v6281
    %v6283 = vrot.slane %v6267, %v6282
    %v6285 = vunpack.c.l.s4 1966171168
    %v6286 = vunpack.c.0.s8 %v6285
    %v6287 = vlaneseq
    %v6288 = vshrl.u32 %v6287, 7
    %v6289 = vsub.s32 %v6286, %v6288
    %v6290 = vrot.slane %v6268, %v6289
    %v6292 = vunpack.c.l.s4 1966171168
    %v6293 = vunpack.c.0.s8 %v6292
    %v6294 = vlaneseq
    %v6295 = vshrl.u32 %v6294, 7
    %v6296 = vsub.s32 %v6293, %v6295
    %v6297 = vrot.slane %v6269, %v6296
    %v6298 = vcombine.low %v6276, %v6283
    %v6299 = vcombine.low %v6290, %v6297
    %v6301 = vunpack.c.l.s4 1966171168
    %v6302 = vunpack.c.0.s8 %v6301
    %v6303 = vlaneseq
    %v6304 = vshrl.u32 %v6303, 7
    %v6305 = vsub.s32 %v6302, %v6304
    %v6306 = vrot.slane %v6298, %v6305
    %v6308 = vunpack.c.l.s4 1966171168
    %v6309 = vunpack.c.0.s8 %v6308
    %v6310 = vlaneseq
    %v6311 = vshrl.u32 %v6310, 7
    %v6312 = vsub.s32 %v6309, %v6311
    %v6313 = vrot.slane %v6299, %v6312
    %v6314 = vcombine.low %v6306, %v6313
    %v6315 = vcombine.low %v5998, %v6000
    %v6316 = vcombine.low %v6080, %v6082
    %v6317 = vcombine.low %v6162, %v6164
    %v6318 = vcombine.low %v6244, %v6246
    %v6320 = vunpack.c.l.s4 1966171168
    %v6321 = vunpack.c.0.s8 %v6320
    %v6322 = vlaneseq
    %v6323 = vshrl.u32 %v6322, 7
    %v6324 = vsub.s32 %v6321, %v6323
    %v6325 = vrot.slane %v6315, %v6324
    %v6327 = vunpack.c.l.s4 1966171168
    %v6328 = vunpack.c.0.s8 %v6327
    %v6329 = vlaneseq
    %v6330 = vshrl.u32 %v6329, 7
    %v6331 = vsub.s32 %v6328, %v6330
    %v6332 = vrot.slane %v6316, %v6331
    %v6334 = vunpack.c.l.s4 1966171168
    %v6335 = vunpack.c.0.s8 %v6334
    %v6336 = vlaneseq
    %v6337 = vshrl.u32 %v6336, 7
    %v6338 = vsub.s32 %v6335, %v6337
    %v6339 = vrot.slane %v6317, %v6338
    %v6341 = vunpack.c.l.s4 1966171168
    %v6342 = vunpack.c.0.s8 %v6341
    %v6343 = vlaneseq
    %v6344 = vshrl.u32 %v6343, 7
    %v6345 = vsub.s32 %v6342, %v6344
    %v6346 = vrot.slane %v6318, %v6345
    %v6347 = vcombine.low %v6325, %v6332
    %v6348 = vcombine.low %v6339, %v6346
    %v6350 = vunpack.c.l.s4 1966171168
    %v6351 = vunpack.c.0.s8 %v6350
    %v6352 = vlaneseq
    %v6353 = vshrl.u32 %v6352, 7
    %v6354 = vsub.s32 %v6351, %v6353
    %v6355 = vrot.slane %v6347, %v6354
    %v6357 = vunpack.c.l.s4 1966171168
    %v6358 = vunpack.c.0.s8 %v6357
    %v6359 = vlaneseq
    %v6360 = vshrl.u32 %v6359, 7
    %v6361 = vsub.s32 %v6358, %v6360
    %v6362 = vrot.slane %v6348, %v6361
    %v6363 = vcombine.low %v6355, %v6362
    %v6366 = vadd.f32 %v5565, %v6314
    %v6367 = vadd.f32 %v5569, %v6363
    %v6368 = vxor.u32 %v6366, 2147483648
    %v6369 = vxor.u32 %v6367, 2147483648
    %v6370 = vmul.f32 %v6368, 1.442695
    %v6371 = vpow.pop %v6370
    %v6372 = vmul.f32 %v6369, 1.442695
    %v6373 = vpow.pop %v6372
    %v6374 = vadd.f32 %v6371, 1.0
    %v6375 = vadd.f32 %v6373, 1.0
    %v6376 = vrcp.pop %v6374
    %v6377 = vmul.f32 1.0, %v6376
    %v6378 = vrcp.pop %v6375
    %v6379 = vmul.f32 1.0, %v6378
    %v6381 = vrot.slane %v6367, 4
    %v6383 = vtanh.pop %v6381
    %v6385 = vrot.slane %v6377, 4
    %v6387 = vmul.f32 %v6385, %v5550
    %v6388 = vmul.f32 %v6377, %v6383
    %v6389 = vadd.f32 %v6387, %v6388
    %v6390 = vtanh.pop %v6389
    %v6391 = vmul.f32 %v6379, %v6390
    %s6392 = scalar_lea.vmem [#allocation5], 5
    %6393 = vst.msk [vmem:[%s6392] ss:$8 sm:$0x3] %vm2197, %v6391
    %6394 = vst.msk [vmem:[%s6392] ss:$8 sm:$0x0] %vm2197, %v6391
    %v6396 = vrot.slane %v6391, 2
    %s6398 = scalar_lea.vmem [#allocation5], 18
    %6399 = vst.msk [vmem:[%s6398] ss:$8 sm:$0x3] %vm2197, %v6396
    %6400 = vst.msk [vmem:[%s6398] ss:$8 sm:$0x0] %vm2197, %v6396
    %s6401 = scalar_lea.vmem [#allocation4], 6
    %v6402 = vld [vmem:[%s6401] ss:$8 sm:$0xf]
    %v6403 = vld [vmem:[%s6401] ss:$8 sm:$0xf0]
    %v6404 = vor.u32 %v6402, %v6403
    %s6405 = scalar_lea.vmem [#allocation4], 70
    %v6406 = vld [vmem:[%s6405] ss:$8 sm:$0xf]
    %v6407 = vld [vmem:[%s6405] ss:$8 sm:$0xf0]
    %v6408 = vor.u32 %v6406, %v6407
    %v6409 = vlaneseq
    %v6410 = vshrl.u32 %v6409, 7
    %v6411 = vsub.s32 0, %v6410
    %v6412 = vrot.slane %v6391, %v6411
    %v6413 = vlaneseq
    %v6414 = vshrl.u32 %v6413, 7
    %v6415 = vsub.s32 1, %v6414
    %v6416 = vrot.slane %v6391, %v6415
    %v6417 = vlaneseq
    %v6418 = vshrl.u32 %v6417, 7
    %v6419 = vsub.s32 2, %v6418
    %v6420 = vrot.slane %v6391, %v6419
    %v6421 = vlaneseq
    %v6422 = vshrl.u32 %v6421, 7
    %v6423 = vsub.s32 3, %v6422
    %v6424 = vrot.slane %v6391, %v6423
    %v6429 = vpack.c.bf16 %v6412, %v6412
    %v6430 = vpack.c.bf16 %v6416, %v6416
    %v6431 = vpack.c.bf16 %v6420, %v6420
    %v6432 = vpack.c.bf16 %v6424, %v6424
    %6433 = vmatprep.subr.bf16.mxu0 %v878
    %6434 = vmatpush1.bf16.msra.mxu0 %v877
    %6435 = vmatprep.subr.bf16.mxu0 %v894
    %6436 = vmatpush1.bf16.msra.mxu0 %v893
    %6437 = vmatprep.subr.bf16.mxu0 %v910
    %6438 = vmatpush1.bf16.msra.mxu0 %v909
    %6439 = vmatprep.subr.bf16.mxu0 %v926
    %6440 = vmatpush1.bf16.msra.mxu0 %v925
    %6441 = vmatprep.subr.bf16.mxu0 %v942
    %6442 = vmatpush1.bf16.msra.mxu0 %v941
    %6443 = vmatprep.subr.bf16.mxu0 %v958
    %6444 = vmatpush1.bf16.msra.mxu0 %v957
    %6445 = vmatprep.subr.bf16.mxu0 %v974
    %6446 = vmatpush1.bf16.msra.mxu0 %v973
    %6447 = vmatprep.subr.bf16.mxu0 %v990
    %6448 = vmatpush1.bf16.msra.mxu0 %v989
    %6449 = vmatprep.subr.bf16.mxu0 %v1006
    %6450 = vmatpush1.bf16.msra.mxu0 %v1005
    %6451 = vmatprep.subr.bf16.mxu0 %v1022
    %6452 = vmatpush1.bf16.msra.mxu0 %v1021
    %6453 = vmatprep.subr.bf16.mxu0 %v1038
    %6454 = vmatpush1.bf16.msra.mxu0 %v1037
    %6455 = vmatprep.subr.bf16.mxu0 %v1054
    %6456 = vmatpush1.bf16.msra.mxu0 %v1053
    %6457 = vmatprep.subr.bf16.mxu0 %v1070
    %6458 = vmatpush1.bf16.msra.mxu0 %v1069
    %6459 = vmatprep.subr.bf16.mxu0 %v1086
    %6460 = vmatpush1.bf16.msra.mxu0 %v1085
    %6461 = vmatprep.subr.bf16.mxu0 %v1102
    %6462 = vmatpush1.bf16.msra.mxu0 %v1101
    %6463 = vmatprep.subr.bf16.mxu0 %v1118
    %6464 = vmatpush1.bf16.msra.mxu0 %v1117
    %6465 = vmatprep.mubr.bf16.mxu0 %v6430
    %6466 = vmatmul.mubr.bf16.gmra.mrb[0].mxu0 %v6429
    %v6467 = vpop.f32.mrb[0].mxu0
    %v6468 = vadd.f32 0.0, %v6467
    %v6469 = vpop.f32.mrb[0].mxu0
    %v6470 = vadd.f32 0.0, %v6469
    %v6471 = vpop.f32.mrb[0].mxu0
    %v6472 = vpop.f32.mrb[0].mxu0
    %6473 = vdwg.mxu0
    %6474 = vmatprep.subr.bf16.mxu0 %v1134
    %6475 = vmatpush1.bf16.msra.mxu0 %v1133
    %6476 = vmatprep.subr.bf16.mxu0 %v1150
    %6477 = vmatpush1.bf16.msra.mxu0 %v1149
    %6478 = vmatprep.subr.bf16.mxu0 %v1166
    %6479 = vmatpush1.bf16.msra.mxu0 %v1165
    %6480 = vmatprep.subr.bf16.mxu0 %v1182
    %6481 = vmatpush1.bf16.msra.mxu0 %v1181
    %6482 = vmatprep.subr.bf16.mxu0 %v1198
    %6483 = vmatpush1.bf16.msra.mxu0 %v1197
    %6484 = vmatprep.subr.bf16.mxu0 %v1214
    %6485 = vmatpush1.bf16.msra.mxu0 %v1213
    %6486 = vmatprep.subr.bf16.mxu0 %v1230
    %6487 = vmatpush1.bf16.msra.mxu0 %v1229
    %6488 = vmatprep.subr.bf16.mxu0 %v1246
    %6489 = vmatpush1.bf16.msra.mxu0 %v1245
    %6490 = vmatprep.subr.bf16.mxu0 %v1262
    %6491 = vmatpush1.bf16.msra.mxu0 %v1261
    %6492 = vmatprep.subr.bf16.mxu0 %v1278
    %6493 = vmatpush1.bf16.msra.mxu0 %v1277
    %6494 = vmatprep.subr.bf16.mxu0 %v1294
    %6495 = vmatpush1.bf16.msra.mxu0 %v1293
    %6496 = vmatprep.subr.bf16.mxu0 %v1310
    %6497 = vmatpush1.bf16.msra.mxu0 %v1309
    %6498 = vmatprep.subr.bf16.mxu0 %v1326
    %6499 = vmatpush1.bf16.msra.mxu0 %v1325
    %6500 = vmatprep.subr.bf16.mxu0 %v1342
    %6501 = vmatpush1.bf16.msra.mxu0 %v1341
    %6502 = vmatprep.subr.bf16.mxu0 %v1358
    %6503 = vmatpush1.bf16.msra.mxu0 %v1357
    %6504 = vmatprep.subr.bf16.mxu0 %v1374
    %6505 = vmatpush1.bf16.msra.mxu0 %v1373
    %6506 = vmatprep.mubr.bf16.mxu0 %v6432
    %6507 = vmatmul.mubr.bf16.gmra.mrb[0].mxu0 %v6431
    %v6508 = vpop.f32.mrb[0].mxu0
    %v6509 = vadd.f32 %v6468, %v6508
    %v6510 = vpop.f32.mrb[0].mxu0
    %v6511 = vadd.f32 %v6470, %v6510
    %v6512 = vpop.f32.mrb[0].mxu0
    %v6513 = vpop.f32.mrb[0].mxu0
    %6514 = vdwg.mxu0
    %6515 = vmatprep.subr.bf16.mxu0 %v880
    %6516 = vmatpush1.bf16.msra.mxu0 %v879
    %6517 = vmatprep.subr.bf16.mxu0 %v896
    %6518 = vmatpush1.bf16.msra.mxu0 %v895
    %6519 = vmatprep.subr.bf16.mxu0 %v912
    %6520 = vmatpush1.bf16.msra.mxu0 %v911
    %6521 = vmatprep.subr.bf16.mxu0 %v928
    %6522 = vmatpush1.bf16.msra.mxu0 %v927
    %6523 = vmatprep.subr.bf16.mxu0 %v944
    %6524 = vmatpush1.bf16.msra.mxu0 %v943
    %6525 = vmatprep.subr.bf16.mxu0 %v960
    %6526 = vmatpush1.bf16.msra.mxu0 %v959
    %6527 = vmatprep.subr.bf16.mxu0 %v976
    %6528 = vmatpush1.bf16.msra.mxu0 %v975
    %6529 = vmatprep.subr.bf16.mxu0 %v992
    %6530 = vmatpush1.bf16.msra.mxu0 %v991
    %6531 = vmatprep.subr.bf16.mxu0 %v1008
    %6532 = vmatpush1.bf16.msra.mxu0 %v1007
    %6533 = vmatprep.subr.bf16.mxu0 %v1024
    %6534 = vmatpush1.bf16.msra.mxu0 %v1023
    %6535 = vmatprep.subr.bf16.mxu0 %v1040
    %6536 = vmatpush1.bf16.msra.mxu0 %v1039
    %6537 = vmatprep.subr.bf16.mxu0 %v1056
    %6538 = vmatpush1.bf16.msra.mxu0 %v1055
    %6539 = vmatprep.subr.bf16.mxu0 %v1072
    %6540 = vmatpush1.bf16.msra.mxu0 %v1071
    %6541 = vmatprep.subr.bf16.mxu0 %v1088
    %6542 = vmatpush1.bf16.msra.mxu0 %v1087
    %6543 = vmatprep.subr.bf16.mxu0 %v1104
    %6544 = vmatpush1.bf16.msra.mxu0 %v1103
    %6545 = vmatprep.subr.bf16.mxu0 %v1120
    %6546 = vmatpush1.bf16.msra.mxu0 %v1119
    %6547 = vmatprep.mubr.bf16.mxu0 %v6430
    %6548 = vmatmul.mubr.bf16.gmra.mrb[0].mxu0 %v6429
    %v6549 = vpop.f32.mrb[0].mxu0
    %v6550 = vadd.f32 0.0, %v6549
    %v6551 = vpop.f32.mrb[0].mxu0
    %v6552 = vadd.f32 0.0, %v6551
    %v6553 = vpop.f32.mrb[0].mxu0
    %v6554 = vpop.f32.mrb[0].mxu0
    %6555 = vdwg.mxu0
    %6556 = vmatprep.subr.bf16.mxu0 %v1136
    %6557 = vmatpush1.bf16.msra.mxu0 %v1135
    %6558 = vmatprep.subr.bf16.mxu0 %v1152
    %6559 = vmatpush1.bf16.msra.mxu0 %v1151
    %6560 = vmatprep.subr.bf16.mxu0 %v1168
    %6561 = vmatpush1.bf16.msra.mxu0 %v1167
    %6562 = vmatprep.subr.bf16.mxu0 %v1184
    %6563 = vmatpush1.bf16.msra.mxu0 %v1183
    %6564 = vmatprep.subr.bf16.mxu0 %v1200
    %6565 = vmatpush1.bf16.msra.mxu0 %v1199
    %6566 = vmatprep.subr.bf16.mxu0 %v1216
    %6567 = vmatpush1.bf16.msra.mxu0 %v1215
    %6568 = vmatprep.subr.bf16.mxu0 %v1232
    %6569 = vmatpush1.bf16.msra.mxu0 %v1231
    %6570 = vmatprep.subr.bf16.mxu0 %v1248
    %6571 = vmatpush1.bf16.msra.mxu0 %v1247
    %6572 = vmatprep.subr.bf16.mxu0 %v1264
    %6573 = vmatpush1.bf16.msra.mxu0 %v1263
    %6574 = vmatprep.subr.bf16.mxu0 %v1280
    %6575 = vmatpush1.bf16.msra.mxu0 %v1279
    %6576 = vmatprep.subr.bf16.mxu0 %v1296
    %6577 = vmatpush1.bf16.msra.mxu0 %v1295
    %6578 = vmatprep.subr.bf16.mxu0 %v1312
    %6579 = vmatpush1.bf16.msra.mxu0 %v1311
    %6580 = vmatprep.subr.bf16.mxu0 %v1328
    %6581 = vmatpush1.bf16.msra.mxu0 %v1327
    %6582 = vmatprep.subr.bf16.mxu0 %v1344
    %6583 = vmatpush1.bf16.msra.mxu0 %v1343
    %6584 = vmatprep.subr.bf16.mxu0 %v1360
    %6585 = vmatpush1.bf16.msra.mxu0 %v1359
    %6586 = vmatprep.subr.bf16.mxu0 %v1376
    %6587 = vmatpush1.bf16.msra.mxu0 %v1375
    %6588 = vmatprep.mubr.bf16.mxu0 %v6432
    %6589 = vmatmul.mubr.bf16.gmra.mrb[0].mxu0 %v6431
    %v6590 = vpop.f32.mrb[0].mxu0
    %v6591 = vadd.f32 %v6550, %v6590
    %v6592 = vpop.f32.mrb[0].mxu0
    %v6593 = vadd.f32 %v6552, %v6592
    %v6594 = vpop.f32.mrb[0].mxu0
    %v6595 = vpop.f32.mrb[0].mxu0
    %6596 = vdwg.mxu0
    %6597 = vmatprep.subr.bf16.mxu0 %v882
    %6598 = vmatpush1.bf16.msra.mxu0 %v881
    %6599 = vmatprep.subr.bf16.mxu0 %v898
    %6600 = vmatpush1.bf16.msra.mxu0 %v897
    %6601 = vmatprep.subr.bf16.mxu0 %v914
    %6602 = vmatpush1.bf16.msra.mxu0 %v913
    %6603 = vmatprep.subr.bf16.mxu0 %v930
    %6604 = vmatpush1.bf16.msra.mxu0 %v929
    %6605 = vmatprep.subr.bf16.mxu0 %v946
    %6606 = vmatpush1.bf16.msra.mxu0 %v945
    %6607 = vmatprep.subr.bf16.mxu0 %v962
    %6608 = vmatpush1.bf16.msra.mxu0 %v961
    %6609 = vmatprep.subr.bf16.mxu0 %v978
    %6610 = vmatpush1.bf16.msra.mxu0 %v977
    %6611 = vmatprep.subr.bf16.mxu0 %v994
    %6612 = vmatpush1.bf16.msra.mxu0 %v993
    %6613 = vmatprep.subr.bf16.mxu0 %v1010
    %6614 = vmatpush1.bf16.msra.mxu0 %v1009
    %6615 = vmatprep.subr.bf16.mxu0 %v1026
    %6616 = vmatpush1.bf16.msra.mxu0 %v1025
    %6617 = vmatprep.subr.bf16.mxu0 %v1042
    %6618 = vmatpush1.bf16.msra.mxu0 %v1041
    %6619 = vmatprep.subr.bf16.mxu0 %v1058
    %6620 = vmatpush1.bf16.msra.mxu0 %v1057
    %6621 = vmatprep.subr.bf16.mxu0 %v1074
    %6622 = vmatpush1.bf16.msra.mxu0 %v1073
    %6623 = vmatprep.subr.bf16.mxu0 %v1090
    %6624 = vmatpush1.bf16.msra.mxu0 %v1089
    %6625 = vmatprep.subr.bf16.mxu0 %v1106
    %6626 = vmatpush1.bf16.msra.mxu0 %v1105
    %6627 = vmatprep.subr.bf16.mxu0 %v1122
    %6628 = vmatpush1.bf16.msra.mxu0 %v1121
    %6629 = vmatprep.mubr.bf16.mxu0 %v6430
    %6630 = vmatmul.mubr.bf16.gmra.mrb[0].mxu0 %v6429
    %v6631 = vpop.f32.mrb[0].mxu0
    %v6632 = vadd.f32 0.0, %v6631
    %v6633 = vpop.f32.mrb[0].mxu0
    %v6634 = vadd.f32 0.0, %v6633
    %v6635 = vpop.f32.mrb[0].mxu0
    %v6636 = vpop.f32.mrb[0].mxu0
    %6637 = vdwg.mxu0
    %6638 = vmatprep.subr.bf16.mxu0 %v1138
    %6639 = vmatpush1.bf16.msra.mxu0 %v1137
    %6640 = vmatprep.subr.bf16.mxu0 %v1154
    %6641 = vmatpush1.bf16.msra.mxu0 %v1153
    %6642 = vmatprep.subr.bf16.mxu0 %v1170
    %6643 = vmatpush1.bf16.msra.mxu0 %v1169
    %6644 = vmatprep.subr.bf16.mxu0 %v1186
    %6645 = vmatpush1.bf16.msra.mxu0 %v1185
    %6646 = vmatprep.subr.bf16.mxu0 %v1202
    %6647 = vmatpush1.bf16.msra.mxu0 %v1201
    %6648 = vmatprep.subr.bf16.mxu0 %v1218
    %6649 = vmatpush1.bf16.msra.mxu0 %v1217
    %6650 = vmatprep.subr.bf16.mxu0 %v1234
    %6651 = vmatpush1.bf16.msra.mxu0 %v1233
    %6652 = vmatprep.subr.bf16.mxu0 %v1250
    %6653 = vmatpush1.bf16.msra.mxu0 %v1249
    %6654 = vmatprep.subr.bf16.mxu0 %v1266
    %6655 = vmatpush1.bf16.msra.mxu0 %v1265
    %6656 = vmatprep.subr.bf16.mxu0 %v1282
    %6657 = vmatpush1.bf16.msra.mxu0 %v1281
    %6658 = vmatprep.subr.bf16.mxu0 %v1298
    %6659 = vmatpush1.bf16.msra.mxu0 %v1297
    %6660 = vmatprep.subr.bf16.mxu0 %v1314
    %6661 = vmatpush1.bf16.msra.mxu0 %v1313
    %6662 = vmatprep.subr.bf16.mxu0 %v1330
    %6663 = vmatpush1.bf16.msra.mxu0 %v1329
    %6664 = vmatprep.subr.bf16.mxu0 %v1346
    %6665 = vmatpush1.bf16.msra.mxu0 %v1345
    %6666 = vmatprep.subr.bf16.mxu0 %v1362
    %6667 = vmatpush1.bf16.msra.mxu0 %v1361
    %6668 = vmatprep.subr.bf16.mxu0 %v1378
    %6669 = vmatpush1.bf16.msra.mxu0 %v1377
    %6670 = vmatprep.mubr.bf16.mxu0 %v6432
    %6671 = vmatmul.mubr.bf16.gmra.mrb[0].mxu0 %v6431
    %v6672 = vpop.f32.mrb[0].mxu0
    %v6673 = vadd.f32 %v6632, %v6672
    %v6674 = vpop.f32.mrb[0].mxu0
    %v6675 = vadd.f32 %v6634, %v6674
    %v6676 = vpop.f32.mrb[0].mxu0
    %v6677 = vpop.f32.mrb[0].mxu0
    %6678 = vdwg.mxu0
    %6679 = vmatprep.subr.bf16.mxu0 %v884
    %6680 = vmatpush1.bf16.msra.mxu0 %v883
    %6681 = vmatprep.subr.bf16.mxu0 %v900
    %6682 = vmatpush1.bf16.msra.mxu0 %v899
    %6683 = vmatprep.subr.bf16.mxu0 %v916
    %6684 = vmatpush1.bf16.msra.mxu0 %v915
    %6685 = vmatprep.subr.bf16.mxu0 %v932
    %6686 = vmatpush1.bf16.msra.mxu0 %v931
    %6687 = vmatprep.subr.bf16.mxu0 %v948
    %6688 = vmatpush1.bf16.msra.mxu0 %v947
    %6689 = vmatprep.subr.bf16.mxu0 %v964
    %6690 = vmatpush1.bf16.msra.mxu0 %v963
    %6691 = vmatprep.subr.bf16.mxu0 %v980
    %6692 = vmatpush1.bf16.msra.mxu0 %v979
    %6693 = vmatprep.subr.bf16.mxu0 %v996
    %6694 = vmatpush1.bf16.msra.mxu0 %v995
    %6695 = vmatprep.subr.bf16.mxu0 %v1012
    %6696 = vmatpush1.bf16.msra.mxu0 %v1011
    %6697 = vmatprep.subr.bf16.mxu0 %v1028
    %6698 = vmatpush1.bf16.msra.mxu0 %v1027
    %6699 = vmatprep.subr.bf16.mxu0 %v1044
    %6700 = vmatpush1.bf16.msra.mxu0 %v1043
    %6701 = vmatprep.subr.bf16.mxu0 %v1060
    %6702 = vmatpush1.bf16.msra.mxu0 %v1059
    %6703 = vmatprep.subr.bf16.mxu0 %v1076
    %6704 = vmatpush1.bf16.msra.mxu0 %v1075
    %6705 = vmatprep.subr.bf16.mxu0 %v1092
    %6706 = vmatpush1.bf16.msra.mxu0 %v1091
    %6707 = vmatprep.subr.bf16.mxu0 %v1108
    %6708 = vmatpush1.bf16.msra.mxu0 %v1107
    %6709 = vmatprep.subr.bf16.mxu0 %v1124
    %6710 = vmatpush1.bf16.msra.mxu0 %v1123
    %6711 = vmatprep.mubr.bf16.mxu0 %v6430
    %6712 = vmatmul.mubr.bf16.gmra.mrb[0].mxu0 %v6429
    %v6713 = vpop.f32.mrb[0].mxu0
    %v6714 = vadd.f32 0.0, %v6713
    %v6715 = vpop.f32.mrb[0].mxu0
    %v6716 = vadd.f32 0.0, %v6715
    %v6717 = vpop.f32.mrb[0].mxu0
    %v6718 = vpop.f32.mrb[0].mxu0
    %6719 = vdwg.mxu0
    %6720 = vmatprep.subr.bf16.mxu0 %v1140
    %6721 = vmatpush1.bf16.msra.mxu0 %v1139
    %6722 = vmatprep.subr.bf16.mxu0 %v1156
    %6723 = vmatpush1.bf16.msra.mxu0 %v1155
    %6724 = vmatprep.subr.bf16.mxu0 %v1172
    %6725 = vmatpush1.bf16.msra.mxu0 %v1171
    %6726 = vmatprep.subr.bf16.mxu0 %v1188
    %6727 = vmatpush1.bf16.msra.mxu0 %v1187
    %6728 = vmatprep.subr.bf16.mxu0 %v1204
    %6729 = vmatpush1.bf16.msra.mxu0 %v1203
    %6730 = vmatprep.subr.bf16.mxu0 %v1220
    %6731 = vmatpush1.bf16.msra.mxu0 %v1219
    %6732 = vmatprep.subr.bf16.mxu0 %v1236
    %6733 = vmatpush1.bf16.msra.mxu0 %v1235
    %6734 = vmatprep.subr.bf16.mxu0 %v1252
    %6735 = vmatpush1.bf16.msra.mxu0 %v1251
    %6736 = vmatprep.subr.bf16.mxu0 %v1268
    %6737 = vmatpush1.bf16.msra.mxu0 %v1267
    %6738 = vmatprep.subr.bf16.mxu0 %v1284
    %6739 = vmatpush1.bf16.msra.mxu0 %v1283
    %6740 = vmatprep.subr.bf16.mxu0 %v1300
    %6741 = vmatpush1.bf16.msra.mxu0 %v1299
    %6742 = vmatprep.subr.bf16.mxu0 %v1316
    %6743 = vmatpush1.bf16.msra.mxu0 %v1315
    %6744 = vmatprep.subr.bf16.mxu0 %v1332
    %6745 = vmatpush1.bf16.msra.mxu0 %v1331
    %6746 = vmatprep.subr.bf16.mxu0 %v1348
    %6747 = vmatpush1.bf16.msra.mxu0 %v1347
    %6748 = vmatprep.subr.bf16.mxu0 %v1364
    %6749 = vmatpush1.bf16.msra.mxu0 %v1363
    %6750 = vmatprep.subr.bf16.mxu0 %v1380
    %6751 = vmatpush1.bf16.msra.mxu0 %v1379
    %6752 = vmatprep.mubr.bf16.mxu0 %v6432
    %6753 = vmatmul.mubr.bf16.gmra.mrb[0].mxu0 %v6431
    %v6754 = vpop.f32.mrb[0].mxu0
    %v6755 = vadd.f32 %v6714, %v6754
    %v6756 = vpop.f32.mrb[0].mxu0
    %v6757 = vadd.f32 %v6716, %v6756
    %v6758 = vpop.f32.mrb[0].mxu0
    %v6759 = vpop.f32.mrb[0].mxu0
    %6760 = vdwg.mxu0
    %6761 = vmatprep.subr.bf16.mxu0 %v886
    %6762 = vmatpush1.bf16.msra.mxu0 %v885
    %6763 = vmatprep.subr.bf16.mxu0 %v902
    %6764 = vmatpush1.bf16.msra.mxu0 %v901
    %6765 = vmatprep.subr.bf16.mxu0 %v918
    %6766 = vmatpush1.bf16.msra.mxu0 %v917
    %6767 = vmatprep.subr.bf16.mxu0 %v934
    %6768 = vmatpush1.bf16.msra.mxu0 %v933
    %6769 = vmatprep.subr.bf16.mxu0 %v950
    %6770 = vmatpush1.bf16.msra.mxu0 %v949
    %6771 = vmatprep.subr.bf16.mxu0 %v966
    %6772 = vmatpush1.bf16.msra.mxu0 %v965
    %6773 = vmatprep.subr.bf16.mxu0 %v982
    %6774 = vmatpush1.bf16.msra.mxu0 %v981
    %6775 = vmatprep.subr.bf16.mxu0 %v998
    %6776 = vmatpush1.bf16.msra.mxu0 %v997
    %6777 = vmatprep.subr.bf16.mxu0 %v1014
    %6778 = vmatpush1.bf16.msra.mxu0 %v1013
    %6779 = vmatprep.subr.bf16.mxu0 %v1030
    %6780 = vmatpush1.bf16.msra.mxu0 %v1029
    %6781 = vmatprep.subr.bf16.mxu0 %v1046
    %6782 = vmatpush1.bf16.msra.mxu0 %v1045
    %6783 = vmatprep.subr.bf16.mxu0 %v1062
    %6784 = vmatpush1.bf16.msra.mxu0 %v1061
    %6785 = vmatprep.subr.bf16.mxu0 %v1078
    %6786 = vmatpush1.bf16.msra.mxu0 %v1077
    %6787 = vmatprep.subr.bf16.mxu0 %v1094
    %6788 = vmatpush1.bf16.msra.mxu0 %v1093
    %6789 = vmatprep.subr.bf16.mxu0 %v1110
    %6790 = vmatpush1.bf16.msra.mxu0 %v1109
    %6791 = vmatprep.subr.bf16.mxu0 %v1126
    %6792 = vmatpush1.bf16.msra.mxu0 %v1125
    %6793 = vmatprep.mubr.bf16.mxu0 %v6430
    %6794 = vmatmul.mubr.bf16.gmra.mrb[0].mxu0 %v6429
    %v6795 = vpop.f32.mrb[0].mxu0
    %v6796 = vadd.f32 0.0, %v6795
    %v6797 = vpop.f32.mrb[0].mxu0
    %v6798 = vadd.f32 0.0, %v6797
    %v6799 = vpop.f32.mrb[0].mxu0
    %v6800 = vpop.f32.mrb[0].mxu0
    %6801 = vdwg.mxu0
    %6802 = vmatprep.subr.bf16.mxu0 %v1142
    %6803 = vmatpush1.bf16.msra.mxu0 %v1141
    %6804 = vmatprep.subr.bf16.mxu0 %v1158
    %6805 = vmatpush1.bf16.msra.mxu0 %v1157
    %6806 = vmatprep.subr.bf16.mxu0 %v1174
    %6807 = vmatpush1.bf16.msra.mxu0 %v1173
    %6808 = vmatprep.subr.bf16.mxu0 %v1190
    %6809 = vmatpush1.bf16.msra.mxu0 %v1189
    %6810 = vmatprep.subr.bf16.mxu0 %v1206
    %6811 = vmatpush1.bf16.msra.mxu0 %v1205
    %6812 = vmatprep.subr.bf16.mxu0 %v1222
    %6813 = vmatpush1.bf16.msra.mxu0 %v1221
    %6814 = vmatprep.subr.bf16.mxu0 %v1238
    %6815 = vmatpush1.bf16.msra.mxu0 %v1237
    %6816 = vmatprep.subr.bf16.mxu0 %v1254
    %6817 = vmatpush1.bf16.msra.mxu0 %v1253
    %6818 = vmatprep.subr.bf16.mxu0 %v1270
    %6819 = vmatpush1.bf16.msra.mxu0 %v1269
    %6820 = vmatprep.subr.bf16.mxu0 %v1286
    %6821 = vmatpush1.bf16.msra.mxu0 %v1285
    %6822 = vmatprep.subr.bf16.mxu0 %v1302
    %6823 = vmatpush1.bf16.msra.mxu0 %v1301
    %6824 = vmatprep.subr.bf16.mxu0 %v1318
    %6825 = vmatpush1.bf16.msra.mxu0 %v1317
    %6826 = vmatprep.subr.bf16.mxu0 %v1334
    %6827 = vmatpush1.bf16.msra.mxu0 %v1333
    %6828 = vmatprep.subr.bf16.mxu0 %v1350
    %6829 = vmatpush1.bf16.msra.mxu0 %v1349
    %6830 = vmatprep.subr.bf16.mxu0 %v1366
    %6831 = vmatpush1.bf16.msra.mxu0 %v1365
    %6832 = vmatprep.subr.bf16.mxu0 %v1382
    %6833 = vmatpush1.bf16.msra.mxu0 %v1381
    %6834 = vmatprep.mubr.bf16.mxu0 %v6432
    %6835 = vmatmul.mubr.bf16.gmra.mrb[0].mxu0 %v6431
    %v6836 = vpop.f32.mrb[0].mxu0
    %v6837 = vadd.f32 %v6796, %v6836
    %v6838 = vpop.f32.mrb[0].mxu0
    %v6839 = vadd.f32 %v6798, %v6838
    %v6840 = vpop.f32.mrb[0].mxu0
    %v6841 = vpop.f32.mrb[0].mxu0
    %6842 = vdwg.mxu0
    %6843 = vmatprep.subr.bf16.mxu0 %v888
    %6844 = vmatpush1.bf16.msra.mxu0 %v887
    %6845 = vmatprep.subr.bf16.mxu0 %v904
    %6846 = vmatpush1.bf16.msra.mxu0 %v903
    %6847 = vmatprep.subr.bf16.mxu0 %v920
    %6848 = vmatpush1.bf16.msra.mxu0 %v919
    %6849 = vmatprep.subr.bf16.mxu0 %v936
    %6850 = vmatpush1.bf16.msra.mxu0 %v935
    %6851 = vmatprep.subr.bf16.mxu0 %v952
    %6852 = vmatpush1.bf16.msra.mxu0 %v951
    %6853 = vmatprep.subr.bf16.mxu0 %v968
    %6854 = vmatpush1.bf16.msra.mxu0 %v967
    %6855 = vmatprep.subr.bf16.mxu0 %v984
    %6856 = vmatpush1.bf16.msra.mxu0 %v983
    %6857 = vmatprep.subr.bf16.mxu0 %v1000
    %6858 = vmatpush1.bf16.msra.mxu0 %v999
    %6859 = vmatprep.subr.bf16.mxu0 %v1016
    %6860 = vmatpush1.bf16.msra.mxu0 %v1015
    %6861 = vmatprep.subr.bf16.mxu0 %v1032
    %6862 = vmatpush1.bf16.msra.mxu0 %v1031
    %6863 = vmatprep.subr.bf16.mxu0 %v1048
    %6864 = vmatpush1.bf16.msra.mxu0 %v1047
    %6865 = vmatprep.subr.bf16.mxu0 %v1064
    %6866 = vmatpush1.bf16.msra.mxu0 %v1063
    %6867 = vmatprep.subr.bf16.mxu0 %v1080
    %6868 = vmatpush1.bf16.msra.mxu0 %v1079
    %6869 = vmatprep.subr.bf16.mxu0 %v1096
    %6870 = vmatpush1.bf16.msra.mxu0 %v1095
    %6871 = vmatprep.subr.bf16.mxu0 %v1112
    %6872 = vmatpush1.bf16.msra.mxu0 %v1111
    %6873 = vmatprep.subr.bf16.mxu0 %v1128
    %6874 = vmatpush1.bf16.msra.mxu0 %v1127
    %6875 = vmatprep.mubr.bf16.mxu0 %v6430
    %6876 = vmatmul.mubr.bf16.gmra.mrb[0].mxu0 %v6429
    %v6877 = vpop.f32.mrb[0].mxu0
    %v6878 = vadd.f32 0.0, %v6877
    %v6879 = vpop.f32.mrb[0].mxu0
    %v6880 = vadd.f32 0.0, %v6879
    %v6881 = vpop.f32.mrb[0].mxu0
    %v6882 = vpop.f32.mrb[0].mxu0
    %6883 = vdwg.mxu0
    %6884 = vmatprep.subr.bf16.mxu0 %v1144
    %6885 = vmatpush1.bf16.msra.mxu0 %v1143
    %6886 = vmatprep.subr.bf16.mxu0 %v1160
    %6887 = vmatpush1.bf16.msra.mxu0 %v1159
    %6888 = vmatprep.subr.bf16.mxu0 %v1176
    %6889 = vmatpush1.bf16.msra.mxu0 %v1175
    %6890 = vmatprep.subr.bf16.mxu0 %v1192
    %6891 = vmatpush1.bf16.msra.mxu0 %v1191
    %6892 = vmatprep.subr.bf16.mxu0 %v1208
    %6893 = vmatpush1.bf16.msra.mxu0 %v1207
    %6894 = vmatprep.subr.bf16.mxu0 %v1224
    %6895 = vmatpush1.bf16.msra.mxu0 %v1223
    %6896 = vmatprep.subr.bf16.mxu0 %v1240
    %6897 = vmatpush1.bf16.msra.mxu0 %v1239
    %6898 = vmatprep.subr.bf16.mxu0 %v1256
    %6899 = vmatpush1.bf16.msra.mxu0 %v1255
    %6900 = vmatprep.subr.bf16.mxu0 %v1272
    %6901 = vmatpush1.bf16.msra.mxu0 %v1271
    %6902 = vmatprep.subr.bf16.mxu0 %v1288
    %6903 = vmatpush1.bf16.msra.mxu0 %v1287
    %6904 = vmatprep.subr.bf16.mxu0 %v1304
    %6905 = vmatpush1.bf16.msra.mxu0 %v1303
    %6906 = vmatprep.subr.bf16.mxu0 %v1320
    %6907 = vmatpush1.bf16.msra.mxu0 %v1319
    %6908 = vmatprep.subr.bf16.mxu0 %v1336
    %6909 = vmatpush1.bf16.msra.mxu0 %v1335
    %6910 = vmatprep.subr.bf16.mxu0 %v1352
    %6911 = vmatpush1.bf16.msra.mxu0 %v1351
    %6912 = vmatprep.subr.bf16.mxu0 %v1368
    %6913 = vmatpush1.bf16.msra.mxu0 %v1367
    %6914 = vmatprep.subr.bf16.mxu0 %v1384
    %6915 = vmatpush1.bf16.msra.mxu0 %v1383
    %6916 = vmatprep.mubr.bf16.mxu0 %v6432
    %6917 = vmatmul.mubr.bf16.gmra.mrb[0].mxu0 %v6431
    %v6918 = vpop.f32.mrb[0].mxu0
    %v6919 = vadd.f32 %v6878, %v6918
    %v6920 = vpop.f32.mrb[0].mxu0
    %v6921 = vadd.f32 %v6880, %v6920
    %v6922 = vpop.f32.mrb[0].mxu0
    %v6923 = vpop.f32.mrb[0].mxu0
    %6924 = vdwg.mxu0
    %6925 = vmatprep.subr.bf16.mxu0 %v890
    %6926 = vmatpush1.bf16.msra.mxu0 %v889
    %6927 = vmatprep.subr.bf16.mxu0 %v906
    %6928 = vmatpush1.bf16.msra.mxu0 %v905
    %6929 = vmatprep.subr.bf16.mxu0 %v922
    %6930 = vmatpush1.bf16.msra.mxu0 %v921
    %6931 = vmatprep.subr.bf16.mxu0 %v938
    %6932 = vmatpush1.bf16.msra.mxu0 %v937
    %6933 = vmatprep.subr.bf16.mxu0 %v954
    %6934 = vmatpush1.bf16.msra.mxu0 %v953
    %6935 = vmatprep.subr.bf16.mxu0 %v970
    %6936 = vmatpush1.bf16.msra.mxu0 %v969
    %6937 = vmatprep.subr.bf16.mxu0 %v986
    %6938 = vmatpush1.bf16.msra.mxu0 %v985
    %6939 = vmatprep.subr.bf16.mxu0 %v1002
    %6940 = vmatpush1.bf16.msra.mxu0 %v1001
    %6941 = vmatprep.subr.bf16.mxu0 %v1018
    %6942 = vmatpush1.bf16.msra.mxu0 %v1017
    %6943 = vmatprep.subr.bf16.mxu0 %v1034
    %6944 = vmatpush1.bf16.msra.mxu0 %v1033
    %6945 = vmatprep.subr.bf16.mxu0 %v1050
    %6946 = vmatpush1.bf16.msra.mxu0 %v1049
    %6947 = vmatprep.subr.bf16.mxu0 %v1066
    %6948 = vmatpush1.bf16.msra.mxu0 %v1065
    %6949 = vmatprep.subr.bf16.mxu0 %v1082
    %6950 = vmatpush1.bf16.msra.mxu0 %v1081
    %6951 = vmatprep.subr.bf16.mxu0 %v1098
    %6952 = vmatpush1.bf16.msra.mxu0 %v1097
    %6953 = vmatprep.subr.bf16.mxu0 %v1114
    %6954 = vmatpush1.bf16.msra.mxu0 %v1113
    %6955 = vmatprep.subr.bf16.mxu0 %v1130
    %6956 = vmatpush1.bf16.msra.mxu0 %v1129
    %6957 = vmatprep.mubr.bf16.mxu0 %v6430
    %6958 = vmatmul.mubr.bf16.gmra.mrb[0].mxu0 %v6429
    %v6959 = vpop.f32.mrb[0].mxu0
    %v6960 = vadd.f32 0.0, %v6959
    %v6961 = vpop.f32.mrb[0].mxu0
    %v6962 = vadd.f32 0.0, %v6961
    %v6963 = vpop.f32.mrb[0].mxu0
    %v6964 = vpop.f32.mrb[0].mxu0
    %6965 = vdwg.mxu0
    %6966 = vmatprep.subr.bf16.mxu0 %v1146
    %6967 = vmatpush1.bf16.msra.mxu0 %v1145
    %6968 = vmatprep.subr.bf16.mxu0 %v1162
    %6969 = vmatpush1.bf16.msra.mxu0 %v1161
    %6970 = vmatprep.subr.bf16.mxu0 %v1178
    %6971 = vmatpush1.bf16.msra.mxu0 %v1177
    %6972 = vmatprep.subr.bf16.mxu0 %v1194
    %6973 = vmatpush1.bf16.msra.mxu0 %v1193
    %6974 = vmatprep.subr.bf16.mxu0 %v1210
    %6975 = vmatpush1.bf16.msra.mxu0 %v1209
    %6976 = vmatprep.subr.bf16.mxu0 %v1226
    %6977 = vmatpush1.bf16.msra.mxu0 %v1225
    %6978 = vmatprep.subr.bf16.mxu0 %v1242
    %6979 = vmatpush1.bf16.msra.mxu0 %v1241
    %6980 = vmatprep.subr.bf16.mxu0 %v1258
    %6981 = vmatpush1.bf16.msra.mxu0 %v1257
    %6982 = vmatprep.subr.bf16.mxu0 %v1274
    %6983 = vmatpush1.bf16.msra.mxu0 %v1273
    %6984 = vmatprep.subr.bf16.mxu0 %v1290
    %6985 = vmatpush1.bf16.msra.mxu0 %v1289
    %6986 = vmatprep.subr.bf16.mxu0 %v1306
    %6987 = vmatpush1.bf16.msra.mxu0 %v1305
    %6988 = vmatprep.subr.bf16.mxu0 %v1322
    %6989 = vmatpush1.bf16.msra.mxu0 %v1321
    %6990 = vmatprep.subr.bf16.mxu0 %v1338
    %6991 = vmatpush1.bf16.msra.mxu0 %v1337
    %6992 = vmatprep.subr.bf16.mxu0 %v1354
    %6993 = vmatpush1.bf16.msra.mxu0 %v1353
    %6994 = vmatprep.subr.bf16.mxu0 %v1370
    %6995 = vmatpush1.bf16.msra.mxu0 %v1369
    %6996 = vmatprep.subr.bf16.mxu0 %v1386
    %6997 = vmatpush1.bf16.msra.mxu0 %v1385
    %6998 = vmatprep.mubr.bf16.mxu0 %v6432
    %6999 = vmatmul.mubr.bf16.gmra.mrb[0].mxu0 %v6431
    %v7000 = vpop.f32.mrb[0].mxu0
    %v7001 = vadd.f32 %v6960, %v7000
    %v7002 = vpop.f32.mrb[0].mxu0
    %v7003 = vadd.f32 %v6962, %v7002
    %v7004 = vpop.f32.mrb[0].mxu0
    %v7005 = vpop.f32.mrb[0].mxu0
    %7006 = vdwg.mxu0
    %7007 = vmatprep.subr.bf16.mxu0 %v892
    %7008 = vmatpush1.bf16.msra.mxu0 %v891
    %7009 = vmatprep.subr.bf16.mxu0 %v908
    %7010 = vmatpush1.bf16.msra.mxu0 %v907
    %7011 = vmatprep.subr.bf16.mxu0 %v924
    %7012 = vmatpush1.bf16.msra.mxu0 %v923
    %7013 = vmatprep.subr.bf16.mxu0 %v940
    %7014 = vmatpush1.bf16.msra.mxu0 %v939
    %7015 = vmatprep.subr.bf16.mxu0 %v956
    %7016 = vmatpush1.bf16.msra.mxu0 %v955
    %7017 = vmatprep.subr.bf16.mxu0 %v972
    %7018 = vmatpush1.bf16.msra.mxu0 %v971
    %7019 = vmatprep.subr.bf16.mxu0 %v988
    %7020 = vmatpush1.bf16.msra.mxu0 %v987
    %7021 = vmatprep.subr.bf16.mxu0 %v1004
    %7022 = vmatpush1.bf16.msra.mxu0 %v1003
    %7023 = vmatprep.subr.bf16.mxu0 %v1020
    %7024 = vmatpush1.bf16.msra.mxu0 %v1019
    %7025 = vmatprep.subr.bf16.mxu0 %v1036
    %7026 = vmatpush1.bf16.msra.mxu0 %v1035
    %7027 = vmatprep.subr.bf16.mxu0 %v1052
    %7028 = vmatpush1.bf16.msra.mxu0 %v1051
    %7029 = vmatprep.subr.bf16.mxu0 %v1068
    %7030 = vmatpush1.bf16.msra.mxu0 %v1067
    %7031 = vmatprep.subr.bf16.mxu0 %v1084
    %7032 = vmatpush1.bf16.msra.mxu0 %v1083
    %7033 = vmatprep.subr.bf16.mxu0 %v1100
    %7034 = vmatpush1.bf16.msra.mxu0 %v1099
    %7035 = vmatprep.subr.bf16.mxu0 %v1116
    %7036 = vmatpush1.bf16.msra.mxu0 %v1115
    %7037 = vmatprep.subr.bf16.mxu0 %v1132
    %7038 = vmatpush1.bf16.msra.mxu0 %v1131
    %7039 = vmatprep.mubr.bf16.mxu0 %v6430
    %7040 = vmatmul.mubr.bf16.gmra.mrb[0].mxu0 %v6429
    %v7041 = vpop.f32.mrb[0].mxu0
    %v7042 = vadd.f32 0.0, %v7041
    %v7043 = vpop.f32.mrb[0].mxu0
    %v7044 = vadd.f32 0.0, %v7043
    %v7045 = vpop.f32.mrb[0].mxu0
    %v7046 = vpop.f32.mrb[0].mxu0
    %7047 = vdwg.mxu0
    %7048 = vmatprep.subr.bf16.mxu0 %v1148
    %7049 = vmatpush1.bf16.msra.mxu0 %v1147
    %7050 = vmatprep.subr.bf16.mxu0 %v1164
    %7051 = vmatpush1.bf16.msra.mxu0 %v1163
    %7052 = vmatprep.subr.bf16.mxu0 %v1180
    %7053 = vmatpush1.bf16.msra.mxu0 %v1179
    %7054 = vmatprep.subr.bf16.mxu0 %v1196
    %7055 = vmatpush1.bf16.msra.mxu0 %v1195
    %7056 = vmatprep.subr.bf16.mxu0 %v1212
    %7057 = vmatpush1.bf16.msra.mxu0 %v1211
    %7058 = vmatprep.subr.bf16.mxu0 %v1228
    %7059 = vmatpush1.bf16.msra.mxu0 %v1227
    %7060 = vmatprep.subr.bf16.mxu0 %v1244
    %7061 = vmatpush1.bf16.msra.mxu0 %v1243
    %7062 = vmatprep.subr.bf16.mxu0 %v1260
    %7063 = vmatpush1.bf16.msra.mxu0 %v1259
    %7064 = vmatprep.subr.bf16.mxu0 %v1276
    %7065 = vmatpush1.bf16.msra.mxu0 %v1275
    %7066 = vmatprep.subr.bf16.mxu0 %v1292
    %7067 = vmatpush1.bf16.msra.mxu0 %v1291
    %7068 = vmatprep.subr.bf16.mxu0 %v1308
    %7069 = vmatpush1.bf16.msra.mxu0 %v1307
    %7070 = vmatprep.subr.bf16.mxu0 %v1324
    %7071 = vmatpush1.bf16.msra.mxu0 %v1323
    %7072 = vmatprep.subr.bf16.mxu0 %v1340
    %7073 = vmatpush1.bf16.msra.mxu0 %v1339
    %7074 = vmatprep.subr.bf16.mxu0 %v1356
    %7075 = vmatpush1.bf16.msra.mxu0 %v1355
    %7076 = vmatprep.subr.bf16.mxu0 %v1372
    %7077 = vmatpush1.bf16.msra.mxu0 %v1371
    %7078 = vmatprep.subr.bf16.mxu0 %v1388
    %7079 = vmatpush1.bf16.msra.mxu0 %v1387
    %7080 = vmatprep.mubr.bf16.mxu0 %v6432
    %7081 = vmatmul.mubr.bf16.gmra.mrb[0].mxu0 %v6431
    %v7082 = vpop.f32.mrb[0].mxu0
    %v7083 = vadd.f32 %v7042, %v7082
    %v7084 = vpop.f32.mrb[0].mxu0
    %v7085 = vadd.f32 %v7044, %v7084
    %v7086 = vpop.f32.mrb[0].mxu0
    %v7087 = vpop.f32.mrb[0].mxu0
    %7088 = vdwg.mxu0
    %v7105 = vcombine.low %v6509, %v6511
    %v7106 = vcombine.low %v6591, %v6593
    %v7107 = vcombine.low %v6673, %v6675
    %v7108 = vcombine.low %v6755, %v6757
    %v7110 = vunpack.c.l.s4 1966171168
    %v7111 = vunpack.c.0.s8 %v7110
    %v7112 = vlaneseq
    %v7113 = vshrl.u32 %v7112, 7
    %v7114 = vsub.s32 %v7111, %v7113
    %v7115 = vrot.slane %v7105, %v7114
    %v7117 = vunpack.c.l.s4 1966171168
    %v7118 = vunpack.c.0.s8 %v7117
    %v7119 = vlaneseq
    %v7120 = vshrl.u32 %v7119, 7
    %v7121 = vsub.s32 %v7118, %v7120
    %v7122 = vrot.slane %v7106, %v7121
    %v7124 = vunpack.c.l.s4 1966171168
    %v7125 = vunpack.c.0.s8 %v7124
    %v7126 = vlaneseq
    %v7127 = vshrl.u32 %v7126, 7
    %v7128 = vsub.s32 %v7125, %v7127
    %v7129 = vrot.slane %v7107, %v7128
    %v7131 = vunpack.c.l.s4 1966171168
    %v7132 = vunpack.c.0.s8 %v7131
    %v7133 = vlaneseq
    %v7134 = vshrl.u32 %v7133, 7
    %v7135 = vsub.s32 %v7132, %v7134
    %v7136 = vrot.slane %v7108, %v7135
    %v7137 = vcombine.low %v7115, %v7122
    %v7138 = vcombine.low %v7129, %v7136
    %v7140 = vunpack.c.l.s4 1966171168
    %v7141 = vunpack.c.0.s8 %v7140
    %v7142 = vlaneseq
    %v7143 = vshrl.u32 %v7142, 7
    %v7144 = vsub.s32 %v7141, %v7143
    %v7145 = vrot.slane %v7137, %v7144
    %v7147 = vunpack.c.l.s4 1966171168
    %v7148 = vunpack.c.0.s8 %v7147
    %v7149 = vlaneseq
    %v7150 = vshrl.u32 %v7149, 7
    %v7151 = vsub.s32 %v7148, %v7150
    %v7152 = vrot.slane %v7138, %v7151
    %v7153 = vcombine.low %v7145, %v7152
    %v7154 = vcombine.low %v6837, %v6839
    %v7155 = vcombine.low %v6919, %v6921
    %v7156 = vcombine.low %v7001, %v7003
    %v7157 = vcombine.low %v7083, %v7085
    %v7159 = vunpack.c.l.s4 1966171168
    %v7160 = vunpack.c.0.s8 %v7159
    %v7161 = vlaneseq
    %v7162 = vshrl.u32 %v7161, 7
    %v7163 = vsub.s32 %v7160, %v7162
    %v7164 = vrot.slane %v7154, %v7163
    %v7166 = vunpack.c.l.s4 1966171168
    %v7167 = vunpack.c.0.s8 %v7166
    %v7168 = vlaneseq
    %v7169 = vshrl.u32 %v7168, 7
    %v7170 = vsub.s32 %v7167, %v7169
    %v7171 = vrot.slane %v7155, %v7170
    %v7173 = vunpack.c.l.s4 1966171168
    %v7174 = vunpack.c.0.s8 %v7173
    %v7175 = vlaneseq
    %v7176 = vshrl.u32 %v7175, 7
    %v7177 = vsub.s32 %v7174, %v7176
    %v7178 = vrot.slane %v7156, %v7177
    %v7180 = vunpack.c.l.s4 1966171168
    %v7181 = vunpack.c.0.s8 %v7180
    %v7182 = vlaneseq
    %v7183 = vshrl.u32 %v7182, 7
    %v7184 = vsub.s32 %v7181, %v7183
    %v7185 = vrot.slane %v7157, %v7184
    %v7186 = vcombine.low %v7164, %v7171
    %v7187 = vcombine.low %v7178, %v7185
    %v7189 = vunpack.c.l.s4 1966171168
    %v7190 = vunpack.c.0.s8 %v7189
    %v7191 = vlaneseq
    %v7192 = vshrl.u32 %v7191, 7
    %v7193 = vsub.s32 %v7190, %v7192
    %v7194 = vrot.slane %v7186, %v7193
    %v7196 = vunpack.c.l.s4 1966171168
    %v7197 = vunpack.c.0.s8 %v7196
    %v7198 = vlaneseq
    %v7199 = vshrl.u32 %v7198, 7
    %v7200 = vsub.s32 %v7197, %v7199
    %v7201 = vrot.slane %v7187, %v7200
    %v7202 = vcombine.low %v7194, %v7201
    %v7205 = vadd.f32 %v6404, %v7153
    %v7206 = vadd.f32 %v6408, %v7202
    %v7207 = vxor.u32 %v7205, 2147483648
    %v7208 = vxor.u32 %v7206, 2147483648
    %v7209 = vmul.f32 %v7207, 1.442695
    %v7210 = vpow.pop %v7209
    %v7211 = vmul.f32 %v7208, 1.442695
    %v7212 = vpow.pop %v7211
    %v7213 = vadd.f32 %v7210, 1.0
    %v7214 = vadd.f32 %v7212, 1.0
    %v7215 = vrcp.pop %v7213
    %v7216 = vmul.f32 1.0, %v7215
    %v7217 = vrcp.pop %v7214
    %v7218 = vmul.f32 1.0, %v7217
    %v7220 = vrot.slane %v7206, 4
    %v7222 = vtanh.pop %v7220
    %v7224 = vrot.slane %v7216, 4
    %v7226 = vmul.f32 %v7224, %v6389
    %v7227 = vmul.f32 %v7216, %v7222
    %v7228 = vadd.f32 %v7226, %v7227
    %v7229 = vtanh.pop %v7228
    %v7230 = vmul.f32 %v7218, %v7229
    %s7231 = scalar_lea.vmem [#allocation5], 6
    %7232 = vst.msk [vmem:[%s7231] ss:$8 sm:$0x3] %vm2197, %v7230
    %7233 = vst.msk [vmem:[%s7231] ss:$8 sm:$0x0] %vm2197, %v7230
    %v7235 = vrot.slane %v7230, 2
    %s7237 = scalar_lea.vmem [#allocation5], 17
    %7238 = vst.msk [vmem:[%s7237] ss:$8 sm:$0x3] %vm2197, %v7235
    %7239 = vst.msk [vmem:[%s7237] ss:$8 sm:$0x0] %vm2197, %v7235
    %s7240 = scalar_lea.vmem [#allocation4], 7
    %v7241 = vld [vmem:[%s7240] ss:$8 sm:$0xf]
    %v7242 = vld [vmem:[%s7240] ss:$8 sm:$0xf0]
    %v7243 = vor.u32 %v7241, %v7242
    %s7244 = scalar_lea.vmem [#allocation4], 71
    %v7245 = vld [vmem:[%s7244] ss:$8 sm:$0xf]
    %v7246 = vld [vmem:[%s7244] ss:$8 sm:$0xf0]
    %v7247 = vor.u32 %v7245, %v7246
    %v7248 = vlaneseq
    %v7249 = vshrl.u32 %v7248, 7
    %v7250 = vsub.s32 0, %v7249
    %v7251 = vrot.slane %v7230, %v7250
    %v7252 = vlaneseq
    %v7253 = vshrl.u32 %v7252, 7
    %v7254 = vsub.s32 1, %v7253
    %v7255 = vrot.slane %v7230, %v7254
    %v7256 = vlaneseq
    %v7257 = vshrl.u32 %v7256, 7
    %v7258 = vsub.s32 2, %v7257
    %v7259 = vrot.slane %v7230, %v7258
    %v7260 = vlaneseq
    %v7261 = vshrl.u32 %v7260, 7
    %v7262 = vsub.s32 3, %v7261
    %v7263 = vrot.slane %v7230, %v7262
    %v7268 = vpack.c.bf16 %v7251, %v7251
    %v7269 = vpack.c.bf16 %v7255, %v7255
    %v7270 = vpack.c.bf16 %v7259, %v7259
    %v7271 = vpack.c.bf16 %v7263, %v7263
    %7272 = vmatprep.subr.bf16.mxu0 %v878
    %7273 = vmatpush1.bf16.msra.mxu0 %v877
    %7274 = vmatprep.subr.bf16.mxu0 %v894
    %7275 = vmatpush1.bf16.msra.mxu0 %v893
    %7276 = vmatprep.subr.bf16.mxu0 %v910
    %7277 = vmatpush1.bf16.msra.mxu0 %v909
    %7278 = vmatprep.subr.bf16.mxu0 %v926
    %7279 = vmatpush1.bf16.msra.mxu0 %v925
    %7280 = vmatprep.subr.bf16.mxu0 %v942
    %7281 = vmatpush1.bf16.msra.mxu0 %v941
    %7282 = vmatprep.subr.bf16.mxu0 %v958
    %7283 = vmatpush1.bf16.msra.mxu0 %v957
    %7284 = vmatprep.subr.bf16.mxu0 %v974
    %7285 = vmatpush1.bf16.msra.mxu0 %v973
    %7286 = vmatprep.subr.bf16.mxu0 %v990
    %7287 = vmatpush1.bf16.msra.mxu0 %v989
    %7288 = vmatprep.subr.bf16.mxu0 %v1006
    %7289 = vmatpush1.bf16.msra.mxu0 %v1005
    %7290 = vmatprep.subr.bf16.mxu0 %v1022
    %7291 = vmatpush1.bf16.msra.mxu0 %v1021
    %7292 = vmatprep.subr.bf16.mxu0 %v1038
    %7293 = vmatpush1.bf16.msra.mxu0 %v1037
    %7294 = vmatprep.subr.bf16.mxu0 %v1054
    %7295 = vmatpush1.bf16.msra.mxu0 %v1053
    %7296 = vmatprep.subr.bf16.mxu0 %v1070
    %7297 = vmatpush1.bf16.msra.mxu0 %v1069
    %7298 = vmatprep.subr.bf16.mxu0 %v1086
    %7299 = vmatpush1.bf16.msra.mxu0 %v1085
    %7300 = vmatprep.subr.bf16.mxu0 %v1102
    %7301 = vmatpush1.bf16.msra.mxu0 %v1101
    %7302 = vmatprep.subr.bf16.mxu0 %v1118
    %7303 = vmatpush1.bf16.msra.mxu0 %v1117
    %7304 = vmatprep.mubr.bf16.mxu0 %v7269
    %7305 = vmatmul.mubr.bf16.gmra.mrb[0].mxu0 %v7268
    %v7306 = vpop.f32.mrb[0].mxu0
    %v7307 = vadd.f32 0.0, %v7306
    %v7308 = vpop.f32.mrb[0].mxu0
    %v7309 = vadd.f32 0.0, %v7308
    %v7310 = vpop.f32.mrb[0].mxu0
    %v7311 = vpop.f32.mrb[0].mxu0
    %7312 = vdwg.mxu0
    %7313 = vmatprep.subr.bf16.mxu0 %v1134
    %7314 = vmatpush1.bf16.msra.mxu0 %v1133
    %7315 = vmatprep.subr.bf16.mxu0 %v1150
    %7316 = vmatpush1.bf16.msra.mxu0 %v1149
    %7317 = vmatprep.subr.bf16.mxu0 %v1166
    %7318 = vmatpush1.bf16.msra.mxu0 %v1165
    %7319 = vmatprep.subr.bf16.mxu0 %v1182
    %7320 = vmatpush1.bf16.msra.mxu0 %v1181
    %7321 = vmatprep.subr.bf16.mxu0 %v1198
    %7322 = vmatpush1.bf16.msra.mxu0 %v1197
    %7323 = vmatprep.subr.bf16.mxu0 %v1214
    %7324 = vmatpush1.bf16.msra.mxu0 %v1213
    %7325 = vmatprep.subr.bf16.mxu0 %v1230
    %7326 = vmatpush1.bf16.msra.mxu0 %v1229
    %7327 = vmatprep.subr.bf16.mxu0 %v1246
    %7328 = vmatpush1.bf16.msra.mxu0 %v1245
    %7329 = vmatprep.subr.bf16.mxu0 %v1262
    %7330 = vmatpush1.bf16.msra.mxu0 %v1261
    %7331 = vmatprep.subr.bf16.mxu0 %v1278
    %7332 = vmatpush1.bf16.msra.mxu0 %v1277
    %7333 = vmatprep.subr.bf16.mxu0 %v1294
    %7334 = vmatpush1.bf16.msra.mxu0 %v1293
    %7335 = vmatprep.subr.bf16.mxu0 %v1310
    %7336 = vmatpush1.bf16.msra.mxu0 %v1309
    %7337 = vmatprep.subr.bf16.mxu0 %v1326
    %7338 = vmatpush1.bf16.msra.mxu0 %v1325
    %7339 = vmatprep.subr.bf16.mxu0 %v1342
    %7340 = vmatpush1.bf16.msra.mxu0 %v1341
    %7341 = vmatprep.subr.bf16.mxu0 %v1358
    %7342 = vmatpush1.bf16.msra.mxu0 %v1357
    %7343 = vmatprep.subr.bf16.mxu0 %v1374
    %7344 = vmatpush1.bf16.msra.mxu0 %v1373
    %7345 = vmatprep.mubr.bf16.mxu0 %v7271
    %7346 = vmatmul.mubr.bf16.gmra.mrb[0].mxu0 %v7270
    %v7347 = vpop.f32.mrb[0].mxu0
    %v7348 = vadd.f32 %v7307, %v7347
    %v7349 = vpop.f32.mrb[0].mxu0
    %v7350 = vadd.f32 %v7309, %v7349
    %v7351 = vpop.f32.mrb[0].mxu0
    %v7352 = vpop.f32.mrb[0].mxu0
    %7353 = vdwg.mxu0
    %7354 = vmatprep.subr.bf16.mxu0 %v880
    %7355 = vmatpush1.bf16.msra.mxu0 %v879
    %7356 = vmatprep.subr.bf16.mxu0 %v896
    %7357 = vmatpush1.bf16.msra.mxu0 %v895
    %7358 = vmatprep.subr.bf16.mxu0 %v912
    %7359 = vmatpush1.bf16.msra.mxu0 %v911
    %7360 = vmatprep.subr.bf16.mxu0 %v928
    %7361 = vmatpush1.bf16.msra.mxu0 %v927
    %7362 = vmatprep.subr.bf16.mxu0 %v944
    %7363 = vmatpush1.bf16.msra.mxu0 %v943
    %7364 = vmatprep.subr.bf16.mxu0 %v960
    %7365 = vmatpush1.bf16.msra.mxu0 %v959
    %7366 = vmatprep.subr.bf16.mxu0 %v976
    %7367 = vmatpush1.bf16.msra.mxu0 %v975
    %7368 = vmatprep.subr.bf16.mxu0 %v992
    %7369 = vmatpush1.bf16.msra.mxu0 %v991
    %7370 = vmatprep.subr.bf16.mxu0 %v1008
    %7371 = vmatpush1.bf16.msra.mxu0 %v1007
    %7372 = vmatprep.subr.bf16.mxu0 %v1024
    %7373 = vmatpush1.bf16.msra.mxu0 %v1023
    %7374 = vmatprep.subr.bf16.mxu0 %v1040
    %7375 = vmatpush1.bf16.msra.mxu0 %v1039
    %7376 = vmatprep.subr.bf16.mxu0 %v1056
    %7377 = vmatpush1.bf16.msra.mxu0 %v1055
    %7378 = vmatprep.subr.bf16.mxu0 %v1072
    %7379 = vmatpush1.bf16.msra.mxu0 %v1071
    %7380 = vmatprep.subr.bf16.mxu0 %v1088
    %7381 = vmatpush1.bf16.msra.mxu0 %v1087
    %7382 = vmatprep.subr.bf16.mxu0 %v1104
    %7383 = vmatpush1.bf16.msra.mxu0 %v1103
    %7384 = vmatprep.subr.bf16.mxu0 %v1120
    %7385 = vmatpush1.bf16.msra.mxu0 %v1119
    %7386 = vmatprep.mubr.bf16.mxu0 %v7269
    %7387 = vmatmul.mubr.bf16.gmra.mrb[0].mxu0 %v7268
    %v7388 = vpop.f32.mrb[0].mxu0
    %v7389 = vadd.f32 0.0, %v7388
    %v7390 = vpop.f32.mrb[0].mxu0
    %v7391 = vadd.f32 0.0, %v7390
    %v7392 = vpop.f32.mrb[0].mxu0
    %v7393 = vpop.f32.mrb[0].mxu0
    %7394 = vdwg.mxu0
    %7395 = vmatprep.subr.bf16.mxu0 %v1136
    %7396 = vmatpush1.bf16.msra.mxu0 %v1135
    %7397 = vmatprep.subr.bf16.mxu0 %v1152
    %7398 = vmatpush1.bf16.msra.mxu0 %v1151
    %7399 = vmatprep.subr.bf16.mxu0 %v1168
    %7400 = vmatpush1.bf16.msra.mxu0 %v1167
    %7401 = vmatprep.subr.bf16.mxu0 %v1184
    %7402 = vmatpush1.bf16.msra.mxu0 %v1183
    %7403 = vmatprep.subr.bf16.mxu0 %v1200
    %7404 = vmatpush1.bf16.msra.mxu0 %v1199
    %7405 = vmatprep.subr.bf16.mxu0 %v1216
    %7406 = vmatpush1.bf16.msra.mxu0 %v1215
    %7407 = vmatprep.subr.bf16.mxu0 %v1232
    %7408 = vmatpush1.bf16.msra.mxu0 %v1231
    %7409 = vmatprep.subr.bf16.mxu0 %v1248
    %7410 = vmatpush1.bf16.msra.mxu0 %v1247
    %7411 = vmatprep.subr.bf16.mxu0 %v1264
    %7412 = vmatpush1.bf16.msra.mxu0 %v1263
    %7413 = vmatprep.subr.bf16.mxu0 %v1280
    %7414 = vmatpush1.bf16.msra.mxu0 %v1279
    %7415 = vmatprep.subr.bf16.mxu0 %v1296
    %7416 = vmatpush1.bf16.msra.mxu0 %v1295
    %7417 = vmatprep.subr.bf16.mxu0 %v1312
    %7418 = vmatpush1.bf16.msra.mxu0 %v1311
    %7419 = vmatprep.subr.bf16.mxu0 %v1328
    %7420 = vmatpush1.bf16.msra.mxu0 %v1327
    %7421 = vmatprep.subr.bf16.mxu0 %v1344
    %7422 = vmatpush1.bf16.msra.mxu0 %v1343
    %7423 = vmatprep.subr.bf16.mxu0 %v1360
    %7424 = vmatpush1.bf16.msra.mxu0 %v1359
    %7425 = vmatprep.subr.bf16.mxu0 %v1376
    %7426 = vmatpush1.bf16.msra.mxu0 %v1375
    %7427 = vmatprep.mubr.bf16.mxu0 %v7271
    %7428 = vmatmul.mubr.bf16.gmra.mrb[0].mxu0 %v7270
    %v7429 = vpop.f32.mrb[0].mxu0
    %v7430 = vadd.f32 %v7389, %v7429
    %v7431 = vpop.f32.mrb[0].mxu0
    %v7432 = vadd.f32 %v7391, %v7431
    %v7433 = vpop.f32.mrb[0].mxu0
    %v7434 = vpop.f32.mrb[0].mxu0
    %7435 = vdwg.mxu0
    %7436 = vmatprep.subr.bf16.mxu0 %v882
    %7437 = vmatpush1.bf16.msra.mxu0 %v881
    %7438 = vmatprep.subr.bf16.mxu0 %v898
    %7439 = vmatpush1.bf16.msra.mxu0 %v897
    %7440 = vmatprep.subr.bf16.mxu0 %v914
    %7441 = vmatpush1.bf16.msra.mxu0 %v913
    %7442 = vmatprep.subr.bf16.mxu0 %v930
    %7443 = vmatpush1.bf16.msra.mxu0 %v929
    %7444 = vmatprep.subr.bf16.mxu0 %v946
    %7445 = vmatpush1.bf16.msra.mxu0 %v945
    %7446 = vmatprep.subr.bf16.mxu0 %v962
    %7447 = vmatpush1.bf16.msra.mxu0 %v961
    %7448 = vmatprep.subr.bf16.mxu0 %v978
    %7449 = vmatpush1.bf16.msra.mxu0 %v977
    %7450 = vmatprep.subr.bf16.mxu0 %v994
    %7451 = vmatpush1.bf16.msra.mxu0 %v993
    %7452 = vmatprep.subr.bf16.mxu0 %v1010
    %7453 = vmatpush1.bf16.msra.mxu0 %v1009
    %7454 = vmatprep.subr.bf16.mxu0 %v1026
    %7455 = vmatpush1.bf16.msra.mxu0 %v1025
    %7456 = vmatprep.subr.bf16.mxu0 %v1042
    %7457 = vmatpush1.bf16.msra.mxu0 %v1041
    %7458 = vmatprep.subr.bf16.mxu0 %v1058
    %7459 = vmatpush1.bf16.msra.mxu0 %v1057
    %7460 = vmatprep.subr.bf16.mxu0 %v1074
    %7461 = vmatpush1.bf16.msra.mxu0 %v1073
    %7462 = vmatprep.subr.bf16.mxu0 %v1090
    %7463 = vmatpush1.bf16.msra.mxu0 %v1089
    %7464 = vmatprep.subr.bf16.mxu0 %v1106
    %7465 = vmatpush1.bf16.msra.mxu0 %v1105
    %7466 = vmatprep.subr.bf16.mxu0 %v1122
    %7467 = vmatpush1.bf16.msra.mxu0 %v1121
    %7468 = vmatprep.mubr.bf16.mxu0 %v7269
    %7469 = vmatmul.mubr.bf16.gmra.mrb[0].mxu0 %v7268
    %v7470 = vpop.f32.mrb[0].mxu0
    %v7471 = vadd.f32 0.0, %v7470
    %v7472 = vpop.f32.mrb[0].mxu0
    %v7473 = vadd.f32 0.0, %v7472
    %v7474 = vpop.f32.mrb[0].mxu0
    %v7475 = vpop.f32.mrb[0].mxu0
    %7476 = vdwg.mxu0
    %7477 = vmatprep.subr.bf16.mxu0 %v1138
    %7478 = vmatpush1.bf16.msra.mxu0 %v1137
    %7479 = vmatprep.subr.bf16.mxu0 %v1154
    %7480 = vmatpush1.bf16.msra.mxu0 %v1153
    %7481 = vmatprep.subr.bf16.mxu0 %v1170
    %7482 = vmatpush1.bf16.msra.mxu0 %v1169
    %7483 = vmatprep.subr.bf16.mxu0 %v1186
    %7484 = vmatpush1.bf16.msra.mxu0 %v1185
    %7485 = vmatprep.subr.bf16.mxu0 %v1202
    %7486 = vmatpush1.bf16.msra.mxu0 %v1201
    %7487 = vmatprep.subr.bf16.mxu0 %v1218
    %7488 = vmatpush1.bf16.msra.mxu0 %v1217
    %7489 = vmatprep.subr.bf16.mxu0 %v1234
    %7490 = vmatpush1.bf16.msra.mxu0 %v1233
    %7491 = vmatprep.subr.bf16.mxu0 %v1250
    %7492 = vmatpush1.bf16.msra.mxu0 %v1249
    %7493 = vmatprep.subr.bf16.mxu0 %v1266
    %7494 = vmatpush1.bf16.msra.mxu0 %v1265
    %7495 = vmatprep.subr.bf16.mxu0 %v1282
    %7496 = vmatpush1.bf16.msra.mxu0 %v1281
    %7497 = vmatprep.subr.bf16.mxu0 %v1298
    %7498 = vmatpush1.bf16.msra.mxu0 %v1297
    %7499 = vmatprep.subr.bf16.mxu0 %v1314
    %7500 = vmatpush1.bf16.msra.mxu0 %v1313
    %7501 = vmatprep.subr.bf16.mxu0 %v1330
    %7502 = vmatpush1.bf16.msra.mxu0 %v1329
    %7503 = vmatprep.subr.bf16.mxu0 %v1346
    %7504 = vmatpush1.bf16.msra.mxu0 %v1345
    %7505 = vmatprep.subr.bf16.mxu0 %v1362
    %7506 = vmatpush1.bf16.msra.mxu0 %v1361
    %7507 = vmatprep.subr.bf16.mxu0 %v1378
    %7508 = vmatpush1.bf16.msra.mxu0 %v1377
    %7509 = vmatprep.mubr.bf16.mxu0 %v7271
    %7510 = vmatmul.mubr.bf16.gmra.mrb[0].mxu0 %v7270
    %v7511 = vpop.f32.mrb[0].mxu0
    %v7512 = vadd.f32 %v7471, %v7511
    %v7513 = vpop.f32.mrb[0].mxu0
    %v7514 = vadd.f32 %v7473, %v7513
    %v7515 = vpop.f32.mrb[0].mxu0
    %v7516 = vpop.f32.mrb[0].mxu0
    %7517 = vdwg.mxu0
    %7518 = vmatprep.subr.bf16.mxu0 %v884
    %7519 = vmatpush1.bf16.msra.mxu0 %v883
    %7520 = vmatprep.subr.bf16.mxu0 %v900
    %7521 = vmatpush1.bf16.msra.mxu0 %v899
    %7522 = vmatprep.subr.bf16.mxu0 %v916
    %7523 = vmatpush1.bf16.msra.mxu0 %v915
    %7524 = vmatprep.subr.bf16.mxu0 %v932
    %7525 = vmatpush1.bf16.msra.mxu0 %v931
    %7526 = vmatprep.subr.bf16.mxu0 %v948
    %7527 = vmatpush1.bf16.msra.mxu0 %v947
    %7528 = vmatprep.subr.bf16.mxu0 %v964
    %7529 = vmatpush1.bf16.msra.mxu0 %v963
    %7530 = vmatprep.subr.bf16.mxu0 %v980
    %7531 = vmatpush1.bf16.msra.mxu0 %v979
    %7532 = vmatprep.subr.bf16.mxu0 %v996
    %7533 = vmatpush1.bf16.msra.mxu0 %v995
    %7534 = vmatprep.subr.bf16.mxu0 %v1012
    %7535 = vmatpush1.bf16.msra.mxu0 %v1011
    %7536 = vmatprep.subr.bf16.mxu0 %v1028
    %7537 = vmatpush1.bf16.msra.mxu0 %v1027
    %7538 = vmatprep.subr.bf16.mxu0 %v1044
    %7539 = vmatpush1.bf16.msra.mxu0 %v1043
    %7540 = vmatprep.subr.bf16.mxu0 %v1060
    %7541 = vmatpush1.bf16.msra.mxu0 %v1059
    %7542 = vmatprep.subr.bf16.mxu0 %v1076
    %7543 = vmatpush1.bf16.msra.mxu0 %v1075
    %7544 = vmatprep.subr.bf16.mxu0 %v1092
    %7545 = vmatpush1.bf16.msra.mxu0 %v1091
    %7546 = vmatprep.subr.bf16.mxu0 %v1108
    %7547 = vmatpush1.bf16.msra.mxu0 %v1107
    %7548 = vmatprep.subr.bf16.mxu0 %v1124
    %7549 = vmatpush1.bf16.msra.mxu0 %v1123
    %7550 = vmatprep.mubr.bf16.mxu0 %v7269
    %7551 = vmatmul.mubr.bf16.gmra.mrb[0].mxu0 %v7268
    %v7552 = vpop.f32.mrb[0].mxu0
    %v7553 = vadd.f32 0.0, %v7552
    %v7554 = vpop.f32.mrb[0].mxu0
    %v7555 = vadd.f32 0.0, %v7554
    %v7556 = vpop.f32.mrb[0].mxu0
    %v7557 = vpop.f32.mrb[0].mxu0
    %7558 = vdwg.mxu0
    %7559 = vmatprep.subr.bf16.mxu0 %v1140
    %7560 = vmatpush1.bf16.msra.mxu0 %v1139
    %7561 = vmatprep.subr.bf16.mxu0 %v1156
    %7562 = vmatpush1.bf16.msra.mxu0 %v1155
    %7563 = vmatprep.subr.bf16.mxu0 %v1172
    %7564 = vmatpush1.bf16.msra.mxu0 %v1171
    %7565 = vmatprep.subr.bf16.mxu0 %v1188
    %7566 = vmatpush1.bf16.msra.mxu0 %v1187
    %7567 = vmatprep.subr.bf16.mxu0 %v1204
    %7568 = vmatpush1.bf16.msra.mxu0 %v1203
    %7569 = vmatprep.subr.bf16.mxu0 %v1220
    %7570 = vmatpush1.bf16.msra.mxu0 %v1219
    %7571 = vmatprep.subr.bf16.mxu0 %v1236
    %7572 = vmatpush1.bf16.msra.mxu0 %v1235
    %7573 = vmatprep.subr.bf16.mxu0 %v1252
    %7574 = vmatpush1.bf16.msra.mxu0 %v1251
    %7575 = vmatprep.subr.bf16.mxu0 %v1268
    %7576 = vmatpush1.bf16.msra.mxu0 %v1267
    %7577 = vmatprep.subr.bf16.mxu0 %v1284
    %7578 = vmatpush1.bf16.msra.mxu0 %v1283
    %7579 = vmatprep.subr.bf16.mxu0 %v1300
    %7580 = vmatpush1.bf16.msra.mxu0 %v1299
    %7581 = vmatprep.subr.bf16.mxu0 %v1316
    %7582 = vmatpush1.bf16.msra.mxu0 %v1315
    %7583 = vmatprep.subr.bf16.mxu0 %v1332
    %7584 = vmatpush1.bf16.msra.mxu0 %v1331
    %7585 = vmatprep.subr.bf16.mxu0 %v1348
    %7586 = vmatpush1.bf16.msra.mxu0 %v1347
    %7587 = vmatprep.subr.bf16.mxu0 %v1364
    %7588 = vmatpush1.bf16.msra.mxu0 %v1363
    %7589 = vmatprep.subr.bf16.mxu0 %v1380
    %7590 = vmatpush1.bf16.msra.mxu0 %v1379
    %7591 = vmatprep.mubr.bf16.mxu0 %v7271
    %7592 = vmatmul.mubr.bf16.gmra.mrb[0].mxu0 %v7270
    %v7593 = vpop.f32.mrb[0].mxu0
    %v7594 = vadd.f32 %v7553, %v7593
    %v7595 = vpop.f32.mrb[0].mxu0
    %v7596 = vadd.f32 %v7555, %v7595
    %v7597 = vpop.f32.mrb[0].mxu0
    %v7598 = vpop.f32.mrb[0].mxu0
    %7599 = vdwg.mxu0
    %7600 = vmatprep.subr.bf16.mxu0 %v886
    %7601 = vmatpush1.bf16.msra.mxu0 %v885
    %7602 = vmatprep.subr.bf16.mxu0 %v902
    %7603 = vmatpush1.bf16.msra.mxu0 %v901
    %7604 = vmatprep.subr.bf16.mxu0 %v918
    %7605 = vmatpush1.bf16.msra.mxu0 %v917
    %7606 = vmatprep.subr.bf16.mxu0 %v934
    %7607 = vmatpush1.bf16.msra.mxu0 %v933
    %7608 = vmatprep.subr.bf16.mxu0 %v950
    %7609 = vmatpush1.bf16.msra.mxu0 %v949
    %7610 = vmatprep.subr.bf16.mxu0 %v966
    %7611 = vmatpush1.bf16.msra.mxu0 %v965
    %7612 = vmatprep.subr.bf16.mxu0 %v982
    %7613 = vmatpush1.bf16.msra.mxu0 %v981
    %7614 = vmatprep.subr.bf16.mxu0 %v998
    %7615 = vmatpush1.bf16.msra.mxu0 %v997
    %7616 = vmatprep.subr.bf16.mxu0 %v1014
    %7617 = vmatpush1.bf16.msra.mxu0 %v1013
    %7618 = vmatprep.subr.bf16.mxu0 %v1030
    %7619 = vmatpush1.bf16.msra.mxu0 %v1029
    %7620 = vmatprep.subr.bf16.mxu0 %v1046
    %7621 = vmatpush1.bf16.msra.mxu0 %v1045
    %7622 = vmatprep.subr.bf16.mxu0 %v1062
    %7623 = vmatpush1.bf16.msra.mxu0 %v1061
    %7624 = vmatprep.subr.bf16.mxu0 %v1078
    %7625 = vmatpush1.bf16.msra.mxu0 %v1077
    %7626 = vmatprep.subr.bf16.mxu0 %v1094
    %7627 = vmatpush1.bf16.msra.mxu0 %v1093
    %7628 = vmatprep.subr.bf16.mxu0 %v1110
    %7629 = vmatpush1.bf16.msra.mxu0 %v1109
    %7630 = vmatprep.subr.bf16.mxu0 %v1126
    %7631 = vmatpush1.bf16.msra.mxu0 %v1125
    %7632 = vmatprep.mubr.bf16.mxu0 %v7269
    %7633 = vmatmul.mubr.bf16.gmra.mrb[0].mxu0 %v7268
    %v7634 = vpop.f32.mrb[0].mxu0
    %v7635 = vadd.f32 0.0, %v7634
    %v7636 = vpop.f32.mrb[0].mxu0
    %v7637 = vadd.f32 0.0, %v7636
    %v7638 = vpop.f32.mrb[0].mxu0
    %v7639 = vpop.f32.mrb[0].mxu0
    %7640 = vdwg.mxu0
    %7641 = vmatprep.subr.bf16.mxu0 %v1142
    %7642 = vmatpush1.bf16.msra.mxu0 %v1141
    %7643 = vmatprep.subr.bf16.mxu0 %v1158
    %7644 = vmatpush1.bf16.msra.mxu0 %v1157
    %7645 = vmatprep.subr.bf16.mxu0 %v1174
    %7646 = vmatpush1.bf16.msra.mxu0 %v1173
    %7647 = vmatprep.subr.bf16.mxu0 %v1190
    %7648 = vmatpush1.bf16.msra.mxu0 %v1189
    %7649 = vmatprep.subr.bf16.mxu0 %v1206
    %7650 = vmatpush1.bf16.msra.mxu0 %v1205
    %7651 = vmatprep.subr.bf16.mxu0 %v1222
    %7652 = vmatpush1.bf16.msra.mxu0 %v1221
    %7653 = vmatprep.subr.bf16.mxu0 %v1238
    %7654 = vmatpush1.bf16.msra.mxu0 %v1237
    %7655 = vmatprep.subr.bf16.mxu0 %v1254
    %7656 = vmatpush1.bf16.msra.mxu0 %v1253
    %7657 = vmatprep.subr.bf16.mxu0 %v1270
    %7658 = vmatpush1.bf16.msra.mxu0 %v1269
    %7659 = vmatprep.subr.bf16.mxu0 %v1286
    %7660 = vmatpush1.bf16.msra.mxu0 %v1285
    %7661 = vmatprep.subr.bf16.mxu0 %v1302
    %7662 = vmatpush1.bf16.msra.mxu0 %v1301
    %7663 = vmatprep.subr.bf16.mxu0 %v1318
    %7664 = vmatpush1.bf16.msra.mxu0 %v1317
    %7665 = vmatprep.subr.bf16.mxu0 %v1334
    %7666 = vmatpush1.bf16.msra.mxu0 %v1333
    %7667 = vmatprep.subr.bf16.mxu0 %v1350
    %7668 = vmatpush1.bf16.msra.mxu0 %v1349
    %7669 = vmatprep.subr.bf16.mxu0 %v1366
    %7670 = vmatpush1.bf16.msra.mxu0 %v1365
    %7671 = vmatprep.subr.bf16.mxu0 %v1382
    %7672 = vmatpush1.bf16.msra.mxu0 %v1381
    %7673 = vmatprep.mubr.bf16.mxu0 %v7271
    %7674 = vmatmul.mubr.bf16.gmra.mrb[0].mxu0 %v7270
    %v7675 = vpop.f32.mrb[0].mxu0
    %v7676 = vadd.f32 %v7635, %v7675
    %v7677 = vpop.f32.mrb[0].mxu0
    %v7678 = vadd.f32 %v7637, %v7677
    %v7679 = vpop.f32.mrb[0].mxu0
    %v7680 = vpop.f32.mrb[0].mxu0
    %7681 = vdwg.mxu0
    %7682 = vmatprep.subr.bf16.mxu0 %v888
    %7683 = vmatpush1.bf16.msra.mxu0 %v887
    %7684 = vmatprep.subr.bf16.mxu0 %v904
    %7685 = vmatpush1.bf16.msra.mxu0 %v903
    %7686 = vmatprep.subr.bf16.mxu0 %v920
    %7687 = vmatpush1.bf16.msra.mxu0 %v919
    %7688 = vmatprep.subr.bf16.mxu0 %v936
    %7689 = vmatpush1.bf16.msra.mxu0 %v935
    %7690 = vmatprep.subr.bf16.mxu0 %v952
    %7691 = vmatpush1.bf16.msra.mxu0 %v951
    %7692 = vmatprep.subr.bf16.mxu0 %v968
    %7693 = vmatpush1.bf16.msra.mxu0 %v967
    %7694 = vmatprep.subr.bf16.mxu0 %v984
    %7695 = vmatpush1.bf16.msra.mxu0 %v983
    %7696 = vmatprep.subr.bf16.mxu0 %v1000
    %7697 = vmatpush1.bf16.msra.mxu0 %v999
    %7698 = vmatprep.subr.bf16.mxu0 %v1016
    %7699 = vmatpush1.bf16.msra.mxu0 %v1015
    %7700 = vmatprep.subr.bf16.mxu0 %v1032
    %7701 = vmatpush1.bf16.msra.mxu0 %v1031
    %7702 = vmatprep.subr.bf16.mxu0 %v1048
    %7703 = vmatpush1.bf16.msra.mxu0 %v1047
    %7704 = vmatprep.subr.bf16.mxu0 %v1064
    %7705 = vmatpush1.bf16.msra.mxu0 %v1063
    %7706 = vmatprep.subr.bf16.mxu0 %v1080
    %7707 = vmatpush1.bf16.msra.mxu0 %v1079
    %7708 = vmatprep.subr.bf16.mxu0 %v1096
    %7709 = vmatpush1.bf16.msra.mxu0 %v1095
    %7710 = vmatprep.subr.bf16.mxu0 %v1112
    %7711 = vmatpush1.bf16.msra.mxu0 %v1111
    %7712 = vmatprep.subr.bf16.mxu0 %v1128
    %7713 = vmatpush1.bf16.msra.mxu0 %v1127
    %7714 = vmatprep.mubr.bf16.mxu0 %v7269
    %7715 = vmatmul.mubr.bf16.gmra.mrb[0].mxu0 %v7268
    %v7716 = vpop.f32.mrb[0].mxu0
    %v7717 = vadd.f32 0.0, %v7716
    %v7718 = vpop.f32.mrb[0].mxu0
    %v7719 = vadd.f32 0.0, %v7718
    %v7720 = vpop.f32.mrb[0].mxu0
    %v7721 = vpop.f32.mrb[0].mxu0
    %7722 = vdwg.mxu0
    %7723 = vmatprep.subr.bf16.mxu0 %v1144
    %7724 = vmatpush1.bf16.msra.mxu0 %v1143
    %7725 = vmatprep.subr.bf16.mxu0 %v1160
    %7726 = vmatpush1.bf16.msra.mxu0 %v1159
    %7727 = vmatprep.subr.bf16.mxu0 %v1176
    %7728 = vmatpush1.bf16.msra.mxu0 %v1175
    %7729 = vmatprep.subr.bf16.mxu0 %v1192
    %7730 = vmatpush1.bf16.msra.mxu0 %v1191
    %7731 = vmatprep.subr.bf16.mxu0 %v1208
    %7732 = vmatpush1.bf16.msra.mxu0 %v1207
    %7733 = vmatprep.subr.bf16.mxu0 %v1224
    %7734 = vmatpush1.bf16.msra.mxu0 %v1223
    %7735 = vmatprep.subr.bf16.mxu0 %v1240
    %7736 = vmatpush1.bf16.msra.mxu0 %v1239
    %7737 = vmatprep.subr.bf16.mxu0 %v1256
    %7738 = vmatpush1.bf16.msra.mxu0 %v1255
    %7739 = vmatprep.subr.bf16.mxu0 %v1272
    %7740 = vmatpush1.bf16.msra.mxu0 %v1271
    %7741 = vmatprep.subr.bf16.mxu0 %v1288
    %7742 = vmatpush1.bf16.msra.mxu0 %v1287
    %7743 = vmatprep.subr.bf16.mxu0 %v1304
    %7744 = vmatpush1.bf16.msra.mxu0 %v1303
    %7745 = vmatprep.subr.bf16.mxu0 %v1320
    %7746 = vmatpush1.bf16.msra.mxu0 %v1319
    %7747 = vmatprep.subr.bf16.mxu0 %v1336
    %7748 = vmatpush1.bf16.msra.mxu0 %v1335
    %7749 = vmatprep.subr.bf16.mxu0 %v1352
    %7750 = vmatpush1.bf16.msra.mxu0 %v1351
    %7751 = vmatprep.subr.bf16.mxu0 %v1368
    %7752 = vmatpush1.bf16.msra.mxu0 %v1367
    %7753 = vmatprep.subr.bf16.mxu0 %v1384
    %7754 = vmatpush1.bf16.msra.mxu0 %v1383
    %7755 = vmatprep.mubr.bf16.mxu0 %v7271
    %7756 = vmatmul.mubr.bf16.gmra.mrb[0].mxu0 %v7270
    %v7757 = vpop.f32.mrb[0].mxu0
    %v7758 = vadd.f32 %v7717, %v7757
    %v7759 = vpop.f32.mrb[0].mxu0
    %v7760 = vadd.f32 %v7719, %v7759
    %v7761 = vpop.f32.mrb[0].mxu0
    %v7762 = vpop.f32.mrb[0].mxu0
    %7763 = vdwg.mxu0
    %7764 = vmatprep.subr.bf16.mxu0 %v890
    %7765 = vmatpush1.bf16.msra.mxu0 %v889
    %7766 = vmatprep.subr.bf16.mxu0 %v906
    %7767 = vmatpush1.bf16.msra.mxu0 %v905
    %7768 = vmatprep.subr.bf16.mxu0 %v922
    %7769 = vmatpush1.bf16.msra.mxu0 %v921
    %7770 = vmatprep.subr.bf16.mxu0 %v938
    %7771 = vmatpush1.bf16.msra.mxu0 %v937
    %7772 = vmatprep.subr.bf16.mxu0 %v954
    %7773 = vmatpush1.bf16.msra.mxu0 %v953
    %7774 = vmatprep.subr.bf16.mxu0 %v970
    %7775 = vmatpush1.bf16.msra.mxu0 %v969
    %7776 = vmatprep.subr.bf16.mxu0 %v986
    %7777 = vmatpush1.bf16.msra.mxu0 %v985
    %7778 = vmatprep.subr.bf16.mxu0 %v1002
    %7779 = vmatpush1.bf16.msra.mxu0 %v1001
    %7780 = vmatprep.subr.bf16.mxu0 %v1018
    %7781 = vmatpush1.bf16.msra.mxu0 %v1017
    %7782 = vmatprep.subr.bf16.mxu0 %v1034
    %7783 = vmatpush1.bf16.msra.mxu0 %v1033
    %7784 = vmatprep.subr.bf16.mxu0 %v1050
    %7785 = vmatpush1.bf16.msra.mxu0 %v1049
    %7786 = vmatprep.subr.bf16.mxu0 %v1066
    %7787 = vmatpush1.bf16.msra.mxu0 %v1065
    %7788 = vmatprep.subr.bf16.mxu0 %v1082
    %7789 = vmatpush1.bf16.msra.mxu0 %v1081
    %7790 = vmatprep.subr.bf16.mxu0 %v1098
    %7791 = vmatpush1.bf16.msra.mxu0 %v1097
    %7792 = vmatprep.subr.bf16.mxu0 %v1114
    %7793 = vmatpush1.bf16.msra.mxu0 %v1113
    %7794 = vmatprep.subr.bf16.mxu0 %v1130
    %7795 = vmatpush1.bf16.msra.mxu0 %v1129
    %7796 = vmatprep.mubr.bf16.mxu0 %v7269
    %7797 = vmatmul.mubr.bf16.gmra.mrb[0].mxu0 %v7268
    %v7798 = vpop.f32.mrb[0].mxu0
    %v7799 = vadd.f32 0.0, %v7798
    %v7800 = vpop.f32.mrb[0].mxu0
    %v7801 = vadd.f32 0.0, %v7800
    %v7802 = vpop.f32.mrb[0].mxu0
    %v7803 = vpop.f32.mrb[0].mxu0
    %7804 = vdwg.mxu0
    %7805 = vmatprep.subr.bf16.mxu0 %v1146
    %7806 = vmatpush1.bf16.msra.mxu0 %v1145
    %7807 = vmatprep.subr.bf16.mxu0 %v1162
    %7808 = vmatpush1.bf16.msra.mxu0 %v1161
    %7809 = vmatprep.subr.bf16.mxu0 %v1178
    %7810 = vmatpush1.bf16.msra.mxu0 %v1177
    %7811 = vmatprep.subr.bf16.mxu0 %v1194
    %7812 = vmatpush1.bf16.msra.mxu0 %v1193
    %7813 = vmatprep.subr.bf16.mxu0 %v1210
    %7814 = vmatpush1.bf16.msra.mxu0 %v1209
    %7815 = vmatprep.subr.bf16.mxu0 %v1226
    %7816 = vmatpush1.bf16.msra.mxu0 %v1225
    %7817 = vmatprep.subr.bf16.mxu0 %v1242
    %7818 = vmatpush1.bf16.msra.mxu0 %v1241
    %7819 = vmatprep.subr.bf16.mxu0 %v1258
    %7820 = vmatpush1.bf16.msra.mxu0 %v1257
    %7821 = vmatprep.subr.bf16.mxu0 %v1274
    %7822 = vmatpush1.bf16.msra.mxu0 %v1273
    %7823 = vmatprep.subr.bf16.mxu0 %v1290
    %7824 = vmatpush1.bf16.msra.mxu0 %v1289
    %7825 = vmatprep.subr.bf16.mxu0 %v1306
    %7826 = vmatpush1.bf16.msra.mxu0 %v1305
    %7827 = vmatprep.subr.bf16.mxu0 %v1322
    %7828 = vmatpush1.bf16.msra.mxu0 %v1321
    %7829 = vmatprep.subr.bf16.mxu0 %v1338
    %7830 = vmatpush1.bf16.msra.mxu0 %v1337
    %7831 = vmatprep.subr.bf16.mxu0 %v1354
    %7832 = vmatpush1.bf16.msra.mxu0 %v1353
    %7833 = vmatprep.subr.bf16.mxu0 %v1370
    %7834 = vmatpush1.bf16.msra.mxu0 %v1369
    %7835 = vmatprep.subr.bf16.mxu0 %v1386
    %7836 = vmatpush1.bf16.msra.mxu0 %v1385
    %7837 = vmatprep.mubr.bf16.mxu0 %v7271
    %7838 = vmatmul.mubr.bf16.gmra.mrb[0].mxu0 %v7270
    %v7839 = vpop.f32.mrb[0].mxu0
    %v7840 = vadd.f32 %v7799, %v7839
    %v7841 = vpop.f32.mrb[0].mxu0
    %v7842 = vadd.f32 %v7801, %v7841
    %v7843 = vpop.f32.mrb[0].mxu0
    %v7844 = vpop.f32.mrb[0].mxu0
    %7845 = vdwg.mxu0
    %7846 = vmatprep.subr.bf16.mxu0 %v892
    %7847 = vmatpush1.bf16.msra.mxu0 %v891
    %7848 = vmatprep.subr.bf16.mxu0 %v908
    %7849 = vmatpush1.bf16.msra.mxu0 %v907
    %7850 = vmatprep.subr.bf16.mxu0 %v924
    %7851 = vmatpush1.bf16.msra.mxu0 %v923
    %7852 = vmatprep.subr.bf16.mxu0 %v940
    %7853 = vmatpush1.bf16.msra.mxu0 %v939
    %7854 = vmatprep.subr.bf16.mxu0 %v956
    %7855 = vmatpush1.bf16.msra.mxu0 %v955
    %7856 = vmatprep.subr.bf16.mxu0 %v972
    %7857 = vmatpush1.bf16.msra.mxu0 %v971
    %7858 = vmatprep.subr.bf16.mxu0 %v988
    %7859 = vmatpush1.bf16.msra.mxu0 %v987
    %7860 = vmatprep.subr.bf16.mxu0 %v1004
    %7861 = vmatpush1.bf16.msra.mxu0 %v1003
    %7862 = vmatprep.subr.bf16.mxu0 %v1020
    %7863 = vmatpush1.bf16.msra.mxu0 %v1019
    %7864 = vmatprep.subr.bf16.mxu0 %v1036
    %7865 = vmatpush1.bf16.msra.mxu0 %v1035
    %7866 = vmatprep.subr.bf16.mxu0 %v1052
    %7867 = vmatpush1.bf16.msra.mxu0 %v1051
    %7868 = vmatprep.subr.bf16.mxu0 %v1068
    %7869 = vmatpush1.bf16.msra.mxu0 %v1067
    %7870 = vmatprep.subr.bf16.mxu0 %v1084
    %7871 = vmatpush1.bf16.msra.mxu0 %v1083
    %7872 = vmatprep.subr.bf16.mxu0 %v1100
    %7873 = vmatpush1.bf16.msra.mxu0 %v1099
    %7874 = vmatprep.subr.bf16.mxu0 %v1116
    %7875 = vmatpush1.bf16.msra.mxu0 %v1115
    %7876 = vmatprep.subr.bf16.mxu0 %v1132
    %7877 = vmatpush1.bf16.msra.mxu0 %v1131
    %7878 = vmatprep.mubr.bf16.mxu0 %v7269
    %7879 = vmatmul.mubr.bf16.gmra.mrb[0].mxu0 %v7268
    %v7880 = vpop.f32.mrb[0].mxu0
    %v7881 = vadd.f32 0.0, %v7880
    %v7882 = vpop.f32.mrb[0].mxu0
    %v7883 = vadd.f32 0.0, %v7882
    %v7884 = vpop.f32.mrb[0].mxu0
    %v7885 = vpop.f32.mrb[0].mxu0
    %7886 = vdwg.mxu0
    %7887 = vmatprep.subr.bf16.mxu0 %v1148
    %7888 = vmatpush1.bf16.msra.mxu0 %v1147
    %7889 = vmatprep.subr.bf16.mxu0 %v1164
    %7890 = vmatpush1.bf16.msra.mxu0 %v1163
    %7891 = vmatprep.subr.bf16.mxu0 %v1180
    %7892 = vmatpush1.bf16.msra.mxu0 %v1179
    %7893 = vmatprep.subr.bf16.mxu0 %v1196
    %7894 = vmatpush1.bf16.msra.mxu0 %v1195
    %7895 = vmatprep.subr.bf16.mxu0 %v1212
    %7896 = vmatpush1.bf16.msra.mxu0 %v1211
    %7897 = vmatprep.subr.bf16.mxu0 %v1228
    %7898 = vmatpush1.bf16.msra.mxu0 %v1227
    %7899 = vmatprep.subr.bf16.mxu0 %v1244
    %7900 = vmatpush1.bf16.msra.mxu0 %v1243
    %7901 = vmatprep.subr.bf16.mxu0 %v1260
    %7902 = vmatpush1.bf16.msra.mxu0 %v1259
    %7903 = vmatprep.subr.bf16.mxu0 %v1276
    %7904 = vmatpush1.bf16.msra.mxu0 %v1275
    %7905 = vmatprep.subr.bf16.mxu0 %v1292
    %7906 = vmatpush1.bf16.msra.mxu0 %v1291
    %7907 = vmatprep.subr.bf16.mxu0 %v1308
    %7908 = vmatpush1.bf16.msra.mxu0 %v1307
    %7909 = vmatprep.subr.bf16.mxu0 %v1324
    %7910 = vmatpush1.bf16.msra.mxu0 %v1323
    %7911 = vmatprep.subr.bf16.mxu0 %v1340
    %7912 = vmatpush1.bf16.msra.mxu0 %v1339
    %7913 = vmatprep.subr.bf16.mxu0 %v1356
    %7914 = vmatpush1.bf16.msra.mxu0 %v1355
    %7915 = vmatprep.subr.bf16.mxu0 %v1372
    %7916 = vmatpush1.bf16.msra.mxu0 %v1371
    %7917 = vmatprep.subr.bf16.mxu0 %v1388
    %7918 = vmatpush1.bf16.msra.mxu0 %v1387
    %7919 = vmatprep.mubr.bf16.mxu0 %v7271
    %7920 = vmatmul.mubr.bf16.gmra.mrb[0].mxu0 %v7270
    %v7921 = vpop.f32.mrb[0].mxu0
    %v7922 = vadd.f32 %v7881, %v7921
    %v7923 = vpop.f32.mrb[0].mxu0
    %v7924 = vadd.f32 %v7883, %v7923
    %v7925 = vpop.f32.mrb[0].mxu0
    %v7926 = vpop.f32.mrb[0].mxu0
    %7927 = vdwg.mxu0
    %v7944 = vcombine.low %v7348, %v7350
    %v7945 = vcombine.low %v7430, %v7432
    %v7946 = vcombine.low %v7512, %v7514
    %v7947 = vcombine.low %v7594, %v7596
    %v7949 = vunpack.c.l.s4 1966171168
    %v7950 = vunpack.c.0.s8 %v7949
    %v7951 = vlaneseq
    %v7952 = vshrl.u32 %v7951, 7
    %v7953 = vsub.s32 %v7950, %v7952
    %v7954 = vrot.slane %v7944, %v7953
    %v7956 = vunpack.c.l.s4 1966171168
    %v7957 = vunpack.c.0.s8 %v7956
    %v7958 = vlaneseq
    %v7959 = vshrl.u32 %v7958, 7
    %v7960 = vsub.s32 %v7957, %v7959
    %v7961 = vrot.slane %v7945, %v7960
    %v7963 = vunpack.c.l.s4 1966171168
    %v7964 = vunpack.c.0.s8 %v7963
    %v7965 = vlaneseq
    %v7966 = vshrl.u32 %v7965, 7
    %v7967 = vsub.s32 %v7964, %v7966
    %v7968 = vrot.slane %v7946, %v7967
    %v7970 = vunpack.c.l.s4 1966171168
    %v7971 = vunpack.c.0.s8 %v7970
    %v7972 = vlaneseq
    %v7973 = vshrl.u32 %v7972, 7
    %v7974 = vsub.s32 %v7971, %v7973
    %v7975 = vrot.slane %v7947, %v7974
    %v7976 = vcombine.low %v7954, %v7961
    %v7977 = vcombine.low %v7968, %v7975
    %v7979 = vunpack.c.l.s4 1966171168
    %v7980 = vunpack.c.0.s8 %v7979
    %v7981 = vlaneseq
    %v7982 = vshrl.u32 %v7981, 7
    %v7983 = vsub.s32 %v7980, %v7982
    %v7984 = vrot.slane %v7976, %v7983
    %v7986 = vunpack.c.l.s4 1966171168
    %v7987 = vunpack.c.0.s8 %v7986
    %v7988 = vlaneseq
    %v7989 = vshrl.u32 %v7988, 7
    %v7990 = vsub.s32 %v7987, %v7989
    %v7991 = vrot.slane %v7977, %v7990
    %v7992 = vcombine.low %v7984, %v7991
    %v7993 = vcombine.low %v7676, %v7678
    %v7994 = vcombine.low %v7758, %v7760
    %v7995 = vcombine.low %v7840, %v7842
    %v7996 = vcombine.low %v7922, %v7924
    %v7998 = vunpack.c.l.s4 1966171168
    %v7999 = vunpack.c.0.s8 %v7998
    %v8000 = vlaneseq
    %v8001 = vshrl.u32 %v8000, 7
    %v8002 = vsub.s32 %v7999, %v8001
    %v8003 = vrot.slane %v7993, %v8002
    %v8005 = vunpack.c.l.s4 1966171168
    %v8006 = vunpack.c.0.s8 %v8005
    %v8007 = vlaneseq
    %v8008 = vshrl.u32 %v8007, 7
    %v8009 = vsub.s32 %v8006, %v8008
    %v8010 = vrot.slane %v7994, %v8009
    %v8012 = vunpack.c.l.s4 1966171168
    %v8013 = vunpack.c.0.s8 %v8012
    %v8014 = vlaneseq
    %v8015 = vshrl.u32 %v8014, 7
    %v8016 = vsub.s32 %v8013, %v8015
    %v8017 = vrot.slane %v7995, %v8016
    %v8019 = vunpack.c.l.s4 1966171168
    %v8020 = vunpack.c.0.s8 %v8019
    %v8021 = vlaneseq
    %v8022 = vshrl.u32 %v8021, 7
    %v8023 = vsub.s32 %v8020, %v8022
    %v8024 = vrot.slane %v7996, %v8023
    %v8025 = vcombine.low %v8003, %v8010
    %v8026 = vcombine.low %v8017, %v8024
    %v8028 = vunpack.c.l.s4 1966171168
    %v8029 = vunpack.c.0.s8 %v8028
    %v8030 = vlaneseq
    %v8031 = vshrl.u32 %v8030, 7
    %v8032 = vsub.s32 %v8029, %v8031
    %v8033 = vrot.slane %v8025, %v8032
    %v8035 = vunpack.c.l.s4 1966171168
    %v8036 = vunpack.c.0.s8 %v8035
    %v8037 = vlaneseq
    %v8038 = vshrl.u32 %v8037, 7
    %v8039 = vsub.s32 %v8036, %v8038
    %v8040 = vrot.slane %v8026, %v8039
    %v8041 = vcombine.low %v8033, %v8040
    %v8044 = vadd.f32 %v7243, %v7992
    %v8045 = vadd.f32 %v7247, %v8041
    %v8046 = vxor.u32 %v8044, 2147483648
    %v8047 = vxor.u32 %v8045, 2147483648
    %v8048 = vmul.f32 %v8046, 1.442695
    %v8049 = vpow.pop %v8048
    %v8050 = vmul.f32 %v8047, 1.442695
    %v8051 = vpow.pop %v8050
    %v8052 = vadd.f32 %v8049, 1.0
    %v8053 = vadd.f32 %v8051, 1.0
    %v8054 = vrcp.pop %v8052
    %v8055 = vmul.f32 1.0, %v8054
    %v8056 = vrcp.pop %v8053
    %v8057 = vmul.f32 1.0, %v8056
    %v8059 = vrot.slane %v8045, 4
    %v8061 = vtanh.pop %v8059
    %v8063 = vrot.slane %v8055, 4
    %v8065 = vmul.f32 %v8063, %v7228
    %v8066 = vmul.f32 %v8055, %v8061
    %v8067 = vadd.f32 %v8065, %v8066
    %v8068 = vtanh.pop %v8067
    %v8069 = vmul.f32 %v8057, %v8068
    %s8070 = scalar_lea.vmem [#allocation5], 7
    %8071 = vst.msk [vmem:[%s8070] ss:$8 sm:$0x3] %vm2197, %v8069
    %8072 = vst.msk [vmem:[%s8070] ss:$8 sm:$0x0] %vm2197, %v8069
    %v8074 = vrot.slane %v8069, 2
    %s8076 = scalar_lea.vmem [#allocation5], 16
    %8077 = vst.msk [vmem:[%s8076] ss:$8 sm:$0x3] %vm2197, %v8074
    %8078 = vst.msk [vmem:[%s8076] ss:$8 sm:$0x0] %vm2197, %v8074
    %v8079 = vld [vmem:[#allocation5] sm:$0xff]
    %v8080 = vld [vmem:[#allocation5 + $0x8] sm:$0xff]
    %v8081 = vld [vmem:[#allocation5 + $0x10] sm:$0xff]
    %v8082 = vld [vmem:[#allocation5 + $0x18] sm:$0xff]
    %v8083 = vld [vmem:[%s2] sm:$0xf]
    %v8084 = vld [vmem:[%s2 + $0x4] sm:$0xf]
    %v8085 = vld [vmem:[%s2 + $0x8] sm:$0xf]
    %v8086 = vld [vmem:[%s2 + $0xc] sm:$0xf]
    %v8087 = vld [vmem:[%s2 + $0x10] sm:$0xf]
    %v8088 = vld [vmem:[%s2 + $0x14] sm:$0xf]
    %v8089 = vld [vmem:[%s2 + $0x18] sm:$0xf]
    %v8090 = vld [vmem:[%s2 + $0x1c] sm:$0xf]
    %v8091 = vld [vmem:[%s2 + $0x20] sm:$0xf]
    %v8092 = vld [vmem:[%s2 + $0x24] sm:$0xf]
    %v8093 = vld [vmem:[%s2 + $0x28] sm:$0xf]
    %v8094 = vld [vmem:[%s2 + $0x2c] sm:$0xf]
    %v8095 = vld [vmem:[%s2 + $0x30] sm:$0xf]
    %v8096 = vld [vmem:[%s2 + $0x34] sm:$0xf]
    %v8097 = vld [vmem:[%s2 + $0x38] sm:$0xf]
    %v8098 = vld [vmem:[%s2 + $0x3c] sm:$0xf]
    %v8099 = vld [vmem:[%s2 + $0x40] sm:$0xf]
    %v8100 = vld [vmem:[%s2 + $0x44] sm:$0xf]
    %v8101 = vld [vmem:[%s2 + $0x48] sm:$0xf]
    %v8102 = vld [vmem:[%s2 + $0x4c] sm:$0xf]
    %v8103 = vld [vmem:[%s2 + $0x50] sm:$0xf]
    %v8104 = vld [vmem:[%s2 + $0x54] sm:$0xf]
    %v8105 = vld [vmem:[%s2 + $0x58] sm:$0xf]
    %v8106 = vld [vmem:[%s2 + $0x5c] sm:$0xf]
    %v8107 = vld [vmem:[%s2 + $0x60] sm:$0xf]
    %v8108 = vld [vmem:[%s2 + $0x64] sm:$0xf]
    %v8109 = vld [vmem:[%s2 + $0x68] sm:$0xf]
    %v8110 = vld [vmem:[%s2 + $0x6c] sm:$0xf]
    %v8111 = vld [vmem:[%s2 + $0x70] sm:$0xf]
    %v8112 = vld [vmem:[%s2 + $0x74] sm:$0xf]
    %v8113 = vld [vmem:[%s2 + $0x78] sm:$0xf]
    %v8114 = vld [vmem:[%s2 + $0x7c] sm:$0xf]
    %v8115 = vld [vmem:[%s2 + $0x80] sm:$0xf]
    %v8116 = vld [vmem:[%s2 + $0x84] sm:$0xf]
    %v8117 = vld [vmem:[%s2 + $0x88] sm:$0xf]
    %v8118 = vld [vmem:[%s2 + $0x8c] sm:$0xf]
    %v8119 = vld [vmem:[%s2 + $0x90] sm:$0xf]
    %v8120 = vld [vmem:[%s2 + $0x94] sm:$0xf]
    %v8121 = vld [vmem:[%s2 + $0x98] sm:$0xf]
    %v8122 = vld [vmem:[%s2 + $0x9c] sm:$0xf]
    %v8123 = vld [vmem:[%s2 + $0xa0] sm:$0xf]
    %v8124 = vld [vmem:[%s2 + $0xa4] sm:$0xf]
    %v8125 = vld [vmem:[%s2 + $0xa8] sm:$0xf]
    %v8126 = vld [vmem:[%s2 + $0xac] sm:$0xf]
    %v8127 = vld [vmem:[%s2 + $0xb0] sm:$0xf]
    %v8128 = vld [vmem:[%s2 + $0xb4] sm:$0xf]
    %v8129 = vld [vmem:[%s2 + $0xb8] sm:$0xf]
    %v8130 = vld [vmem:[%s2 + $0xbc] sm:$0xf]
    %v8131 = vld [vmem:[%s2 + $0xc0] sm:$0xf]
    %v8132 = vld [vmem:[%s2 + $0xc4] sm:$0xf]
    %v8133 = vld [vmem:[%s2 + $0xc8] sm:$0xf]
    %v8134 = vld [vmem:[%s2 + $0xcc] sm:$0xf]
    %v8135 = vld [vmem:[%s2 + $0xd0] sm:$0xf]
    %v8136 = vld [vmem:[%s2 + $0xd4] sm:$0xf]
    %v8137 = vld [vmem:[%s2 + $0xd8] sm:$0xf]
    %v8138 = vld [vmem:[%s2 + $0xdc] sm:$0xf]
    %v8139 = vld [vmem:[%s2 + $0xe0] sm:$0xf]
    %v8140 = vld [vmem:[%s2 + $0xe4] sm:$0xf]
    %v8141 = vld [vmem:[%s2 + $0xe8] sm:$0xf]
    %v8142 = vld [vmem:[%s2 + $0xec] sm:$0xf]
    %v8143 = vld [vmem:[%s2 + $0xf0] sm:$0xf]
    %v8144 = vld [vmem:[%s2 + $0xf4] sm:$0xf]
    %v8145 = vld [vmem:[%s2 + $0xf8] sm:$0xf]
    %v8146 = vld [vmem:[%s2 + $0xfc] sm:$0xf]
    %v8147 = vld [vmem:[%s2 + $0x100] sm:$0xf]
    %v8148 = vld [vmem:[%s2 + $0x104] sm:$0xf]
    %v8149 = vld [vmem:[%s2 + $0x108] sm:$0xf]
    %v8150 = vld [vmem:[%s2 + $0x10c] sm:$0xf]
    %v8151 = vld [vmem:[%s2 + $0x110] sm:$0xf]
    %v8152 = vld [vmem:[%s2 + $0x114] sm:$0xf]
    %v8153 = vld [vmem:[%s2 + $0x118] sm:$0xf]
    %v8154 = vld [vmem:[%s2 + $0x11c] sm:$0xf]
    %v8155 = vld [vmem:[%s2 + $0x120] sm:$0xf]
    %v8156 = vld [vmem:[%s2 + $0x124] sm:$0xf]
    %v8157 = vld [vmem:[%s2 + $0x128] sm:$0xf]
    %v8158 = vld [vmem:[%s2 + $0x12c] sm:$0xf]
    %v8159 = vld [vmem:[%s2 + $0x130] sm:$0xf]
    %v8160 = vld [vmem:[%s2 + $0x134] sm:$0xf]
    %v8161 = vld [vmem:[%s2 + $0x138] sm:$0xf]
    %v8162 = vld [vmem:[%s2 + $0x13c] sm:$0xf]
    %v8163 = vld [vmem:[%s2 + $0x140] sm:$0xf]
    %v8164 = vld [vmem:[%s2 + $0x144] sm:$0xf]
    %v8165 = vld [vmem:[%s2 + $0x148] sm:$0xf]
    %v8166 = vld [vmem:[%s2 + $0x14c] sm:$0xf]
    %v8167 = vld [vmem:[%s2 + $0x150] sm:$0xf]
    %v8168 = vld [vmem:[%s2 + $0x154] sm:$0xf]
    %v8169 = vld [vmem:[%s2 + $0x158] sm:$0xf]
    %v8170 = vld [vmem:[%s2 + $0x15c] sm:$0xf]
    %v8171 = vld [vmem:[%s2 + $0x160] sm:$0xf]
    %v8172 = vld [vmem:[%s2 + $0x164] sm:$0xf]
    %v8173 = vld [vmem:[%s2 + $0x168] sm:$0xf]
    %v8174 = vld [vmem:[%s2 + $0x16c] sm:$0xf]
    %v8175 = vld [vmem:[%s2 + $0x170] sm:$0xf]
    %v8176 = vld [vmem:[%s2 + $0x174] sm:$0xf]
    %v8177 = vld [vmem:[%s2 + $0x178] sm:$0xf]
    %v8178 = vld [vmem:[%s2 + $0x17c] sm:$0xf]
    %v8179 = vld [vmem:[%s2 + $0x180] sm:$0xf]
    %v8180 = vld [vmem:[%s2 + $0x184] sm:$0xf]
    %v8181 = vld [vmem:[%s2 + $0x188] sm:$0xf]
    %v8182 = vld [vmem:[%s2 + $0x18c] sm:$0xf]
    %v8183 = vld [vmem:[%s2 + $0x190] sm:$0xf]
    %v8184 = vld [vmem:[%s2 + $0x194] sm:$0xf]
    %v8185 = vld [vmem:[%s2 + $0x198] sm:$0xf]
    %v8186 = vld [vmem:[%s2 + $0x19c] sm:$0xf]
    %v8187 = vld [vmem:[%s2 + $0x1a0] sm:$0xf]
    %v8188 = vld [vmem:[%s2 + $0x1a4] sm:$0xf]
    %v8189 = vld [vmem:[%s2 + $0x1a8] sm:$0xf]
    %v8190 = vld [vmem:[%s2 + $0x1ac] sm:$0xf]
    %v8191 = vld [vmem:[%s2 + $0x1b0] sm:$0xf]
    %v8192 = vld [vmem:[%s2 + $0x1b4] sm:$0xf]
    %v8193 = vld [vmem:[%s2 + $0x1b8] sm:$0xf]
    %v8194 = vld [vmem:[%s2 + $0x1bc] sm:$0xf]
    %v8195 = vld [vmem:[%s2 + $0x1c0] sm:$0xf]
    %v8196 = vld [vmem:[%s2 + $0x1c4] sm:$0xf]
    %v8197 = vld [vmem:[%s2 + $0x1c8] sm:$0xf]
    %v8198 = vld [vmem:[%s2 + $0x1cc] sm:$0xf]
    %v8199 = vld [vmem:[%s2 + $0x1d0] sm:$0xf]
    %v8200 = vld [vmem:[%s2 + $0x1d4] sm:$0xf]
    %v8201 = vld [vmem:[%s2 + $0x1d8] sm:$0xf]
    %v8202 = vld [vmem:[%s2 + $0x1dc] sm:$0xf]
    %v8203 = vld [vmem:[%s2 + $0x1e0] sm:$0xf]
    %v8204 = vld [vmem:[%s2 + $0x1e4] sm:$0xf]
    %v8205 = vld [vmem:[%s2 + $0x1e8] sm:$0xf]
    %v8206 = vld [vmem:[%s2 + $0x1ec] sm:$0xf]
    %v8207 = vld [vmem:[%s2 + $0x1f0] sm:$0xf]
    %v8208 = vld [vmem:[%s2 + $0x1f4] sm:$0xf]
    %v8209 = vld [vmem:[%s2 + $0x1f8] sm:$0xf]
    %v8210 = vld [vmem:[%s2 + $0x1fc] sm:$0xf]
    %v8211 = vld [vmem:[%s2 + $0x200] sm:$0xf]
    %v8212 = vld [vmem:[%s2 + $0x204] sm:$0xf]
    %v8213 = vld [vmem:[%s2 + $0x208] sm:$0xf]
    %v8214 = vld [vmem:[%s2 + $0x20c] sm:$0xf]
    %v8215 = vld [vmem:[%s2 + $0x210] sm:$0xf]
    %v8216 = vld [vmem:[%s2 + $0x214] sm:$0xf]
    %v8217 = vld [vmem:[%s2 + $0x218] sm:$0xf]
    %v8218 = vld [vmem:[%s2 + $0x21c] sm:$0xf]
    %v8219 = vld [vmem:[%s2 + $0x220] sm:$0xf]
    %v8220 = vld [vmem:[%s2 + $0x224] sm:$0xf]
    %v8221 = vld [vmem:[%s2 + $0x228] sm:$0xf]
    %v8222 = vld [vmem:[%s2 + $0x22c] sm:$0xf]
    %v8223 = vld [vmem:[%s2 + $0x230] sm:$0xf]
    %v8224 = vld [vmem:[%s2 + $0x234] sm:$0xf]
    %v8225 = vld [vmem:[%s2 + $0x238] sm:$0xf]
    %v8226 = vld [vmem:[%s2 + $0x23c] sm:$0xf]
    %v8227 = vld [vmem:[%s2 + $0x240] sm:$0xf]
    %v8228 = vld [vmem:[%s2 + $0x244] sm:$0xf]
    %v8229 = vld [vmem:[%s2 + $0x248] sm:$0xf]
    %v8230 = vld [vmem:[%s2 + $0x24c] sm:$0xf]
    %v8231 = vld [vmem:[%s2 + $0x250] sm:$0xf]
    %v8232 = vld [vmem:[%s2 + $0x254] sm:$0xf]
    %v8233 = vld [vmem:[%s2 + $0x258] sm:$0xf]
    %v8234 = vld [vmem:[%s2 + $0x25c] sm:$0xf]
    %v8235 = vld [vmem:[%s2 + $0x260] sm:$0xf]
    %v8236 = vld [vmem:[%s2 + $0x264] sm:$0xf]
    %v8237 = vld [vmem:[%s2 + $0x268] sm:$0xf]
    %v8238 = vld [vmem:[%s2 + $0x26c] sm:$0xf]
    %v8239 = vld [vmem:[%s2 + $0x270] sm:$0xf]
    %v8240 = vld [vmem:[%s2 + $0x274] sm:$0xf]
    %v8241 = vld [vmem:[%s2 + $0x278] sm:$0xf]
    %v8242 = vld [vmem:[%s2 + $0x27c] sm:$0xf]
    %v8243 = vld [vmem:[%s2 + $0x280] sm:$0xf]
    %v8244 = vld [vmem:[%s2 + $0x284] sm:$0xf]
    %v8245 = vld [vmem:[%s2 + $0x288] sm:$0xf]
    %v8246 = vld [vmem:[%s2 + $0x28c] sm:$0xf]
    %v8247 = vld [vmem:[%s2 + $0x290] sm:$0xf]
    %v8248 = vld [vmem:[%s2 + $0x294] sm:$0xf]
    %v8249 = vld [vmem:[%s2 + $0x298] sm:$0xf]
    %v8250 = vld [vmem:[%s2 + $0x29c] sm:$0xf]
    %v8251 = vld [vmem:[%s2 + $0x2a0] sm:$0xf]
    %v8252 = vld [vmem:[%s2 + $0x2a4] sm:$0xf]
    %v8253 = vld [vmem:[%s2 + $0x2a8] sm:$0xf]
    %v8254 = vld [vmem:[%s2 + $0x2ac] sm:$0xf]
    %v8255 = vld [vmem:[%s2 + $0x2b0] sm:$0xf]
    %v8256 = vld [vmem:[%s2 + $0x2b4] sm:$0xf]
    %s8257 = scalar_lea.vmem %s3, 1
    %v8258 = vld [vmem:[%s8257] ss:$8 sm:$0x7]
    %v8260 = vlaneseq
    %v8261 = vshrl.u32 %v8260, 7
    %v8262 = vsub.s32 0, %v8261
    %v8263 = vrot.slane %v8258, %v8262
    %v8264 = vlaneseq
    %v8265 = vshrl.u32 %v8264, 7
    %v8266 = vsub.s32 1, %v8265
    %v8267 = vrot.slane %v8258, %v8266
    %v8268 = vlaneseq
    %v8269 = vshrl.u32 %v8268, 7
    %v8270 = vsub.s32 2, %v8269
    %v8271 = vrot.slane %v8258, %v8270
    %v8275 = vpack.c.bf16 %v8263, %v8263
    %v8276 = vpack.c.bf16 %v8267, %v8267
    %v8277 = vpack.c.bf16 %v8271, %v8271
    %v8278 = vld [vmem:[%s3 + $0x2] ss:$0 sm:$0xff]
    %v8279 = vld [vmem:[%s3 + $0x3] ss:$0 sm:$0xff]
    %v8280 = vld [vmem:[%s3 + $0x4] ss:$0 sm:$0xff]
    %v8281 = vld [vmem:[%s3 + $0x5] ss:$0 sm:$0xff]
    %v8282 = vpack.c.bf16 %v8079, %v8079
    %v8283 = vpack.c.bf16 %v8080, %v8080
    %v8284 = vpack.c.bf16 %v8081, %v8081
    %v8285 = vpack.c.bf16 %v8082, %v8082
    %v8324 = vunpack.c.l.b16 %v8147
    %v8325 = vunpack.c.l.b16 %v8148
    %v8326 = vunpack.c.l.b16 %v8149
    %v8327 = vunpack.c.l.b16 %v8150
    %v8328 = vunpack.c.l.b16 %v8151
    %v8329 = vunpack.c.l.b16 %v8152
    %v8330 = vunpack.c.l.b16 %v8153
    %v8331 = vunpack.c.l.b16 %v8154
    %v8332 = vunpack.c.l.b16 %v8155
    %v8333 = vunpack.c.l.b16 %v8156
    %v8334 = vunpack.c.l.b16 %v8157
    %v8335 = vunpack.c.l.b16 %v8158
    %v8336 = vunpack.c.l.b16 %v8159
    %v8337 = vunpack.c.l.b16 %v8160
    %v8338 = vunpack.c.l.b16 %v8161
    %v8339 = vunpack.c.l.b16 %v8162
    %v8340 = vunpack.c.l.b16 %v8163
    %v8341 = vunpack.c.l.b16 %v8164
    %v8342 = vunpack.c.l.b16 %v8165
    %v8343 = vunpack.c.l.b16 %v8166
    %v8344 = vunpack.c.l.b16 %v8167
    %v8345 = vunpack.c.l.b16 %v8168
    %v8346 = vunpack.c.l.b16 %v8169
    %v8347 = vunpack.c.l.b16 %v8170
    %v8348 = vunpack.c.l.b16 %v8171
    %v8349 = vunpack.c.l.b16 %v8172
    %v8350 = vunpack.c.l.b16 %v8173
    %v8351 = vunpack.c.l.b16 %v8174
    %v8352 = vunpack.c.l.b16 %v8175
    %v8353 = vunpack.c.l.b16 %v8176
    %v8354 = vunpack.c.l.b16 %v8177
    %v8355 = vunpack.c.l.b16 %v8178
    %v8356 = vunpack.c.l.b16 %v8179
    %v8357 = vunpack.c.l.b16 %v8180
    %v8358 = vunpack.c.l.b16 %v8181
    %v8359 = vunpack.c.l.b16 %v8182
    %v8360 = vunpack.c.l.b16 %v8183
    %v8361 = vunpack.c.l.b16 %v8184
    %v8362 = vpack.c.b16 %v8325, %v8324
    %v8363 = vpack.c.b16 %v8327, %v8326
    %v8364 = vpack.c.b16 %v8329, %v8328
    %v8365 = vpack.c.b16 %v8331, %v8330
    %v8366 = vpack.c.b16 %v8333, %v8332
    %v8367 = vpack.c.b16 %v8335, %v8334
    %v8368 = vpack.c.b16 %v8337, %v8336
    %v8369 = vpack.c.b16 %v8339, %v8338
    %v8370 = vpack.c.b16 %v8341, %v8340
    %v8371 = vpack.c.b16 %v8343, %v8342
    %v8372 = vpack.c.b16 %v8345, %v8344
    %v8373 = vpack.c.b16 %v8347, %v8346
    %v8374 = vpack.c.b16 %v8349, %v8348
    %v8375 = vpack.c.b16 %v8351, %v8350
    %v8376 = vpack.c.b16 %v8353, %v8352
    %v8377 = vpack.c.b16 %v8355, %v8354
    %v8378 = vpack.c.b16 %v8357, %v8356
    %v8379 = vpack.c.b16 %v8359, %v8358
    %v8380 = vpack.c.b16 %v8361, %v8360
    %vm8400 = vcmask 392192
    %v8402 = vsel %vm8400, %v8277, 0
    %8404 = vmatprep.subr.bf16.mxu0 0
    %8405 = vmatpush1.bf16.msra.mxu0 %v8362
    %8406 = vmatprep.subr.bf16.mxu0 0
    %8407 = vmatpush1.bf16.msra.mxu0 %v8363
    %8408 = vmatprep.subr.bf16.mxu0 0
    %8409 = vmatpush1.bf16.msra.mxu0 %v8364
    %8410 = vmatprep.subr.bf16.mxu0 0
    %8411 = vmatpush1.bf16.msra.mxu0 %v8365
    %8412 = vmatprep.subr.bf16.mxu0 0
    %8413 = vmatpush1.bf16.msra.mxu0 %v8366
    %8414 = vmatprep.subr.bf16.mxu0 0
    %8415 = vmatpush1.bf16.msra.mxu0 %v8367
    %8416 = vmatprep.subr.bf16.mxu0 0
    %8417 = vmatpush1.bf16.msra.mxu0 %v8368
    %8418 = vmatprep.subr.bf16.mxu0 0
    %8419 = vmatpush1.bf16.msra.mxu0 %v8369
    %8420 = vmatprep.subr.bf16.mxu0 0
    %8421 = vmatpush1.bf16.msra.mxu0 %v8370
    %8422 = vmatprep.subr.bf16.mxu0 0
    %8423 = vmatpush1.bf16.msra.mxu0 %v8371
    %8424 = vmatprep.subr.bf16.mxu0 0
    %8425 = vmatpush1.bf16.msra.mxu0 %v8372
    %8426 = vmatprep.subr.bf16.mxu0 0
    %8427 = vmatpush1.bf16.msra.mxu0 %v8373
    %8428 = vmatprep.subr.bf16.mxu0 0
    %8429 = vmatpush1.bf16.msra.mxu0 %v8374
    %8430 = vmatprep.subr.bf16.mxu0 0
    %8431 = vmatpush1.bf16.msra.mxu0 %v8375
    %8432 = vmatprep.subr.bf16.mxu0 0
    %8433 = vmatpush1.bf16.msra.mxu0 %v8376
    %8434 = vmatprep.subr.bf16.mxu0 0
    %8435 = vmatpush1.bf16.msra.mxu0 %v8377
    %8436 = vmatprep.mubr.bf16.mxu0 %v8276
    %8437 = vmatmul.mubr.bf16.gmra.mrb[0].mxu0 %v8275
    %v8438 = vpop.f32.mrb[0].mxu0
    %v8439 = vadd.f32 0.0, %v8438
    %v8440 = vpop.f32.mrb[0].mxu0
    %v8441 = vpop.f32.mrb[0].mxu0
    %v8442 = vpop.f32.mrb[0].mxu0
    %8443 = vdwg.mxu0
    %8444 = vmatprep.subr.bf16.mxu0 0
    %8445 = vmatpush1.bf16.msra.mxu0 %v8378
    %8446 = vmatprep.subr.bf16.mxu0 0
    %8447 = vmatpush1.bf16.msra.mxu0 %v8379
    %8448 = vmatprep.subr.bf16.mxu0 0
    %8449 = vmatpush1.bf16.msra.mxu0 %v8380
    %8450 = vmatprep.subr.bf16.mxu0 0
    %8451 = vmatpush1.bf16.msra.mxu0 0
    %8452 = vmatprep.subr.bf16.mxu0 0
    %8453 = vmatpush1.bf16.msra.mxu0 0
    %8454 = vmatprep.subr.bf16.mxu0 0
    %8455 = vmatpush1.bf16.msra.mxu0 0
    %8456 = vmatprep.subr.bf16.mxu0 0
    %8457 = vmatpush1.bf16.msra.mxu0 0
    %8458 = vmatprep.subr.bf16.mxu0 0
    %8459 = vmatpush1.bf16.msra.mxu0 0
    %8460 = vmatprep.subr.bf16.mxu0 0
    %8461 = vmatpush1.bf16.msra.mxu0 0
    %8462 = vmatprep.subr.bf16.mxu0 0
    %8463 = vmatpush1.bf16.msra.mxu0 0
    %8464 = vmatprep.subr.bf16.mxu0 0
    %8465 = vmatpush1.bf16.msra.mxu0 0
    %8466 = vmatprep.subr.bf16.mxu0 0
    %8467 = vmatpush1.bf16.msra.mxu0 0
    %8468 = vmatprep.subr.bf16.mxu0 0
    %8469 = vmatpush1.bf16.msra.mxu0 0
    %8470 = vmatprep.subr.bf16.mxu0 0
    %8471 = vmatpush1.bf16.msra.mxu0 0
    %8472 = vmatprep.subr.bf16.mxu0 0
    %8473 = vmatpush1.bf16.msra.mxu0 0
    %8474 = vmatprep.subr.bf16.mxu0 0
    %8475 = vmatpush1.bf16.msra.mxu0 0
    %8476 = vmatprep.mubr.bf16.mxu0 0
    %8477 = vmatmul.mubr.bf16.gmra.mrb[0].mxu0 %v8402
    %v8478 = vpop.f32.mrb[0].mxu0
    %v8479 = vadd.f32 %v8439, %v8478
    %v8480 = vpop.f32.mrb[0].mxu0
    %v8481 = vpop.f32.mrb[0].mxu0
    %v8482 = vpop.f32.mrb[0].mxu0
    %8483 = vdwg.mxu0
    %v8484 = vlaneseq
    %v8485 = vshrl.u32 %v8484, 7
    %v8486 = vsub.s32 0, %v8485
    %v8487 = vrot.slane %v8479, %v8486
    %v8552 = vunpack.c.l.b16 %v8083
    %v8553 = vunpack.c.l.b16 %v8084
    %v8554 = vunpack.c.l.b16 %v8085
    %v8555 = vunpack.c.l.b16 %v8086
    %v8556 = vunpack.c.l.b16 %v8087
    %v8557 = vunpack.c.l.b16 %v8088
    %v8558 = vunpack.c.l.b16 %v8089
    %v8559 = vunpack.c.l.b16 %v8090
    %v8560 = vunpack.c.l.b16 %v8091
    %v8561 = vunpack.c.l.b16 %v8092
    %v8562 = vunpack.c.l.b16 %v8093
    %v8563 = vunpack.c.l.b16 %v8094
    %v8564 = vunpack.c.l.b16 %v8095
    %v8565 = vunpack.c.l.b16 %v8096
    %v8566 = vunpack.c.l.b16 %v8097
    %v8567 = vunpack.c.l.b16 %v8098
    %v8568 = vunpack.c.l.b16 %v8099
    %v8569 = vunpack.c.l.b16 %v8100
    %v8570 = vunpack.c.l.b16 %v8101
    %v8571 = vunpack.c.l.b16 %v8102
    %v8572 = vunpack.c.l.b16 %v8103
    %v8573 = vunpack.c.l.b16 %v8104
    %v8574 = vunpack.c.l.b16 %v8105
    %v8575 = vunpack.c.l.b16 %v8106
    %v8576 = vunpack.c.l.b16 %v8107
    %v8577 = vunpack.c.l.b16 %v8108
    %v8578 = vunpack.c.l.b16 %v8109
    %v8579 = vunpack.c.l.b16 %v8110
    %v8580 = vunpack.c.l.b16 %v8111
    %v8581 = vunpack.c.l.b16 %v8112
    %v8582 = vunpack.c.l.b16 %v8113
    %v8583 = vunpack.c.l.b16 %v8114
    %v8584 = vunpack.c.l.b16 %v8115
    %v8585 = vunpack.c.l.b16 %v8116
    %v8586 = vunpack.c.l.b16 %v8117
    %v8587 = vunpack.c.l.b16 %v8118
    %v8588 = vunpack.c.l.b16 %v8119
    %v8589 = vunpack.c.l.b16 %v8120
    %v8590 = vunpack.c.l.b16 %v8121
    %v8591 = vunpack.c.l.b16 %v8122
    %v8592 = vunpack.c.l.b16 %v8123
    %v8593 = vunpack.c.l.b16 %v8124
    %v8594 = vunpack.c.l.b16 %v8125
    %v8595 = vunpack.c.l.b16 %v8126
    %v8596 = vunpack.c.l.b16 %v8127
    %v8597 = vunpack.c.l.b16 %v8128
    %v8598 = vunpack.c.l.b16 %v8129
    %v8599 = vunpack.c.l.b16 %v8130
    %v8600 = vunpack.c.l.b16 %v8131
    %v8601 = vunpack.c.l.b16 %v8132
    %v8602 = vunpack.c.l.b16 %v8133
    %v8603 = vunpack.c.l.b16 %v8134
    %v8604 = vunpack.c.l.b16 %v8135
    %v8605 = vunpack.c.l.b16 %v8136
    %v8606 = vunpack.c.l.b16 %v8137
    %v8607 = vunpack.c.l.b16 %v8138
    %v8608 = vunpack.c.l.b16 %v8139
    %v8609 = vunpack.c.l.b16 %v8140
    %v8610 = vunpack.c.l.b16 %v8141
    %v8611 = vunpack.c.l.b16 %v8142
    %v8612 = vunpack.c.l.b16 %v8143
    %v8613 = vunpack.c.l.b16 %v8144
    %v8614 = vunpack.c.l.b16 %v8145
    %v8615 = vunpack.c.l.b16 %v8146
    %v8616 = vpack.c.b16 %v8553, %v8552
    %v8617 = vpack.c.b16 %v8555, %v8554
    %v8618 = vpack.c.b16 %v8557, %v8556
    %v8619 = vpack.c.b16 %v8559, %v8558
    %v8620 = vpack.c.b16 %v8561, %v8560
    %v8621 = vpack.c.b16 %v8563, %v8562
    %v8622 = vpack.c.b16 %v8565, %v8564
    %v8623 = vpack.c.b16 %v8567, %v8566
    %v8624 = vpack.c.b16 %v8569, %v8568
    %v8625 = vpack.c.b16 %v8571, %v8570
    %v8626 = vpack.c.b16 %v8573, %v8572
    %v8627 = vpack.c.b16 %v8575, %v8574
    %v8628 = vpack.c.b16 %v8577, %v8576
    %v8629 = vpack.c.b16 %v8579, %v8578
    %v8630 = vpack.c.b16 %v8581, %v8580
    %v8631 = vpack.c.b16 %v8583, %v8582
    %v8632 = vpack.c.b16 %v8585, %v8584
    %v8633 = vpack.c.b16 %v8587, %v8586
    %v8634 = vpack.c.b16 %v8589, %v8588
    %v8635 = vpack.c.b16 %v8591, %v8590
    %v8636 = vpack.c.b16 %v8593, %v8592
    %v8637 = vpack.c.b16 %v8595, %v8594
    %v8638 = vpack.c.b16 %v8597, %v8596
    %v8639 = vpack.c.b16 %v8599, %v8598
    %v8640 = vpack.c.b16 %v8601, %v8600
    %v8641 = vpack.c.b16 %v8603, %v8602
    %v8642 = vpack.c.b16 %v8605, %v8604
    %v8643 = vpack.c.b16 %v8607, %v8606
    %v8644 = vpack.c.b16 %v8609, %v8608
    %v8645 = vpack.c.b16 %v8611, %v8610
    %v8646 = vpack.c.b16 %v8613, %v8612
    %v8647 = vpack.c.b16 %v8615, %v8614
    %8680 = vmatprep.subr.bf16.mxu0 0
    %8681 = vmatpush1.bf16.msra.mxu0 %v8616
    %8682 = vmatprep.subr.bf16.mxu0 0
    %8683 = vmatpush1.bf16.msra.mxu0 %v8617
    %8684 = vmatprep.subr.bf16.mxu0 0
    %8685 = vmatpush1.bf16.msra.mxu0 %v8618
    %8686 = vmatprep.subr.bf16.mxu0 0
    %8687 = vmatpush1.bf16.msra.mxu0 %v8619
    %8688 = vmatprep.subr.bf16.mxu0 0
    %8689 = vmatpush1.bf16.msra.mxu0 %v8620
    %8690 = vmatprep.subr.bf16.mxu0 0
    %8691 = vmatpush1.bf16.msra.mxu0 %v8621
    %8692 = vmatprep.subr.bf16.mxu0 0
    %8693 = vmatpush1.bf16.msra.mxu0 %v8622
    %8694 = vmatprep.subr.bf16.mxu0 0
    %8695 = vmatpush1.bf16.msra.mxu0 %v8623
    %8696 = vmatprep.subr.bf16.mxu0 0
    %8697 = vmatpush1.bf16.msra.mxu0 %v8624
    %8698 = vmatprep.subr.bf16.mxu0 0
    %8699 = vmatpush1.bf16.msra.mxu0 %v8625
    %8700 = vmatprep.subr.bf16.mxu0 0
    %8701 = vmatpush1.bf16.msra.mxu0 %v8626
    %8702 = vmatprep.subr.bf16.mxu0 0
    %8703 = vmatpush1.bf16.msra.mxu0 %v8627
    %8704 = vmatprep.subr.bf16.mxu0 0
    %8705 = vmatpush1.bf16.msra.mxu0 %v8628
    %8706 = vmatprep.subr.bf16.mxu0 0
    %8707 = vmatpush1.bf16.msra.mxu0 %v8629
    %8708 = vmatprep.subr.bf16.mxu0 0
    %8709 = vmatpush1.bf16.msra.mxu0 %v8630
    %8710 = vmatprep.subr.bf16.mxu0 0
    %8711 = vmatpush1.bf16.msra.mxu0 %v8631
    %8712 = vmatprep.mubr.bf16.mxu0 %v8283
    %8713 = vmatmul.mubr.bf16.gmra.mrb[0].mxu0 %v8282
    %v8714 = vpop.f32.mrb[0].mxu0
    %v8715 = vadd.f32 %v8487, %v8714
    %v8716 = vpop.f32.mrb[0].mxu0
    %v8717 = vpop.f32.mrb[0].mxu0
    %v8718 = vpop.f32.mrb[0].mxu0
    %8719 = vdwg.mxu0
    %8720 = vmatprep.subr.bf16.mxu0 0
    %8721 = vmatpush1.bf16.msra.mxu0 %v8632
    %8722 = vmatprep.subr.bf16.mxu0 0
    %8723 = vmatpush1.bf16.msra.mxu0 %v8633
    %8724 = vmatprep.subr.bf16.mxu0 0
    %8725 = vmatpush1.bf16.msra.mxu0 %v8634
    %8726 = vmatprep.subr.bf16.mxu0 0
    %8727 = vmatpush1.bf16.msra.mxu0 %v8635
    %8728 = vmatprep.subr.bf16.mxu0 0
    %8729 = vmatpush1.bf16.msra.mxu0 %v8636
    %8730 = vmatprep.subr.bf16.mxu0 0
    %8731 = vmatpush1.bf16.msra.mxu0 %v8637
    %8732 = vmatprep.subr.bf16.mxu0 0
    %8733 = vmatpush1.bf16.msra.mxu0 %v8638
    %8734 = vmatprep.subr.bf16.mxu0 0
    %8735 = vmatpush1.bf16.msra.mxu0 %v8639
    %8736 = vmatprep.subr.bf16.mxu0 0
    %8737 = vmatpush1.bf16.msra.mxu0 %v8640
    %8738 = vmatprep.subr.bf16.mxu0 0
    %8739 = vmatpush1.bf16.msra.mxu0 %v8641
    %8740 = vmatprep.subr.bf16.mxu0 0
    %8741 = vmatpush1.bf16.msra.mxu0 %v8642
    %8742 = vmatprep.subr.bf16.mxu0 0
    %8743 = vmatpush1.bf16.msra.mxu0 %v8643
    %8744 = vmatprep.subr.bf16.mxu0 0
    %8745 = vmatpush1.bf16.msra.mxu0 %v8644
    %8746 = vmatprep.subr.bf16.mxu0 0
    %8747 = vmatpush1.bf16.msra.mxu0 %v8645
    %8748 = vmatprep.subr.bf16.mxu0 0
    %8749 = vmatpush1.bf16.msra.mxu0 %v8646
    %8750 = vmatprep.subr.bf16.mxu0 0
    %8751 = vmatpush1.bf16.msra.mxu0 %v8647
    %8752 = vmatprep.mubr.bf16.mxu0 %v8285
    %8753 = vmatmul.mubr.bf16.gmra.mrb[0].mxu0 %v8284
    %v8754 = vpop.f32.mrb[0].mxu0
    %v8755 = vadd.f32 %v8715, %v8754
    %v8756 = vpop.f32.mrb[0].mxu0
    %v8757 = vpop.f32.mrb[0].mxu0
    %v8758 = vpop.f32.mrb[0].mxu0
    %8759 = vdwg.mxu0
    %v8760 = vadd.f32 %v8755, %v8278
    %v8761 = vtanh.pop %v8760
    %v8762 = vpack.c.bf16 %v8761, %v8761
    %v8767 = vunpack.c.l.b16 %v8185
    %v8768 = vunpack.c.l.b16 %v8186
    %v8769 = vunpack.c.l.b16 %v8187
    %v8770 = vunpack.c.l.b16 %v8188
    %v8771 = vpack.c.b16 %v8768, %v8767
    %v8772 = vpack.c.b16 %v8770, %v8769
    %vm8775 = vcmask 261120
    %v8777 = vsel %vm8775, %v8762, 0
    %8779 = vmatprep.subr.bf16.mxu0 0
    %8780 = vmatpush1.bf16.msra.mxu0 %v8771
    %8781 = vmatprep.subr.bf16.mxu0 0
    %8782 = vmatpush1.bf16.msra.mxu0 %v8772
    %8783 = vmatprep.subr.bf16.mxu0 0
    %8784 = vmatpush1.bf16.msra.mxu0 0
    %8785 = vmatprep.subr.bf16.mxu0 0
    %8786 = vmatpush1.bf16.msra.mxu0 0
    %8787 = vmatprep.subr.bf16.mxu0 0
    %8788 = vmatpush1.bf16.msra.mxu0 0
    %8789 = vmatprep.subr.bf16.mxu0 0
    %8790 = vmatpush1.bf16.msra.mxu0 0
    %8791 = vmatprep.subr.bf16.mxu0 0
    %8792 = vmatpush1.bf16.msra.mxu0 0
    %8793 = vmatprep.subr.bf16.mxu0 0
    %8794 = vmatpush1.bf16.msra.mxu0 0
    %8795 = vmatprep.subr.bf16.mxu0 0
    %8796 = vmatpush1.bf16.msra.mxu0 0
    %8797 = vmatprep.subr.bf16.mxu0 0
    %8798 = vmatpush1.bf16.msra.mxu0 0
    %8799 = vmatprep.subr.bf16.mxu0 0
    %8800 = vmatpush1.bf16.msra.mxu0 0
    %8801 = vmatprep.subr.bf16.mxu0 0
    %8802 = vmatpush1.bf16.msra.mxu0 0
    %8803 = vmatprep.subr.bf16.mxu0 0
    %8804 = vmatpush1.bf16.msra.mxu0 0
    %8805 = vmatprep.subr.bf16.mxu0 0
    %8806 = vmatpush1.bf16.msra.mxu0 0
    %8807 = vmatprep.subr.bf16.mxu0 0
    %8808 = vmatpush1.bf16.msra.mxu0 0
    %8809 = vmatprep.subr.bf16.mxu0 0
    %8810 = vmatpush1.bf16.msra.mxu0 0
    %8811 = vmatprep.mubr.bf16.mxu0 0
    %8812 = vmatmul.mubr.bf16.gmra.mrb[0].mxu0 %v8777
    %v8813 = vpop.f32.mrb[0].mxu0
    %v8814 = vadd.f32 %v8279, %v8813
    %v8815 = vpop.f32.mrb[0].mxu0
    %v8816 = vpop.f32.mrb[0].mxu0
    %v8817 = vpop.f32.mrb[0].mxu0
    %8818 = vdwg.mxu0
    %v8819 = vtanh.pop %v8814
    %v8820 = vpack.c.bf16 %v8819, %v8819
    %v8825 = vunpack.c.l.b16 %v8189
    %v8826 = vunpack.c.l.b16 %v8190
    %v8827 = vunpack.c.l.b16 %v8191
    %v8828 = vunpack.c.l.b16 %v8192
    %v8829 = vpack.c.b16 %v8826, %v8825
    %v8830 = vpack.c.b16 %v8828, %v8827
    %v8834 = vsel %vm8775, %v8820, 0
    %8836 = vmatprep.subr.bf16.mxu0 0
    %8837 = vmatpush1.bf16.msra.mxu0 %v8829
    %8838 = vmatprep.subr.bf16.mxu0 0
    %8839 = vmatpush1.bf16.msra.mxu0 %v8830
    %8840 = vmatprep.subr.bf16.mxu0 0
    %8841 = vmatpush1.bf16.msra.mxu0 0
    %8842 = vmatprep.subr.bf16.mxu0 0
    %8843 = vmatpush1.bf16.msra.mxu0 0
    %8844 = vmatprep.subr.bf16.mxu0 0
    %8845 = vmatpush1.bf16.msra.mxu0 0
    %8846 = vmatprep.subr.bf16.mxu0 0
    %8847 = vmatpush1.bf16.msra.mxu0 0
    %8848 = vmatprep.subr.bf16.mxu0 0
    %8849 = vmatpush1.bf16.msra.mxu0 0
    %8850 = vmatprep.subr.bf16.mxu0 0
    %8851 = vmatpush1.bf16.msra.mxu0 0
    %8852 = vmatprep.subr.bf16.mxu0 0
    %8853 = vmatpush1.bf16.msra.mxu0 0
    %8854 = vmatprep.subr.bf16.mxu0 0
    %8855 = vmatpush1.bf16.msra.mxu0 0
    %8856 = vmatprep.subr.bf16.mxu0 0
    %8857 = vmatpush1.bf16.msra.mxu0 0
    %8858 = vmatprep.subr.bf16.mxu0 0
    %8859 = vmatpush1.bf16.msra.mxu0 0
    %8860 = vmatprep.subr.bf16.mxu0 0
    %8861 = vmatpush1.bf16.msra.mxu0 0
    %8862 = vmatprep.subr.bf16.mxu0 0
    %8863 = vmatpush1.bf16.msra.mxu0 0
    %8864 = vmatprep.subr.bf16.mxu0 0
    %8865 = vmatpush1.bf16.msra.mxu0 0
    %8866 = vmatprep.subr.bf16.mxu0 0
    %8867 = vmatpush1.bf16.msra.mxu0 0
    %8868 = vmatprep.mubr.bf16.mxu0 0
    %8869 = vmatmul.mubr.bf16.gmra.mrb[0].mxu0 %v8834
    %v8870 = vpop.f32.mrb[0].mxu0
    %v8871 = vadd.f32 0.0, %v8870
    %v8872 = vpop.f32.mrb[0].mxu0
    %v8873 = vpop.f32.mrb[0].mxu0
    %v8874 = vpop.f32.mrb[0].mxu0
    %8875 = vdwg.mxu0
    %v8876 = vadd.f32 %v8871, %v8280
    %vm8877 = vcmask 7168
    %v8878 = vsel %vm8877, %v8876, -inf
    %v8879 = vrot.slane %v8878, 4
    %v8880 = vmax.f32 %v8878, %v8879
    %v8881 = vrot.slane %v8880, 2
    %v8882 = vmax.f32 %v8880, %v8881
    %v8883 = vrot.slane %v8882, 1
    %v8884 = vmax.f32 %v8882, %v8883
    %v8885 = vsub.f32 %v8876, %v8884
    %v8886 = vmul.f32 %v8885, 1.442695
    %v8887 = vpow.pop %v8886
    %v8888 = vsel %vm8877, %v8887, 0.0
    %v8889 = vrot.slane %v8888, 4
    %v8890 = vadd.f32 %v8888, %v8889
    %v8891 = vrot.slane %v8890, 2
    %v8892 = vadd.f32 %v8890, %v8891
    %v8893 = vrot.slane %v8892, 1
    %v8894 = vadd.f32 %v8892, %v8893
    %v8895 = vlog2.pop %v8894
    %v8896 = vmul.f32 %v8895, 0.6931472
    %v8897 = vadd.f32 %v8884, %v8896
    %v8898 = vsub.f32 %v8876, %v8897
    %8900 = vset.pattern.permute.xlu0 0
    %8901 = vperm.xlu0 %8900, %v8898
    %v8902 = vpop.permute.xlu0 %8901
    %v8904 = vmul.f32 %v8079, %v8902
    %v8905 = vmul.f32 %v8080, %v8902
    %v8906 = vmul.f32 %v8081, %v8902
    %v8907 = vmul.f32 %v8082, %v8902
    %v8908 = vrot.slane %v8904, 4
    %v8909 = vadd.f32 %v8904, %v8908
    %v8910 = vrot.slane %v8909, 2
    %v8911 = vadd.f32 %v8909, %v8910
    %v8912 = vrot.slane %v8911, 1
    %v8913 = vadd.f32 %v8911, %v8912
    %v8914 = vrot.slane %v8905, 4
    %v8915 = vadd.f32 %v8905, %v8914
    %v8916 = vrot.slane %v8915, 2
    %v8917 = vadd.f32 %v8915, %v8916
    %v8918 = vrot.slane %v8917, 1
    %v8919 = vadd.f32 %v8917, %v8918
    %v8920 = vrot.slane %v8906, 4
    %v8921 = vadd.f32 %v8906, %v8920
    %v8922 = vrot.slane %v8921, 2
    %v8923 = vadd.f32 %v8921, %v8922
    %v8924 = vrot.slane %v8923, 1
    %v8925 = vadd.f32 %v8923, %v8924
    %v8926 = vrot.slane %v8907, 4
    %v8927 = vadd.f32 %v8907, %v8926
    %v8928 = vrot.slane %v8927, 2
    %v8929 = vadd.f32 %v8927, %v8928
    %v8930 = vrot.slane %v8929, 1
    %v8931 = vadd.f32 %v8929, %v8930
    %v8932 = vpack.c.bf16 %v8913, %v8913
    %v8933 = vpack.c.bf16 %v8919, %v8919
    %v8934 = vpack.c.bf16 %v8925, %v8925
    %v8935 = vpack.c.bf16 %v8931, %v8931
    %v9000 = vunpack.c.l.b16 %v8193
    %v9001 = vunpack.c.l.b16 %v8194
    %v9002 = vunpack.c.l.b16 %v8195
    %v9003 = vunpack.c.l.b16 %v8196
    %v9004 = vunpack.c.l.b16 %v8197
    %v9005 = vunpack.c.l.b16 %v8198
    %v9006 = vunpack.c.l.b16 %v8199
    %v9007 = vunpack.c.l.b16 %v8200
    %v9008 = vunpack.c.l.b16 %v8201
    %v9009 = vunpack.c.l.b16 %v8202
    %v9010 = vunpack.c.l.b16 %v8203
    %v9011 = vunpack.c.l.b16 %v8204
    %v9012 = vunpack.c.l.b16 %v8205
    %v9013 = vunpack.c.l.b16 %v8206
    %v9014 = vunpack.c.l.b16 %v8207
    %v9015 = vunpack.c.l.b16 %v8208
    %v9016 = vunpack.c.l.b16 %v8209
    %v9017 = vunpack.c.l.b16 %v8210
    %v9018 = vunpack.c.l.b16 %v8211
    %v9019 = vunpack.c.l.b16 %v8212
    %v9020 = vunpack.c.l.b16 %v8213
    %v9021 = vunpack.c.l.b16 %v8214
    %v9022 = vunpack.c.l.b16 %v8215
    %v9023 = vunpack.c.l.b16 %v8216
    %v9024 = vunpack.c.l.b16 %v8217
    %v9025 = vunpack.c.l.b16 %v8218
    %v9026 = vunpack.c.l.b16 %v8219
    %v9027 = vunpack.c.l.b16 %v8220
    %v9028 = vunpack.c.l.b16 %v8221
    %v9029 = vunpack.c.l.b16 %v8222
    %v9030 = vunpack.c.l.b16 %v8223
    %v9031 = vunpack.c.l.b16 %v8224
    %v9032 = vunpack.c.l.b16 %v8225
    %v9033 = vunpack.c.l.b16 %v8226
    %v9034 = vunpack.c.l.b16 %v8227
    %v9035 = vunpack.c.l.b16 %v8228
    %v9036 = vunpack.c.l.b16 %v8229
    %v9037 = vunpack.c.l.b16 %v8230
    %v9038 = vunpack.c.l.b16 %v8231
    %v9039 = vunpack.c.l.b16 %v8232
    %v9040 = vunpack.c.l.b16 %v8233
    %v9041 = vunpack.c.l.b16 %v8234
    %v9042 = vunpack.c.l.b16 %v8235
    %v9043 = vunpack.c.l.b16 %v8236
    %v9044 = vunpack.c.l.b16 %v8237
    %v9045 = vunpack.c.l.b16 %v8238
    %v9046 = vunpack.c.l.b16 %v8239
    %v9047 = vunpack.c.l.b16 %v8240
    %v9048 = vunpack.c.l.b16 %v8241
    %v9049 = vunpack.c.l.b16 %v8242
    %v9050 = vunpack.c.l.b16 %v8243
    %v9051 = vunpack.c.l.b16 %v8244
    %v9052 = vunpack.c.l.b16 %v8245
    %v9053 = vunpack.c.l.b16 %v8246
    %v9054 = vunpack.c.l.b16 %v8247
    %v9055 = vunpack.c.l.b16 %v8248
    %v9056 = vunpack.c.l.b16 %v8249
    %v9057 = vunpack.c.l.b16 %v8250
    %v9058 = vunpack.c.l.b16 %v8251
    %v9059 = vunpack.c.l.b16 %v8252
    %v9060 = vunpack.c.l.b16 %v8253
    %v9061 = vunpack.c.l.b16 %v8254
    %v9062 = vunpack.c.l.b16 %v8255
    %v9063 = vunpack.c.l.b16 %v8256
    %v9064 = vpack.c.b16 %v9001, %v9000
    %v9065 = vpack.c.b16 %v9003, %v9002
    %v9066 = vpack.c.b16 %v9005, %v9004
    %v9067 = vpack.c.b16 %v9007, %v9006
    %v9068 = vpack.c.b16 %v9009, %v9008
    %v9069 = vpack.c.b16 %v9011, %v9010
    %v9070 = vpack.c.b16 %v9013, %v9012
    %v9071 = vpack.c.b16 %v9015, %v9014
    %v9072 = vpack.c.b16 %v9017, %v9016
    %v9073 = vpack.c.b16 %v9019, %v9018
    %v9074 = vpack.c.b16 %v9021, %v9020
    %v9075 = vpack.c.b16 %v9023, %v9022
    %v9076 = vpack.c.b16 %v9025, %v9024
    %v9077 = vpack.c.b16 %v9027, %v9026
    %v9078 = vpack.c.b16 %v9029, %v9028
    %v9079 = vpack.c.b16 %v9031, %v9030
    %v9080 = vpack.c.b16 %v9033, %v9032
    %v9081 = vpack.c.b16 %v9035, %v9034
    %v9082 = vpack.c.b16 %v9037, %v9036
    %v9083 = vpack.c.b16 %v9039, %v9038
    %v9084 = vpack.c.b16 %v9041, %v9040
    %v9085 = vpack.c.b16 %v9043, %v9042
    %v9086 = vpack.c.b16 %v9045, %v9044
    %v9087 = vpack.c.b16 %v9047, %v9046
    %v9088 = vpack.c.b16 %v9049, %v9048
    %v9089 = vpack.c.b16 %v9051, %v9050
    %v9090 = vpack.c.b16 %v9053, %v9052
    %v9091 = vpack.c.b16 %v9055, %v9054
    %v9092 = vpack.c.b16 %v9057, %v9056
    %v9093 = vpack.c.b16 %v9059, %v9058
    %v9094 = vpack.c.b16 %v9061, %v9060
    %v9095 = vpack.c.b16 %v9063, %v9062
    %9128 = vmatprep.subr.bf16.mxu0 0
    %9129 = vmatpush1.bf16.msra.mxu0 %v9064
    %9130 = vmatprep.subr.bf16.mxu0 0
    %9131 = vmatpush1.bf16.msra.mxu0 %v9065
    %9132 = vmatprep.subr.bf16.mxu0 0
    %9133 = vmatpush1.bf16.msra.mxu0 %v9066
    %9134 = vmatprep.subr.bf16.mxu0 0
    %9135 = vmatpush1.bf16.msra.mxu0 %v9067
    %9136 = vmatprep.subr.bf16.mxu0 0
    %9137 = vmatpush1.bf16.msra.mxu0 %v9068
    %9138 = vmatprep.subr.bf16.mxu0 0
    %9139 = vmatpush1.bf16.msra.mxu0 %v9069
    %9140 = vmatprep.subr.bf16.mxu0 0
    %9141 = vmatpush1.bf16.msra.mxu0 %v9070
    %9142 = vmatprep.subr.bf16.mxu0 0
    %9143 = vmatpush1.bf16.msra.mxu0 %v9071
    %9144 = vmatprep.subr.bf16.mxu0 0
    %9145 = vmatpush1.bf16.msra.mxu0 %v9072
    %9146 = vmatprep.subr.bf16.mxu0 0
    %9147 = vmatpush1.bf16.msra.mxu0 %v9073
    %9148 = vmatprep.subr.bf16.mxu0 0
    %9149 = vmatpush1.bf16.msra.mxu0 %v9074
    %9150 = vmatprep.subr.bf16.mxu0 0
    %9151 = vmatpush1.bf16.msra.mxu0 %v9075
    %9152 = vmatprep.subr.bf16.mxu0 0
    %9153 = vmatpush1.bf16.msra.mxu0 %v9076
    %9154 = vmatprep.subr.bf16.mxu0 0
    %9155 = vmatpush1.bf16.msra.mxu0 %v9077
    %9156 = vmatprep.subr.bf16.mxu0 0
    %9157 = vmatpush1.bf16.msra.mxu0 %v9078
    %9158 = vmatprep.subr.bf16.mxu0 0
    %9159 = vmatpush1.bf16.msra.mxu0 %v9079
    %9160 = vmatprep.mubr.bf16.mxu0 %v8933
    %9161 = vmatmul.mubr.bf16.gmra.mrb[0].mxu0 %v8932
    %v9162 = vpop.f32.mrb[0].mxu0
    %v9163 = vadd.f32 0.0, %v9162
    %v9164 = vpop.f32.mrb[0].mxu0
    %v9165 = vpop.f32.mrb[0].mxu0
    %v9166 = vpop.f32.mrb[0].mxu0
    %9167 = vdwg.mxu0
    %9168 = vmatprep.subr.bf16.mxu0 0
    %9169 = vmatpush1.bf16.msra.mxu0 %v9080
    %9170 = vmatprep.subr.bf16.mxu0 0
    %9171 = vmatpush1.bf16.msra.mxu0 %v9081
    %9172 = vmatprep.subr.bf16.mxu0 0
    %9173 = vmatpush1.bf16.msra.mxu0 %v9082
    %9174 = vmatprep.subr.bf16.mxu0 0
    %9175 = vmatpush1.bf16.msra.mxu0 %v9083
    %9176 = vmatprep.subr.bf16.mxu0 0
    %9177 = vmatpush1.bf16.msra.mxu0 %v9084
    %9178 = vmatprep.subr.bf16.mxu0 0
    %9179 = vmatpush1.bf16.msra.mxu0 %v9085
    %9180 = vmatprep.subr.bf16.mxu0 0
    %9181 = vmatpush1.bf16.msra.mxu0 %v9086
    %9182 = vmatprep.subr.bf16.mxu0 0
    %9183 = vmatpush1.bf16.msra.mxu0 %v9087
    %9184 = vmatprep.subr.bf16.mxu0 0
    %9185 = vmatpush1.bf16.msra.mxu0 %v9088
    %9186 = vmatprep.subr.bf16.mxu0 0
    %9187 = vmatpush1.bf16.msra.mxu0 %v9089
    %9188 = vmatprep.subr.bf16.mxu0 0
    %9189 = vmatpush1.bf16.msra.mxu0 %v9090
    %9190 = vmatprep.subr.bf16.mxu0 0
    %9191 = vmatpush1.bf16.msra.mxu0 %v9091
    %9192 = vmatprep.subr.bf16.mxu0 0
    %9193 = vmatpush1.bf16.msra.mxu0 %v9092
    %9194 = vmatprep.subr.bf16.mxu0 0
    %9195 = vmatpush1.bf16.msra.mxu0 %v9093
    %9196 = vmatprep.subr.bf16.mxu0 0
    %9197 = vmatpush1.bf16.msra.mxu0 %v9094
    %9198 = vmatprep.subr.bf16.mxu0 0
    %9199 = vmatpush1.bf16.msra.mxu0 %v9095
    %9200 = vmatprep.mubr.bf16.mxu0 %v8935
    %9201 = vmatmul.mubr.bf16.gmra.mrb[0].mxu0 %v8934
    %v9202 = vpop.f32.mrb[0].mxu0
    %v9203 = vadd.f32 %v9163, %v9202
    %v9204 = vpop.f32.mrb[0].mxu0
    %v9205 = vpop.f32.mrb[0].mxu0
    %v9206 = vpop.f32.mrb[0].mxu0
    %9207 = vdwg.mxu0
    %v9208 = vadd.f32 %v9203, %v8281
    %vm9209 = vcmask 245760
    %v9210 = vsel %vm9209, %v9208, -inf
    %9211 = vmax.xlane.f32.xlu0 %v9210
    %v9212 = vpop.xlane.xlu0 %9211
    %v9213 = vsub.f32 %v9208, %v9212
    %v9214 = vmul.f32 %v9213, 1.442695
    %v9215 = vpow.pop %v9214
    %v9216 = vsel %vm9209, %v9215, 0.0
    %9217 = vadd.xlane.f32.xlu0 %v9216
    %v9218 = vpop.xlane.xlu0 %9217
    %v9219 = vlog2.pop %v9218
    %v9220 = vmul.f32 %v9219, 0.6931472
    %v9221 = vadd.f32 %v9212, %v9220
    %v9222 = vsub.f32 %v9208, %v9221
    %9223 = vst.msk [vmem:[%s4] sm:$0x1] %vm9209, %v9222
    // Predicated region
    $region14: #{lstmnet_forward.1} parent=1 // pred_check
      _
    $region15: #{lstmnet_forward.1} parent=1 // pred_check_branch
      %9225 = sbr.rel (0) target = $region17
    $region16: #{lstmnet_forward.1} parent=1 // pred_region
      _
    $region17: #{lstmnet_forward.1} parent=1 // pred_fallthru
      _
    // Predicated region
    $region18: #{lstmnet_forward.1} parent=1 // pred_check
      _
    $region19: #{lstmnet_forward.1} parent=1 // pred_check_branch
      %9227 = sbr.rel (0) target = $region21
    $region20: #{lstmnet_forward.1} parent=1 // pred_region
      _
    $region21: #{lstmnet_forward.1} parent=1 // pred_fallthru
      _
  %9228 = vsyncmov [#allocation3]
  %s9229 = vpop.sfrf %9228
  %p9230 = scmp.eq.s32.totalorder %s9229, 0
  %p9231 = pneg %p9230
  %9233 = shalt.err (%p9231)

</llo_original>
